<compile_context>
chip_gen: v7x
topology: tpu7x:2x2x1
jax: 0.10.0
libtpu: 0.0.40
codegen_flags: <defaults>
</compile_context>

<pallas_src>
import math

import jax
import jax.numpy as jnp
from jax.experimental import pallas as pl
from jax.experimental.pallas import tpu as pltpu

LN_EPS = 1e-5
BN_EPS = 1e-5
PERF_EPS = 1e-8
ONE_SIXTH = 1.0 / 6.0
MATMUL_DTYPE = jnp.bfloat16   # MXU operand dtype (f32 accumulation everywhere)


def _vmem_limit_bytes():
    """~half of physical VMEM (64 MiB on v5e/v6e, 32 MiB on v7x), >= default."""
    try:
        cap = pltpu.get_tpu_info().vmem_capacity_bytes
    except Exception:
        cap = 128 * 1024 * 1024
    return int(max(32 * 1024 * 1024, cap // 2))


def _pick_batch_block(B, rows_per_batch, target_rows=1024):
    """Largest divisor of B with Bb*rows_per_batch <= target_rows, capped at
    B//2 so the parallel grid always has >=2 steps (v7x has 2 TensorCores)."""
    cap = max(1, min(B, target_rows // max(1, rows_per_batch)))
    cap = min(cap, max(1, B // 2))
    for bb in range(cap, 0, -1):
        if B % bb == 0:
            return bb
    return 1


def _hswish(t):
    return t * (jnp.clip(t + 3.0, 0.0, 6.0) * ONE_SIXTH)


# --------------------------------------------------------------------------
# Pallas kernel 1: plain linear  y = x @ w + b   (final projection)
#   Tiled over M; N = embed_dim is a multiple of 128 (768 real / 128 demo) so
#   output stores are unmasked full-lane vst.
# --------------------------------------------------------------------------
def _linear_kernel(x_ref, w_ref, b_ref, o_ref):
    x = x_ref[...].astype(MATMUL_DTYPE)
    o_ref[...] = (jnp.dot(x, w_ref[...], preferred_element_type=jnp.float32)
                  + b_ref[...]).astype(o_ref.dtype)


def linear(x, w, b, tm=512):
    # x: (M, K), w: (K, N) [bf16], b: (N,)
    M, K = x.shape
    N = w.shape[1]
    tm = min(tm, M)
    return pl.pallas_call(
        _linear_kernel,
        grid=(pl.cdiv(M, tm),),
        out_shape=jax.ShapeDtypeStruct((M, N), jnp.float32),
        in_specs=[
            pl.BlockSpec((tm, K), lambda i: (i, 0)),
            pl.BlockSpec((K, N), lambda i: (0, 0)),
            pl.BlockSpec((1, N), lambda i: (0, 0)),
        ],
        out_specs=pl.BlockSpec((tm, N), lambda i: (i, 0)),
        compiler_params=pltpu.CompilerParams(
            dimension_semantics=("parallel",),
            vmem_limit_bytes=_vmem_limit_bytes()),
    )(x, w, b.reshape(1, N))


# --------------------------------------------------------------------------
# Pallas kernel 2 (fused): Token_performer_local forward
#   LayerNorm -> fused kqv -> positive random features -> linear attention ->
#   proj (+v skip) -> LocalityFeedForward (1x1 + BN + h_swish, 3x3 depthwise +
#   BN + h_swish, SE, 1x1 + BN, residual) -- all in one grid step per batch
#   block, no HBM round trip of the attention output.
# --------------------------------------------------------------------------
def _make_token_performer_kernel(side):
    H = W = side

    def kernel(x_ref, g_ref, be_ref, wkqv_ref, bkqv_ref, wprm_ref,
               wproj_ref, bproj_ref,
               w1_ref, s1_ref, sh1_ref, wdw_ref, s2_ref, sh2_ref,
               wse1_ref, bse1_ref, wse2_ref, bse2_ref,
               w3_ref, s3_ref, sh3_ref, o_ref):
        Bb, T, D = x_ref.shape
        E = wproj_ref.shape[0]
        m = wprm_ref.shape[1]
        hid = w1_ref.shape[1]
        N = Bb * T
        inv_sqrt_m = 1.0 / math.sqrt(m)

        # ----------------- single_attn(norm1(x)), batch-folded -----------------
        x = x_ref[...].reshape(N, D)          # big M for every matmul

        mu = jnp.mean(x, axis=-1, keepdims=True)
        xc = x - mu
        var = jnp.mean(xc * xc, axis=-1, keepdims=True)
        xn = xc * jax.lax.rsqrt(var + LN_EPS) * g_ref[...] + be_ref[...]

        # Fused kqv projection: one (N, D) @ (D, 3E) MXU pass; the contiguous
        # E-lane extracts below are a few cheap VPU/XLU ops.
        kqv = jnp.dot(xn.astype(MATMUL_DTYPE), wkqv_ref[...],
                      preferred_element_type=jnp.float32) + bkqv_ref[...]
        k = kqv[:, 0 * E:1 * E]
        q = kqv[:, 1 * E:2 * E]
        v = kqv[:, 2 * E:3 * E]

        # Positive random features.  The wprm dot stays f32 (it feeds exp();
        # bf16 rounding there is amplified) -- it is a small K=E matmul.
        def prm_exp(t):
            td = 0.5 * jnp.sum(t * t, axis=-1, keepdims=True)
            wtx = jnp.dot(t, wprm_ref[...], preferred_element_type=jnp.float32)
            return jnp.exp(wtx - td) * inv_sqrt_m

        kp = prm_exp(k).reshape(Bb, T, m)
        qp = prm_exp(q).reshape(Bb, T, m)
        v3 = v.reshape(Bb, T, E)

        ks = jnp.sum(kp, axis=1, keepdims=True)                    # (Bb, 1, m)
        Dn = jnp.sum(qp * ks, axis=-1, keepdims=True)              # (Bb, T, 1)
        # kptv contracts the token (sublane) dim of both operands; each operand
        # feeds exactly one contraction, so an explicit pre-transpose of kp/qp
        # would not save any re-derived XLU work -- let Mosaic fold it in.
        kptv = jnp.einsum('btm,bte->bme', kp, v3,
                          preferred_element_type=jnp.float32)      # (Bb, m, E)
        y = jnp.einsum('btm,bme->bte', qp, kptv,
                       preferred_element_type=jnp.float32)         # (Bb, T, E)

        # approx reciprocal on the EUP (free slot); exact division available
        # for tight parity checks by setting approx=False.
        y2 = y.reshape(N, E) * pl.reciprocal(Dn.reshape(N, 1) + PERF_EPS,
                                             approx=True)
        proj = jnp.dot(y2.astype(MATMUL_DTYPE), wproj_ref[...],
                       preferred_element_type=jnp.float32) + bproj_ref[...]
        attn = v + proj                       # skip with v (dropout = identity)

        # ----------------- LocalityFeedForward, fused in-register ---------------
        t1 = jnp.dot(attn.astype(MATMUL_DTYPE), w1_ref[...],
                     preferred_element_type=jnp.float32)
        t1 = _hswish(t1 * s1_ref[...] + sh1_ref[...])              # (N, hid)

        # Depthwise 3x3 (stride 1, pad 1): shifted + boundary-masked taps on the
        # flat (Bb*H*W, hid) tile.  Only 4 boundary compares total; the centre
        # tap needs no mask and seeds the accumulator.  The masks also keep the
        # shifts exact across the folded batch dimension.
        yy = jax.lax.broadcasted_iota(jnp.int32, (Bb, H, W, 1), 1).reshape(N, 1)
        xx = jax.lax.broadcasted_iota(jnp.int32, (Bb, H, W, 1), 2).reshape(N, 1)
        row_ok = {-1: yy >= 1, 0: None, 1: yy < H - 1}
        col_ok = {-1: xx >= 1, 0: None, 1: xx < W - 1}
        wdw = wdw_ref[...]                                         # (9, hid)
        acc = t1 * wdw[4:5, :]                                     # centre tap
        # TODO(synk): pltpu.roll would push these shifts onto the idle XLU; kept
        # as jnp.roll (slice+concat, known-good lowering) until sublane-rotate
        # of narrow (<128-lane) tiles is validated in interpret mode.
        for dy in (-1, 0, 1):
            for dx in (-1, 0, 1):
                if dy == 0 and dx == 0:
                    continue
                tap = (dy + 1) * 3 + (dx + 1)
                shifted = jnp.roll(t1, -(dy * W + dx), axis=0)
                r, c = row_ok[dy], col_ok[dx]
                valid = c if r is None else (r if c is None else r & c)
                acc = acc + jnp.where(valid, shifted, 0.0) * wdw[tap:tap + 1, :]
        t2 = _hswish(acc * s2_ref[...] + sh2_ref[...])

        # Squeeze-and-Excitation (per image of the folded batch block).  The
        # (hid, hse=4) dots are tiny -- keep them in f32, no bf16 cast.
        t2b = t2.reshape(Bb, T, hid)
        pooled = jnp.mean(t2b, axis=1)                             # (Bb, hid)
        se = jnp.dot(pooled, wse1_ref[...],
                     preferred_element_type=jnp.float32) + bse1_ref[...]
        se = jnp.maximum(se, 0.0)
        se = jnp.dot(se, wse2_ref[...],
                     preferred_element_type=jnp.float32) + bse2_ref[...]
        se = jnp.clip(se + 3.0, 0.0, 6.0) * ONE_SIXTH              # h_sigmoid
        t3 = (t2b * se[:, None, :]).reshape(N, hid)

        out = jnp.dot(t3.astype(MATMUL_DTYPE), w3_ref[...],
                      preferred_element_type=jnp.float32)
        out = attn + (out * s3_ref[...] + sh3_ref[...])            # LFF residual
        # TODO(synk): a lane-dense (Bb, T*E) out block would avoid masked
        # vst.msk stores (E < 128), but requires a sublane->lane relayout of the
        # result tile that Mosaic may only realize via a VMEM round-trip; kept
        # as the (Bb, T, E) block until that relayout is measured.
        o_ref[...] = out.reshape(Bb, T, E).astype(o_ref.dtype)

    return kernel


def token_performer_local(x, p):
    B, T, D = x.shape
    side = math.isqrt(T)
    assert side * side == T
    a, c = p['attn'], p['conv']
    E = a['wproj'].shape[0]
    weights = (a['ln_g'], a['ln_b'], a['wkqv'], a['bkqv'], a['wprm'],
               a['wproj'], a['bproj'],
               c['w1'], c['bn1_s'], c['bn1_t'], c['wdw'], c['bn2_s'], c['bn2_t'],
               c['wse1'], c['bse1'], c['wse2'], c['bse2'],
               c['w3'], c['bn3_s'], c['bn3_t'])
    Bb = _pick_batch_block(B, T)
    in_specs = [pl.BlockSpec((Bb, T, D), lambda i: (i, 0, 0))]
    for wgt in weights:
        in_specs.append(
            pl.BlockSpec(wgt.shape, lambda i, _n=len(wgt.shape): (0,) * _n))
    return pl.pallas_call(
        _make_token_performer_kernel(side),
        grid=(B // Bb,),
        out_shape=jax.ShapeDtypeStruct((B, T, E), jnp.float32),
        in_specs=in_specs,
        out_specs=pl.BlockSpec((Bb, T, E), lambda i: (i, 0, 0)),
        compiler_params=pltpu.CompilerParams(
            dimension_semantics=("parallel",),
            vmem_limit_bytes=_vmem_limit_bytes()),
    )(x, *weights)


# --------------------------------------------------------------------------
# Glue: nn.Unfold emitted directly token-major from an NHWC view
#   (kills the inter-stage (0,2,1) transposes / NCHW reshapes -- pure HBM glue)
# --------------------------------------------------------------------------
def unfold_nhwc(x, k, stride, pad):
    # x: (B, H, W, C) -> (B, L, C*k*k) with PyTorch's channel-major patch
    # ordering (index = c*k*k + ki*k + kj), i.e. soft_split(x_nchw).transpose(1,2)
    B, H, W, C = x.shape
    xp = jnp.pad(x, ((0, 0), (pad, pad), (pad, pad), (0, 0)))
    Ho = (H + 2 * pad - k) // stride + 1
    Wo = (W + 2 * pad - k) // stride + 1
    wins = []
    for ki in range(k):
        for kj in range(k):
            wins.append(xp[:, ki:ki + stride * Ho:stride,
                           kj:kj + stride * Wo:stride, :])
    col = jnp.stack(wins, axis=-1)                  # (B, Ho, Wo, C, k*k)
    return col.reshape(B, Ho * Wo, C * k * k)


# --------------------------------------------------------------------------
# T2T_module_local forward (performer branch)
# --------------------------------------------------------------------------
def t2t_forward(x, params):
    # x: (B, C, H, W) NCHW like the PyTorch module; convert once to NHWC so all
    # inter-stage tensors stay token-major (no NCHW round trips between stages).
    x = jnp.transpose(x, (0, 2, 3, 1))
    x = unfold_nhwc(x, 7, 4, 2)                       # soft_split0 -> (B, L0, 3*49)
    x = token_performer_local(x, params['attn1'])     # (B, L0, token_dim)
    B, N, C = x.shape
    s = math.isqrt(N)
    x = unfold_nhwc(x.reshape(B, s, s, C), 3, 2, 1)   # soft_split1
    x = token_performer_local(x, params['attn2'])     # (B, L1, token_dim)
    B, N, C = x.shape
    s = math.isqrt(N)
    x = unfold_nhwc(x.reshape(B, s, s, C), 3, 2, 1)   # soft_split2 -> (B, L2, 9*td)
    B, L, K = x.shape
    y = linear(x.reshape(B * L, K), params['proj_w'], params['proj_b'])
    return y.reshape(B, L, -1)


# --------------------------------------------------------------------------
# Deterministic parameter construction (synthetic, shapes match the module)
# --------------------------------------------------------------------------
def _bn_fold(key, c):
    k1, k2, k3, k4 = jax.random.split(key, 4)
    gamma = 1.0 + 0.1 * jax.random.normal(k1, (c,), jnp.float32)
    beta = 0.05 * jax.random.normal(k2, (c,), jnp.float32)
    mean = 0.1 * jax.random.normal(k3, (c,), jnp.float32)
    var = 1.0 + 0.1 * jnp.abs(jax.random.normal(k4, (c,), jnp.float32))
    scale = gamma / jnp.sqrt(var + BN_EPS)
    shift = beta - mean * scale
    return scale.reshape(1, c), shift.reshape(1, c)


def init_performer_params(key, dim, emb, kernel_ratio=0.5):
    m = int(emb * kernel_ratio)
    reduction = emb // 4
    hse = emb // reduction                      # SE hidden dim
    hid = emb                                   # expand_ratio = 1
    ks = jax.random.split(key, 24)
    n = lambda k, shape, s=0.05: s * jax.random.normal(k, shape, jnp.float32)
    lo = lambda a: a.astype(MATMUL_DTYPE)       # MXU weights stored in bf16

    attn = {
        'ln_g': 1.0 + n(ks[0], (1, dim), 0.1),
        'ln_b': n(ks[1], (1, dim)),
        # fused kqv weight, (dim, 3*emb), columns ordered [k | q | v]
        'wkqv': lo(n(ks[2], (dim, 3 * emb))),
        'bkqv': n(ks[3], (1, 3 * emb)),
        # stand-in for orthogonal(m, emb) * sqrt(m), stored transposed (emb, m), f32
        'wprm': jax.random.normal(ks[4], (emb, m), jnp.float32)
                / math.sqrt(emb) * math.sqrt(m),
        'wproj': lo(n(ks[5], (emb, emb))),
        'bproj': n(ks[6], (1, emb)),
    }
    bn1_s, bn1_t = _bn_fold(ks[7], hid)
    bn2_s, bn2_t = _bn_fold(ks[8], hid)
    bn3_s, bn3_t = _bn_fold(ks[9], emb)
    conv = {
        'w1': lo(n(ks[10], (emb, hid))),        # 1x1 conv weight, (in, out)
        'bn1_s': bn1_s, 'bn1_t': bn1_t,
        # depthwise 3x3 weight, (ky*3+kx, ch) == PyTorch (C,1,3,3) per-tap flatten
        'wdw': n(ks[11], (9, hid)),
        'bn2_s': bn2_s, 'bn2_t': bn2_t,
        'wse1': n(ks[12], (hid, hse)),          # SE dots kept f32 (tiny)
        'bse1': n(ks[13], (1, hse)),
        'wse2': n(ks[14], (hse, hid)),
        'bse2': n(ks[15], (1, hid)),
        'w3': lo(n(ks[16], (hid, emb))),
        'bn3_s': bn3_s, 'bn3_t': bn3_t,
    }
    return {'attn': attn, 'conv': conv}


if __name__ == "__main__":
    # Small-shape instantiation of T2T_module_local(img_size=32, tokens_type='performer',
    # in_chans=3, embed_dim=128, token_dim=16).
    img_size, in_chans, token_dim, embed_dim = 32, 3, 16, 128
    key = jax.random.PRNGKey(0)
    kx, kp1, kp2, kpw, kpb = jax.random.split(key, 5)

    x = jax.random.normal(kx, (2, in_chans, img_size, img_size), jnp.float32)

    params = {
        'attn1': init_performer_params(kp1, in_chans * 7 * 7, token_dim),
        'attn2': init_performer_params(kp2, token_dim * 3 * 3, token_dim),
        'proj_w': (0.05 * jax.random.normal(kpw, (token_dim * 3 * 3, embed_dim),
                                            jnp.float32)).astype(MATMUL_DTYPE),
        'proj_b': 0.05 * jax.random.normal(kpb, (embed_dim,), jnp.float32),
    }

    out = jax.jit(t2t_forward)(x, params)
    out = jax.block_until_ready(out)
    n_tok = (img_size // 16) ** 2
    assert out.shape == (2, n_tok, embed_dim), out.shape
    assert bool(jnp.all(jnp.isfinite(out)))
    # TODO(synk): Dropout layers (dp1/dp2) are eval-mode identities; training-mode RNG dropout not implemented.
    print("KERNEL_OK")
</pallas_src>

<mosaic_0001>
module attributes {stable_mosaic.version = 11 : i64} {
  func.func @kernel(%arg0: i32, %arg1: memref<1x64x147xf32, #tpu.memory_space<vmem>>, %arg2: memref<1x147xf32, #tpu.memory_space<vmem>>, %arg3: memref<1x147xf32, #tpu.memory_space<vmem>>, %arg4: memref<147x48xbf16, #tpu.memory_space<vmem>>, %arg5: memref<1x48xf32, #tpu.memory_space<vmem>>, %arg6: memref<16x8xf32, #tpu.memory_space<vmem>>, %arg7: memref<16x16xbf16, #tpu.memory_space<vmem>>, %arg8: memref<1x16xf32, #tpu.memory_space<vmem>>, %arg9: memref<16x16xbf16, #tpu.memory_space<vmem>>, %arg10: memref<1x16xf32, #tpu.memory_space<vmem>>, %arg11: memref<1x16xf32, #tpu.memory_space<vmem>>, %arg12: memref<9x16xf32, #tpu.memory_space<vmem>>, %arg13: memref<1x16xf32, #tpu.memory_space<vmem>>, %arg14: memref<1x16xf32, #tpu.memory_space<vmem>>, %arg15: memref<16x4xf32, #tpu.memory_space<vmem>>, %arg16: memref<1x4xf32, #tpu.memory_space<vmem>>, %arg17: memref<4x16xf32, #tpu.memory_space<vmem>>, %arg18: memref<1x16xf32, #tpu.memory_space<vmem>>, %arg19: memref<16x16xbf16, #tpu.memory_space<vmem>>, %arg20: memref<1x16xf32, #tpu.memory_space<vmem>>, %arg21: memref<1x16xf32, #tpu.memory_space<vmem>>, %arg22: memref<1x64x16xf32, #tpu.memory_space<vmem>>) attributes {dimension_semantics = [#tpu.dimension_semantics<parallel>], iteration_bounds = array<i64: 2>, scalar_prefetch = 0 : i64, scratch_operands = 0 : i64, tpu.core_type = #tpu.core_type<tc>, window_params = [{transform_indices = @transform_0, window_bounds = array<i64: 1, 64, 147>}, {pipeline_mode = #tpu.pipeline_mode<synchronous>, transform_indices = @transform_1, window_bounds = array<i64: 1, 147>}, {pipeline_mode = #tpu.pipeline_mode<synchronous>, transform_indices = @transform_2, window_bounds = array<i64: 1, 147>}, {pipeline_mode = #tpu.pipeline_mode<synchronous>, transform_indices = @transform_3, window_bounds = array<i64: 147, 48>}, {pipeline_mode = #tpu.pipeline_mode<synchronous>, transform_indices = @transform_4, window_bounds = array<i64: 1, 48>}, {pipeline_mode = #tpu.pipeline_mode<synchronous>, transform_indices = @transform_5, window_bounds = array<i64: 16, 8>}, {pipeline_mode = #tpu.pipeline_mode<synchronous>, transform_indices = @transform_6, window_bounds = array<i64: 16, 16>}, {pipeline_mode = #tpu.pipeline_mode<synchronous>, transform_indices = @transform_7, window_bounds = array<i64: 1, 16>}, {pipeline_mode = #tpu.pipeline_mode<synchronous>, transform_indices = @transform_8, window_bounds = array<i64: 16, 16>}, {pipeline_mode = #tpu.pipeline_mode<synchronous>, transform_indices = @transform_9, window_bounds = array<i64: 1, 16>}, {pipeline_mode = #tpu.pipeline_mode<synchronous>, transform_indices = @transform_10, window_bounds = array<i64: 1, 16>}, {pipeline_mode = #tpu.pipeline_mode<synchronous>, transform_indices = @transform_11, window_bounds = array<i64: 9, 16>}, {pipeline_mode = #tpu.pipeline_mode<synchronous>, transform_indices = @transform_12, window_bounds = array<i64: 1, 16>}, {pipeline_mode = #tpu.pipeline_mode<synchronous>, transform_indices = @transform_13, window_bounds = array<i64: 1, 16>}, {pipeline_mode = #tpu.pipeline_mode<synchronous>, transform_indices = @transform_14, window_bounds = array<i64: 16, 4>}, {pipeline_mode = #tpu.pipeline_mode<synchronous>, transform_indices = @transform_15, window_bounds = array<i64: 1, 4>}, {pipeline_mode = #tpu.pipeline_mode<synchronous>, transform_indices = @transform_16, window_bounds = array<i64: 4, 16>}, {pipeline_mode = #tpu.pipeline_mode<synchronous>, transform_indices = @transform_17, window_bounds = array<i64: 1, 16>}, {pipeline_mode = #tpu.pipeline_mode<synchronous>, transform_indices = @transform_18, window_bounds = array<i64: 16, 16>}, {pipeline_mode = #tpu.pipeline_mode<synchronous>, transform_indices = @transform_19, window_bounds = array<i64: 1, 16>}, {pipeline_mode = #tpu.pipeline_mode<synchronous>, transform_indices = @transform_20, window_bounds = array<i64: 1, 16>}, {transform_indices = @transform_21, window_bounds = array<i64: 1, 64, 16>}]} {
    %c0 = arith.constant 0 : index
    %c0_0 = arith.constant 0 : index
    %c0_1 = arith.constant 0 : index
    %0 = vector.load %arg1[%c0, %c0_0, %c0_1] : memref<1x64x147xf32, #tpu.memory_space<vmem>>, vector<1x64x147xf32>
    %1 = vector.shape_cast %0 : vector<1x64x147xf32> to vector<64x147xf32>
    %cst = arith.constant dense<0.000000e+00> : vector<64xf32>
    %2 = vector.multi_reduction <add>, %1, %cst [1] : vector<64x147xf32> to vector<64xf32>
    %3 = vector.shape_cast %2 : vector<64xf32> to vector<64x1xf32>
    %cst_2 = arith.constant 1.470000e+02 : f32
    %4 = vector.broadcast %cst_2 : f32 to vector<64x1xf32>
    %5 = arith.divf %3, %4 : vector<64x1xf32>
    %6 = vector.broadcast %5 : vector<64x1xf32> to vector<64x147xf32>
    %7 = arith.subf %1, %6 : vector<64x147xf32>
    %8 = arith.mulf %7, %7 : vector<64x147xf32>
    %cst_3 = arith.constant dense<0.000000e+00> : vector<64xf32>
    %9 = vector.multi_reduction <add>, %8, %cst_3 [1] : vector<64x147xf32> to vector<64xf32>
    %10 = vector.shape_cast %9 : vector<64xf32> to vector<64x1xf32>
    %cst_4 = arith.constant 1.470000e+02 : f32
    %11 = vector.broadcast %cst_4 : f32 to vector<64x1xf32>
    %12 = arith.divf %10, %11 : vector<64x1xf32>
    %cst_5 = arith.constant 9.99999974E-6 : f32
    %13 = vector.broadcast %cst_5 : f32 to vector<64x1xf32>
    %14 = arith.addf %12, %13 : vector<64x1xf32>
    %15 = math.rsqrt %14 : vector<64x1xf32>
    %16 = vector.broadcast %15 : vector<64x1xf32> to vector<64x147xf32>
    %17 = arith.mulf %7, %16 : vector<64x147xf32>
    %c0_6 = arith.constant 0 : index
    %c0_7 = arith.constant 0 : index
    %18 = vector.load %arg2[%c0_6, %c0_7] : memref<1x147xf32, #tpu.memory_space<vmem>>, vector<1x147xf32>
    %19 = vector.broadcast %18 : vector<1x147xf32> to vector<64x147xf32>
    %20 = arith.mulf %17, %19 : vector<64x147xf32>
    %c0_8 = arith.constant 0 : index
    %c0_9 = arith.constant 0 : index
    %21 = vector.load %arg3[%c0_8, %c0_9] : memref<1x147xf32, #tpu.memory_space<vmem>>, vector<1x147xf32>
    %22 = vector.broadcast %21 : vector<1x147xf32> to vector<64x147xf32>
    %23 = arith.addf %20, %22 : vector<64x147xf32>
    %24 = arith.truncf %23 : vector<64x147xf32> to vector<64x147xbf16>
    %c0_10 = arith.constant 0 : index
    %c0_11 = arith.constant 0 : index
    %25 = vector.load %arg4[%c0_10, %c0_11] : memref<147x48xbf16, #tpu.memory_space<vmem>>, vector<147x48xbf16>
    %cst_12 = arith.constant dense<0.000000e+00> : vector<64x48xf32>
    %26 = tpu.matmul %24, %25, %cst_12 {dimension_numbers = #tpu.dot_dimension_numbers<[1], [0], [0], [1], [0, 0, 1, 1], [], []>} : vector<64x147xbf16>, vector<147x48xbf16>, vector<64x48xf32> -> vector<64x48xf32>
    %c0_13 = arith.constant 0 : index
    %c0_14 = arith.constant 0 : index
    %27 = vector.load %arg5[%c0_13, %c0_14] : memref<1x48xf32, #tpu.memory_space<vmem>>, vector<1x48xf32>
    %28 = vector.broadcast %27 : vector<1x48xf32> to vector<64x48xf32>
    %29 = arith.addf %26, %28 : vector<64x48xf32>
    %30 = vector.extract_strided_slice %29 {offsets = [0, 0], sizes = [64, 16], strides = [1, 1]} : vector<64x48xf32> to vector<64x16xf32>
    %31 = vector.extract_strided_slice %29 {offsets = [0, 16], sizes = [64, 16], strides = [1, 1]} : vector<64x48xf32> to vector<64x16xf32>
    %32 = vector.extract_strided_slice %29 {offsets = [0, 32], sizes = [64, 16], strides = [1, 1]} : vector<64x48xf32> to vector<64x16xf32>
    %33 = arith.mulf %30, %30 : vector<64x16xf32>
    %cst_15 = arith.constant dense<0.000000e+00> : vector<64xf32>
    %34 = vector.multi_reduction <add>, %33, %cst_15 [1] : vector<64x16xf32> to vector<64xf32>
    %35 = vector.shape_cast %34 : vector<64xf32> to vector<64x1xf32>
    %cst_16 = arith.constant 5.000000e-01 : f32
    %36 = vector.broadcast %cst_16 : f32 to vector<64x1xf32>
    %37 = arith.mulf %36, %35 : vector<64x1xf32>
    %c0_17 = arith.constant 0 : index
    %c0_18 = arith.constant 0 : index
    %38 = vector.load %arg6[%c0_17, %c0_18] : memref<16x8xf32, #tpu.memory_space<vmem>>, vector<16x8xf32>
    %cst_19 = arith.constant dense<0.000000e+00> : vector<64x8xf32>
    %39 = tpu.matmul %30, %38, %cst_19 {dimension_numbers = #tpu.dot_dimension_numbers<[1], [0], [0], [1], [0, 0, 1, 1], [], []>} : vector<64x16xf32>, vector<16x8xf32>, vector<64x8xf32> -> vector<64x8xf32>
    %40 = vector.broadcast %37 : vector<64x1xf32> to vector<64x8xf32>
    %41 = arith.subf %39, %40 : vector<64x8xf32>
    %42 = math.exp %41 : vector<64x8xf32>
    %cst_20 = arith.constant 0.353553385 : f32
    %43 = vector.broadcast %cst_20 : f32 to vector<64x8xf32>
    %44 = arith.mulf %42, %43 : vector<64x8xf32>
    %45 = vector.shape_cast %44 : vector<64x8xf32> to vector<1x64x8xf32>
    %46 = arith.mulf %31, %31 : vector<64x16xf32>
    %cst_21 = arith.constant dense<0.000000e+00> : vector<64xf32>
    %47 = vector.multi_reduction <add>, %46, %cst_21 [1] : vector<64x16xf32> to vector<64xf32>
    %48 = vector.shape_cast %47 : vector<64xf32> to vector<64x1xf32>
    %cst_22 = arith.constant 5.000000e-01 : f32
    %49 = vector.broadcast %cst_22 : f32 to vector<64x1xf32>
    %50 = arith.mulf %49, %48 : vector<64x1xf32>
    %c0_23 = arith.constant 0 : index
    %c0_24 = arith.constant 0 : index
    %51 = vector.load %arg6[%c0_23, %c0_24] : memref<16x8xf32, #tpu.memory_space<vmem>>, vector<16x8xf32>
    %cst_25 = arith.constant dense<0.000000e+00> : vector<64x8xf32>
    %52 = tpu.matmul %31, %51, %cst_25 {dimension_numbers = #tpu.dot_dimension_numbers<[1], [0], [0], [1], [0, 0, 1, 1], [], []>} : vector<64x16xf32>, vector<16x8xf32>, vector<64x8xf32> -> vector<64x8xf32>
    %53 = vector.broadcast %50 : vector<64x1xf32> to vector<64x8xf32>
    %54 = arith.subf %52, %53 : vector<64x8xf32>
    %55 = math.exp %54 : vector<64x8xf32>
    %cst_26 = arith.constant 0.353553385 : f32
    %56 = vector.broadcast %cst_26 : f32 to vector<64x8xf32>
    %57 = arith.mulf %55, %56 : vector<64x8xf32>
    %58 = vector.shape_cast %57 : vector<64x8xf32> to vector<1x64x8xf32>
    %59 = vector.shape_cast %32 : vector<64x16xf32> to vector<1x64x16xf32>
    %cst_27 = arith.constant dense<0.000000e+00> : vector<1x8xf32>
    %60 = vector.multi_reduction <add>, %45, %cst_27 [1] : vector<1x64x8xf32> to vector<1x8xf32>
    %61 = vector.shape_cast %60 : vector<1x8xf32> to vector<1x1x8xf32>
    %62 = vector.broadcast %61 : vector<1x1x8xf32> to vector<1x64x8xf32>
    %63 = arith.mulf %58, %62 : vector<1x64x8xf32>
    %cst_28 = arith.constant dense<0.000000e+00> : vector<1x64xf32>
    %64 = vector.multi_reduction <add>, %63, %cst_28 [2] : vector<1x64x8xf32> to vector<1x64xf32>
    %65 = vector.shape_cast %64 : vector<1x64xf32> to vector<1x64x1xf32>
    "tpu.trace_start"() <{level = 10 : i32, message = "btm,bte->bme"}> : () -> ()
    %cst_29 = arith.constant dense<0.000000e+00> : vector<1x8x16xf32>
    %66 = tpu.matmul %45, %59, %cst_29 {dimension_numbers = #tpu.dot_dimension_numbers<[1], [1], [2], [2], [0, 0, 0, 2, 1, 2], [0], [0]>} : vector<1x64x8xf32>, vector<1x64x16xf32>, vector<1x8x16xf32> -> vector<1x8x16xf32>
    "tpu.trace_stop"() : () -> ()
    "tpu.trace_start"() <{level = 10 : i32, message = "btm,bme->bte"}> : () -> ()
    %cst_30 = arith.constant dense<0.000000e+00> : vector<1x64x16xf32>
    %67 = tpu.matmul %58, %66, %cst_30 {dimension_numbers = #tpu.dot_dimension_numbers<[2], [1], [1], [2], [0, 0, 0, 1, 1, 2], [0], [0]>} : vector<1x64x8xf32>, vector<1x8x16xf32>, vector<1x64x16xf32> -> vector<1x64x16xf32>
    "tpu.trace_stop"() : () -> ()
    %68 = vector.shape_cast %67 : vector<1x64x16xf32> to vector<64x16xf32>
    %69 = vector.shape_cast %65 : vector<1x64x1xf32> to vector<64x1xf32>
    %cst_31 = arith.constant 9.99999993E-9 : f32
    %70 = vector.broadcast %cst_31 : f32 to vector<64x1xf32>
    %71 = arith.addf %69, %70 : vector<64x1xf32>
    %72 = tpu.reciprocal %71 {approx = true} : vector<64x1xf32> -> vector<64x1xf32>
    %73 = vector.broadcast %72 : vector<64x1xf32> to vector<64x16xf32>
    %74 = arith.mulf %68, %73 : vector<64x16xf32>
    %75 = arith.truncf %74 : vector<64x16xf32> to vector<64x16xbf16>
    %c0_32 = arith.constant 0 : index
    %c0_33 = arith.constant 0 : index
    %76 = vector.load %arg7[%c0_32, %c0_33] : memref<16x16xbf16, #tpu.memory_space<vmem>>, vector<16x16xbf16>
    %cst_34 = arith.constant dense<0.000000e+00> : vector<64x16xf32>
    %77 = tpu.matmul %75, %76, %cst_34 {dimension_numbers = #tpu.dot_dimension_numbers<[1], [0], [0], [1], [0, 0, 1, 1], [], []>} : vector<64x16xbf16>, vector<16x16xbf16>, vector<64x16xf32> -> vector<64x16xf32>
    %c0_35 = arith.constant 0 : index
    %c0_36 = arith.constant 0 : index
    %78 = vector.load %arg8[%c0_35, %c0_36] : memref<1x16xf32, #tpu.memory_space<vmem>>, vector<1x16xf32>
    %79 = vector.broadcast %78 : vector<1x16xf32> to vector<64x16xf32>
    %80 = arith.addf %77, %79 : vector<64x16xf32>
    %81 = arith.addf %32, %80 : vector<64x16xf32>
    %82 = arith.truncf %81 : vector<64x16xf32> to vector<64x16xbf16>
    %c0_37 = arith.constant 0 : index
    %c0_38 = arith.constant 0 : index
    %83 = vector.load %arg9[%c0_37, %c0_38] : memref<16x16xbf16, #tpu.memory_space<vmem>>, vector<16x16xbf16>
    %cst_39 = arith.constant dense<0.000000e+00> : vector<64x16xf32>
    %84 = tpu.matmul %82, %83, %cst_39 {dimension_numbers = #tpu.dot_dimension_numbers<[1], [0], [0], [1], [0, 0, 1, 1], [], []>} : vector<64x16xbf16>, vector<16x16xbf16>, vector<64x16xf32> -> vector<64x16xf32>
    %c0_40 = arith.constant 0 : index
    %c0_41 = arith.constant 0 : index
    %85 = vector.load %arg10[%c0_40, %c0_41] : memref<1x16xf32, #tpu.memory_space<vmem>>, vector<1x16xf32>
    %86 = vector.broadcast %85 : vector<1x16xf32> to vector<64x16xf32>
    %87 = arith.mulf %84, %86 : vector<64x16xf32>
    %c0_42 = arith.constant 0 : index
    %c0_43 = arith.constant 0 : index
    %88 = vector.load %arg11[%c0_42, %c0_43] : memref<1x16xf32, #tpu.memory_space<vmem>>, vector<1x16xf32>
    %89 = vector.broadcast %88 : vector<1x16xf32> to vector<64x16xf32>
    %90 = arith.addf %87, %89 : vector<64x16xf32>
    %cst_44 = arith.constant 3.000000e+00 : f32
    %91 = vector.broadcast %cst_44 : f32 to vector<64x16xf32>
    %92 = arith.addf %90, %91 : vector<64x16xf32>
    %cst_45 = arith.constant 0.000000e+00 : f32
    %cst_46 = arith.constant 6.000000e+00 : f32
    %93 = vector.broadcast %cst_45 : f32 to vector<64x16xf32>
    %94 = arith.maximumf %93, %92 : vector<64x16xf32>
    %95 = vector.broadcast %cst_46 : f32 to vector<64x16xf32>
    %96 = arith.minimumf %95, %94 : vector<64x16xf32>
    %cst_47 = arith.constant 0.166666672 : f32
    %97 = vector.broadcast %cst_47 : f32 to vector<64x16xf32>
    %98 = arith.mulf %96, %97 : vector<64x16xf32>
    %99 = arith.mulf %90, %98 : vector<64x16xf32>
    %100 = tpu.iota {dimensions = array<i32: 1>} : vector<1x8x8x1xi32>
    %101 = vector.shape_cast %100 : vector<1x8x8x1xi32> to vector<64x1xi32>
    %102 = tpu.iota {dimensions = array<i32: 2>} : vector<1x8x8x1xi32>
    %103 = vector.shape_cast %102 : vector<1x8x8x1xi32> to vector<64x1xi32>
    %c1_i32 = arith.constant 1 : i32
    %104 = vector.broadcast %c1_i32 : i32 to vector<64x1xi32>
    %105 = arith.cmpi sge, %101, %104 : vector<64x1xi32>
    %c7_i32 = arith.constant 7 : i32
    %106 = vector.broadcast %c7_i32 : i32 to vector<64x1xi32>
    %107 = arith.cmpi slt, %101, %106 : vector<64x1xi32>
    %c1_i32_48 = arith.constant 1 : i32
    %108 = vector.broadcast %c1_i32_48 : i32 to vector<64x1xi32>
    %109 = arith.cmpi sge, %103, %108 : vector<64x1xi32>
    %c7_i32_49 = arith.constant 7 : i32
    %110 = vector.broadcast %c7_i32_49 : i32 to vector<64x1xi32>
    %111 = arith.cmpi slt, %103, %110 : vector<64x1xi32>
    %c0_50 = arith.constant 0 : index
    %c0_51 = arith.constant 0 : index
    %112 = vector.load %arg12[%c0_50, %c0_51] : memref<9x16xf32, #tpu.memory_space<vmem>>, vector<9x16xf32>
    %113 = vector.extract_strided_slice %112 {offsets = [4, 0], sizes = [1, 16], strides = [1, 1]} : vector<9x16xf32> to vector<1x16xf32>
    %114 = vector.broadcast %113 : vector<1x16xf32> to vector<64x16xf32>
    %115 = arith.mulf %99, %114 : vector<64x16xf32>
    %116 = vector.extract_strided_slice %99 {offsets = [55, 0], sizes = [9, 16], strides = [1, 1]} : vector<64x16xf32> to vector<9x16xf32>
    %117 = vector.extract_strided_slice %99 {offsets = [0, 0], sizes = [55, 16], strides = [1, 1]} : vector<64x16xf32> to vector<55x16xf32>
    %118 = tpu.concatenate %116, %117 in 0 : vector<9x16xf32>, vector<55x16xf32> -> vector<64x16xf32>
    %119 = arith.andi %105, %109 : vector<64x1xi1>
    %cst_52 = arith.constant 0.000000e+00 : f32
    %120 = vector.shape_cast %119 : vector<64x1xi1> to vector<64x1xi1>
    %121 = vector.broadcast %120 : vector<64x1xi1> to vector<64x16xi1>
    %122 = vector.broadcast %cst_52 : f32 to vector<64x16xf32>
    %123 = arith.select %121, %118, %122 : vector<64x16xi1>, vector<64x16xf32>
    %124 = vector.extract_strided_slice %112 {offsets = [0, 0], sizes = [1, 16], strides = [1, 1]} : vector<9x16xf32> to vector<1x16xf32>
    %125 = vector.broadcast %124 : vector<1x16xf32> to vector<64x16xf32>
    %126 = arith.mulf %123, %125 : vector<64x16xf32>
    %127 = arith.addf %115, %126 : vector<64x16xf32>
    %128 = vector.extract_strided_slice %99 {offsets = [56, 0], sizes = [8, 16], strides = [1, 1]} : vector<64x16xf32> to vector<8x16xf32>
    %129 = vector.extract_strided_slice %99 {offsets = [0, 0], sizes = [56, 16], strides = [1, 1]} : vector<64x16xf32> to vector<56x16xf32>
    %130 = tpu.concatenate %128, %129 in 0 : vector<8x16xf32>, vector<56x16xf32> -> vector<64x16xf32>
    %cst_53 = arith.constant 0.000000e+00 : f32
    %131 = vector.shape_cast %105 : vector<64x1xi1> to vector<64x1xi1>
    %132 = vector.broadcast %131 : vector<64x1xi1> to vector<64x16xi1>
    %133 = vector.broadcast %cst_53 : f32 to vector<64x16xf32>
    %134 = arith.select %132, %130, %133 : vector<64x16xi1>, vector<64x16xf32>
    %135 = vector.extract_strided_slice %112 {offsets = [1, 0], sizes = [1, 16], strides = [1, 1]} : vector<9x16xf32> to vector<1x16xf32>
    %136 = vector.broadcast %135 : vector<1x16xf32> to vector<64x16xf32>
    %137 = arith.mulf %134, %136 : vector<64x16xf32>
    %138 = arith.addf %127, %137 : vector<64x16xf32>
    %139 = vector.extract_strided_slice %99 {offsets = [57, 0], sizes = [7, 16], strides = [1, 1]} : vector<64x16xf32> to vector<7x16xf32>
    %140 = vector.extract_strided_slice %99 {offsets = [0, 0], sizes = [57, 16], strides = [1, 1]} : vector<64x16xf32> to vector<57x16xf32>
    %141 = tpu.concatenate %139, %140 in 0 : vector<7x16xf32>, vector<57x16xf32> -> vector<64x16xf32>
    %142 = arith.andi %105, %111 : vector<64x1xi1>
    %cst_54 = arith.constant 0.000000e+00 : f32
    %143 = vector.shape_cast %142 : vector<64x1xi1> to vector<64x1xi1>
    %144 = vector.broadcast %143 : vector<64x1xi1> to vector<64x16xi1>
    %145 = vector.broadcast %cst_54 : f32 to vector<64x16xf32>
    %146 = arith.select %144, %141, %145 : vector<64x16xi1>, vector<64x16xf32>
    %147 = vector.extract_strided_slice %112 {offsets = [2, 0], sizes = [1, 16], strides = [1, 1]} : vector<9x16xf32> to vector<1x16xf32>
    %148 = vector.broadcast %147 : vector<1x16xf32> to vector<64x16xf32>
    %149 = arith.mulf %146, %148 : vector<64x16xf32>
    %150 = arith.addf %138, %149 : vector<64x16xf32>
    %151 = vector.extract_strided_slice %99 {offsets = [63, 0], sizes = [1, 16], strides = [1, 1]} : vector<64x16xf32> to vector<1x16xf32>
    %152 = vector.extract_strided_slice %99 {offsets = [0, 0], sizes = [63, 16], strides = [1, 1]} : vector<64x16xf32> to vector<63x16xf32>
    %153 = tpu.concatenate %151, %152 in 0 : vector<1x16xf32>, vector<63x16xf32> -> vector<64x16xf32>
    %cst_55 = arith.constant 0.000000e+00 : f32
    %154 = vector.shape_cast %109 : vector<64x1xi1> to vector<64x1xi1>
    %155 = vector.broadcast %154 : vector<64x1xi1> to vector<64x16xi1>
    %156 = vector.broadcast %cst_55 : f32 to vector<64x16xf32>
    %157 = arith.select %155, %153, %156 : vector<64x16xi1>, vector<64x16xf32>
    %158 = vector.extract_strided_slice %112 {offsets = [3, 0], sizes = [1, 16], strides = [1, 1]} : vector<9x16xf32> to vector<1x16xf32>
    %159 = vector.broadcast %158 : vector<1x16xf32> to vector<64x16xf32>
    %160 = arith.mulf %157, %159 : vector<64x16xf32>
    %161 = arith.addf %150, %160 : vector<64x16xf32>
    %162 = vector.extract_strided_slice %99 {offsets = [1, 0], sizes = [63, 16], strides = [1, 1]} : vector<64x16xf32> to vector<63x16xf32>
    %163 = vector.extract_strided_slice %99 {offsets = [0, 0], sizes = [1, 16], strides = [1, 1]} : vector<64x16xf32> to vector<1x16xf32>
    %164 = tpu.concatenate %162, %163 in 0 : vector<63x16xf32>, vector<1x16xf32> -> vector<64x16xf32>
    %cst_56 = arith.constant 0.000000e+00 : f32
    %165 = vector.shape_cast %111 : vector<64x1xi1> to vector<64x1xi1>
    %166 = vector.broadcast %165 : vector<64x1xi1> to vector<64x16xi1>
    %167 = vector.broadcast %cst_56 : f32 to vector<64x16xf32>
    %168 = arith.select %166, %164, %167 : vector<64x16xi1>, vector<64x16xf32>
    %169 = vector.extract_strided_slice %112 {offsets = [5, 0], sizes = [1, 16], strides = [1, 1]} : vector<9x16xf32> to vector<1x16xf32>
    %170 = vector.broadcast %169 : vector<1x16xf32> to vector<64x16xf32>
    %171 = arith.mulf %168, %170 : vector<64x16xf32>
    %172 = arith.addf %161, %171 : vector<64x16xf32>
    %173 = vector.extract_strided_slice %99 {offsets = [7, 0], sizes = [57, 16], strides = [1, 1]} : vector<64x16xf32> to vector<57x16xf32>
    %174 = vector.extract_strided_slice %99 {offsets = [0, 0], sizes = [7, 16], strides = [1, 1]} : vector<64x16xf32> to vector<7x16xf32>
    %175 = tpu.concatenate %173, %174 in 0 : vector<57x16xf32>, vector<7x16xf32> -> vector<64x16xf32>
    %176 = arith.andi %107, %109 : vector<64x1xi1>
    %cst_57 = arith.constant 0.000000e+00 : f32
    %177 = vector.shape_cast %176 : vector<64x1xi1> to vector<64x1xi1>
    %178 = vector.broadcast %177 : vector<64x1xi1> to vector<64x16xi1>
    %179 = vector.broadcast %cst_57 : f32 to vector<64x16xf32>
    %180 = arith.select %178, %175, %179 : vector<64x16xi1>, vector<64x16xf32>
    %181 = vector.extract_strided_slice %112 {offsets = [6, 0], sizes = [1, 16], strides = [1, 1]} : vector<9x16xf32> to vector<1x16xf32>
    %182 = vector.broadcast %181 : vector<1x16xf32> to vector<64x16xf32>
    %183 = arith.mulf %180, %182 : vector<64x16xf32>
    %184 = arith.addf %172, %183 : vector<64x16xf32>
    %185 = vector.extract_strided_slice %99 {offsets = [8, 0], sizes = [56, 16], strides = [1, 1]} : vector<64x16xf32> to vector<56x16xf32>
    %186 = vector.extract_strided_slice %99 {offsets = [0, 0], sizes = [8, 16], strides = [1, 1]} : vector<64x16xf32> to vector<8x16xf32>
    %187 = tpu.concatenate %185, %186 in 0 : vector<56x16xf32>, vector<8x16xf32> -> vector<64x16xf32>
    %cst_58 = arith.constant 0.000000e+00 : f32
    %188 = vector.shape_cast %107 : vector<64x1xi1> to vector<64x1xi1>
    %189 = vector.broadcast %188 : vector<64x1xi1> to vector<64x16xi1>
    %190 = vector.broadcast %cst_58 : f32 to vector<64x16xf32>
    %191 = arith.select %189, %187, %190 : vector<64x16xi1>, vector<64x16xf32>
    %192 = vector.extract_strided_slice %112 {offsets = [7, 0], sizes = [1, 16], strides = [1, 1]} : vector<9x16xf32> to vector<1x16xf32>
    %193 = vector.broadcast %192 : vector<1x16xf32> to vector<64x16xf32>
    %194 = arith.mulf %191, %193 : vector<64x16xf32>
    %195 = arith.addf %184, %194 : vector<64x16xf32>
    %196 = vector.extract_strided_slice %99 {offsets = [9, 0], sizes = [55, 16], strides = [1, 1]} : vector<64x16xf32> to vector<55x16xf32>
    %197 = vector.extract_strided_slice %99 {offsets = [0, 0], sizes = [9, 16], strides = [1, 1]} : vector<64x16xf32> to vector<9x16xf32>
    %198 = tpu.concatenate %196, %197 in 0 : vector<55x16xf32>, vector<9x16xf32> -> vector<64x16xf32>
    %199 = arith.andi %107, %111 : vector<64x1xi1>
    %cst_59 = arith.constant 0.000000e+00 : f32
    %200 = vector.shape_cast %199 : vector<64x1xi1> to vector<64x1xi1>
    %201 = vector.broadcast %200 : vector<64x1xi1> to vector<64x16xi1>
    %202 = vector.broadcast %cst_59 : f32 to vector<64x16xf32>
    %203 = arith.select %201, %198, %202 : vector<64x16xi1>, vector<64x16xf32>
    %204 = vector.extract_strided_slice %112 {offsets = [8, 0], sizes = [1, 16], strides = [1, 1]} : vector<9x16xf32> to vector<1x16xf32>
    %205 = vector.broadcast %204 : vector<1x16xf32> to vector<64x16xf32>
    %206 = arith.mulf %203, %205 : vector<64x16xf32>
    %207 = arith.addf %195, %206 : vector<64x16xf32>
    %c0_60 = arith.constant 0 : index
    %c0_61 = arith.constant 0 : index
    %208 = vector.load %arg13[%c0_60, %c0_61] : memref<1x16xf32, #tpu.memory_space<vmem>>, vector<1x16xf32>
    %209 = vector.broadcast %208 : vector<1x16xf32> to vector<64x16xf32>
    %210 = arith.mulf %207, %209 : vector<64x16xf32>
    %c0_62 = arith.constant 0 : index
    %c0_63 = arith.constant 0 : index
    %211 = vector.load %arg14[%c0_62, %c0_63] : memref<1x16xf32, #tpu.memory_space<vmem>>, vector<1x16xf32>
    %212 = vector.broadcast %211 : vector<1x16xf32> to vector<64x16xf32>
    %213 = arith.addf %210, %212 : vector<64x16xf32>
    %cst_64 = arith.constant 3.000000e+00 : f32
    %214 = vector.broadcast %cst_64 : f32 to vector<64x16xf32>
    %215 = arith.addf %213, %214 : vector<64x16xf32>
    %cst_65 = arith.constant 0.000000e+00 : f32
    %cst_66 = arith.constant 6.000000e+00 : f32
    %216 = vector.broadcast %cst_65 : f32 to vector<64x16xf32>
    %217 = arith.maximumf %216, %215 : vector<64x16xf32>
    %218 = vector.broadcast %cst_66 : f32 to vector<64x16xf32>
    %219 = arith.minimumf %218, %217 : vector<64x16xf32>
    %cst_67 = arith.constant 0.166666672 : f32
    %220 = vector.broadcast %cst_67 : f32 to vector<64x16xf32>
    %221 = arith.mulf %219, %220 : vector<64x16xf32>
    %222 = arith.mulf %213, %221 : vector<64x16xf32>
    %223 = vector.shape_cast %222 : vector<64x16xf32> to vector<1x64x16xf32>
    %cst_68 = arith.constant dense<0.000000e+00> : vector<1x16xf32>
    %224 = vector.multi_reduction <add>, %223, %cst_68 [1] : vector<1x64x16xf32> to vector<1x16xf32>
    %cst_69 = arith.constant 6.400000e+01 : f32
    %225 = vector.broadcast %cst_69 : f32 to vector<1x16xf32>
    %226 = arith.divf %224, %225 : vector<1x16xf32>
    %c0_70 = arith.constant 0 : index
    %c0_71 = arith.constant 0 : index
    %227 = vector.load %arg15[%c0_70, %c0_71] : memref<16x4xf32, #tpu.memory_space<vmem>>, vector<16x4xf32>
    %cst_72 = arith.constant dense<0.000000e+00> : vector<1x4xf32>
    %228 = tpu.matmul %226, %227, %cst_72 {dimension_numbers = #tpu.dot_dimension_numbers<[1], [0], [0], [1], [0, 0, 1, 1], [], []>} : vector<1x16xf32>, vector<16x4xf32>, vector<1x4xf32> -> vector<1x4xf32>
    %c0_73 = arith.constant 0 : index
    %c0_74 = arith.constant 0 : index
    %229 = vector.load %arg16[%c0_73, %c0_74] : memref<1x4xf32, #tpu.memory_space<vmem>>, vector<1x4xf32>
    %230 = arith.addf %228, %229 : vector<1x4xf32>
    %cst_75 = arith.constant 0.000000e+00 : f32
    %231 = vector.broadcast %cst_75 : f32 to vector<1x4xf32>
    %232 = arith.maximumf %230, %231 : vector<1x4xf32>
    %c0_76 = arith.constant 0 : index
    %c0_77 = arith.constant 0 : index
    %233 = vector.load %arg17[%c0_76, %c0_77] : memref<4x16xf32, #tpu.memory_space<vmem>>, vector<4x16xf32>
    %cst_78 = arith.constant dense<0.000000e+00> : vector<1x16xf32>
    %234 = tpu.matmul %232, %233, %cst_78 {dimension_numbers = #tpu.dot_dimension_numbers<[1], [0], [0], [1], [0, 0, 1, 1], [], []>} : vector<1x4xf32>, vector<4x16xf32>, vector<1x16xf32> -> vector<1x16xf32>
    %c0_79 = arith.constant 0 : index
    %c0_80 = arith.constant 0 : index
    %235 = vector.load %arg18[%c0_79, %c0_80] : memref<1x16xf32, #tpu.memory_space<vmem>>, vector<1x16xf32>
    %236 = arith.addf %234, %235 : vector<1x16xf32>
    %cst_81 = arith.constant 3.000000e+00 : f32
    %237 = vector.broadcast %cst_81 : f32 to vector<1x16xf32>
    %238 = arith.addf %236, %237 : vector<1x16xf32>
    %cst_82 = arith.constant 0.000000e+00 : f32
    %cst_83 = arith.constant 6.000000e+00 : f32
    %239 = vector.broadcast %cst_82 : f32 to vector<1x16xf32>
    %240 = arith.maximumf %239, %238 : vector<1x16xf32>
    %241 = vector.broadcast %cst_83 : f32 to vector<1x16xf32>
    %242 = arith.minimumf %241, %240 : vector<1x16xf32>
    %cst_84 = arith.constant 0.166666672 : f32
    %243 = vector.broadcast %cst_84 : f32 to vector<1x16xf32>
    %244 = arith.mulf %242, %243 : vector<1x16xf32>
    %245 = vector.shape_cast %244 : vector<1x16xf32> to vector<1x1x16xf32>
    %246 = vector.broadcast %245 : vector<1x1x16xf32> to vector<1x64x16xf32>
    %247 = arith.mulf %223, %246 : vector<1x64x16xf32>
    %248 = vector.shape_cast %247 : vector<1x64x16xf32> to vector<64x16xf32>
    %249 = arith.truncf %248 : vector<64x16xf32> to vector<64x16xbf16>
    %c0_85 = arith.constant 0 : index
    %c0_86 = arith.constant 0 : index
    %250 = vector.load %arg19[%c0_85, %c0_86] : memref<16x16xbf16, #tpu.memory_space<vmem>>, vector<16x16xbf16>
    %cst_87 = arith.constant dense<0.000000e+00> : vector<64x16xf32>
    %251 = tpu.matmul %249, %250, %cst_87 {dimension_numbers = #tpu.dot_dimension_numbers<[1], [0], [0], [1], [0, 0, 1, 1], [], []>} : vector<64x16xbf16>, vector<16x16xbf16>, vector<64x16xf32> -> vector<64x16xf32>
    %c0_88 = arith.constant 0 : index
    %c0_89 = arith.constant 0 : index
    %252 = vector.load %arg20[%c0_88, %c0_89] : memref<1x16xf32, #tpu.memory_space<vmem>>, vector<1x16xf32>
    %253 = vector.broadcast %252 : vector<1x16xf32> to vector<64x16xf32>
    %254 = arith.mulf %251, %253 : vector<64x16xf32>
    %c0_90 = arith.constant 0 : index
    %c0_91 = arith.constant 0 : index
    %255 = vector.load %arg21[%c0_90, %c0_91] : memref<1x16xf32, #tpu.memory_space<vmem>>, vector<1x16xf32>
    %256 = vector.broadcast %255 : vector<1x16xf32> to vector<64x16xf32>
    %257 = arith.addf %254, %256 : vector<64x16xf32>
    %258 = arith.addf %81, %257 : vector<64x16xf32>
    %259 = vector.shape_cast %258 : vector<64x16xf32> to vector<1x64x16xf32>
    %c0_92 = arith.constant 0 : index
    %c0_93 = arith.constant 0 : index
    %c0_94 = arith.constant 0 : index
    %260 = vector.load %arg22[%c0_92, %c0_93, %c0_94] : memref<1x64x16xf32, #tpu.memory_space<vmem>>, vector<1x64x16xf32>
    tpu.vector_store %arg22[%c0_92, %c0_93, %c0_94], %259 {strides = array<i32>} : memref<1x64x16xf32, #tpu.memory_space<vmem>>, vector<1x64x16xf32>,
    return
  }
  func.func @transform_0(%arg0: i32) -> (i32, i32, i32) {
    %c0_i32 = arith.constant 0 : i32
    %c0_i32_0 = arith.constant 0 : i32
    %c0_i32_1 = arith.constant 0 : i32
    return %arg0, %c0_i32, %c0_i32_0 : i32, i32, i32
  }
  func.func @transform_1(%arg0: i32) -> (i32, i32) {
    %c0_i32 = arith.constant 0 : i32
    %c0_i32_0 = arith.constant 0 : i32
    %c0_i32_1 = arith.constant 0 : i32
    return %c0_i32, %c0_i32_0 : i32, i32
  }
  func.func @transform_2(%arg0: i32) -> (i32, i32) {
    %c0_i32 = arith.constant 0 : i32
    %c0_i32_0 = arith.constant 0 : i32
    %c0_i32_1 = arith.constant 0 : i32
    return %c0_i32, %c0_i32_0 : i32, i32
  }
  func.func @transform_3(%arg0: i32) -> (i32, i32) {
    %c0_i32 = arith.constant 0 : i32
    %c0_i32_0 = arith.constant 0 : i32
    %c0_i32_1 = arith.constant 0 : i32
    return %c0_i32, %c0_i32_0 : i32, i32
  }
  func.func @transform_4(%arg0: i32) -> (i32, i32) {
    %c0_i32 = arith.constant 0 : i32
    %c0_i32_0 = arith.constant 0 : i32
    %c0_i32_1 = arith.constant 0 : i32
    return %c0_i32, %c0_i32_0 : i32, i32
  }
  func.func @transform_5(%arg0: i32) -> (i32, i32) {
    %c0_i32 = arith.constant 0 : i32
    %c0_i32_0 = arith.constant 0 : i32
    %c0_i32_1 = arith.constant 0 : i32
    return %c0_i32, %c0_i32_0 : i32, i32
  }
  func.func @transform_6(%arg0: i32) -> (i32, i32) {
    %c0_i32 = arith.constant 0 : i32
    %c0_i32_0 = arith.constant 0 : i32
    %c0_i32_1 = arith.constant 0 : i32
    return %c0_i32, %c0_i32_0 : i32, i32
  }
  func.func @transform_7(%arg0: i32) -> (i32, i32) {
    %c0_i32 = arith.constant 0 : i32
    %c0_i32_0 = arith.constant 0 : i32
    %c0_i32_1 = arith.constant 0 : i32
    return %c0_i32, %c0_i32_0 : i32, i32
  }
  func.func @transform_8(%arg0: i32) -> (i32, i32) {
    %c0_i32 = arith.constant 0 : i32
    %c0_i32_0 = arith.constant 0 : i32
    %c0_i32_1 = arith.constant 0 : i32
    return %c0_i32, %c0_i32_0 : i32, i32
  }
  func.func @transform_9(%arg0: i32) -> (i32, i32) {
    %c0_i32 = arith.constant 0 : i32
    %c0_i32_0 = arith.constant 0 : i32
    %c0_i32_1 = arith.constant 0 : i32
    return %c0_i32, %c0_i32_0 : i32, i32
  }
  func.func @transform_10(%arg0: i32) -> (i32, i32) {
    %c0_i32 = arith.constant 0 : i32
    %c0_i32_0 = arith.constant 0 : i32
    %c0_i32_1 = arith.constant 0 : i32
    return %c0_i32, %c0_i32_0 : i32, i32
  }
  func.func @transform_11(%arg0: i32) -> (i32, i32) {
    %c0_i32 = arith.constant 0 : i32
    %c0_i32_0 = arith.constant 0 : i32
    %c0_i32_1 = arith.constant 0 : i32
    return %c0_i32, %c0_i32_0 : i32, i32
  }
  func.func @transform_12(%arg0: i32) -> (i32, i32) {
    %c0_i32 = arith.constant 0 : i32
    %c0_i32_0 = arith.constant 0 : i32
    %c0_i32_1 = arith.constant 0 : i32
    return %c0_i32, %c0_i32_0 : i32, i32
  }
  func.func @transform_13(%arg0: i32) -> (i32, i32) {
    %c0_i32 = arith.constant 0 : i32
    %c0_i32_0 = arith.constant 0 : i32
    %c0_i32_1 = arith.constant 0 : i32
    return %c0_i32, %c0_i32_0 : i32, i32
  }
  func.func @transform_14(%arg0: i32) -> (i32, i32) {
    %c0_i32 = arith.constant 0 : i32
    %c0_i32_0 = arith.constant 0 : i32
    %c0_i32_1 = arith.constant 0 : i32
    return %c0_i32, %c0_i32_0 : i32, i32
  }
  func.func @transform_15(%arg0: i32) -> (i32, i32) {
    %c0_i32 = arith.constant 0 : i32
    %c0_i32_0 = arith.constant 0 : i32
    %c0_i32_1 = arith.constant 0 : i32
    return %c0_i32, %c0_i32_0 : i32, i32
  }
  func.func @transform_16(%arg0: i32) -> (i32, i32) {
    %c0_i32 = arith.constant 0 : i32
    %c0_i32_0 = arith.constant 0 : i32
    %c0_i32_1 = arith.constant 0 : i32
    return %c0_i32, %c0_i32_0 : i32, i32
  }
  func.func @transform_17(%arg0: i32) -> (i32, i32) {
    %c0_i32 = arith.constant 0 : i32
    %c0_i32_0 = arith.constant 0 : i32
    %c0_i32_1 = arith.constant 0 : i32
    return %c0_i32, %c0_i32_0 : i32, i32
  }
  func.func @transform_18(%arg0: i32) -> (i32, i32) {
    %c0_i32 = arith.constant 0 : i32
    %c0_i32_0 = arith.constant 0 : i32
    %c0_i32_1 = arith.constant 0 : i32
    return %c0_i32, %c0_i32_0 : i32, i32
  }
  func.func @transform_19(%arg0: i32) -> (i32, i32) {
    %c0_i32 = arith.constant 0 : i32
    %c0_i32_0 = arith.constant 0 : i32
    %c0_i32_1 = arith.constant 0 : i32
    return %c0_i32, %c0_i32_0 : i32, i32
  }
  func.func @transform_20(%arg0: i32) -> (i32, i32) {
    %c0_i32 = arith.constant 0 : i32
    %c0_i32_0 = arith.constant 0 : i32
    %c0_i32_1 = arith.constant 0 : i32
    return %c0_i32, %c0_i32_0 : i32, i32
  }
  func.func @transform_21(%arg0: i32) -> (i32, i32, i32) {
    %c0_i32 = arith.constant 0 : i32
    %c0_i32_0 = arith.constant 0 : i32
    %c0_i32_1 = arith.constant 0 : i32
    return %arg0, %c0_i32, %c0_i32_0 : i32, i32, i32
  }
}

module attributes {stable_mosaic.version = 11 : i64} {
  func.func @kernel(%arg0: i32, %arg1: memref<1x16x144xf32, #tpu.memory_space<vmem>>, %arg2: memref<1x144xf32, #tpu.memory_space<vmem>>, %arg3: memref<1x144xf32, #tpu.memory_space<vmem>>, %arg4: memref<144x48xbf16, #tpu.memory_space<vmem>>, %arg5: memref<1x48xf32, #tpu.memory_space<vmem>>, %arg6: memref<16x8xf32, #tpu.memory_space<vmem>>, %arg7: memref<16x16xbf16, #tpu.memory_space<vmem>>, %arg8: memref<1x16xf32, #tpu.memory_space<vmem>>, %arg9: memref<16x16xbf16, #tpu.memory_space<vmem>>, %arg10: memref<1x16xf32, #tpu.memory_space<vmem>>, %arg11: memref<1x16xf32, #tpu.memory_space<vmem>>, %arg12: memref<9x16xf32, #tpu.memory_space<vmem>>, %arg13: memref<1x16xf32, #tpu.memory_space<vmem>>, %arg14: memref<1x16xf32, #tpu.memory_space<vmem>>, %arg15: memref<16x4xf32, #tpu.memory_space<vmem>>, %arg16: memref<1x4xf32, #tpu.memory_space<vmem>>, %arg17: memref<4x16xf32, #tpu.memory_space<vmem>>, %arg18: memref<1x16xf32, #tpu.memory_space<vmem>>, %arg19: memref<16x16xbf16, #tpu.memory_space<vmem>>, %arg20: memref<1x16xf32, #tpu.memory_space<vmem>>, %arg21: memref<1x16xf32, #tpu.memory_space<vmem>>, %arg22: memref<1x16x16xf32, #tpu.memory_space<vmem>>) attributes {dimension_semantics = [#tpu.dimension_semantics<parallel>], iteration_bounds = array<i64: 2>, scalar_prefetch = 0 : i64, scratch_operands = 0 : i64, tpu.core_type = #tpu.core_type<tc>, window_params = [{transform_indices = @transform_0, window_bounds = array<i64: 1, 16, 144>}, {pipeline_mode = #tpu.pipeline_mode<synchronous>, transform_indices = @transform_1, window_bounds = array<i64: 1, 144>}, {pipeline_mode = #tpu.pipeline_mode<synchronous>, transform_indices = @transform_2, window_bounds = array<i64: 1, 144>}, {pipeline_mode = #tpu.pipeline_mode<synchronous>, transform_indices = @transform_3, window_bounds = array<i64: 144, 48>}, {pipeline_mode = #tpu.pipeline_mode<synchronous>, transform_indices = @transform_4, window_bounds = array<i64: 1, 48>}, {pipeline_mode = #tpu.pipeline_mode<synchronous>, transform_indices = @transform_5, window_bounds = array<i64: 16, 8>}, {pipeline_mode = #tpu.pipeline_mode<synchronous>, transform_indices = @transform_6, window_bounds = array<i64: 16, 16>}, {pipeline_mode = #tpu.pipeline_mode<synchronous>, transform_indices = @transform_7, window_bounds = array<i64: 1, 16>}, {pipeline_mode = #tpu.pipeline_mode<synchronous>, transform_indices = @transform_8, window_bounds = array<i64: 16, 16>}, {pipeline_mode = #tpu.pipeline_mode<synchronous>, transform_indices = @transform_9, window_bounds = array<i64: 1, 16>}, {pipeline_mode = #tpu.pipeline_mode<synchronous>, transform_indices = @transform_10, window_bounds = array<i64: 1, 16>}, {pipeline_mode = #tpu.pipeline_mode<synchronous>, transform_indices = @transform_11, window_bounds = array<i64: 9, 16>}, {pipeline_mode = #tpu.pipeline_mode<synchronous>, transform_indices = @transform_12, window_bounds = array<i64: 1, 16>}, {pipeline_mode = #tpu.pipeline_mode<synchronous>, transform_indices = @transform_13, window_bounds = array<i64: 1, 16>}, {pipeline_mode = #tpu.pipeline_mode<synchronous>, transform_indices = @transform_14, window_bounds = array<i64: 16, 4>}, {pipeline_mode = #tpu.pipeline_mode<synchronous>, transform_indices = @transform_15, window_bounds = array<i64: 1, 4>}, {pipeline_mode = #tpu.pipeline_mode<synchronous>, transform_indices = @transform_16, window_bounds = array<i64: 4, 16>}, {pipeline_mode = #tpu.pipeline_mode<synchronous>, transform_indices = @transform_17, window_bounds = array<i64: 1, 16>}, {pipeline_mode = #tpu.pipeline_mode<synchronous>, transform_indices = @transform_18, window_bounds = array<i64: 16, 16>}, {pipeline_mode = #tpu.pipeline_mode<synchronous>, transform_indices = @transform_19, window_bounds = array<i64: 1, 16>}, {pipeline_mode = #tpu.pipeline_mode<synchronous>, transform_indices = @transform_20, window_bounds = array<i64: 1, 16>}, {transform_indices = @transform_21, window_bounds = array<i64: 1, 16, 16>}]} {
    %c0 = arith.constant 0 : index
    %c0_0 = arith.constant 0 : index
    %c0_1 = arith.constant 0 : index
    %0 = vector.load %arg1[%c0, %c0_0, %c0_1] : memref<1x16x144xf32, #tpu.memory_space<vmem>>, vector<1x16x144xf32>
    %1 = vector.shape_cast %0 : vector<1x16x144xf32> to vector<16x144xf32>
    %cst = arith.constant dense<0.000000e+00> : vector<16xf32>
    %2 = vector.multi_reduction <add>, %1, %cst [1] : vector<16x144xf32> to vector<16xf32>
    %3 = vector.shape_cast %2 : vector<16xf32> to vector<16x1xf32>
    %cst_2 = arith.constant 1.440000e+02 : f32
    %4 = vector.broadcast %cst_2 : f32 to vector<16x1xf32>
    %5 = arith.divf %3, %4 : vector<16x1xf32>
    %6 = vector.broadcast %5 : vector<16x1xf32> to vector<16x144xf32>
    %7 = arith.subf %1, %6 : vector<16x144xf32>
    %8 = arith.mulf %7, %7 : vector<16x144xf32>
    %cst_3 = arith.constant dense<0.000000e+00> : vector<16xf32>
    %9 = vector.multi_reduction <add>, %8, %cst_3 [1] : vector<16x144xf32> to vector<16xf32>
    %10 = vector.shape_cast %9 : vector<16xf32> to vector<16x1xf32>
    %cst_4 = arith.constant 1.440000e+02 : f32
    %11 = vector.broadcast %cst_4 : f32 to vector<16x1xf32>
    %12 = arith.divf %10, %11 : vector<16x1xf32>
    %cst_5 = arith.constant 9.99999974E-6 : f32
    %13 = vector.broadcast %cst_5 : f32 to vector<16x1xf32>
    %14 = arith.addf %12, %13 : vector<16x1xf32>
    %15 = math.rsqrt %14 : vector<16x1xf32>
    %16 = vector.broadcast %15 : vector<16x1xf32> to vector<16x144xf32>
    %17 = arith.mulf %7, %16 : vector<16x144xf32>
    %c0_6 = arith.constant 0 : index
    %c0_7 = arith.constant 0 : index
    %18 = vector.load %arg2[%c0_6, %c0_7] : memref<1x144xf32, #tpu.memory_space<vmem>>, vector<1x144xf32>
    %19 = vector.broadcast %18 : vector<1x144xf32> to vector<16x144xf32>
    %20 = arith.mulf %17, %19 : vector<16x144xf32>
    %c0_8 = arith.constant 0 : index
    %c0_9 = arith.constant 0 : index
    %21 = vector.load %arg3[%c0_8, %c0_9] : memref<1x144xf32, #tpu.memory_space<vmem>>, vector<1x144xf32>
    %22 = vector.broadcast %21 : vector<1x144xf32> to vector<16x144xf32>
    %23 = arith.addf %20, %22 : vector<16x144xf32>
    %24 = arith.truncf %23 : vector<16x144xf32> to vector<16x144xbf16>
    %c0_10 = arith.constant 0 : index
    %c0_11 = arith.constant 0 : index
    %25 = vector.load %arg4[%c0_10, %c0_11] : memref<144x48xbf16, #tpu.memory_space<vmem>>, vector<144x48xbf16>
    %cst_12 = arith.constant dense<0.000000e+00> : vector<16x48xf32>
    %26 = tpu.matmul %24, %25, %cst_12 {dimension_numbers = #tpu.dot_dimension_numbers<[1], [0], [0], [1], [0, 0, 1, 1], [], []>} : vector<16x144xbf16>, vector<144x48xbf16>, vector<16x48xf32> -> vector<16x48xf32>
    %c0_13 = arith.constant 0 : index
    %c0_14 = arith.constant 0 : index
    %27 = vector.load %arg5[%c0_13, %c0_14] : memref<1x48xf32, #tpu.memory_space<vmem>>, vector<1x48xf32>
    %28 = vector.broadcast %27 : vector<1x48xf32> to vector<16x48xf32>
    %29 = arith.addf %26, %28 : vector<16x48xf32>
    %30 = vector.extract_strided_slice %29 {offsets = [0, 0], sizes = [16, 16], strides = [1, 1]} : vector<16x48xf32> to vector<16x16xf32>
    %31 = vector.extract_strided_slice %29 {offsets = [0, 16], sizes = [16, 16], strides = [1, 1]} : vector<16x48xf32> to vector<16x16xf32>
    %32 = vector.extract_strided_slice %29 {offsets = [0, 32], sizes = [16, 16], strides = [1, 1]} : vector<16x48xf32> to vector<16x16xf32>
    %33 = arith.mulf %30, %30 : vector<16x16xf32>
    %cst_15 = arith.constant dense<0.000000e+00> : vector<16xf32>
    %34 = vector.multi_reduction <add>, %33, %cst_15 [1] : vector<16x16xf32> to vector<16xf32>
    %35 = vector.shape_cast %34 : vector<16xf32> to vector<16x1xf32>
    %cst_16 = arith.constant 5.000000e-01 : f32
    %36 = vector.broadcast %cst_16 : f32 to vector<16x1xf32>
    %37 = arith.mulf %36, %35 : vector<16x1xf32>
    %c0_17 = arith.constant 0 : index
    %c0_18 = arith.constant 0 : index
    %38 = vector.load %arg6[%c0_17, %c0_18] : memref<16x8xf32, #tpu.memory_space<vmem>>, vector<16x8xf32>
    %cst_19 = arith.constant dense<0.000000e+00> : vector<16x8xf32>
    %39 = tpu.matmul %30, %38, %cst_19 {dimension_numbers = #tpu.dot_dimension_numbers<[1], [0], [0], [1], [0, 0, 1, 1], [], []>} : vector<16x16xf32>, vector<16x8xf32>, vector<16x8xf32> -> vector<16x8xf32>
    %40 = vector.broadcast %37 : vector<16x1xf32> to vector<16x8xf32>
    %41 = arith.subf %39, %40 : vector<16x8xf32>
    %42 = math.exp %41 : vector<16x8xf32>
    %cst_20 = arith.constant 0.353553385 : f32
    %43 = vector.broadcast %cst_20 : f32 to vector<16x8xf32>
    %44 = arith.mulf %42, %43 : vector<16x8xf32>
    %45 = vector.shape_cast %44 : vector<16x8xf32> to vector<1x16x8xf32>
    %46 = arith.mulf %31, %31 : vector<16x16xf32>
    %cst_21 = arith.constant dense<0.000000e+00> : vector<16xf32>
    %47 = vector.multi_reduction <add>, %46, %cst_21 [1] : vector<16x16xf32> to vector<16xf32>
    %48 = vector.shape_cast %47 : vector<16xf32> to vector<16x1xf32>
    %cst_22 = arith.constant 5.000000e-01 : f32
    %49 = vector.broadcast %cst_22 : f32 to vector<16x1xf32>
    %50 = arith.mulf %49, %48 : vector<16x1xf32>
    %c0_23 = arith.constant 0 : index
    %c0_24 = arith.constant 0 : index
    %51 = vector.load %arg6[%c0_23, %c0_24] : memref<16x8xf32, #tpu.memory_space<vmem>>, vector<16x8xf32>
    %cst_25 = arith.constant dense<0.000000e+00> : vector<16x8xf32>
    %52 = tpu.matmul %31, %51, %cst_25 {dimension_numbers = #tpu.dot_dimension_numbers<[1], [0], [0], [1], [0, 0, 1, 1], [], []>} : vector<16x16xf32>, vector<16x8xf32>, vector<16x8xf32> -> vector<16x8xf32>
    %53 = vector.broadcast %50 : vector<16x1xf32> to vector<16x8xf32>
    %54 = arith.subf %52, %53 : vector<16x8xf32>
    %55 = math.exp %54 : vector<16x8xf32>
    %cst_26 = arith.constant 0.353553385 : f32
    %56 = vector.broadcast %cst_26 : f32 to vector<16x8xf32>
    %57 = arith.mulf %55, %56 : vector<16x8xf32>
    %58 = vector.shape_cast %57 : vector<16x8xf32> to vector<1x16x8xf32>
    %59 = vector.shape_cast %32 : vector<16x16xf32> to vector<1x16x16xf32>
    %cst_27 = arith.constant dense<0.000000e+00> : vector<1x8xf32>
    %60 = vector.multi_reduction <add>, %45, %cst_27 [1] : vector<1x16x8xf32> to vector<1x8xf32>
    %61 = vector.shape_cast %60 : vector<1x8xf32> to vector<1x1x8xf32>
    %62 = vector.broadcast %61 : vector<1x1x8xf32> to vector<1x16x8xf32>
    %63 = arith.mulf %58, %62 : vector<1x16x8xf32>
    %cst_28 = arith.constant dense<0.000000e+00> : vector<1x16xf32>
    %64 = vector.multi_reduction <add>, %63, %cst_28 [2] : vector<1x16x8xf32> to vector<1x16xf32>
    %65 = vector.shape_cast %64 : vector<1x16xf32> to vector<1x16x1xf32>
    "tpu.trace_start"() <{level = 10 : i32, message = "btm,bte->bme"}> : () -> ()
    %cst_29 = arith.constant dense<0.000000e+00> : vector<1x8x16xf32>
    %66 = tpu.matmul %45, %59, %cst_29 {dimension_numbers = #tpu.dot_dimension_numbers<[1], [1], [2], [2], [0, 0, 0, 2, 1, 2], [0], [0]>} : vector<1x16x8xf32>, vector<1x16x16xf32>, vector<1x8x16xf32> -> vector<1x8x16xf32>
    "tpu.trace_stop"() : () -> ()
    "tpu.trace_start"() <{level = 10 : i32, message = "btm,bme->bte"}> : () -> ()
    %cst_30 = arith.constant dense<0.000000e+00> : vector<1x16x16xf32>
    %67 = tpu.matmul %58, %66, %cst_30 {dimension_numbers = #tpu.dot_dimension_numbers<[2], [1], [1], [2], [0, 0, 0, 1, 1, 2], [0], [0]>} : vector<1x16x8xf32>, vector<1x8x16xf32>, vector<1x16x16xf32> -> vector<1x16x16xf32>
    "tpu.trace_stop"() : () -> ()
    %68 = vector.shape_cast %67 : vector<1x16x16xf32> to vector<16x16xf32>
    %69 = vector.shape_cast %65 : vector<1x16x1xf32> to vector<16x1xf32>
    %cst_31 = arith.constant 9.99999993E-9 : f32
    %70 = vector.broadcast %cst_31 : f32 to vector<16x1xf32>
    %71 = arith.addf %69, %70 : vector<16x1xf32>
    %72 = tpu.reciprocal %71 {approx = true} : vector<16x1xf32> -> vector<16x1xf32>
    %73 = vector.broadcast %72 : vector<16x1xf32> to vector<16x16xf32>
    %74 = arith.mulf %68, %73 : vector<16x16xf32>
    %75 = arith.truncf %74 : vector<16x16xf32> to vector<16x16xbf16>
    %c0_32 = arith.constant 0 : index
    %c0_33 = arith.constant 0 : index
    %76 = vector.load %arg7[%c0_32, %c0_33] : memref<16x16xbf16, #tpu.memory_space<vmem>>, vector<16x16xbf16>
    %cst_34 = arith.constant dense<0.000000e+00> : vector<16x16xf32>
    %77 = tpu.matmul %75, %76, %cst_34 {dimension_numbers = #tpu.dot_dimension_numbers<[1], [0], [0], [1], [0, 0, 1, 1], [], []>} : vector<16x16xbf16>, vector<16x16xbf16>, vector<16x16xf32> -> vector<16x16xf32>
    %c0_35 = arith.constant 0 : index
    %c0_36 = arith.constant 0 : index
    %78 = vector.load %arg8[%c0_35, %c0_36] : memref<1x16xf32, #tpu.memory_space<vmem>>, vector<1x16xf32>
    %79 = vector.broadcast %78 : vector<1x16xf32> to vector<16x16xf32>
    %80 = arith.addf %77, %79 : vector<16x16xf32>
    %81 = arith.addf %32, %80 : vector<16x16xf32>
    %82 = arith.truncf %81 : vector<16x16xf32> to vector<16x16xbf16>
    %c0_37 = arith.constant 0 : index
    %c0_38 = arith.constant 0 : index
    %83 = vector.load %arg9[%c0_37, %c0_38] : memref<16x16xbf16, #tpu.memory_space<vmem>>, vector<16x16xbf16>
    %cst_39 = arith.constant dense<0.000000e+00> : vector<16x16xf32>
    %84 = tpu.matmul %82, %83, %cst_39 {dimension_numbers = #tpu.dot_dimension_numbers<[1], [0], [0], [1], [0, 0, 1, 1], [], []>} : vector<16x16xbf16>, vector<16x16xbf16>, vector<16x16xf32> -> vector<16x16xf32>
    %c0_40 = arith.constant 0 : index
    %c0_41 = arith.constant 0 : index
    %85 = vector.load %arg10[%c0_40, %c0_41] : memref<1x16xf32, #tpu.memory_space<vmem>>, vector<1x16xf32>
    %86 = vector.broadcast %85 : vector<1x16xf32> to vector<16x16xf32>
    %87 = arith.mulf %84, %86 : vector<16x16xf32>
    %c0_42 = arith.constant 0 : index
    %c0_43 = arith.constant 0 : index
    %88 = vector.load %arg11[%c0_42, %c0_43] : memref<1x16xf32, #tpu.memory_space<vmem>>, vector<1x16xf32>
    %89 = vector.broadcast %88 : vector<1x16xf32> to vector<16x16xf32>
    %90 = arith.addf %87, %89 : vector<16x16xf32>
    %cst_44 = arith.constant 3.000000e+00 : f32
    %91 = vector.broadcast %cst_44 : f32 to vector<16x16xf32>
    %92 = arith.addf %90, %91 : vector<16x16xf32>
    %cst_45 = arith.constant 0.000000e+00 : f32
    %cst_46 = arith.constant 6.000000e+00 : f32
    %93 = vector.broadcast %cst_45 : f32 to vector<16x16xf32>
    %94 = arith.maximumf %93, %92 : vector<16x16xf32>
    %95 = vector.broadcast %cst_46 : f32 to vector<16x16xf32>
    %96 = arith.minimumf %95, %94 : vector<16x16xf32>
    %cst_47 = arith.constant 0.166666672 : f32
    %97 = vector.broadcast %cst_47 : f32 to vector<16x16xf32>
    %98 = arith.mulf %96, %97 : vector<16x16xf32>
    %99 = arith.mulf %90, %98 : vector<16x16xf32>
    %100 = tpu.iota {dimensions = array<i32: 1>} : vector<1x4x4x1xi32>
    %101 = vector.shape_cast %100 : vector<1x4x4x1xi32> to vector<16x1xi32>
    %102 = tpu.iota {dimensions = array<i32: 2>} : vector<1x4x4x1xi32>
    %103 = vector.shape_cast %102 : vector<1x4x4x1xi32> to vector<16x1xi32>
    %c1_i32 = arith.constant 1 : i32
    %104 = vector.broadcast %c1_i32 : i32 to vector<16x1xi32>
    %105 = arith.cmpi sge, %101, %104 : vector<16x1xi32>
    %c3_i32 = arith.constant 3 : i32
    %106 = vector.broadcast %c3_i32 : i32 to vector<16x1xi32>
    %107 = arith.cmpi slt, %101, %106 : vector<16x1xi32>
    %c1_i32_48 = arith.constant 1 : i32
    %108 = vector.broadcast %c1_i32_48 : i32 to vector<16x1xi32>
    %109 = arith.cmpi sge, %103, %108 : vector<16x1xi32>
    %c3_i32_49 = arith.constant 3 : i32
    %110 = vector.broadcast %c3_i32_49 : i32 to vector<16x1xi32>
    %111 = arith.cmpi slt, %103, %110 : vector<16x1xi32>
    %c0_50 = arith.constant 0 : index
    %c0_51 = arith.constant 0 : index
    %112 = vector.load %arg12[%c0_50, %c0_51] : memref<9x16xf32, #tpu.memory_space<vmem>>, vector<9x16xf32>
    %113 = vector.extract_strided_slice %112 {offsets = [4, 0], sizes = [1, 16], strides = [1, 1]} : vector<9x16xf32> to vector<1x16xf32>
    %114 = vector.broadcast %113 : vector<1x16xf32> to vector<16x16xf32>
    %115 = arith.mulf %99, %114 : vector<16x16xf32>
    %116 = vector.extract_strided_slice %99 {offsets = [11, 0], sizes = [5, 16], strides = [1, 1]} : vector<16x16xf32> to vector<5x16xf32>
    %117 = vector.extract_strided_slice %99 {offsets = [0, 0], sizes = [11, 16], strides = [1, 1]} : vector<16x16xf32> to vector<11x16xf32>
    %118 = tpu.concatenate %116, %117 in 0 : vector<5x16xf32>, vector<11x16xf32> -> vector<16x16xf32>
    %119 = arith.andi %105, %109 : vector<16x1xi1>
    %cst_52 = arith.constant 0.000000e+00 : f32
    %120 = vector.shape_cast %119 : vector<16x1xi1> to vector<16x1xi1>
    %121 = vector.broadcast %120 : vector<16x1xi1> to vector<16x16xi1>
    %122 = vector.broadcast %cst_52 : f32 to vector<16x16xf32>
    %123 = arith.select %121, %118, %122 : vector<16x16xi1>, vector<16x16xf32>
    %124 = vector.extract_strided_slice %112 {offsets = [0, 0], sizes = [1, 16], strides = [1, 1]} : vector<9x16xf32> to vector<1x16xf32>
    %125 = vector.broadcast %124 : vector<1x16xf32> to vector<16x16xf32>
    %126 = arith.mulf %123, %125 : vector<16x16xf32>
    %127 = arith.addf %115, %126 : vector<16x16xf32>
    %128 = vector.extract_strided_slice %99 {offsets = [12, 0], sizes = [4, 16], strides = [1, 1]} : vector<16x16xf32> to vector<4x16xf32>
    %129 = vector.extract_strided_slice %99 {offsets = [0, 0], sizes = [12, 16], strides = [1, 1]} : vector<16x16xf32> to vector<12x16xf32>
    %130 = tpu.concatenate %128, %129 in 0 : vector<4x16xf32>, vector<12x16xf32> -> vector<16x16xf32>
    %cst_53 = arith.constant 0.000000e+00 : f32
    %131 = vector.shape_cast %105 : vector<16x1xi1> to vector<16x1xi1>
    %132 = vector.broadcast %131 : vector<16x1xi1> to vector<16x16xi1>
    %133 = vector.broadcast %cst_53 : f32 to vector<16x16xf32>
    %134 = arith.select %132, %130, %133 : vector<16x16xi1>, vector<16x16xf32>
    %135 = vector.extract_strided_slice %112 {offsets = [1, 0], sizes = [1, 16], strides = [1, 1]} : vector<9x16xf32> to vector<1x16xf32>
    %136 = vector.broadcast %135 : vector<1x16xf32> to vector<16x16xf32>
    %137 = arith.mulf %134, %136 : vector<16x16xf32>
    %138 = arith.addf %127, %137 : vector<16x16xf32>
    %139 = vector.extract_strided_slice %99 {offsets = [13, 0], sizes = [3, 16], strides = [1, 1]} : vector<16x16xf32> to vector<3x16xf32>
    %140 = vector.extract_strided_slice %99 {offsets = [0, 0], sizes = [13, 16], strides = [1, 1]} : vector<16x16xf32> to vector<13x16xf32>
    %141 = tpu.concatenate %139, %140 in 0 : vector<3x16xf32>, vector<13x16xf32> -> vector<16x16xf32>
    %142 = arith.andi %105, %111 : vector<16x1xi1>
    %cst_54 = arith.constant 0.000000e+00 : f32
    %143 = vector.shape_cast %142 : vector<16x1xi1> to vector<16x1xi1>
    %144 = vector.broadcast %143 : vector<16x1xi1> to vector<16x16xi1>
    %145 = vector.broadcast %cst_54 : f32 to vector<16x16xf32>
    %146 = arith.select %144, %141, %145 : vector<16x16xi1>, vector<16x16xf32>
    %147 = vector.extract_strided_slice %112 {offsets = [2, 0], sizes = [1, 16], strides = [1, 1]} : vector<9x16xf32> to vector<1x16xf32>
    %148 = vector.broadcast %147 : vector<1x16xf32> to vector<16x16xf32>
    %149 = arith.mulf %146, %148 : vector<16x16xf32>
    %150 = arith.addf %138, %149 : vector<16x16xf32>
    %151 = vector.extract_strided_slice %99 {offsets = [15, 0], sizes = [1, 16], strides = [1, 1]} : vector<16x16xf32> to vector<1x16xf32>
    %152 = vector.extract_strided_slice %99 {offsets = [0, 0], sizes = [15, 16], strides = [1, 1]} : vector<16x16xf32> to vector<15x16xf32>
    %153 = tpu.concatenate %151, %152 in 0 : vector<1x16xf32>, vector<15x16xf32> -> vector<16x16xf32>
    %cst_55 = arith.constant 0.000000e+00 : f32
    %154 = vector.shape_cast %109 : vector<16x1xi1> to vector<16x1xi1>
    %155 = vector.broadcast %154 : vector<16x1xi1> to vector<16x16xi1>
    %156 = vector.broadcast %cst_55 : f32 to vector<16x16xf32>
    %157 = arith.select %155, %153, %156 : vector<16x16xi1>, vector<16x16xf32>
    %158 = vector.extract_strided_slice %112 {offsets = [3, 0], sizes = [1, 16], strides = [1, 1]} : vector<9x16xf32> to vector<1x16xf32>
    %159 = vector.broadcast %158 : vector<1x16xf32> to vector<16x16xf32>
    %160 = arith.mulf %157, %159 : vector<16x16xf32>
    %161 = arith.addf %150, %160 : vector<16x16xf32>
    %162 = vector.extract_strided_slice %99 {offsets = [1, 0], sizes = [15, 16], strides = [1, 1]} : vector<16x16xf32> to vector<15x16xf32>
    %163 = vector.extract_strided_slice %99 {offsets = [0, 0], sizes = [1, 16], strides = [1, 1]} : vector<16x16xf32> to vector<1x16xf32>
    %164 = tpu.concatenate %162, %163 in 0 : vector<15x16xf32>, vector<1x16xf32> -> vector<16x16xf32>
    %cst_56 = arith.constant 0.000000e+00 : f32
    %165 = vector.shape_cast %111 : vector<16x1xi1> to vector<16x1xi1>
    %166 = vector.broadcast %165 : vector<16x1xi1> to vector<16x16xi1>
    %167 = vector.broadcast %cst_56 : f32 to vector<16x16xf32>
    %168 = arith.select %166, %164, %167 : vector<16x16xi1>, vector<16x16xf32>
    %169 = vector.extract_strided_slice %112 {offsets = [5, 0], sizes = [1, 16], strides = [1, 1]} : vector<9x16xf32> to vector<1x16xf32>
    %170 = vector.broadcast %169 : vector<1x16xf32> to vector<16x16xf32>
    %171 = arith.mulf %168, %170 : vector<16x16xf32>
    %172 = arith.addf %161, %171 : vector<16x16xf32>
    %173 = vector.extract_strided_slice %99 {offsets = [3, 0], sizes = [13, 16], strides = [1, 1]} : vector<16x16xf32> to vector<13x16xf32>
    %174 = vector.extract_strided_slice %99 {offsets = [0, 0], sizes = [3, 16], strides = [1, 1]} : vector<16x16xf32> to vector<3x16xf32>
    %175 = tpu.concatenate %173, %174 in 0 : vector<13x16xf32>, vector<3x16xf32> -> vector<16x16xf32>
    %176 = arith.andi %107, %109 : vector<16x1xi1>
    %cst_57 = arith.constant 0.000000e+00 : f32
    %177 = vector.shape_cast %176 : vector<16x1xi1> to vector<16x1xi1>
    %178 = vector.broadcast %177 : vector<16x1xi1> to vector<16x16xi1>
    %179 = vector.broadcast %cst_57 : f32 to vector<16x16xf32>
    %180 = arith.select %178, %175, %179 : vector<16x16xi1>, vector<16x16xf32>
    %181 = vector.extract_strided_slice %112 {offsets = [6, 0], sizes = [1, 16], strides = [1, 1]} : vector<9x16xf32> to vector<1x16xf32>
    %182 = vector.broadcast %181 : vector<1x16xf32> to vector<16x16xf32>
    %183 = arith.mulf %180, %182 : vector<16x16xf32>
    %184 = arith.addf %172, %183 : vector<16x16xf32>
    %185 = vector.extract_strided_slice %99 {offsets = [4, 0], sizes = [12, 16], strides = [1, 1]} : vector<16x16xf32> to vector<12x16xf32>
    %186 = vector.extract_strided_slice %99 {offsets = [0, 0], sizes = [4, 16], strides = [1, 1]} : vector<16x16xf32> to vector<4x16xf32>
    %187 = tpu.concatenate %185, %186 in 0 : vector<12x16xf32>, vector<4x16xf32> -> vector<16x16xf32>
    %cst_58 = arith.constant 0.000000e+00 : f32
    %188 = vector.shape_cast %107 : vector<16x1xi1> to vector<16x1xi1>
    %189 = vector.broadcast %188 : vector<16x1xi1> to vector<16x16xi1>
    %190 = vector.broadcast %cst_58 : f32 to vector<16x16xf32>
    %191 = arith.select %189, %187, %190 : vector<16x16xi1>, vector<16x16xf32>
    %192 = vector.extract_strided_slice %112 {offsets = [7, 0], sizes = [1, 16], strides = [1, 1]} : vector<9x16xf32> to vector<1x16xf32>
    %193 = vector.broadcast %192 : vector<1x16xf32> to vector<16x16xf32>
    %194 = arith.mulf %191, %193 : vector<16x16xf32>
    %195 = arith.addf %184, %194 : vector<16x16xf32>
    %196 = vector.extract_strided_slice %99 {offsets = [5, 0], sizes = [11, 16], strides = [1, 1]} : vector<16x16xf32> to vector<11x16xf32>
    %197 = vector.extract_strided_slice %99 {offsets = [0, 0], sizes = [5, 16], strides = [1, 1]} : vector<16x16xf32> to vector<5x16xf32>
    %198 = tpu.concatenate %196, %197 in 0 : vector<11x16xf32>, vector<5x16xf32> -> vector<16x16xf32>
    %199 = arith.andi %107, %111 : vector<16x1xi1>
    %cst_59 = arith.constant 0.000000e+00 : f32
    %200 = vector.shape_cast %199 : vector<16x1xi1> to vector<16x1xi1>
    %201 = vector.broadcast %200 : vector<16x1xi1> to vector<16x16xi1>
    %202 = vector.broadcast %cst_59 : f32 to vector<16x16xf32>
    %203 = arith.select %201, %198, %202 : vector<16x16xi1>, vector<16x16xf32>
    %204 = vector.extract_strided_slice %112 {offsets = [8, 0], sizes = [1, 16], strides = [1, 1]} : vector<9x16xf32> to vector<1x16xf32>
    %205 = vector.broadcast %204 : vector<1x16xf32> to vector<16x16xf32>
    %206 = arith.mulf %203, %205 : vector<16x16xf32>
    %207 = arith.addf %195, %206 : vector<16x16xf32>
    %c0_60 = arith.constant 0 : index
    %c0_61 = arith.constant 0 : index
    %208 = vector.load %arg13[%c0_60, %c0_61] : memref<1x16xf32, #tpu.memory_space<vmem>>, vector<1x16xf32>
    %209 = vector.broadcast %208 : vector<1x16xf32> to vector<16x16xf32>
    %210 = arith.mulf %207, %209 : vector<16x16xf32>
    %c0_62 = arith.constant 0 : index
    %c0_63 = arith.constant 0 : index
    %211 = vector.load %arg14[%c0_62, %c0_63] : memref<1x16xf32, #tpu.memory_space<vmem>>, vector<1x16xf32>
    %212 = vector.broadcast %211 : vector<1x16xf32> to vector<16x16xf32>
    %213 = arith.addf %210, %212 : vector<16x16xf32>
    %cst_64 = arith.constant 3.000000e+00 : f32
    %214 = vector.broadcast %cst_64 : f32 to vector<16x16xf32>
    %215 = arith.addf %213, %214 : vector<16x16xf32>
    %cst_65 = arith.constant 0.000000e+00 : f32
    %cst_66 = arith.constant 6.000000e+00 : f32
    %216 = vector.broadcast %cst_65 : f32 to vector<16x16xf32>
    %217 = arith.maximumf %216, %215 : vector<16x16xf32>
    %218 = vector.broadcast %cst_66 : f32 to vector<16x16xf32>
    %219 = arith.minimumf %218, %217 : vector<16x16xf32>
    %cst_67 = arith.constant 0.166666672 : f32
    %220 = vector.broadcast %cst_67 : f32 to vector<16x16xf32>
    %221 = arith.mulf %219, %220 : vector<16x16xf32>
    %222 = arith.mulf %213, %221 : vector<16x16xf32>
    %223 = vector.shape_cast %222 : vector<16x16xf32> to vector<1x16x16xf32>
    %cst_68 = arith.constant dense<0.000000e+00> : vector<1x16xf32>
    %224 = vector.multi_reduction <add>, %223, %cst_68 [1] : vector<1x16x16xf32> to vector<1x16xf32>
    %cst_69 = arith.constant 1.600000e+01 : f32
    %225 = vector.broadcast %cst_69 : f32 to vector<1x16xf32>
    %226 = arith.divf %224, %225 : vector<1x16xf32>
    %c0_70 = arith.constant 0 : index
    %c0_71 = arith.constant 0 : index
    %227 = vector.load %arg15[%c0_70, %c0_71] : memref<16x4xf32, #tpu.memory_space<vmem>>, vector<16x4xf32>
    %cst_72 = arith.constant dense<0.000000e+00> : vector<1x4xf32>
    %228 = tpu.matmul %226, %227, %cst_72 {dimension_numbers = #tpu.dot_dimension_numbers<[1], [0], [0], [1], [0, 0, 1, 1], [], []>} : vector<1x16xf32>, vector<16x4xf32>, vector<1x4xf32> -> vector<1x4xf32>
    %c0_73 = arith.constant 0 : index
    %c0_74 = arith.constant 0 : index
    %229 = vector.load %arg16[%c0_73, %c0_74] : memref<1x4xf32, #tpu.memory_space<vmem>>, vector<1x4xf32>
    %230 = arith.addf %228, %229 : vector<1x4xf32>
    %cst_75 = arith.constant 0.000000e+00 : f32
    %231 = vector.broadcast %cst_75 : f32 to vector<1x4xf32>
    %232 = arith.maximumf %230, %231 : vector<1x4xf32>
    %c0_76 = arith.constant 0 : index
    %c0_77 = arith.constant 0 : index
    %233 = vector.load %arg17[%c0_76, %c0_77] : memref<4x16xf32, #tpu.memory_space<vmem>>, vector<4x16xf32>
    %cst_78 = arith.constant dense<0.000000e+00> : vector<1x16xf32>
    %234 = tpu.matmul %232, %233, %cst_78 {dimension_numbers = #tpu.dot_dimension_numbers<[1], [0], [0], [1], [0, 0, 1, 1], [], []>} : vector<1x4xf32>, vector<4x16xf32>, vector<1x16xf32> -> vector<1x16xf32>
    %c0_79 = arith.constant 0 : index
    %c0_80 = arith.constant 0 : index
    %235 = vector.load %arg18[%c0_79, %c0_80] : memref<1x16xf32, #tpu.memory_space<vmem>>, vector<1x16xf32>
    %236 = arith.addf %234, %235 : vector<1x16xf32>
    %cst_81 = arith.constant 3.000000e+00 : f32
    %237 = vector.broadcast %cst_81 : f32 to vector<1x16xf32>
    %238 = arith.addf %236, %237 : vector<1x16xf32>
    %cst_82 = arith.constant 0.000000e+00 : f32
    %cst_83 = arith.constant 6.000000e+00 : f32
    %239 = vector.broadcast %cst_82 : f32 to vector<1x16xf32>
    %240 = arith.maximumf %239, %238 : vector<1x16xf32>
    %241 = vector.broadcast %cst_83 : f32 to vector<1x16xf32>
    %242 = arith.minimumf %241, %240 : vector<1x16xf32>
    %cst_84 = arith.constant 0.166666672 : f32
    %243 = vector.broadcast %cst_84 : f32 to vector<1x16xf32>
    %244 = arith.mulf %242, %243 : vector<1x16xf32>
    %245 = vector.shape_cast %244 : vector<1x16xf32> to vector<1x1x16xf32>
    %246 = vector.broadcast %245 : vector<1x1x16xf32> to vector<1x16x16xf32>
    %247 = arith.mulf %223, %246 : vector<1x16x16xf32>
    %248 = vector.shape_cast %247 : vector<1x16x16xf32> to vector<16x16xf32>
    %249 = arith.truncf %248 : vector<16x16xf32> to vector<16x16xbf16>
    %c0_85 = arith.constant 0 : index
    %c0_86 = arith.constant 0 : index
    %250 = vector.load %arg19[%c0_85, %c0_86] : memref<16x16xbf16, #tpu.memory_space<vmem>>, vector<16x16xbf16>
    %cst_87 = arith.constant dense<0.000000e+00> : vector<16x16xf32>
    %251 = tpu.matmul %249, %250, %cst_87 {dimension_numbers = #tpu.dot_dimension_numbers<[1], [0], [0], [1], [0, 0, 1, 1], [], []>} : vector<16x16xbf16>, vector<16x16xbf16>, vector<16x16xf32> -> vector<16x16xf32>
    %c0_88 = arith.constant 0 : index
    %c0_89 = arith.constant 0 : index
    %252 = vector.load %arg20[%c0_88, %c0_89] : memref<1x16xf32, #tpu.memory_space<vmem>>, vector<1x16xf32>
    %253 = vector.broadcast %252 : vector<1x16xf32> to vector<16x16xf32>
    %254 = arith.mulf %251, %253 : vector<16x16xf32>
    %c0_90 = arith.constant 0 : index
    %c0_91 = arith.constant 0 : index
    %255 = vector.load %arg21[%c0_90, %c0_91] : memref<1x16xf32, #tpu.memory_space<vmem>>, vector<1x16xf32>
    %256 = vector.broadcast %255 : vector<1x16xf32> to vector<16x16xf32>
    %257 = arith.addf %254, %256 : vector<16x16xf32>
    %258 = arith.addf %81, %257 : vector<16x16xf32>
    %259 = vector.shape_cast %258 : vector<16x16xf32> to vector<1x16x16xf32>
    %c0_92 = arith.constant 0 : index
    %c0_93 = arith.constant 0 : index
    %c0_94 = arith.constant 0 : index
    %260 = vector.load %arg22[%c0_92, %c0_93, %c0_94] : memref<1x16x16xf32, #tpu.memory_space<vmem>>, vector<1x16x16xf32>
    tpu.vector_store %arg22[%c0_92, %c0_93, %c0_94], %259 {strides = array<i32>} : memref<1x16x16xf32, #tpu.memory_space<vmem>>, vector<1x16x16xf32>,
    return
  }
  func.func @transform_0(%arg0: i32) -> (i32, i32, i32) {
    %c0_i32 = arith.constant 0 : i32
    %c0_i32_0 = arith.constant 0 : i32
    %c0_i32_1 = arith.constant 0 : i32
    return %arg0, %c0_i32, %c0_i32_0 : i32, i32, i32
  }
  func.func @transform_1(%arg0: i32) -> (i32, i32) {
    %c0_i32 = arith.constant 0 : i32
    %c0_i32_0 = arith.constant 0 : i32
    %c0_i32_1 = arith.constant 0 : i32
    return %c0_i32, %c0_i32_0 : i32, i32
  }
  func.func @transform_2(%arg0: i32) -> (i32, i32) {
    %c0_i32 = arith.constant 0 : i32
    %c0_i32_0 = arith.constant 0 : i32
    %c0_i32_1 = arith.constant 0 : i32
    return %c0_i32, %c0_i32_0 : i32, i32
  }
  func.func @transform_3(%arg0: i32) -> (i32, i32) {
    %c0_i32 = arith.constant 0 : i32
    %c0_i32_0 = arith.constant 0 : i32
    %c0_i32_1 = arith.constant 0 : i32
    return %c0_i32, %c0_i32_0 : i32, i32
  }
  func.func @transform_4(%arg0: i32) -> (i32, i32) {
    %c0_i32 = arith.constant 0 : i32
    %c0_i32_0 = arith.constant 0 : i32
    %c0_i32_1 = arith.constant 0 : i32
    return %c0_i32, %c0_i32_0 : i32, i32
  }
  func.func @transform_5(%arg0: i32) -> (i32, i32) {
    %c0_i32 = arith.constant 0 : i32
    %c0_i32_0 = arith.constant 0 : i32
    %c0_i32_1 = arith.constant 0 : i32
    return %c0_i32, %c0_i32_0 : i32, i32
  }
  func.func @transform_6(%arg0: i32) -> (i32, i32) {
    %c0_i32 = arith.constant 0 : i32
    %c0_i32_0 = arith.constant 0 : i32
    %c0_i32_1 = arith.constant 0 : i32
    return %c0_i32, %c0_i32_0 : i32, i32
  }
  func.func @transform_7(%arg0: i32) -> (i32, i32) {
    %c0_i32 = arith.constant 0 : i32
    %c0_i32_0 = arith.constant 0 : i32
    %c0_i32_1 = arith.constant 0 : i32
    return %c0_i32, %c0_i32_0 : i32, i32
  }
  func.func @transform_8(%arg0: i32) -> (i32, i32) {
    %c0_i32 = arith.constant 0 : i32
    %c0_i32_0 = arith.constant 0 : i32
    %c0_i32_1 = arith.constant 0 : i32
    return %c0_i32, %c0_i32_0 : i32, i32
  }
  func.func @transform_9(%arg0: i32) -> (i32, i32) {
    %c0_i32 = arith.constant 0 : i32
    %c0_i32_0 = arith.constant 0 : i32
    %c0_i32_1 = arith.constant 0 : i32
    return %c0_i32, %c0_i32_0 : i32, i32
  }
  func.func @transform_10(%arg0: i32) -> (i32, i32) {
    %c0_i32 = arith.constant 0 : i32
    %c0_i32_0 = arith.constant 0 : i32
    %c0_i32_1 = arith.constant 0 : i32
    return %c0_i32, %c0_i32_0 : i32, i32
  }
  func.func @transform_11(%arg0: i32) -> (i32, i32) {
    %c0_i32 = arith.constant 0 : i32
    %c0_i32_0 = arith.constant 0 : i32
    %c0_i32_1 = arith.constant 0 : i32
    return %c0_i32, %c0_i32_0 : i32, i32
  }
  func.func @transform_12(%arg0: i32) -> (i32, i32) {
    %c0_i32 = arith.constant 0 : i32
    %c0_i32_0 = arith.constant 0 : i32
    %c0_i32_1 = arith.constant 0 : i32
    return %c0_i32, %c0_i32_0 : i32, i32
  }
  func.func @transform_13(%arg0: i32) -> (i32, i32) {
    %c0_i32 = arith.constant 0 : i32
    %c0_i32_0 = arith.constant 0 : i32
    %c0_i32_1 = arith.constant 0 : i32
    return %c0_i32, %c0_i32_0 : i32, i32
  }
  func.func @transform_14(%arg0: i32) -> (i32, i32) {
    %c0_i32 = arith.constant 0 : i32
    %c0_i32_0 = arith.constant 0 : i32
    %c0_i32_1 = arith.constant 0 : i32
    return %c0_i32, %c0_i32_0 : i32, i32
  }
  func.func @transform_15(%arg0: i32) -> (i32, i32) {
    %c0_i32 = arith.constant 0 : i32
    %c0_i32_0 = arith.constant 0 : i32
    %c0_i32_1 = arith.constant 0 : i32
    return %c0_i32, %c0_i32_0 : i32, i32
  }
  func.func @transform_16(%arg0: i32) -> (i32, i32) {
    %c0_i32 = arith.constant 0 : i32
    %c0_i32_0 = arith.constant 0 : i32
    %c0_i32_1 = arith.constant 0 : i32
    return %c0_i32, %c0_i32_0 : i32, i32
  }
  func.func @transform_17(%arg0: i32) -> (i32, i32) {
    %c0_i32 = arith.constant 0 : i32
    %c0_i32_0 = arith.constant 0 : i32
    %c0_i32_1 = arith.constant 0 : i32
    return %c0_i32, %c0_i32_0 : i32, i32
  }
  func.func @transform_18(%arg0: i32) -> (i32, i32) {
    %c0_i32 = arith.constant 0 : i32
    %c0_i32_0 = arith.constant 0 : i32
    %c0_i32_1 = arith.constant 0 : i32
    return %c0_i32, %c0_i32_0 : i32, i32
  }
  func.func @transform_19(%arg0: i32) -> (i32, i32) {
    %c0_i32 = arith.constant 0 : i32
    %c0_i32_0 = arith.constant 0 : i32
    %c0_i32_1 = arith.constant 0 : i32
    return %c0_i32, %c0_i32_0 : i32, i32
  }
  func.func @transform_20(%arg0: i32) -> (i32, i32) {
    %c0_i32 = arith.constant 0 : i32
    %c0_i32_0 = arith.constant 0 : i32
    %c0_i32_1 = arith.constant 0 : i32
    return %c0_i32, %c0_i32_0 : i32, i32
  }
  func.func @transform_21(%arg0: i32) -> (i32, i32, i32) {
    %c0_i32 = arith.constant 0 : i32
    %c0_i32_0 = arith.constant 0 : i32
    %c0_i32_1 = arith.constant 0 : i32
    return %arg0, %c0_i32, %c0_i32_0 : i32, i32, i32
  }
}

module attributes {stable_mosaic.version = 11 : i64} {
  func.func @_linear_kernel(%arg0: i32, %arg1: memref<8x144xf32, #tpu.memory_space<vmem>>, %arg2: memref<144x128xbf16, #tpu.memory_space<vmem>>, %arg3: memref<1x128xf32, #tpu.memory_space<vmem>>, %arg4: memref<8x128xf32, #tpu.memory_space<vmem>>) attributes {dimension_semantics = [#tpu.dimension_semantics<parallel>], iteration_bounds = array<i64: 1>, scalar_prefetch = 0 : i64, scratch_operands = 0 : i64, tpu.core_type = #tpu.core_type<tc>, window_params = [{transform_indices = @transform_0, window_bounds = array<i64: 8, 144>}, {pipeline_mode = #tpu.pipeline_mode<synchronous>, transform_indices = @transform_1, window_bounds = array<i64: 144, 128>}, {pipeline_mode = #tpu.pipeline_mode<synchronous>, transform_indices = @transform_2, window_bounds = array<i64: 1, 128>}, {transform_indices = @transform_3, window_bounds = array<i64: 8, 128>}]} {
    %c0 = arith.constant 0 : index
    %c0_0 = arith.constant 0 : index
    %0 = vector.load %arg1[%c0, %c0_0] : memref<8x144xf32, #tpu.memory_space<vmem>>, vector<8x144xf32>
    %1 = arith.truncf %0 : vector<8x144xf32> to vector<8x144xbf16>
    %c0_1 = arith.constant 0 : index
    %c0_2 = arith.constant 0 : index
    %2 = vector.load %arg2[%c0_1, %c0_2] : memref<144x128xbf16, #tpu.memory_space<vmem>>, vector<144x128xbf16>
    %cst = arith.constant dense<0.000000e+00> : vector<8x128xf32>
    %3 = tpu.matmul %1, %2, %cst {dimension_numbers = #tpu.dot_dimension_numbers<[1], [0], [0], [1], [0, 0, 1, 1], [], []>} : vector<8x144xbf16>, vector<144x128xbf16>, vector<8x128xf32> -> vector<8x128xf32>
    %c0_3 = arith.constant 0 : index
    %c0_4 = arith.constant 0 : index
    %4 = vector.load %arg3[%c0_3, %c0_4] : memref<1x128xf32, #tpu.memory_space<vmem>>, vector<1x128xf32>
    %5 = vector.broadcast %4 : vector<1x128xf32> to vector<8x128xf32>
    %6 = arith.addf %3, %5 : vector<8x128xf32>
    %c0_5 = arith.constant 0 : index
    %c0_6 = arith.constant 0 : index
    %7 = vector.load %arg4[%c0_5, %c0_6] : memref<8x128xf32, #tpu.memory_space<vmem>>, vector<8x128xf32>
    tpu.vector_store %arg4[%c0_5, %c0_6], %6 {strides = array<i32>} : memref<8x128xf32, #tpu.memory_space<vmem>>, vector<8x128xf32>,
    return
  }
  func.func @transform_0(%arg0: i32) -> (i32, i32) {
    %c0_i32 = arith.constant 0 : i32
    %c0_i32_0 = arith.constant 0 : i32
    return %arg0, %c0_i32 : i32, i32
  }
  func.func @transform_1(%arg0: i32) -> (i32, i32) {
    %c0_i32 = arith.constant 0 : i32
    %c0_i32_0 = arith.constant 0 : i32
    %c0_i32_1 = arith.constant 0 : i32
    return %c0_i32, %c0_i32_0 : i32, i32
  }
  func.func @transform_2(%arg0: i32) -> (i32, i32) {
    %c0_i32 = arith.constant 0 : i32
    %c0_i32_0 = arith.constant 0 : i32
    %c0_i32_1 = arith.constant 0 : i32
    return %c0_i32, %c0_i32_0 : i32, i32
  }
  func.func @transform_3(%arg0: i32) -> (i32, i32) {
    %c0_i32 = arith.constant 0 : i32
    %c0_i32_0 = arith.constant 0 : i32
    return %arg0, %c0_i32 : i32, i32
  }
}

</mosaic_0001>

<llo_original>
// kernel: t2t_forward.3
$region0: #{t2t_forward.3}
  #allocation0 [shape = 'u32[]', space=smem, size = 0x4, offset = 0x4, fixed_abs, tag = 'smem constant byte address 0x4 - core index']
  #allocation1 [shape = 'u32[144,128]{1,0:T(1,128)}', space=vmem, size = 0x12000, scoped, tag = 'internal scratch']
  %s0 = inlined_call_operand.hbm [shape: f32[2,64,147], index: 0, kind: input, shape index: {}]
  %s1 = inlined_call_operand.hbm [shape: f32[1,147], index: 1, kind: input, shape index: {}]
  %s2 = inlined_call_operand.hbm [shape: f32[1,147], index: 2, kind: input, shape index: {}]
  %s3 = inlined_call_operand.hbm [shape: bf16[147,48], index: 3, kind: input, shape index: {}]
  %s4 = inlined_call_operand.hbm [shape: f32[1,48], index: 4, kind: input, shape index: {}]
  %s5 = inlined_call_operand.hbm [shape: f32[16,8], index: 5, kind: input, shape index: {}]
  %s6 = inlined_call_operand.hbm [shape: bf16[16,16], index: 6, kind: input, shape index: {}]
  %s7 = inlined_call_operand.hbm [shape: f32[1,16], index: 7, kind: input, shape index: {}]
  %s8 = inlined_call_operand.hbm [shape: bf16[16,16], index: 8, kind: input, shape index: {}]
  %s9 = inlined_call_operand.hbm [shape: f32[1,16], index: 9, kind: input, shape index: {}]
  %s10 = inlined_call_operand.hbm [shape: f32[1,16], index: 10, kind: input, shape index: {}]
  %s11 = inlined_call_operand.hbm [shape: f32[9,16], index: 11, kind: input, shape index: {}]
  %s12 = inlined_call_operand.hbm [shape: f32[1,16], index: 12, kind: input, shape index: {}]
  %s13 = inlined_call_operand.hbm [shape: f32[1,16], index: 13, kind: input, shape index: {}]
  %s14 = inlined_call_operand.hbm [shape: f32[16,4], index: 14, kind: input, shape index: {}]
  %s15 = inlined_call_operand.hbm [shape: f32[1,4], index: 15, kind: input, shape index: {}]
  %s16 = inlined_call_operand.hbm [shape: f32[4,16], index: 16, kind: input, shape index: {}]
  %s17 = inlined_call_operand.hbm [shape: f32[1,16], index: 17, kind: input, shape index: {}]
  %s18 = inlined_call_operand.hbm [shape: bf16[16,16], index: 18, kind: input, shape index: {}]
  %s19 = inlined_call_operand.hbm [shape: f32[1,16], index: 19, kind: input, shape index: {}]
  %s20 = inlined_call_operand.hbm [shape: f32[1,16], index: 20, kind: input, shape index: {}]
  %s21 = inlined_call_operand.hbm [shape: f32[2,64,16], index: 21, kind: output, shape index: {}]
  %s22 = sld [smem:[#allocation0]]
  $region201: #{t2t_forward.3} parent=0
    _
  %s24 = ssub.s32 1, %s22
  %s25 = scalar_select 0, %s24, %s22
  $region1: #{t2t_forward.3} parent=0
    #allocation2 [shape = 'u8[131072]{0}', space=vmem, size = 0x20000, scoped, tag = 'input window, operand 0']
    #allocation3 [shape = 's32[2]{0}', space=sflag, size = 0x8, scoped, tag = 'scoped memory for t2t_forward.3']
    #allocation4 [shape = 's32[2]{0}', space=sflag, size = 0x8, scoped, tag = 'scoped memory for t2t_forward.3']
    #allocation5 [shape = 'u8[1024]{0}', space=vmem, size = 0x400, scoped, tag = 'input window, operand 1, single buffered']
    #allocation6 [shape = 's32[1]{0}', space=sflag, size = 0x4, scoped, tag = 'scoped memory for t2t_forward.3']
    #allocation7 [shape = 'u8[1024]{0}', space=vmem, size = 0x400, scoped, tag = 'input window, operand 2, single buffered']
    #allocation8 [shape = 'u8[38912]{0}', space=vmem, size = 0x9800, scoped, tag = 'input window, operand 3, single buffered']
    #allocation9 [shape = 's32[1]{0}', space=sflag, size = 0x4, scoped, tag = 'scoped memory for t2t_forward.3']
    #allocation10 [shape = 'u8[512]{0}', space=vmem, size = 0x400, scoped, tag = 'input window, operand 4, single buffered']
    #allocation11 [shape = 'u8[8192]{0}', space=vmem, size = 0x2000, scoped, tag = 'input window, operand 5, single buffered']
    #allocation12 [shape = 's32[1]{0}', space=sflag, size = 0x4, scoped, tag = 'scoped memory for t2t_forward.3']
    #allocation13 [shape = 'u8[4096]{0}', space=vmem, size = 0x1000, scoped, tag = 'input window, operand 6, single buffered']
    #allocation14 [shape = 'u8[512]{0}', space=vmem, size = 0x400, scoped, tag = 'input window, operand 7, single buffered']
    #allocation15 [shape = 's32[1]{0}', space=sflag, size = 0x4, scoped, tag = 'scoped memory for t2t_forward.3']
    #allocation16 [shape = 'u8[4096]{0}', space=vmem, size = 0x1000, scoped, tag = 'input window, operand 8, single buffered']
    #allocation17 [shape = 'u8[512]{0}', space=vmem, size = 0x400, scoped, tag = 'input window, operand 9, single buffered']
    #allocation18 [shape = 's32[1]{0}', space=sflag, size = 0x4, scoped, tag = 'scoped memory for t2t_forward.3']
    #allocation19 [shape = 'u8[512]{0}', space=vmem, size = 0x400, scoped, tag = 'input window, operand 10, single buffered']
    #allocation20 [shape = 'u8[8192]{0}', space=vmem, size = 0x2000, scoped, tag = 'input window, operand 11, single buffered']
    #allocation21 [shape = 's32[1]{0}', space=sflag, size = 0x4, scoped, tag = 'scoped memory for t2t_forward.3']
    #allocation22 [shape = 'u8[512]{0}', space=vmem, size = 0x400, scoped, tag = 'input window, operand 12, single buffered']
    #allocation23 [shape = 'u8[512]{0}', space=vmem, size = 0x400, scoped, tag = 'input window, operand 13, single buffered']
    #allocation24 [shape = 's32[1]{0}', space=sflag, size = 0x4, scoped, tag = 'scoped memory for t2t_forward.3']
    #allocation25 [shape = 'u8[8192]{0}', space=vmem, size = 0x2000, scoped, tag = 'input window, operand 14, single buffered']
    #allocation26 [shape = 'u8[512]{0}', space=vmem, size = 0x400, scoped, tag = 'input window, operand 15, single buffered']
    #allocation27 [shape = 's32[1]{0}', space=sflag, size = 0x4, scoped, tag = 'scoped memory for t2t_forward.3']
    #allocation28 [shape = 'u8[2048]{0}', space=vmem, size = 0x800, scoped, tag = 'input window, operand 16, single buffered']
    #allocation29 [shape = 'u8[512]{0}', space=vmem, size = 0x400, scoped, tag = 'input window, operand 17, single buffered']
    #allocation30 [shape = 's32[1]{0}', space=sflag, size = 0x4, scoped, tag = 'scoped memory for t2t_forward.3']
    #allocation31 [shape = 'u8[4096]{0}', space=vmem, size = 0x1000, scoped, tag = 'input window, operand 18, single buffered']
    #allocation32 [shape = 'u8[512]{0}', space=vmem, size = 0x400, scoped, tag = 'input window, operand 19, single buffered']
    #allocation33 [shape = 's32[1]{0}', space=sflag, size = 0x4, scoped, tag = 'scoped memory for t2t_forward.3']
    #allocation34 [shape = 'u8[512]{0}', space=vmem, size = 0x400, scoped, tag = 'input window, operand 20, single buffered']
    #allocation35 [shape = 'u8[65536]{0}', space=vmem, size = 0x10000, scoped, tag = 'output window, operand 0']
    %26 = vsyncpa [#allocation3], 0
    %s27 = scalar_lea.sflag [#allocation3], 1
    %28 = vsyncpa %s27, 0
    %29 = vsyncpa [#allocation6], 0
    %30 = vsyncpa [#allocation9], 0
    %31 = vsyncpa [#allocation12], 0
    %32 = vsyncpa [#allocation15], 0
    %33 = vsyncpa [#allocation18], 0
    %34 = vsyncpa [#allocation21], 0
    %35 = vsyncpa [#allocation24], 0
    %36 = vsyncpa [#allocation27], 0
    %37 = vsyncpa [#allocation30], 0
    %38 = vsyncpa [#allocation33], 0
    %39 = vsyncpa [#allocation4], 0
    %s40 = scalar_lea.sflag [#allocation4], 1
    %41 = vsyncpa %s40, 0
    loop: start=0, step=1, limit=4
    $region2: #{t2t_forward.3} parent=1 // loop_pre_header
      _
    $region3: #{t2t_forward.3} parent=1 // loop_header
      %s43 = sphi 0, %s47
      %p44 = scmp.ge.s32.totalorder %s43, 4
      %s53 = sphi 0, %s55
      %s56 = sphi 0, %s53
      %s57 = sphi 0, %s56
      %s73 = sphi 0, %s57
      %s77 = sphi 0, %s77
      %s79 = sphi 0, %s77
      %s80 = sphi 0, %s79
      %s94 = sphi 0, %s80
      %s98 = sphi 0, %s98
      %s100 = sphi 0, %s98
      %s101 = sphi 0, %s100
      %s115 = sphi 0, %s101
      %s119 = sphi 0, %s119
      %s121 = sphi 0, %s119
      %s122 = sphi 0, %s121
      %s136 = sphi 0, %s122
      %s140 = sphi 0, %s140
      %s142 = sphi 0, %s140
      %s143 = sphi 0, %s142
      %s157 = sphi 0, %s143
      %s161 = sphi 0, %s161
      %s163 = sphi 0, %s161
      %s164 = sphi 0, %s163
      %s178 = sphi 0, %s164
      %s182 = sphi 0, %s182
      %s184 = sphi 0, %s182
      %s185 = sphi 0, %s184
      %s199 = sphi 0, %s185
      %s203 = sphi 0, %s203
      %s205 = sphi 0, %s203
      %s206 = sphi 0, %s205
      %s220 = sphi 0, %s206
      %s224 = sphi 0, %s224
      %s226 = sphi 0, %s224
      %s227 = sphi 0, %s226
      %s241 = sphi 0, %s227
      %s245 = sphi 0, %s245
      %s247 = sphi 0, %s245
      %s248 = sphi 0, %s247
      %s262 = sphi 0, %s248
      %s266 = sphi 0, %s266
      %s268 = sphi 0, %s266
      %s269 = sphi 0, %s268
      %s283 = sphi 0, %s269
      %s287 = sphi 0, %s287
      %s289 = sphi 0, %s287
      %s290 = sphi 0, %s289
      %s304 = sphi 0, %s290
      %s308 = sphi 0, %s308
      %s310 = sphi 0, %s308
      %s311 = sphi 0, %s310
      %s325 = sphi 0, %s311
      %s329 = sphi 0, %s329
      %s331 = sphi 0, %s329
      %s332 = sphi 0, %s331
      %s346 = sphi 0, %s332
      %s350 = sphi 0, %s350
      %s352 = sphi 0, %s350
      %s353 = sphi 0, %s352
      %s367 = sphi 0, %s353
      %s371 = sphi 0, %s371
      %s373 = sphi 0, %s371
      %s374 = sphi 0, %s373
      %s388 = sphi 0, %s374
      %s392 = sphi 0, %s392
      %s394 = sphi 0, %s392
      %s395 = sphi 0, %s394
      %s409 = sphi 0, %s395
      %s413 = sphi 0, %s413
      %s415 = sphi 0, %s413
      %s416 = sphi 0, %s415
      %s430 = sphi 0, %s416
      %s434 = sphi 0, %s434
      %s436 = sphi 0, %s434
      %s437 = sphi 0, %s436
      %s451 = sphi 0, %s437
      %s455 = sphi 0, %s455
      %s457 = sphi 0, %s455
      %s458 = sphi 0, %s457
      %s472 = sphi 0, %s458
      %s476 = sphi 0, %s476
      %s478 = sphi 0, %s476
      %s479 = sphi 0, %s478
      %s493 = sphi 0, %s479
      %s499 = sphi 0, %s501
      %s502 = sphi 0, %s499
      %s503 = sphi 0, %s502
      %s519 = sphi 0, %s503
    $region4: #{t2t_forward.3} parent=1 // loop_header_branch
      %46 = sbr.rel (%p44) target = $region8
    $region5: #{t2t_forward.3} parent=1 // loop_body
      %s48 = ssub.s32 %s43, 1
      %s49 = ssub.s32 %s43, 2
      %s50 = sadd.s32 %s43, 1
      %s51 = ssub.s32 %s43, %s50
      %p52 = scmp.eq.s32.totalorder %s51, 0
      %s54 = sadd.s32 %s53, 1
      %s55 = scalar_select %p52, %s53, %s54
      %p58 = pneg %p52
      %p59 = scmp.eq.s32.totalorder %s43, 1
      %p60 = por %p58, %p59
      %p61 = scmp.ne.s32.totalorder %s53, %s56
      %p62 = scmp.eq.s32.totalorder %s43, 0
      %p63 = por %p61, %p62
      %p64 = scmp.ne.s32.totalorder %s53, %s56
      %p65 = scmp.eq.s32.totalorder %s48, 1
      %p66 = por %p64, %p65
      %p67 = scmp.ne.s32.totalorder %s56, %s57
      %p68 = scmp.eq.s32.totalorder %s48, 0
      %p69 = por %p67, %p68
      %p70 = scmp.ne.s32.totalorder %s56, %s57
      %p71 = scmp.eq.s32.totalorder %s49, 1
      %p72 = por %p70, %p71
      %p74 = scmp.ne.s32.totalorder %s57, %s73
      %p75 = scmp.eq.s32.totalorder %s49, 0
      %p76 = por %p74, %p75
      %s78 = sadd.s32 %s77, 1
      %p81 = scmp.eq.s32.totalorder %s43, 1
      %p82 = scmp.ne.s32.totalorder %s77, %s79
      %p83 = scmp.eq.s32.totalorder %s43, 0
      %p84 = por %p82, %p83
      %p85 = scmp.ne.s32.totalorder %s77, %s79
      %p86 = scmp.eq.s32.totalorder %s48, 1
      %p87 = por %p85, %p86
      %p88 = scmp.ne.s32.totalorder %s79, %s80
      %p89 = scmp.eq.s32.totalorder %s48, 0
      %p90 = por %p88, %p89
      %p91 = scmp.ne.s32.totalorder %s79, %s80
      %p92 = scmp.eq.s32.totalorder %s49, 1
      %p93 = por %p91, %p92
      %p95 = scmp.ne.s32.totalorder %s80, %s94
      %p96 = scmp.eq.s32.totalorder %s49, 0
      %p97 = por %p95, %p96
      %s99 = sadd.s32 %s98, 1
      %p102 = scmp.eq.s32.totalorder %s43, 1
      %p103 = scmp.ne.s32.totalorder %s98, %s100
      %p104 = scmp.eq.s32.totalorder %s43, 0
      %p105 = por %p103, %p104
      %p106 = scmp.ne.s32.totalorder %s98, %s100
      %p107 = scmp.eq.s32.totalorder %s48, 1
      %p108 = por %p106, %p107
      %p109 = scmp.ne.s32.totalorder %s100, %s101
      %p110 = scmp.eq.s32.totalorder %s48, 0
      %p111 = por %p109, %p110
      %p112 = scmp.ne.s32.totalorder %s100, %s101
      %p113 = scmp.eq.s32.totalorder %s49, 1
      %p114 = por %p112, %p113
      %p116 = scmp.ne.s32.totalorder %s101, %s115
      %p117 = scmp.eq.s32.totalorder %s49, 0
      %p118 = por %p116, %p117
      %s120 = sadd.s32 %s119, 1
      %p123 = scmp.eq.s32.totalorder %s43, 1
      %p124 = scmp.ne.s32.totalorder %s119, %s121
      %p125 = scmp.eq.s32.totalorder %s43, 0
      %p126 = por %p124, %p125
      %p127 = scmp.ne.s32.totalorder %s119, %s121
      %p128 = scmp.eq.s32.totalorder %s48, 1
      %p129 = por %p127, %p128
      %p130 = scmp.ne.s32.totalorder %s121, %s122
      %p131 = scmp.eq.s32.totalorder %s48, 0
      %p132 = por %p130, %p131
      %p133 = scmp.ne.s32.totalorder %s121, %s122
      %p134 = scmp.eq.s32.totalorder %s49, 1
      %p135 = por %p133, %p134
      %p137 = scmp.ne.s32.totalorder %s122, %s136
      %p138 = scmp.eq.s32.totalorder %s49, 0
      %p139 = por %p137, %p138
      %s141 = sadd.s32 %s140, 1
      %p144 = scmp.eq.s32.totalorder %s43, 1
      %p145 = scmp.ne.s32.totalorder %s140, %s142
      %p146 = scmp.eq.s32.totalorder %s43, 0
      %p147 = por %p145, %p146
      %p148 = scmp.ne.s32.totalorder %s140, %s142
      %p149 = scmp.eq.s32.totalorder %s48, 1
      %p150 = por %p148, %p149
      %p151 = scmp.ne.s32.totalorder %s142, %s143
      %p152 = scmp.eq.s32.totalorder %s48, 0
      %p153 = por %p151, %p152
      %p154 = scmp.ne.s32.totalorder %s142, %s143
      %p155 = scmp.eq.s32.totalorder %s49, 1
      %p156 = por %p154, %p155
      %p158 = scmp.ne.s32.totalorder %s143, %s157
      %p159 = scmp.eq.s32.totalorder %s49, 0
      %p160 = por %p158, %p159
      %s162 = sadd.s32 %s161, 1
      %p165 = scmp.eq.s32.totalorder %s43, 1
      %p166 = scmp.ne.s32.totalorder %s161, %s163
      %p167 = scmp.eq.s32.totalorder %s43, 0
      %p168 = por %p166, %p167
      %p169 = scmp.ne.s32.totalorder %s161, %s163
      %p170 = scmp.eq.s32.totalorder %s48, 1
      %p171 = por %p169, %p170
      %p172 = scmp.ne.s32.totalorder %s163, %s164
      %p173 = scmp.eq.s32.totalorder %s48, 0
      %p174 = por %p172, %p173
      %p175 = scmp.ne.s32.totalorder %s163, %s164
      %p176 = scmp.eq.s32.totalorder %s49, 1
      %p177 = por %p175, %p176
      %p179 = scmp.ne.s32.totalorder %s164, %s178
      %p180 = scmp.eq.s32.totalorder %s49, 0
      %p181 = por %p179, %p180
      %s183 = sadd.s32 %s182, 1
      %p186 = scmp.eq.s32.totalorder %s43, 1
      %p187 = scmp.ne.s32.totalorder %s182, %s184
      %p188 = scmp.eq.s32.totalorder %s43, 0
      %p189 = por %p187, %p188
      %p190 = scmp.ne.s32.totalorder %s182, %s184
      %p191 = scmp.eq.s32.totalorder %s48, 1
      %p192 = por %p190, %p191
      %p193 = scmp.ne.s32.totalorder %s184, %s185
      %p194 = scmp.eq.s32.totalorder %s48, 0
      %p195 = por %p193, %p194
      %p196 = scmp.ne.s32.totalorder %s184, %s185
      %p197 = scmp.eq.s32.totalorder %s49, 1
      %p198 = por %p196, %p197
      %p200 = scmp.ne.s32.totalorder %s185, %s199
      %p201 = scmp.eq.s32.totalorder %s49, 0
      %p202 = por %p200, %p201
      %s204 = sadd.s32 %s203, 1
      %p207 = scmp.eq.s32.totalorder %s43, 1
      %p208 = scmp.ne.s32.totalorder %s203, %s205
      %p209 = scmp.eq.s32.totalorder %s43, 0
      %p210 = por %p208, %p209
      %p211 = scmp.ne.s32.totalorder %s203, %s205
      %p212 = scmp.eq.s32.totalorder %s48, 1
      %p213 = por %p211, %p212
      %p214 = scmp.ne.s32.totalorder %s205, %s206
      %p215 = scmp.eq.s32.totalorder %s48, 0
      %p216 = por %p214, %p215
      %p217 = scmp.ne.s32.totalorder %s205, %s206
      %p218 = scmp.eq.s32.totalorder %s49, 1
      %p219 = por %p217, %p218
      %p221 = scmp.ne.s32.totalorder %s206, %s220
      %p222 = scmp.eq.s32.totalorder %s49, 0
      %p223 = por %p221, %p222
      %s225 = sadd.s32 %s224, 1
      %p228 = scmp.eq.s32.totalorder %s43, 1
      %p229 = scmp.ne.s32.totalorder %s224, %s226
      %p230 = scmp.eq.s32.totalorder %s43, 0
      %p231 = por %p229, %p230
      %p232 = scmp.ne.s32.totalorder %s224, %s226
      %p233 = scmp.eq.s32.totalorder %s48, 1
      %p234 = por %p232, %p233
      %p235 = scmp.ne.s32.totalorder %s226, %s227
      %p236 = scmp.eq.s32.totalorder %s48, 0
      %p237 = por %p235, %p236
      %p238 = scmp.ne.s32.totalorder %s226, %s227
      %p239 = scmp.eq.s32.totalorder %s49, 1
      %p240 = por %p238, %p239
      %p242 = scmp.ne.s32.totalorder %s227, %s241
      %p243 = scmp.eq.s32.totalorder %s49, 0
      %p244 = por %p242, %p243
      %s246 = sadd.s32 %s245, 1
      %p249 = scmp.eq.s32.totalorder %s43, 1
      %p250 = scmp.ne.s32.totalorder %s245, %s247
      %p251 = scmp.eq.s32.totalorder %s43, 0
      %p252 = por %p250, %p251
      %p253 = scmp.ne.s32.totalorder %s245, %s247
      %p254 = scmp.eq.s32.totalorder %s48, 1
      %p255 = por %p253, %p254
      %p256 = scmp.ne.s32.totalorder %s247, %s248
      %p257 = scmp.eq.s32.totalorder %s48, 0
      %p258 = por %p256, %p257
      %p259 = scmp.ne.s32.totalorder %s247, %s248
      %p260 = scmp.eq.s32.totalorder %s49, 1
      %p261 = por %p259, %p260
      %p263 = scmp.ne.s32.totalorder %s248, %s262
      %p264 = scmp.eq.s32.totalorder %s49, 0
      %p265 = por %p263, %p264
      %s267 = sadd.s32 %s266, 1
      %p270 = scmp.eq.s32.totalorder %s43, 1
      %p271 = scmp.ne.s32.totalorder %s266, %s268
      %p272 = scmp.eq.s32.totalorder %s43, 0
      %p273 = por %p271, %p272
      %p274 = scmp.ne.s32.totalorder %s266, %s268
      %p275 = scmp.eq.s32.totalorder %s48, 1
      %p276 = por %p274, %p275
      %p277 = scmp.ne.s32.totalorder %s268, %s269
      %p278 = scmp.eq.s32.totalorder %s48, 0
      %p279 = por %p277, %p278
      %p280 = scmp.ne.s32.totalorder %s268, %s269
      %p281 = scmp.eq.s32.totalorder %s49, 1
      %p282 = por %p280, %p281
      %p284 = scmp.ne.s32.totalorder %s269, %s283
      %p285 = scmp.eq.s32.totalorder %s49, 0
      %p286 = por %p284, %p285
      %s288 = sadd.s32 %s287, 1
      %p291 = scmp.eq.s32.totalorder %s43, 1
      %p292 = scmp.ne.s32.totalorder %s287, %s289
      %p293 = scmp.eq.s32.totalorder %s43, 0
      %p294 = por %p292, %p293
      %p295 = scmp.ne.s32.totalorder %s287, %s289
      %p296 = scmp.eq.s32.totalorder %s48, 1
      %p297 = por %p295, %p296
      %p298 = scmp.ne.s32.totalorder %s289, %s290
      %p299 = scmp.eq.s32.totalorder %s48, 0
      %p300 = por %p298, %p299
      %p301 = scmp.ne.s32.totalorder %s289, %s290
      %p302 = scmp.eq.s32.totalorder %s49, 1
      %p303 = por %p301, %p302
      %p305 = scmp.ne.s32.totalorder %s290, %s304
      %p306 = scmp.eq.s32.totalorder %s49, 0
      %p307 = por %p305, %p306
      %s309 = sadd.s32 %s308, 1
      %p312 = scmp.eq.s32.totalorder %s43, 1
      %p313 = scmp.ne.s32.totalorder %s308, %s310
      %p314 = scmp.eq.s32.totalorder %s43, 0
      %p315 = por %p313, %p314
      %p316 = scmp.ne.s32.totalorder %s308, %s310
      %p317 = scmp.eq.s32.totalorder %s48, 1
      %p318 = por %p316, %p317
      %p319 = scmp.ne.s32.totalorder %s310, %s311
      %p320 = scmp.eq.s32.totalorder %s48, 0
      %p321 = por %p319, %p320
      %p322 = scmp.ne.s32.totalorder %s310, %s311
      %p323 = scmp.eq.s32.totalorder %s49, 1
      %p324 = por %p322, %p323
      %p326 = scmp.ne.s32.totalorder %s311, %s325
      %p327 = scmp.eq.s32.totalorder %s49, 0
      %p328 = por %p326, %p327
      %s330 = sadd.s32 %s329, 1
      %p333 = scmp.eq.s32.totalorder %s43, 1
      %p334 = scmp.ne.s32.totalorder %s329, %s331
      %p335 = scmp.eq.s32.totalorder %s43, 0
      %p336 = por %p334, %p335
      %p337 = scmp.ne.s32.totalorder %s329, %s331
      %p338 = scmp.eq.s32.totalorder %s48, 1
      %p339 = por %p337, %p338
      %p340 = scmp.ne.s32.totalorder %s331, %s332
      %p341 = scmp.eq.s32.totalorder %s48, 0
      %p342 = por %p340, %p341
      %p343 = scmp.ne.s32.totalorder %s331, %s332
      %p344 = scmp.eq.s32.totalorder %s49, 1
      %p345 = por %p343, %p344
      %p347 = scmp.ne.s32.totalorder %s332, %s346
      %p348 = scmp.eq.s32.totalorder %s49, 0
      %p349 = por %p347, %p348
      %s351 = sadd.s32 %s350, 1
      %p354 = scmp.eq.s32.totalorder %s43, 1
      %p355 = scmp.ne.s32.totalorder %s350, %s352
      %p356 = scmp.eq.s32.totalorder %s43, 0
      %p357 = por %p355, %p356
      %p358 = scmp.ne.s32.totalorder %s350, %s352
      %p359 = scmp.eq.s32.totalorder %s48, 1
      %p360 = por %p358, %p359
      %p361 = scmp.ne.s32.totalorder %s352, %s353
      %p362 = scmp.eq.s32.totalorder %s48, 0
      %p363 = por %p361, %p362
      %p364 = scmp.ne.s32.totalorder %s352, %s353
      %p365 = scmp.eq.s32.totalorder %s49, 1
      %p366 = por %p364, %p365
      %p368 = scmp.ne.s32.totalorder %s353, %s367
      %p369 = scmp.eq.s32.totalorder %s49, 0
      %p370 = por %p368, %p369
      %s372 = sadd.s32 %s371, 1
      %p375 = scmp.eq.s32.totalorder %s43, 1
      %p376 = scmp.ne.s32.totalorder %s371, %s373
      %p377 = scmp.eq.s32.totalorder %s43, 0
      %p378 = por %p376, %p377
      %p379 = scmp.ne.s32.totalorder %s371, %s373
      %p380 = scmp.eq.s32.totalorder %s48, 1
      %p381 = por %p379, %p380
      %p382 = scmp.ne.s32.totalorder %s373, %s374
      %p383 = scmp.eq.s32.totalorder %s48, 0
      %p384 = por %p382, %p383
      %p385 = scmp.ne.s32.totalorder %s373, %s374
      %p386 = scmp.eq.s32.totalorder %s49, 1
      %p387 = por %p385, %p386
      %p389 = scmp.ne.s32.totalorder %s374, %s388
      %p390 = scmp.eq.s32.totalorder %s49, 0
      %p391 = por %p389, %p390
      %s393 = sadd.s32 %s392, 1
      %p396 = scmp.eq.s32.totalorder %s43, 1
      %p397 = scmp.ne.s32.totalorder %s392, %s394
      %p398 = scmp.eq.s32.totalorder %s43, 0
      %p399 = por %p397, %p398
      %p400 = scmp.ne.s32.totalorder %s392, %s394
      %p401 = scmp.eq.s32.totalorder %s48, 1
      %p402 = por %p400, %p401
      %p403 = scmp.ne.s32.totalorder %s394, %s395
      %p404 = scmp.eq.s32.totalorder %s48, 0
      %p405 = por %p403, %p404
      %p406 = scmp.ne.s32.totalorder %s394, %s395
      %p407 = scmp.eq.s32.totalorder %s49, 1
      %p408 = por %p406, %p407
      %p410 = scmp.ne.s32.totalorder %s395, %s409
      %p411 = scmp.eq.s32.totalorder %s49, 0
      %p412 = por %p410, %p411
      %s414 = sadd.s32 %s413, 1
      %p417 = scmp.eq.s32.totalorder %s43, 1
      %p418 = scmp.ne.s32.totalorder %s413, %s415
      %p419 = scmp.eq.s32.totalorder %s43, 0
      %p420 = por %p418, %p419
      %p421 = scmp.ne.s32.totalorder %s413, %s415
      %p422 = scmp.eq.s32.totalorder %s48, 1
      %p423 = por %p421, %p422
      %p424 = scmp.ne.s32.totalorder %s415, %s416
      %p425 = scmp.eq.s32.totalorder %s48, 0
      %p426 = por %p424, %p425
      %p427 = scmp.ne.s32.totalorder %s415, %s416
      %p428 = scmp.eq.s32.totalorder %s49, 1
      %p429 = por %p427, %p428
      %p431 = scmp.ne.s32.totalorder %s416, %s430
      %p432 = scmp.eq.s32.totalorder %s49, 0
      %p433 = por %p431, %p432
      %s435 = sadd.s32 %s434, 1
      %p438 = scmp.eq.s32.totalorder %s43, 1
      %p439 = scmp.ne.s32.totalorder %s434, %s436
      %p440 = scmp.eq.s32.totalorder %s43, 0
      %p441 = por %p439, %p440
      %p442 = scmp.ne.s32.totalorder %s434, %s436
      %p443 = scmp.eq.s32.totalorder %s48, 1
      %p444 = por %p442, %p443
      %p445 = scmp.ne.s32.totalorder %s436, %s437
      %p446 = scmp.eq.s32.totalorder %s48, 0
      %p447 = por %p445, %p446
      %p448 = scmp.ne.s32.totalorder %s436, %s437
      %p449 = scmp.eq.s32.totalorder %s49, 1
      %p450 = por %p448, %p449
      %p452 = scmp.ne.s32.totalorder %s437, %s451
      %p453 = scmp.eq.s32.totalorder %s49, 0
      %p454 = por %p452, %p453
      %s456 = sadd.s32 %s455, 1
      %p459 = scmp.eq.s32.totalorder %s43, 1
      %p460 = scmp.ne.s32.totalorder %s455, %s457
      %p461 = scmp.eq.s32.totalorder %s43, 0
      %p462 = por %p460, %p461
      %p463 = scmp.ne.s32.totalorder %s455, %s457
      %p464 = scmp.eq.s32.totalorder %s48, 1
      %p465 = por %p463, %p464
      %p466 = scmp.ne.s32.totalorder %s457, %s458
      %p467 = scmp.eq.s32.totalorder %s48, 0
      %p468 = por %p466, %p467
      %p469 = scmp.ne.s32.totalorder %s457, %s458
      %p470 = scmp.eq.s32.totalorder %s49, 1
      %p471 = por %p469, %p470
      %p473 = scmp.ne.s32.totalorder %s458, %s472
      %p474 = scmp.eq.s32.totalorder %s49, 0
      %p475 = por %p473, %p474
      %s477 = sadd.s32 %s476, 1
      %p480 = scmp.eq.s32.totalorder %s43, 1
      %p481 = scmp.ne.s32.totalorder %s476, %s478
      %p482 = scmp.eq.s32.totalorder %s43, 0
      %p483 = por %p481, %p482
      %p484 = scmp.ne.s32.totalorder %s476, %s478
      %p485 = scmp.eq.s32.totalorder %s48, 1
      %p486 = por %p484, %p485
      %p487 = scmp.ne.s32.totalorder %s478, %s479
      %p488 = scmp.eq.s32.totalorder %s48, 0
      %p489 = por %p487, %p488
      %p490 = scmp.ne.s32.totalorder %s478, %s479
      %p491 = scmp.eq.s32.totalorder %s49, 1
      %p492 = por %p490, %p491
      %p494 = scmp.ne.s32.totalorder %s479, %s493
      %p495 = scmp.eq.s32.totalorder %s49, 0
      %p496 = por %p494, %p495
      %s497 = ssub.s32 %s43, %s50
      %p498 = scmp.eq.s32.totalorder %s497, 0
      %s500 = sadd.s32 %s499, 1
      %s501 = scalar_select %p498, %s499, %s500
      %p504 = pneg %p498
      %p505 = scmp.eq.s32.totalorder %s43, 1
      %p506 = por %p504, %p505
      %p507 = scmp.ne.s32.totalorder %s499, %s502
      %p508 = scmp.eq.s32.totalorder %s43, 0
      %p509 = por %p507, %p508
      %p510 = scmp.ne.s32.totalorder %s499, %s502
      %p511 = scmp.eq.s32.totalorder %s48, 1
      %p512 = por %p510, %p511
      %p513 = scmp.ne.s32.totalorder %s502, %s503
      %p514 = scmp.eq.s32.totalorder %s48, 0
      %p515 = por %p513, %p514
      %p516 = scmp.ne.s32.totalorder %s502, %s503
      %p517 = scmp.eq.s32.totalorder %s49, 1
      %p518 = por %p516, %p517
      %p520 = scmp.ne.s32.totalorder %s503, %s519
      %p521 = scmp.eq.s32.totalorder %s49, 0
      %p522 = por %p520, %p521
      %p523 = scmp.le.s32.totalorder 1, %s43
      %p524 = scmp.lt.s32.totalorder %s43, 3
      %p525 = pnand %p523, %p524
      %p526 = pneg %p525
      // Predicated region
      $region9: #{t2t_forward.3} parent=5 // pred_check
        _
      $region10: #{t2t_forward.3} parent=5 // pred_check_branch
        %528 = sbr.rel (%p525) target = $region12
      $region11: #{t2t_forward.3} parent=5 // pred_region
        %s529 = ssub.s32 %s43, 1
        // Predicated region
        $region13: #{t2t_forward.3} parent=11 // pred_check
          %p530 = pneg %p90
        $region14: #{t2t_forward.3} parent=11 // pred_check_branch
          %532 = sbr.rel (%p530) target = $region16
        $region15: #{t2t_forward.3} parent=11 // pred_region
          %s534 = ssub.s32 32, 32
          %535 = vsyncadd [#allocation6], %s534
          %s537 = sshll.u32 [#allocation5], 4
          %s538 = int_to_ptr.vmem [resolvable:$true] %s537
          %540 = dma.hbm_to_vmem [thread:$0]  %s1, 32, %s538, [#allocation6]
        $region16: #{t2t_forward.3} parent=11 // pred_fallthru
          _
        // Predicated region
        $region17: #{t2t_forward.3} parent=11 // pred_check
          %p541 = pneg %p111
        $region18: #{t2t_forward.3} parent=11 // pred_check_branch
          %543 = sbr.rel (%p541) target = $region20
        $region19: #{t2t_forward.3} parent=11 // pred_region
          %s545 = ssub.s32 32, 32
          %546 = vsyncadd [#allocation6], %s545
          %s548 = sshll.u32 [#allocation7], 4
          %s549 = int_to_ptr.vmem [resolvable:$true] %s548
          %551 = dma.hbm_to_vmem [thread:$0]  %s2, 32, %s549, [#allocation6]
        $region20: #{t2t_forward.3} parent=11 // pred_fallthru
          _
        // Predicated region
        $region21: #{t2t_forward.3} parent=11 // pred_check
          %p552 = pneg %p132
        $region22: #{t2t_forward.3} parent=11 // pred_check_branch
          %554 = sbr.rel (%p552) target = $region24
        $region23: #{t2t_forward.3} parent=11 // pred_region
          %s556 = ssub.s32 1216, 1216
          %557 = vsyncadd [#allocation9], %s556
          %s558 = sshll.u32 [#allocation8], 4
          %s559 = int_to_ptr.vmem [resolvable:$true] %s558
          %564 = dma.hbm_to_vmem [thread:$0]  %s3, 1216, %s559, [#allocation9], 64, 64, 4
        $region24: #{t2t_forward.3} parent=11 // pred_fallthru
          _
        // Predicated region
        $region25: #{t2t_forward.3} parent=11 // pred_check
          %p565 = pneg %p153
        $region26: #{t2t_forward.3} parent=11 // pred_check_branch
          %567 = sbr.rel (%p565) target = $region28
        $region27: #{t2t_forward.3} parent=11 // pred_region
          %s569 = ssub.s32 16, 16
          %570 = vsyncadd [#allocation9], %s569
          %s572 = sshll.u32 [#allocation10], 4
          %s573 = int_to_ptr.vmem [resolvable:$true] %s572
          %575 = dma.hbm_to_vmem [thread:$0]  %s4, 16, %s573, [#allocation9]
        $region28: #{t2t_forward.3} parent=11 // pred_fallthru
          _
        // Predicated region
        $region29: #{t2t_forward.3} parent=11 // pred_check
          %p576 = pneg %p174
        $region30: #{t2t_forward.3} parent=11 // pred_check_branch
          %578 = sbr.rel (%p576) target = $region32
        $region31: #{t2t_forward.3} parent=11 // pred_region
          %s580 = ssub.s32 256, 256
          %581 = vsyncadd [#allocation12], %s580
          %s582 = sshll.u32 [#allocation11], 4
          %s583 = int_to_ptr.vmem [resolvable:$true] %s582
          %588 = dma.hbm_to_vmem [thread:$0]  %s5, 256, %s583, [#allocation12], 128, 128, 8
        $region32: #{t2t_forward.3} parent=11 // pred_fallthru
          _
        // Predicated region
        $region33: #{t2t_forward.3} parent=11 // pred_check
          %p589 = pneg %p195
        $region34: #{t2t_forward.3} parent=11 // pred_check_branch
          %591 = sbr.rel (%p589) target = $region36
        $region35: #{t2t_forward.3} parent=11 // pred_region
          %s593 = ssub.s32 128, 128
          %594 = vsyncadd [#allocation12], %s593
          %s595 = sshll.u32 [#allocation13], 4
          %s596 = int_to_ptr.vmem [resolvable:$true] %s595
          %601 = dma.hbm_to_vmem [thread:$0]  %s6, 128, %s596, [#allocation12], 64, 64, 4
        $region36: #{t2t_forward.3} parent=11 // pred_fallthru
          _
        // Predicated region
        $region37: #{t2t_forward.3} parent=11 // pred_check
          %p602 = pneg %p216
        $region38: #{t2t_forward.3} parent=11 // pred_check_branch
          %604 = sbr.rel (%p602) target = $region40
        $region39: #{t2t_forward.3} parent=11 // pred_region
          %s606 = ssub.s32 16, 16
          %607 = vsyncadd [#allocation15], %s606
          %s609 = sshll.u32 [#allocation14], 4
          %s610 = int_to_ptr.vmem [resolvable:$true] %s609
          %612 = dma.hbm_to_vmem [thread:$0]  %s7, 16, %s610, [#allocation15]
        $region40: #{t2t_forward.3} parent=11 // pred_fallthru
          _
        // Predicated region
        $region41: #{t2t_forward.3} parent=11 // pred_check
          %p613 = pneg %p237
        $region42: #{t2t_forward.3} parent=11 // pred_check_branch
          %615 = sbr.rel (%p613) target = $region44
        $region43: #{t2t_forward.3} parent=11 // pred_region
          %s617 = ssub.s32 128, 128
          %618 = vsyncadd [#allocation15], %s617
          %s619 = sshll.u32 [#allocation16], 4
          %s620 = int_to_ptr.vmem [resolvable:$true] %s619
          %625 = dma.hbm_to_vmem [thread:$0]  %s8, 128, %s620, [#allocation15], 64, 64, 4
        $region44: #{t2t_forward.3} parent=11 // pred_fallthru
          _
        // Predicated region
        $region45: #{t2t_forward.3} parent=11 // pred_check
          %p626 = pneg %p258
        $region46: #{t2t_forward.3} parent=11 // pred_check_branch
          %628 = sbr.rel (%p626) target = $region48
        $region47: #{t2t_forward.3} parent=11 // pred_region
          %s630 = ssub.s32 16, 16
          %631 = vsyncadd [#allocation18], %s630
          %s633 = sshll.u32 [#allocation17], 4
          %s634 = int_to_ptr.vmem [resolvable:$true] %s633
          %636 = dma.hbm_to_vmem [thread:$0]  %s9, 16, %s634, [#allocation18]
        $region48: #{t2t_forward.3} parent=11 // pred_fallthru
          _
        // Predicated region
        $region49: #{t2t_forward.3} parent=11 // pred_check
          %p637 = pneg %p279
        $region50: #{t2t_forward.3} parent=11 // pred_check_branch
          %639 = sbr.rel (%p637) target = $region52
        $region51: #{t2t_forward.3} parent=11 // pred_region
          %s641 = ssub.s32 16, 16
          %642 = vsyncadd [#allocation18], %s641
          %s644 = sshll.u32 [#allocation19], 4
          %s645 = int_to_ptr.vmem [resolvable:$true] %s644
          %647 = dma.hbm_to_vmem [thread:$0]  %s10, 16, %s645, [#allocation18]
        $region52: #{t2t_forward.3} parent=11 // pred_fallthru
          _
        // Predicated region
        $region53: #{t2t_forward.3} parent=11 // pred_check
          %p648 = pneg %p300
        $region54: #{t2t_forward.3} parent=11 // pred_check_branch
          %650 = sbr.rel (%p648) target = $region56
        $region55: #{t2t_forward.3} parent=11 // pred_region
          %s652 = ssub.s32 256, 256
          %653 = vsyncadd [#allocation21], %s652
          %s654 = sshll.u32 [#allocation20], 4
          %s655 = int_to_ptr.vmem [resolvable:$true] %s654
          %660 = dma.hbm_to_vmem [thread:$0]  %s11, 256, %s655, [#allocation21], 128, 128, 8
        $region56: #{t2t_forward.3} parent=11 // pred_fallthru
          _
        // Predicated region
        $region57: #{t2t_forward.3} parent=11 // pred_check
          %p661 = pneg %p321
        $region58: #{t2t_forward.3} parent=11 // pred_check_branch
          %663 = sbr.rel (%p661) target = $region60
        $region59: #{t2t_forward.3} parent=11 // pred_region
          %s665 = ssub.s32 16, 16
          %666 = vsyncadd [#allocation21], %s665
          %s668 = sshll.u32 [#allocation22], 4
          %s669 = int_to_ptr.vmem [resolvable:$true] %s668
          %671 = dma.hbm_to_vmem [thread:$0]  %s12, 16, %s669, [#allocation21]
        $region60: #{t2t_forward.3} parent=11 // pred_fallthru
          _
        // Predicated region
        $region61: #{t2t_forward.3} parent=11 // pred_check
          %p672 = pneg %p342
        $region62: #{t2t_forward.3} parent=11 // pred_check_branch
          %674 = sbr.rel (%p672) target = $region64
        $region63: #{t2t_forward.3} parent=11 // pred_region
          %s676 = ssub.s32 16, 16
          %677 = vsyncadd [#allocation24], %s676
          %s679 = sshll.u32 [#allocation23], 4
          %s680 = int_to_ptr.vmem [resolvable:$true] %s679
          %682 = dma.hbm_to_vmem [thread:$0]  %s13, 16, %s680, [#allocation24]
        $region64: #{t2t_forward.3} parent=11 // pred_fallthru
          _
        // Predicated region
        $region65: #{t2t_forward.3} parent=11 // pred_check
          %p683 = pneg %p363
        $region66: #{t2t_forward.3} parent=11 // pred_check_branch
          %685 = sbr.rel (%p683) target = $region68
        $region67: #{t2t_forward.3} parent=11 // pred_region
          %s687 = ssub.s32 256, 256
          %688 = vsyncadd [#allocation24], %s687
          %s689 = sshll.u32 [#allocation25], 4
          %s690 = int_to_ptr.vmem [resolvable:$true] %s689
          %695 = dma.hbm_to_vmem [thread:$0]  %s14, 256, %s690, [#allocation24], 128, 128, 8
        $region68: #{t2t_forward.3} parent=11 // pred_fallthru
          _
        // Predicated region
        $region69: #{t2t_forward.3} parent=11 // pred_check
          %p696 = pneg %p384
        $region70: #{t2t_forward.3} parent=11 // pred_check_branch
          %698 = sbr.rel (%p696) target = $region72
        $region71: #{t2t_forward.3} parent=11 // pred_region
          %s700 = ssub.s32 16, 16
          %701 = vsyncadd [#allocation27], %s700
          %s703 = sshll.u32 [#allocation26], 4
          %s704 = int_to_ptr.vmem [resolvable:$true] %s703
          %706 = dma.hbm_to_vmem [thread:$0]  %s15, 16, %s704, [#allocation27]
        $region72: #{t2t_forward.3} parent=11 // pred_fallthru
          _
        // Predicated region
        $region73: #{t2t_forward.3} parent=11 // pred_check
          %p707 = pneg %p405
        $region74: #{t2t_forward.3} parent=11 // pred_check_branch
          %709 = sbr.rel (%p707) target = $region76
        $region75: #{t2t_forward.3} parent=11 // pred_region
          %s711 = ssub.s32 64, 64
          %712 = vsyncadd [#allocation27], %s711
          %s714 = sshll.u32 [#allocation28], 4
          %s715 = int_to_ptr.vmem [resolvable:$true] %s714
          %717 = dma.hbm_to_vmem [thread:$0]  %s16, 64, %s715, [#allocation27]
        $region76: #{t2t_forward.3} parent=11 // pred_fallthru
          _
        // Predicated region
        $region77: #{t2t_forward.3} parent=11 // pred_check
          %p718 = pneg %p426
        $region78: #{t2t_forward.3} parent=11 // pred_check_branch
          %720 = sbr.rel (%p718) target = $region80
        $region79: #{t2t_forward.3} parent=11 // pred_region
          %s722 = ssub.s32 16, 16
          %723 = vsyncadd [#allocation30], %s722
          %s725 = sshll.u32 [#allocation29], 4
          %s726 = int_to_ptr.vmem [resolvable:$true] %s725
          %728 = dma.hbm_to_vmem [thread:$0]  %s17, 16, %s726, [#allocation30]
        $region80: #{t2t_forward.3} parent=11 // pred_fallthru
          _
        // Predicated region
        $region81: #{t2t_forward.3} parent=11 // pred_check
          %p729 = pneg %p447
        $region82: #{t2t_forward.3} parent=11 // pred_check_branch
          %731 = sbr.rel (%p729) target = $region84
        $region83: #{t2t_forward.3} parent=11 // pred_region
          %s733 = ssub.s32 128, 128
          %734 = vsyncadd [#allocation30], %s733
          %s735 = sshll.u32 [#allocation31], 4
          %s736 = int_to_ptr.vmem [resolvable:$true] %s735
          %741 = dma.hbm_to_vmem [thread:$0]  %s18, 128, %s736, [#allocation30], 64, 64, 4
        $region84: #{t2t_forward.3} parent=11 // pred_fallthru
          _
        // Predicated region
        $region85: #{t2t_forward.3} parent=11 // pred_check
          %p742 = pneg %p468
        $region86: #{t2t_forward.3} parent=11 // pred_check_branch
          %744 = sbr.rel (%p742) target = $region88
        $region87: #{t2t_forward.3} parent=11 // pred_region
          %s746 = ssub.s32 16, 16
          %747 = vsyncadd [#allocation33], %s746
          %s749 = sshll.u32 [#allocation32], 4
          %s750 = int_to_ptr.vmem [resolvable:$true] %s749
          %752 = dma.hbm_to_vmem [thread:$0]  %s19, 16, %s750, [#allocation33]
        $region88: #{t2t_forward.3} parent=11 // pred_fallthru
          _
        // Predicated region
        $region89: #{t2t_forward.3} parent=11 // pred_check
          %p753 = pneg %p489
        $region90: #{t2t_forward.3} parent=11 // pred_check_branch
          %755 = sbr.rel (%p753) target = $region92
        $region91: #{t2t_forward.3} parent=11 // pred_region
          %s757 = ssub.s32 16, 16
          %758 = vsyncadd [#allocation33], %s757
          %s760 = sshll.u32 [#allocation34], 4
          %s761 = int_to_ptr.vmem [resolvable:$true] %s760
          %763 = dma.hbm_to_vmem [thread:$0]  %s20, 16, %s761, [#allocation33]
        $region92: #{t2t_forward.3} parent=11 // pred_fallthru
          _
      $region12: #{t2t_forward.3} parent=5 // pred_fallthru
        _
      %p764 = scmp.lt.s32.totalorder %s43, 2
      // Predicated region
      $region93: #{t2t_forward.3} parent=5 // pred_check
        %p765 = pneg %p764
      $region94: #{t2t_forward.3} parent=5 // pred_check_branch
        %767 = sbr.rel (%p765) target = $region96
      $region95: #{t2t_forward.3} parent=5 // pred_region
        // Predicated region
        $region97: #{t2t_forward.3} parent=95 // pred_check
          %p768 = pneg %p63
        $region98: #{t2t_forward.3} parent=95 // pred_check_branch
          %770 = sbr.rel (%p768) target = $region100
        $region99: #{t2t_forward.3} parent=95 // pred_region
          %s771 = sand.u32 %s53, 1
          %s772 = scalar_lea.sflag [#allocation3], %s771
          %s773 = sand.u32 %s53, 1
          %s774 = smul.addr %s773, 128
          %s775 = scalar_lea.vmem [#allocation2], %s774
          %s777 = ssub.s32 2048, 2048
          %778 = vsyncadd %s772, %s777
          %s779 = smul.addr %s43, 16
          %s780 = smul.addr %s779, 128
          %s781 = scalar_lea.hbm %s0, %s780
          %s782 = sshll.u32 %s775, 4
          %s783 = int_to_ptr.vmem [resolvable:$true] %s782
          %788 = dma.hbm_to_vmem [thread:$0]  %s781, 2048, %s783, %s772, 256, 256, 16
        $region100: #{t2t_forward.3} parent=95 // pred_fallthru
          _
      $region96: #{t2t_forward.3} parent=5 // pred_fallthru
        _
      %p789 = scmp.le.s32.totalorder 1, %s43
      %p790 = scmp.lt.s32.totalorder %s43, 3
      %p791 = pnand %p789, %p790
      %p792 = pneg %p791
      // Predicated region
      $region101: #{t2t_forward.3} parent=5 // pred_check
        _
      $region102: #{t2t_forward.3} parent=5 // pred_check_branch
        %794 = sbr.rel (%p791) target = $region104
      $region103: #{t2t_forward.3} parent=5 // pred_region
        %s795 = ssub.s32 %s43, 1
        %s796 = sand.u32 %s56, 1
        %s797 = scalar_lea.sflag [#allocation3], %s796
        %s798 = sand.u32 %s56, 1
        %s799 = smul.addr %s798, 128
        %s800 = scalar_lea.vmem [#allocation2], %s799
        // Predicated region
        $region105: #{t2t_forward.3} parent=103 // pred_check
          %p801 = pneg %p69
        $region106: #{t2t_forward.3} parent=103 // pred_check_branch
          %803 = sbr.rel (%p801) target = $region108
        $region107: #{t2t_forward.3} parent=103 // pred_region
          %804 = dma.done %s797, 2048
        $region108: #{t2t_forward.3} parent=103 // pred_fallthru
          _
        // Predicated region
        $region109: #{t2t_forward.3} parent=103 // pred_check
          %p805 = pneg %p90
        $region110: #{t2t_forward.3} parent=103 // pred_check_branch
          %807 = sbr.rel (%p805) target = $region112
        $region111: #{t2t_forward.3} parent=103 // pred_region
          %808 = dma.done [#allocation6], 32
        $region112: #{t2t_forward.3} parent=103 // pred_fallthru
          _
        // Predicated region
        $region113: #{t2t_forward.3} parent=103 // pred_check
          %p809 = pneg %p111
        $region114: #{t2t_forward.3} parent=103 // pred_check_branch
          %811 = sbr.rel (%p809) target = $region116
        $region115: #{t2t_forward.3} parent=103 // pred_region
          %812 = dma.done [#allocation6], 32
        $region116: #{t2t_forward.3} parent=103 // pred_fallthru
          _
        // Predicated region
        $region117: #{t2t_forward.3} parent=103 // pred_check
          %p813 = pneg %p132
        $region118: #{t2t_forward.3} parent=103 // pred_check_branch
          %815 = sbr.rel (%p813) target = $region120
        $region119: #{t2t_forward.3} parent=103 // pred_region
          %816 = dma.done [#allocation9], 1216
        $region120: #{t2t_forward.3} parent=103 // pred_fallthru
          _
        // Predicated region
        $region121: #{t2t_forward.3} parent=103 // pred_check
          %p817 = pneg %p153
        $region122: #{t2t_forward.3} parent=103 // pred_check_branch
          %819 = sbr.rel (%p817) target = $region124
        $region123: #{t2t_forward.3} parent=103 // pred_region
          %820 = dma.done [#allocation9], 16
        $region124: #{t2t_forward.3} parent=103 // pred_fallthru
          _
        // Predicated region
        $region125: #{t2t_forward.3} parent=103 // pred_check
          %p821 = pneg %p174
        $region126: #{t2t_forward.3} parent=103 // pred_check_branch
          %823 = sbr.rel (%p821) target = $region128
        $region127: #{t2t_forward.3} parent=103 // pred_region
          %824 = dma.done [#allocation12], 256
        $region128: #{t2t_forward.3} parent=103 // pred_fallthru
          _
        // Predicated region
        $region129: #{t2t_forward.3} parent=103 // pred_check
          %p825 = pneg %p195
        $region130: #{t2t_forward.3} parent=103 // pred_check_branch
          %827 = sbr.rel (%p825) target = $region132
        $region131: #{t2t_forward.3} parent=103 // pred_region
          %828 = dma.done [#allocation12], 128
        $region132: #{t2t_forward.3} parent=103 // pred_fallthru
          _
        // Predicated region
        $region133: #{t2t_forward.3} parent=103 // pred_check
          %p829 = pneg %p216
        $region134: #{t2t_forward.3} parent=103 // pred_check_branch
          %831 = sbr.rel (%p829) target = $region136
        $region135: #{t2t_forward.3} parent=103 // pred_region
          %832 = dma.done [#allocation15], 16
        $region136: #{t2t_forward.3} parent=103 // pred_fallthru
          _
        // Predicated region
        $region137: #{t2t_forward.3} parent=103 // pred_check
          %p833 = pneg %p237
        $region138: #{t2t_forward.3} parent=103 // pred_check_branch
          %835 = sbr.rel (%p833) target = $region140
        $region139: #{t2t_forward.3} parent=103 // pred_region
          %836 = dma.done [#allocation15], 128
        $region140: #{t2t_forward.3} parent=103 // pred_fallthru
          _
        // Predicated region
        $region141: #{t2t_forward.3} parent=103 // pred_check
          %p837 = pneg %p258
        $region142: #{t2t_forward.3} parent=103 // pred_check_branch
          %839 = sbr.rel (%p837) target = $region144
        $region143: #{t2t_forward.3} parent=103 // pred_region
          %840 = dma.done [#allocation18], 16
        $region144: #{t2t_forward.3} parent=103 // pred_fallthru
          _
        // Predicated region
        $region145: #{t2t_forward.3} parent=103 // pred_check
          %p841 = pneg %p279
        $region146: #{t2t_forward.3} parent=103 // pred_check_branch
          %843 = sbr.rel (%p841) target = $region148
        $region147: #{t2t_forward.3} parent=103 // pred_region
          %844 = dma.done [#allocation18], 16
        $region148: #{t2t_forward.3} parent=103 // pred_fallthru
          _
        // Predicated region
        $region149: #{t2t_forward.3} parent=103 // pred_check
          %p845 = pneg %p300
        $region150: #{t2t_forward.3} parent=103 // pred_check_branch
          %847 = sbr.rel (%p845) target = $region152
        $region151: #{t2t_forward.3} parent=103 // pred_region
          %848 = dma.done [#allocation21], 256
        $region152: #{t2t_forward.3} parent=103 // pred_fallthru
          _
        // Predicated region
        $region153: #{t2t_forward.3} parent=103 // pred_check
          %p849 = pneg %p321
        $region154: #{t2t_forward.3} parent=103 // pred_check_branch
          %851 = sbr.rel (%p849) target = $region156
        $region155: #{t2t_forward.3} parent=103 // pred_region
          %852 = dma.done [#allocation21], 16
        $region156: #{t2t_forward.3} parent=103 // pred_fallthru
          _
        // Predicated region
        $region157: #{t2t_forward.3} parent=103 // pred_check
          %p853 = pneg %p342
        $region158: #{t2t_forward.3} parent=103 // pred_check_branch
          %855 = sbr.rel (%p853) target = $region160
        $region159: #{t2t_forward.3} parent=103 // pred_region
          %856 = dma.done [#allocation24], 16
        $region160: #{t2t_forward.3} parent=103 // pred_fallthru
          _
        // Predicated region
        $region161: #{t2t_forward.3} parent=103 // pred_check
          %p857 = pneg %p363
        $region162: #{t2t_forward.3} parent=103 // pred_check_branch
          %859 = sbr.rel (%p857) target = $region164
        $region163: #{t2t_forward.3} parent=103 // pred_region
          %860 = dma.done [#allocation24], 256
        $region164: #{t2t_forward.3} parent=103 // pred_fallthru
          _
        // Predicated region
        $region165: #{t2t_forward.3} parent=103 // pred_check
          %p861 = pneg %p384
        $region166: #{t2t_forward.3} parent=103 // pred_check_branch
          %863 = sbr.rel (%p861) target = $region168
        $region167: #{t2t_forward.3} parent=103 // pred_region
          %864 = dma.done [#allocation27], 16
        $region168: #{t2t_forward.3} parent=103 // pred_fallthru
          _
        // Predicated region
        $region169: #{t2t_forward.3} parent=103 // pred_check
          %p865 = pneg %p405
        $region170: #{t2t_forward.3} parent=103 // pred_check_branch
          %867 = sbr.rel (%p865) target = $region172
        $region171: #{t2t_forward.3} parent=103 // pred_region
          %868 = dma.done [#allocation27], 64
        $region172: #{t2t_forward.3} parent=103 // pred_fallthru
          _
        // Predicated region
        $region173: #{t2t_forward.3} parent=103 // pred_check
          %p869 = pneg %p426
        $region174: #{t2t_forward.3} parent=103 // pred_check_branch
          %871 = sbr.rel (%p869) target = $region176
        $region175: #{t2t_forward.3} parent=103 // pred_region
          %872 = dma.done [#allocation30], 16
        $region176: #{t2t_forward.3} parent=103 // pred_fallthru
          _
        // Predicated region
        $region177: #{t2t_forward.3} parent=103 // pred_check
          %p873 = pneg %p447
        $region178: #{t2t_forward.3} parent=103 // pred_check_branch
          %875 = sbr.rel (%p873) target = $region180
        $region179: #{t2t_forward.3} parent=103 // pred_region
          %876 = dma.done [#allocation30], 128
        $region180: #{t2t_forward.3} parent=103 // pred_fallthru
          _
        // Predicated region
        $region181: #{t2t_forward.3} parent=103 // pred_check
          %p877 = pneg %p468
        $region182: #{t2t_forward.3} parent=103 // pred_check_branch
          %879 = sbr.rel (%p877) target = $region184
        $region183: #{t2t_forward.3} parent=103 // pred_region
          %880 = dma.done [#allocation33], 16
        $region184: #{t2t_forward.3} parent=103 // pred_fallthru
          _
        // Predicated region
        $region185: #{t2t_forward.3} parent=103 // pred_check
          %p881 = pneg %p489
        $region186: #{t2t_forward.3} parent=103 // pred_check_branch
          %883 = sbr.rel (%p881) target = $region188
        $region187: #{t2t_forward.3} parent=103 // pred_region
          %884 = dma.done [#allocation33], 16
        $region188: #{t2t_forward.3} parent=103 // pred_fallthru
          _
        %s885 = sand.u32 %s56, 1
        %s886 = scalar_lea.sflag [#allocation3], %s885
        %s887 = sand.u32 %s56, 1
        %s888 = smul.addr %s887, 128
        %s889 = scalar_lea.vmem [#allocation2], %s888
        %p890 = pneg %p69
        %p891 = pneg %p66
        %p892 = pneg %p90
        %p893 = pneg %p87
        %p894 = pneg %p111
        %p895 = pneg %p108
        %p896 = pneg %p132
        %p897 = pneg %p129
        %p898 = pneg %p153
        %p899 = pneg %p150
        %p900 = pneg %p174
        %p901 = pneg %p171
        %p902 = pneg %p195
        %p903 = pneg %p192
        %p904 = pneg %p216
        %p905 = pneg %p213
        %p906 = pneg %p237
        %p907 = pneg %p234
        %p908 = pneg %p258
        %p909 = pneg %p255
        %p910 = pneg %p279
        %p911 = pneg %p276
        %p912 = pneg %p300
        %p913 = pneg %p297
        %p914 = pneg %p321
        %p915 = pneg %p318
        %p916 = pneg %p342
        %p917 = pneg %p339
        %p918 = pneg %p363
        %p919 = pneg %p360
        %p920 = pneg %p384
        %p921 = pneg %p381
        %p922 = pneg %p405
        %p923 = pneg %p402
        %p924 = pneg %p426
        %p925 = pneg %p423
        %p926 = pneg %p447
        %p927 = pneg %p444
        %p928 = pneg %p468
        %p929 = pneg %p465
        %p930 = pneg %p489
        %p931 = pneg %p486
        %p932 = pneg %p515
        %p933 = pneg %p512
        %s934 = sand.u32 %s502, 1
        %s935 = scalar_lea.sflag [#allocation4], %s934
        %s936 = sand.u32 %s502, 1
        %s937 = smul.addr %s936, 64
        %s938 = scalar_lea.vmem [#allocation35], %s937
        %v940 = vld [vmem:[%s800] sm:$0xff]
        %v941 = vld [vmem:[%s800 + $0x8] sm:$0xff]
        %v942 = vld [vmem:[%s800 + $0x10] sm:$0xff]
        %v943 = vld [vmem:[%s800 + $0x18] sm:$0xff]
        %v944 = vld [vmem:[%s800 + $0x20] sm:$0xff]
        %v945 = vld [vmem:[%s800 + $0x28] sm:$0xff]
        %v946 = vld [vmem:[%s800 + $0x30] sm:$0xff]
        %v947 = vld [vmem:[%s800 + $0x38] sm:$0xff]
        %v948 = vld [vmem:[%s800 + $0x40] sm:$0xff]
        %v949 = vld [vmem:[%s800 + $0x48] sm:$0xff]
        %v950 = vld [vmem:[%s800 + $0x50] sm:$0xff]
        %v951 = vld [vmem:[%s800 + $0x58] sm:$0xff]
        %v952 = vld [vmem:[%s800 + $0x60] sm:$0xff]
        %v953 = vld [vmem:[%s800 + $0x68] sm:$0xff]
        %v954 = vld [vmem:[%s800 + $0x70] sm:$0xff]
        %v955 = vld [vmem:[%s800 + $0x78] sm:$0xff]
        %vm956 = vcmask 154624
        %v957 = vsel %vm956, %v941, 0.0
        %v958 = vadd.f32 %v940, %v957
        %959 = vadd.xlane.f32.xlu0 %v958
        %v960 = vpop.xlane.xlu0 %959
        %v961 = vsel %vm956, %v943, 0.0
        %v962 = vadd.f32 %v942, %v961
        %963 = vadd.xlane.f32.xlu0 %v962
        %v964 = vpop.xlane.xlu0 %963
        %v965 = vsel %vm956, %v945, 0.0
        %v966 = vadd.f32 %v944, %v965
        %967 = vadd.xlane.f32.xlu0 %v966
        %v968 = vpop.xlane.xlu0 %967
        %v969 = vsel %vm956, %v947, 0.0
        %v970 = vadd.f32 %v946, %v969
        %971 = vadd.xlane.f32.xlu0 %v970
        %v972 = vpop.xlane.xlu0 %971
        %v973 = vsel %vm956, %v949, 0.0
        %v974 = vadd.f32 %v948, %v973
        %975 = vadd.xlane.f32.xlu0 %v974
        %v976 = vpop.xlane.xlu0 %975
        %v977 = vsel %vm956, %v951, 0.0
        %v978 = vadd.f32 %v950, %v977
        %979 = vadd.xlane.f32.xlu0 %v978
        %v980 = vpop.xlane.xlu0 %979
        %v981 = vsel %vm956, %v953, 0.0
        %v982 = vadd.f32 %v952, %v981
        %983 = vadd.xlane.f32.xlu0 %v982
        %v984 = vpop.xlane.xlu0 %983
        %v985 = vsel %vm956, %v955, 0.0
        %v986 = vadd.f32 %v954, %v985
        %987 = vadd.xlane.f32.xlu0 %v986
        %v988 = vpop.xlane.xlu0 %987
        %v989 = vrcp.pop 147.0
        %v990 = vmul.f32 %v960, %v989
        %v991 = vmul.f32 %v964, %v989
        %v992 = vmul.f32 %v968, %v989
        %v993 = vmul.f32 %v972, %v989
        %v994 = vmul.f32 %v976, %v989
        %v995 = vmul.f32 %v980, %v989
        %v996 = vmul.f32 %v984, %v989
        %v997 = vmul.f32 %v988, %v989
        %v998 = vsub.f32 %v940, %v990
        %v999 = vsub.f32 %v941, %v990
        %v1000 = vsub.f32 %v942, %v991
        %v1001 = vsub.f32 %v943, %v991
        %v1002 = vsub.f32 %v944, %v992
        %v1003 = vsub.f32 %v945, %v992
        %v1004 = vsub.f32 %v946, %v993
        %v1005 = vsub.f32 %v947, %v993
        %v1006 = vsub.f32 %v948, %v994
        %v1007 = vsub.f32 %v949, %v994
        %v1008 = vsub.f32 %v950, %v995
        %v1009 = vsub.f32 %v951, %v995
        %v1010 = vsub.f32 %v952, %v996
        %v1011 = vsub.f32 %v953, %v996
        %v1012 = vsub.f32 %v954, %v997
        %v1013 = vsub.f32 %v955, %v997
        %v1014 = vmul.f32 %v998, %v998
        %v1015 = vmul.f32 %v999, %v999
        %v1016 = vmul.f32 %v1000, %v1000
        %v1017 = vmul.f32 %v1001, %v1001
        %v1018 = vmul.f32 %v1002, %v1002
        %v1019 = vmul.f32 %v1003, %v1003
        %v1020 = vmul.f32 %v1004, %v1004
        %v1021 = vmul.f32 %v1005, %v1005
        %v1022 = vmul.f32 %v1006, %v1006
        %v1023 = vmul.f32 %v1007, %v1007
        %v1024 = vmul.f32 %v1008, %v1008
        %v1025 = vmul.f32 %v1009, %v1009
        %v1026 = vmul.f32 %v1010, %v1010
        %v1027 = vmul.f32 %v1011, %v1011
        %v1028 = vmul.f32 %v1012, %v1012
        %v1029 = vmul.f32 %v1013, %v1013
        %v1030 = vsel %vm956, %v1015, 0.0
        %v1031 = vadd.f32 %v1014, %v1030
        %1032 = vadd.xlane.f32.xlu0 %v1031
        %v1033 = vpop.xlane.xlu0 %1032
        %v1034 = vsel %vm956, %v1017, 0.0
        %v1035 = vadd.f32 %v1016, %v1034
        %1036 = vadd.xlane.f32.xlu0 %v1035
        %v1037 = vpop.xlane.xlu0 %1036
        %v1038 = vsel %vm956, %v1019, 0.0
        %v1039 = vadd.f32 %v1018, %v1038
        %1040 = vadd.xlane.f32.xlu0 %v1039
        %v1041 = vpop.xlane.xlu0 %1040
        %v1042 = vsel %vm956, %v1021, 0.0
        %v1043 = vadd.f32 %v1020, %v1042
        %1044 = vadd.xlane.f32.xlu0 %v1043
        %v1045 = vpop.xlane.xlu0 %1044
        %v1046 = vsel %vm956, %v1023, 0.0
        %v1047 = vadd.f32 %v1022, %v1046
        %1048 = vadd.xlane.f32.xlu0 %v1047
        %v1049 = vpop.xlane.xlu0 %1048
        %v1050 = vsel %vm956, %v1025, 0.0
        %v1051 = vadd.f32 %v1024, %v1050
        %1052 = vadd.xlane.f32.xlu0 %v1051
        %v1053 = vpop.xlane.xlu0 %1052
        %v1054 = vsel %vm956, %v1027, 0.0
        %v1055 = vadd.f32 %v1026, %v1054
        %1056 = vadd.xlane.f32.xlu0 %v1055
        %v1057 = vpop.xlane.xlu0 %1056
        %v1058 = vsel %vm956, %v1029, 0.0
        %v1059 = vadd.f32 %v1028, %v1058
        %1060 = vadd.xlane.f32.xlu0 %v1059
        %v1061 = vpop.xlane.xlu0 %1060
        %v1062 = vmul.f32 %v1033, %v989
        %v1063 = vmul.f32 %v1037, %v989
        %v1064 = vmul.f32 %v1041, %v989
        %v1065 = vmul.f32 %v1045, %v989
        %v1066 = vmul.f32 %v1049, %v989
        %v1067 = vmul.f32 %v1053, %v989
        %v1068 = vmul.f32 %v1057, %v989
        %v1069 = vmul.f32 %v1061, %v989
        %v1070 = vadd.f32 %v1062, 1e-05
        %v1071 = vadd.f32 %v1063, 1e-05
        %v1072 = vadd.f32 %v1064, 1e-05
        %v1073 = vadd.f32 %v1065, 1e-05
        %v1074 = vadd.f32 %v1066, 1e-05
        %v1075 = vadd.f32 %v1067, 1e-05
        %v1076 = vadd.f32 %v1068, 1e-05
        %v1077 = vadd.f32 %v1069, 1e-05
        %v1078 = vrsqrt.pop %v1070
        %v1079 = vrsqrt.pop %v1071
        %v1080 = vrsqrt.pop %v1072
        %v1081 = vrsqrt.pop %v1073
        %v1082 = vrsqrt.pop %v1074
        %v1083 = vrsqrt.pop %v1075
        %v1084 = vrsqrt.pop %v1076
        %v1085 = vrsqrt.pop %v1077
        %v1086 = vmul.f32 %v998, %v1078
        %v1087 = vmul.f32 %v999, %v1078
        %v1088 = vmul.f32 %v1000, %v1079
        %v1089 = vmul.f32 %v1001, %v1079
        %v1090 = vmul.f32 %v1002, %v1080
        %v1091 = vmul.f32 %v1003, %v1080
        %v1092 = vmul.f32 %v1004, %v1081
        %v1093 = vmul.f32 %v1005, %v1081
        %v1094 = vmul.f32 %v1006, %v1082
        %v1095 = vmul.f32 %v1007, %v1082
        %v1096 = vmul.f32 %v1008, %v1083
        %v1097 = vmul.f32 %v1009, %v1083
        %v1098 = vmul.f32 %v1010, %v1084
        %v1099 = vmul.f32 %v1011, %v1084
        %v1100 = vmul.f32 %v1012, %v1085
        %v1101 = vmul.f32 %v1013, %v1085
        %v1102 = vld [vmem:[#allocation5] sm:$0x3]
        %v1104 = vlaneseq
        %v1105 = vshrl.u32 %v1104, 7
        %v1106 = vsub.s32 0, %v1105
        %v1107 = vrot.slane %v1102, %v1106
        %v1108 = vlaneseq
        %v1109 = vshrl.u32 %v1108, 7
        %v1110 = vsub.s32 1, %v1109
        %v1111 = vrot.slane %v1102, %v1110
        %v1114 = vmul.f32 %v1086, %v1107
        %v1115 = vmul.f32 %v1087, %v1111
        %v1116 = vmul.f32 %v1088, %v1107
        %v1117 = vmul.f32 %v1089, %v1111
        %v1118 = vmul.f32 %v1090, %v1107
        %v1119 = vmul.f32 %v1091, %v1111
        %v1120 = vmul.f32 %v1092, %v1107
        %v1121 = vmul.f32 %v1093, %v1111
        %v1122 = vmul.f32 %v1094, %v1107
        %v1123 = vmul.f32 %v1095, %v1111
        %v1124 = vmul.f32 %v1096, %v1107
        %v1125 = vmul.f32 %v1097, %v1111
        %v1126 = vmul.f32 %v1098, %v1107
        %v1127 = vmul.f32 %v1099, %v1111
        %v1128 = vmul.f32 %v1100, %v1107
        %v1129 = vmul.f32 %v1101, %v1111
        %v1130 = vld [vmem:[#allocation7] sm:$0x3]
        %v1132 = vlaneseq
        %v1133 = vshrl.u32 %v1132, 7
        %v1134 = vsub.s32 0, %v1133
        %v1135 = vrot.slane %v1130, %v1134
        %v1136 = vlaneseq
        %v1137 = vshrl.u32 %v1136, 7
        %v1138 = vsub.s32 1, %v1137
        %v1139 = vrot.slane %v1130, %v1138
        %v1142 = vadd.f32 %v1114, %v1135
        %v1143 = vadd.f32 %v1115, %v1139
        %v1144 = vadd.f32 %v1116, %v1135
        %v1145 = vadd.f32 %v1117, %v1139
        %v1146 = vadd.f32 %v1118, %v1135
        %v1147 = vadd.f32 %v1119, %v1139
        %v1148 = vadd.f32 %v1120, %v1135
        %v1149 = vadd.f32 %v1121, %v1139
        %v1150 = vadd.f32 %v1122, %v1135
        %v1151 = vadd.f32 %v1123, %v1139
        %v1152 = vadd.f32 %v1124, %v1135
        %v1153 = vadd.f32 %v1125, %v1139
        %v1154 = vadd.f32 %v1126, %v1135
        %v1155 = vadd.f32 %v1127, %v1139
        %v1156 = vadd.f32 %v1128, %v1135
        %v1157 = vadd.f32 %v1129, %v1139
        %v1158 = vpack.c.bf16 %v1144, %v1142
        %v1159 = vpack.c.bf16 %v1145, %v1143
        %v1160 = vpack.c.bf16 %v1148, %v1146
        %v1161 = vpack.c.bf16 %v1149, %v1147
        %v1162 = vpack.c.bf16 %v1152, %v1150
        %v1163 = vpack.c.bf16 %v1153, %v1151
        %v1164 = vpack.c.bf16 %v1156, %v1154
        %v1165 = vpack.c.bf16 %v1157, %v1155
        %v1166 = vld [vmem:[#allocation8] sm:$0xf]
        %v1167 = vld [vmem:[#allocation8 + $0x4] sm:$0xf]
        %v1168 = vld [vmem:[#allocation8 + $0x8] sm:$0xf]
        %v1169 = vld [vmem:[#allocation8 + $0xc] sm:$0xf]
        %v1170 = vld [vmem:[#allocation8 + $0x10] sm:$0xf]
        %v1171 = vld [vmem:[#allocation8 + $0x14] sm:$0xf]
        %v1172 = vld [vmem:[#allocation8 + $0x18] sm:$0xf]
        %v1173 = vld [vmem:[#allocation8 + $0x1c] sm:$0xf]
        %v1174 = vld [vmem:[#allocation8 + $0x20] sm:$0xf]
        %v1175 = vld [vmem:[#allocation8 + $0x24] sm:$0xf]
        %v1176 = vld [vmem:[#allocation8 + $0x28] sm:$0xf]
        %v1177 = vld [vmem:[#allocation8 + $0x2c] sm:$0xf]
        %v1178 = vld [vmem:[#allocation8 + $0x30] sm:$0xf]
        %v1179 = vld [vmem:[#allocation8 + $0x34] sm:$0xf]
        %v1180 = vld [vmem:[#allocation8 + $0x38] sm:$0xf]
        %v1181 = vld [vmem:[#allocation8 + $0x3c] sm:$0xf]
        %v1182 = vld [vmem:[#allocation8 + $0x40] sm:$0xf]
        %v1183 = vld [vmem:[#allocation8 + $0x44] sm:$0xf]
        %v1184 = vld [vmem:[#allocation8 + $0x48] sm:$0x3]
        %v1185 = vld [vmem:[#allocation10] sm:$0x1]
        %v1187 = vlaneseq
        %v1188 = vshrl.u32 %v1187, 7
        %v1189 = vsub.s32 0, %v1188
        %v1190 = vrot.slane %v1185, %v1189
        %v1211 = vunpack.c.l.b16 %v1166
        %v1212 = vunpack.c.l.b16 %v1167
        %v1213 = vunpack.c.l.b16 %v1168
        %v1214 = vunpack.c.l.b16 %v1169
        %v1215 = vunpack.c.l.b16 %v1170
        %v1216 = vunpack.c.l.b16 %v1171
        %v1217 = vunpack.c.l.b16 %v1172
        %v1218 = vunpack.c.l.b16 %v1173
        %v1219 = vunpack.c.l.b16 %v1174
        %v1220 = vunpack.c.l.b16 %v1175
        %v1221 = vunpack.c.l.b16 %v1176
        %v1222 = vunpack.c.l.b16 %v1177
        %v1223 = vunpack.c.l.b16 %v1178
        %v1224 = vunpack.c.l.b16 %v1179
        %v1225 = vunpack.c.l.b16 %v1180
        %v1226 = vunpack.c.l.b16 %v1181
        %v1227 = vunpack.c.l.b16 %v1182
        %v1228 = vunpack.c.l.b16 %v1183
        %v1229 = vunpack.c.l.b16 %v1184
        %v1230 = vpack.c.b16 %v1212, %v1211
        %v1231 = vpack.c.b16 %v1214, %v1213
        %v1232 = vpack.c.b16 %v1216, %v1215
        %v1233 = vpack.c.b16 %v1218, %v1217
        %v1234 = vpack.c.b16 %v1220, %v1219
        %v1235 = vpack.c.b16 %v1222, %v1221
        %v1236 = vpack.c.b16 %v1224, %v1223
        %v1237 = vpack.c.b16 %v1226, %v1225
        %v1238 = vpack.c.b16 %v1228, %v1227
        %v1239 = vpack.c.b16 %v1229, %v1229
        %v1250 = vsel %vm956, %v1159, 0
        %v1253 = vsel %vm956, %v1161, 0
        %v1256 = vsel %vm956, %v1163, 0
        %v1259 = vsel %vm956, %v1165, 0
        %vm1261 = vcmask 1040384
        %vm1262 = vcmask 1041408
        %v1263 = vsel %vm1261, 4294967295, 65535
        %v1264 = vsel %vm1262, %v1263, 0
        %v1266 = vand.u32 %v1239, %v1264
        %1268 = vmatprep.subr.bf16.mxu0 0
        %1269 = vmatpush1.bf16.msra.mxu0 %v1230
        %1270 = vmatprep.subr.bf16.mxu0 0
        %1271 = vmatpush1.bf16.msra.mxu0 %v1231
        %1272 = vmatprep.subr.bf16.mxu0 0
        %1273 = vmatpush1.bf16.msra.mxu0 %v1232
        %1274 = vmatprep.subr.bf16.mxu0 0
        %1275 = vmatpush1.bf16.msra.mxu0 %v1233
        %1276 = vmatprep.subr.bf16.mxu0 0
        %1277 = vmatpush1.bf16.msra.mxu0 %v1234
        %1278 = vmatprep.subr.bf16.mxu0 0
        %1279 = vmatpush1.bf16.msra.mxu0 %v1235
        %1280 = vmatprep.subr.bf16.mxu0 0
        %1281 = vmatpush1.bf16.msra.mxu0 %v1236
        %1282 = vmatprep.subr.bf16.mxu0 0
        %1283 = vmatpush1.bf16.msra.mxu0 %v1237
        %1284 = vmatprep.subr.bf16.mxu0 0
        %1285 = vmatpush1.bf16.msra.mxu0 %v1238
        %1286 = vmatprep.subr.bf16.mxu0 0
        %1287 = vmatpush1.bf16.msra.mxu0 %v1266
        %1288 = vmatprep.subr.bf16.mxu0 0
        %1289 = vmatpush1.bf16.msra.mxu0 0
        %1290 = vmatprep.subr.bf16.mxu0 0
        %1291 = vmatpush1.bf16.msra.mxu0 0
        %1292 = vmatprep.subr.bf16.mxu0 0
        %1293 = vmatpush1.bf16.msra.mxu0 0
        %1294 = vmatprep.subr.bf16.mxu0 0
        %1295 = vmatpush1.bf16.msra.mxu0 0
        %1296 = vmatprep.subr.bf16.mxu0 0
        %1297 = vmatpush1.bf16.msra.mxu0 0
        %1298 = vmatprep.subr.bf16.mxu0 0
        %1299 = vmatpush1.bf16.msra.mxu0 0
        %1300 = vmatprep.mubr.bf16.mxu0 %v1250
        %1301 = vmatmul.mubr.bf16.gmra.mrb[0].mxu0 %v1158
        %v1302 = vpop.f32.mrb[0].mxu0
        %v1303 = vadd.f32 %v1190, %v1302
        %v1304 = vpop.f32.mrb[0].mxu0
        %v1305 = vpop.f32.mrb[0].mxu0
        %v1306 = vadd.f32 %v1190, %v1305
        %v1307 = vpop.f32.mrb[0].mxu0
        %1308 = vmatprep.mubr.bf16.mxu0 %v1253
        %1309 = vmatmul.mubr.bf16.gmra.mrb[0].mxu0 %v1160
        %v1310 = vpop.f32.mrb[0].mxu0
        %v1311 = vadd.f32 %v1190, %v1310
        %v1312 = vpop.f32.mrb[0].mxu0
        %v1313 = vpop.f32.mrb[0].mxu0
        %v1314 = vadd.f32 %v1190, %v1313
        %v1315 = vpop.f32.mrb[0].mxu0
        %1316 = vmatprep.mubr.bf16.mxu0 %v1256
        %1317 = vmatmul.mubr.bf16.gmra.mrb[0].mxu0 %v1162
        %v1318 = vpop.f32.mrb[0].mxu0
        %v1319 = vadd.f32 %v1190, %v1318
        %v1320 = vpop.f32.mrb[0].mxu0
        %v1321 = vpop.f32.mrb[0].mxu0
        %v1322 = vadd.f32 %v1190, %v1321
        %v1323 = vpop.f32.mrb[0].mxu0
        %1324 = vmatprep.mubr.bf16.mxu0 %v1259
        %1325 = vmatmul.mubr.bf16.gmra.mrb[0].mxu0 %v1164
        %v1326 = vpop.f32.mrb[0].mxu0
        %v1327 = vadd.f32 %v1190, %v1326
        %v1328 = vpop.f32.mrb[0].mxu0
        %v1329 = vpop.f32.mrb[0].mxu0
        %v1330 = vadd.f32 %v1190, %v1329
        %v1331 = vpop.f32.mrb[0].mxu0
        %1332 = vdwg.mxu0
        %v1333 = vmul.f32 %v1303, %v1303
        %v1334 = vmul.f32 %v1306, %v1306
        %v1335 = vmul.f32 %v1311, %v1311
        %v1336 = vmul.f32 %v1314, %v1314
        %v1337 = vmul.f32 %v1319, %v1319
        %v1338 = vmul.f32 %v1322, %v1322
        %v1339 = vmul.f32 %v1327, %v1327
        %v1340 = vmul.f32 %v1330, %v1330
        %vm1341 = vcmask 130048
        %v1342 = vsel %vm1341, %v1333, 0.0
        %1343 = vadd.xlane.f32.xlu0 %v1342
        %v1344 = vpop.xlane.xlu0 %1343
        %v1345 = vsel %vm1341, %v1334, 0.0
        %1346 = vadd.xlane.f32.xlu0 %v1345
        %v1347 = vpop.xlane.xlu0 %1346
        %v1348 = vsel %vm1341, %v1335, 0.0
        %1349 = vadd.xlane.f32.xlu0 %v1348
        %v1350 = vpop.xlane.xlu0 %1349
        %v1351 = vsel %vm1341, %v1336, 0.0
        %1352 = vadd.xlane.f32.xlu0 %v1351
        %v1353 = vpop.xlane.xlu0 %1352
        %v1354 = vsel %vm1341, %v1337, 0.0
        %1355 = vadd.xlane.f32.xlu0 %v1354
        %v1356 = vpop.xlane.xlu0 %1355
        %v1357 = vsel %vm1341, %v1338, 0.0
        %1358 = vadd.xlane.f32.xlu0 %v1357
        %v1359 = vpop.xlane.xlu0 %1358
        %v1360 = vsel %vm1341, %v1339, 0.0
        %1361 = vadd.xlane.f32.xlu0 %v1360
        %v1362 = vpop.xlane.xlu0 %1361
        %v1363 = vsel %vm1341, %v1340, 0.0
        %1364 = vadd.xlane.f32.xlu0 %v1363
        %v1365 = vpop.xlane.xlu0 %1364
        %v1366 = vmul.f32 %v1344, 0.5
        %v1367 = vmul.f32 %v1347, 0.5
        %v1368 = vmul.f32 %v1350, 0.5
        %v1369 = vmul.f32 %v1353, 0.5
        %v1370 = vmul.f32 %v1356, 0.5
        %v1371 = vmul.f32 %v1359, 0.5
        %v1372 = vmul.f32 %v1362, 0.5
        %v1373 = vmul.f32 %v1365, 0.5
        %v1374 = vld [vmem:[#allocation11] sm:$0xff]
        %v1375 = vld [vmem:[#allocation11 + $0x8] sm:$0xff]
        %v1377 = vsel %vm1341, %v1303, 0
        %v1380 = vsel %vm1341, %v1306, 0
        %v1383 = vsel %vm1341, %v1311, 0
        %v1386 = vsel %vm1341, %v1314, 0
        %v1389 = vsel %vm1341, %v1319, 0
        %v1392 = vsel %vm1341, %v1322, 0
        %v1395 = vsel %vm1341, %v1327, 0
        %v1398 = vsel %vm1341, %v1330, 0
        %1400 = vmatprep.subr.mxu0 0.0
        %1401 = vmatpush1.msra.mxu0 %v1374
        %1402 = vmatprep.subr.mxu0 0.0
        %1403 = vmatpush1.msra.mxu0 %v1375
        %1404 = vmatprep.subr.mxu0 0.0
        %1405 = vmatpush1.msra.mxu0 0.0
        %1406 = vmatprep.subr.mxu0 0.0
        %1407 = vmatpush1.msra.mxu0 0.0
        %1408 = vmatprep.subr.mxu0 0.0
        %1409 = vmatpush1.msra.mxu0 0.0
        %1410 = vmatprep.subr.mxu0 0.0
        %1411 = vmatpush1.msra.mxu0 0.0
        %1412 = vmatprep.subr.mxu0 0.0
        %1413 = vmatpush1.msra.mxu0 0.0
        %1414 = vmatprep.subr.mxu0 0.0
        %1415 = vmatpush1.msra.mxu0 0.0
        %1416 = vmatprep.subr.mxu0 0.0
        %1417 = vmatpush1.msra.mxu0 0.0
        %1418 = vmatprep.subr.mxu0 0.0
        %1419 = vmatpush1.msra.mxu0 0.0
        %1420 = vmatprep.subr.mxu0 0.0
        %1421 = vmatpush1.msra.mxu0 0.0
        %1422 = vmatprep.subr.mxu0 0.0
        %1423 = vmatpush1.msra.mxu0 0.0
        %1424 = vmatprep.subr.mxu0 0.0
        %1425 = vmatpush1.msra.mxu0 0.0
        %1426 = vmatprep.subr.mxu0 0.0
        %1427 = vmatpush1.msra.mxu0 0.0
        %1428 = vmatprep.subr.mxu0 0.0
        %1429 = vmatpush1.msra.mxu0 0.0
        %1430 = vmatprep.subr.mxu0 0.0
        %1431 = vmatpush1.msra.mxu0 0.0
        %1432 = vmatprep.subr.mxu0 0.0
        %1433 = vmatpush1.msra.mxu0 0.0
        %1434 = vmatprep.subr.mxu0 0.0
        %1435 = vmatpush1.msra.mxu0 0.0
        %1436 = vmatprep.subr.mxu0 0.0
        %1437 = vmatpush1.msra.mxu0 0.0
        %1438 = vmatprep.subr.mxu0 0.0
        %1439 = vmatpush1.msra.mxu0 0.0
        %1440 = vmatprep.subr.mxu0 0.0
        %1441 = vmatpush1.msra.mxu0 0.0
        %1442 = vmatprep.subr.mxu0 0.0
        %1443 = vmatpush1.msra.mxu0 0.0
        %1444 = vmatprep.subr.mxu0 0.0
        %1445 = vmatpush1.msra.mxu0 0.0
        %1446 = vmatprep.subr.mxu0 0.0
        %1447 = vmatpush1.msra.mxu0 0.0
        %1448 = vmatprep.subr.mxu0 0.0
        %1449 = vmatpush1.msra.mxu0 0.0
        %1450 = vmatprep.subr.mxu0 0.0
        %1451 = vmatpush1.msra.mxu0 0.0
        %1452 = vmatprep.subr.mxu0 0.0
        %1453 = vmatpush1.msra.mxu0 0.0
        %1454 = vmatprep.subr.mxu0 0.0
        %1455 = vmatpush1.msra.mxu0 0.0
        %1456 = vmatprep.subr.mxu0 0.0
        %1457 = vmatpush1.msra.mxu0 0.0
        %1458 = vmatprep.subr.mxu0 0.0
        %1459 = vmatpush1.msra.mxu0 0.0
        %1460 = vmatprep.subr.mxu0 0.0
        %1461 = vmatpush1.msra.mxu0 0.0
        %1462 = vmatprep.subr.mxu0 0.0
        %1463 = vmatpush1.msra.mxu0 0.0
        %1464 = vmatprep.mubr.f32.mxu0 0.0
        %1465 = vmatmul.mubr.f32.gmra.mrb[0].mxu0 %v1377
        %v1466 = vpop.f32.mrb[0].mxu0
        %v1467 = vadd.f32 0.0, %v1466
        %v1468 = vpop.f32.mrb[0].mxu0
        %1469 = vmatprep.mubr.f32.mxu0 0.0
        %1470 = vmatmul.mubr.f32.gmra.mrb[0].mxu0 %v1380
        %v1471 = vpop.f32.mrb[0].mxu0
        %v1472 = vadd.f32 0.0, %v1471
        %v1473 = vpop.f32.mrb[0].mxu0
        %1474 = vmatprep.mubr.f32.mxu0 0.0
        %1475 = vmatmul.mubr.f32.gmra.mrb[0].mxu0 %v1383
        %v1476 = vpop.f32.mrb[0].mxu0
        %v1477 = vadd.f32 0.0, %v1476
        %v1478 = vpop.f32.mrb[0].mxu0
        %1479 = vmatprep.mubr.f32.mxu0 0.0
        %1480 = vmatmul.mubr.f32.gmra.mrb[0].mxu0 %v1386
        %v1481 = vpop.f32.mrb[0].mxu0
        %v1482 = vadd.f32 0.0, %v1481
        %v1483 = vpop.f32.mrb[0].mxu0
        %1484 = vmatprep.mubr.f32.mxu0 0.0
        %1485 = vmatmul.mubr.f32.gmra.mrb[0].mxu0 %v1389
        %v1486 = vpop.f32.mrb[0].mxu0
        %v1487 = vadd.f32 0.0, %v1486
        %v1488 = vpop.f32.mrb[0].mxu0
        %1489 = vmatprep.mubr.f32.mxu0 0.0
        %1490 = vmatmul.mubr.f32.gmra.mrb[0].mxu0 %v1392
        %v1491 = vpop.f32.mrb[0].mxu0
        %v1492 = vadd.f32 0.0, %v1491
        %v1493 = vpop.f32.mrb[0].mxu0
        %1494 = vmatprep.mubr.f32.mxu0 0.0
        %1495 = vmatmul.mubr.f32.gmra.mrb[0].mxu0 %v1395
        %v1496 = vpop.f32.mrb[0].mxu0
        %v1497 = vadd.f32 0.0, %v1496
        %v1498 = vpop.f32.mrb[0].mxu0
        %1499 = vmatprep.mubr.f32.mxu0 0.0
        %1500 = vmatmul.mubr.f32.gmra.mrb[0].mxu0 %v1398
        %v1501 = vpop.f32.mrb[0].mxu0
        %v1502 = vadd.f32 0.0, %v1501
        %v1503 = vpop.f32.mrb[0].mxu0
        %1504 = vdwg.mxu0
        %v1505 = vsub.f32 %v1467, %v1366
        %v1506 = vsub.f32 %v1472, %v1367
        %v1507 = vsub.f32 %v1477, %v1368
        %v1508 = vsub.f32 %v1482, %v1369
        %v1509 = vsub.f32 %v1487, %v1370
        %v1510 = vsub.f32 %v1492, %v1371
        %v1511 = vsub.f32 %v1497, %v1372
        %v1512 = vsub.f32 %v1502, %v1373
        %v1513 = vmul.f32 %v1505, 1.442695
        %v1514 = vpow.pop %v1513
        %v1515 = vmul.f32 %v1506, 1.442695
        %v1516 = vpow.pop %v1515
        %v1517 = vmul.f32 %v1507, 1.442695
        %v1518 = vpow.pop %v1517
        %v1519 = vmul.f32 %v1508, 1.442695
        %v1520 = vpow.pop %v1519
        %v1521 = vmul.f32 %v1509, 1.442695
        %v1522 = vpow.pop %v1521
        %v1523 = vmul.f32 %v1510, 1.442695
        %v1524 = vpow.pop %v1523
        %v1525 = vmul.f32 %v1511, 1.442695
        %v1526 = vpow.pop %v1525
        %v1527 = vmul.f32 %v1512, 1.442695
        %v1528 = vpow.pop %v1527
        %v1529 = vmul.f32 %v1514, 0.35355338
        %v1530 = vmul.f32 %v1516, 0.35355338
        %v1531 = vmul.f32 %v1518, 0.35355338
        %v1532 = vmul.f32 %v1520, 0.35355338
        %v1533 = vmul.f32 %v1522, 0.35355338
        %v1534 = vmul.f32 %v1524, 0.35355338
        %v1535 = vmul.f32 %v1526, 0.35355338
        %v1536 = vmul.f32 %v1528, 0.35355338
        %1545 = vrot.lane.b32.xlu0 %v1333, 112
        %v1546 = vpop.permute.xlu0 %1545
        %1547 = vrot.lane.b32.xlu0 %v1334, 112
        %v1548 = vpop.permute.xlu0 %1547
        %1549 = vrot.lane.b32.xlu0 %v1335, 112
        %v1550 = vpop.permute.xlu0 %1549
        %1551 = vrot.lane.b32.xlu0 %v1336, 112
        %v1552 = vpop.permute.xlu0 %1551
        %1553 = vrot.lane.b32.xlu0 %v1337, 112
        %v1554 = vpop.permute.xlu0 %1553
        %1555 = vrot.lane.b32.xlu0 %v1338, 112
        %v1556 = vpop.permute.xlu0 %1555
        %1557 = vrot.lane.b32.xlu0 %v1339, 112
        %v1558 = vpop.permute.xlu0 %1557
        %1559 = vrot.lane.b32.xlu0 %v1340, 112
        %v1560 = vpop.permute.xlu0 %1559
        %v1569 = vsel %vm1341, %v1546, 0.0
        %1570 = vadd.xlane.f32.xlu0 %v1569
        %v1571 = vpop.xlane.xlu0 %1570
        %v1572 = vsel %vm1341, %v1548, 0.0
        %1573 = vadd.xlane.f32.xlu0 %v1572
        %v1574 = vpop.xlane.xlu0 %1573
        %v1575 = vsel %vm1341, %v1550, 0.0
        %1576 = vadd.xlane.f32.xlu0 %v1575
        %v1577 = vpop.xlane.xlu0 %1576
        %v1578 = vsel %vm1341, %v1552, 0.0
        %1579 = vadd.xlane.f32.xlu0 %v1578
        %v1580 = vpop.xlane.xlu0 %1579
        %v1581 = vsel %vm1341, %v1554, 0.0
        %1582 = vadd.xlane.f32.xlu0 %v1581
        %v1583 = vpop.xlane.xlu0 %1582
        %v1584 = vsel %vm1341, %v1556, 0.0
        %1585 = vadd.xlane.f32.xlu0 %v1584
        %v1586 = vpop.xlane.xlu0 %1585
        %v1587 = vsel %vm1341, %v1558, 0.0
        %1588 = vadd.xlane.f32.xlu0 %v1587
        %v1589 = vpop.xlane.xlu0 %1588
        %v1590 = vsel %vm1341, %v1560, 0.0
        %1591 = vadd.xlane.f32.xlu0 %v1590
        %v1592 = vpop.xlane.xlu0 %1591
        %v1593 = vmul.f32 %v1571, 0.5
        %v1594 = vmul.f32 %v1574, 0.5
        %v1595 = vmul.f32 %v1577, 0.5
        %v1596 = vmul.f32 %v1580, 0.5
        %v1597 = vmul.f32 %v1583, 0.5
        %v1598 = vmul.f32 %v1586, 0.5
        %v1599 = vmul.f32 %v1589, 0.5
        %v1600 = vmul.f32 %v1592, 0.5
        %1601 = vrot.lane.b32.xlu0 %v1303, 112
        %v1602 = vpop.permute.xlu0 %1601
        %1603 = vrot.lane.b32.xlu0 %v1306, 112
        %v1604 = vpop.permute.xlu0 %1603
        %1605 = vrot.lane.b32.xlu0 %v1311, 112
        %v1606 = vpop.permute.xlu0 %1605
        %1607 = vrot.lane.b32.xlu0 %v1314, 112
        %v1608 = vpop.permute.xlu0 %1607
        %1609 = vrot.lane.b32.xlu0 %v1319, 112
        %v1610 = vpop.permute.xlu0 %1609
        %1611 = vrot.lane.b32.xlu0 %v1322, 112
        %v1612 = vpop.permute.xlu0 %1611
        %1613 = vrot.lane.b32.xlu0 %v1327, 112
        %v1614 = vpop.permute.xlu0 %1613
        %1615 = vrot.lane.b32.xlu0 %v1330, 112
        %v1616 = vpop.permute.xlu0 %1615
        %v1617 = vsel %vm1341, %v1602, 0
        %v1619 = vsel %vm1341, %v1604, 0
        %v1621 = vsel %vm1341, %v1606, 0
        %v1623 = vsel %vm1341, %v1608, 0
        %v1625 = vsel %vm1341, %v1610, 0
        %v1627 = vsel %vm1341, %v1612, 0
        %v1629 = vsel %vm1341, %v1614, 0
        %v1631 = vsel %vm1341, %v1616, 0
        %1633 = vmatprep.subr.mxu0 0.0
        %1634 = vmatpush1.msra.mxu0 %v1374
        %1635 = vmatprep.subr.mxu0 0.0
        %1636 = vmatpush1.msra.mxu0 %v1375
        %1637 = vmatprep.subr.mxu0 0.0
        %1638 = vmatpush1.msra.mxu0 0.0
        %1639 = vmatprep.subr.mxu0 0.0
        %1640 = vmatpush1.msra.mxu0 0.0
        %1641 = vmatprep.subr.mxu0 0.0
        %1642 = vmatpush1.msra.mxu0 0.0
        %1643 = vmatprep.subr.mxu0 0.0
        %1644 = vmatpush1.msra.mxu0 0.0
        %1645 = vmatprep.subr.mxu0 0.0
        %1646 = vmatpush1.msra.mxu0 0.0
        %1647 = vmatprep.subr.mxu0 0.0
        %1648 = vmatpush1.msra.mxu0 0.0
        %1649 = vmatprep.subr.mxu0 0.0
        %1650 = vmatpush1.msra.mxu0 0.0
        %1651 = vmatprep.subr.mxu0 0.0
        %1652 = vmatpush1.msra.mxu0 0.0
        %1653 = vmatprep.subr.mxu0 0.0
        %1654 = vmatpush1.msra.mxu0 0.0
        %1655 = vmatprep.subr.mxu0 0.0
        %1656 = vmatpush1.msra.mxu0 0.0
        %1657 = vmatprep.subr.mxu0 0.0
        %1658 = vmatpush1.msra.mxu0 0.0
        %1659 = vmatprep.subr.mxu0 0.0
        %1660 = vmatpush1.msra.mxu0 0.0
        %1661 = vmatprep.subr.mxu0 0.0
        %1662 = vmatpush1.msra.mxu0 0.0
        %1663 = vmatprep.subr.mxu0 0.0
        %1664 = vmatpush1.msra.mxu0 0.0
        %1665 = vmatprep.subr.mxu0 0.0
        %1666 = vmatpush1.msra.mxu0 0.0
        %1667 = vmatprep.subr.mxu0 0.0
        %1668 = vmatpush1.msra.mxu0 0.0
        %1669 = vmatprep.subr.mxu0 0.0
        %1670 = vmatpush1.msra.mxu0 0.0
        %1671 = vmatprep.subr.mxu0 0.0
        %1672 = vmatpush1.msra.mxu0 0.0
        %1673 = vmatprep.subr.mxu0 0.0
        %1674 = vmatpush1.msra.mxu0 0.0
        %1675 = vmatprep.subr.mxu0 0.0
        %1676 = vmatpush1.msra.mxu0 0.0
        %1677 = vmatprep.subr.mxu0 0.0
        %1678 = vmatpush1.msra.mxu0 0.0
        %1679 = vmatprep.subr.mxu0 0.0
        %1680 = vmatpush1.msra.mxu0 0.0
        %1681 = vmatprep.subr.mxu0 0.0
        %1682 = vmatpush1.msra.mxu0 0.0
        %1683 = vmatprep.subr.mxu0 0.0
        %1684 = vmatpush1.msra.mxu0 0.0
        %1685 = vmatprep.subr.mxu0 0.0
        %1686 = vmatpush1.msra.mxu0 0.0
        %1687 = vmatprep.subr.mxu0 0.0
        %1688 = vmatpush1.msra.mxu0 0.0
        %1689 = vmatprep.subr.mxu0 0.0
        %1690 = vmatpush1.msra.mxu0 0.0
        %1691 = vmatprep.subr.mxu0 0.0
        %1692 = vmatpush1.msra.mxu0 0.0
        %1693 = vmatprep.subr.mxu0 0.0
        %1694 = vmatpush1.msra.mxu0 0.0
        %1695 = vmatprep.subr.mxu0 0.0
        %1696 = vmatpush1.msra.mxu0 0.0
        %1697 = vmatprep.mubr.f32.mxu0 0.0
        %1698 = vmatmul.mubr.f32.gmra.mrb[0].mxu0 %v1617
        %v1699 = vpop.f32.mrb[0].mxu0
        %v1700 = vadd.f32 0.0, %v1699
        %v1701 = vpop.f32.mrb[0].mxu0
        %1702 = vmatprep.mubr.f32.mxu0 0.0
        %1703 = vmatmul.mubr.f32.gmra.mrb[0].mxu0 %v1619
        %v1704 = vpop.f32.mrb[0].mxu0
        %v1705 = vadd.f32 0.0, %v1704
        %v1706 = vpop.f32.mrb[0].mxu0
        %1707 = vmatprep.mubr.f32.mxu0 0.0
        %1708 = vmatmul.mubr.f32.gmra.mrb[0].mxu0 %v1621
        %v1709 = vpop.f32.mrb[0].mxu0
        %v1710 = vadd.f32 0.0, %v1709
        %v1711 = vpop.f32.mrb[0].mxu0
        %1712 = vmatprep.mubr.f32.mxu0 0.0
        %1713 = vmatmul.mubr.f32.gmra.mrb[0].mxu0 %v1623
        %v1714 = vpop.f32.mrb[0].mxu0
        %v1715 = vadd.f32 0.0, %v1714
        %v1716 = vpop.f32.mrb[0].mxu0
        %1717 = vmatprep.mubr.f32.mxu0 0.0
        %1718 = vmatmul.mubr.f32.gmra.mrb[0].mxu0 %v1625
        %v1719 = vpop.f32.mrb[0].mxu0
        %v1720 = vadd.f32 0.0, %v1719
        %v1721 = vpop.f32.mrb[0].mxu0
        %1722 = vmatprep.mubr.f32.mxu0 0.0
        %1723 = vmatmul.mubr.f32.gmra.mrb[0].mxu0 %v1627
        %v1724 = vpop.f32.mrb[0].mxu0
        %v1725 = vadd.f32 0.0, %v1724
        %v1726 = vpop.f32.mrb[0].mxu0
        %1727 = vmatprep.mubr.f32.mxu0 0.0
        %1728 = vmatmul.mubr.f32.gmra.mrb[0].mxu0 %v1629
        %v1729 = vpop.f32.mrb[0].mxu0
        %v1730 = vadd.f32 0.0, %v1729
        %v1731 = vpop.f32.mrb[0].mxu0
        %1732 = vmatprep.mubr.f32.mxu0 0.0
        %1733 = vmatmul.mubr.f32.gmra.mrb[0].mxu0 %v1631
        %v1734 = vpop.f32.mrb[0].mxu0
        %v1735 = vadd.f32 0.0, %v1734
        %v1736 = vpop.f32.mrb[0].mxu0
        %1737 = vdwg.mxu0
        %v1738 = vsub.f32 %v1700, %v1593
        %v1739 = vsub.f32 %v1705, %v1594
        %v1740 = vsub.f32 %v1710, %v1595
        %v1741 = vsub.f32 %v1715, %v1596
        %v1742 = vsub.f32 %v1720, %v1597
        %v1743 = vsub.f32 %v1725, %v1598
        %v1744 = vsub.f32 %v1730, %v1599
        %v1745 = vsub.f32 %v1735, %v1600
        %v1746 = vmul.f32 %v1738, 1.442695
        %v1747 = vpow.pop %v1746
        %v1748 = vmul.f32 %v1739, 1.442695
        %v1749 = vpow.pop %v1748
        %v1750 = vmul.f32 %v1740, 1.442695
        %v1751 = vpow.pop %v1750
        %v1752 = vmul.f32 %v1741, 1.442695
        %v1753 = vpow.pop %v1752
        %v1754 = vmul.f32 %v1742, 1.442695
        %v1755 = vpow.pop %v1754
        %v1756 = vmul.f32 %v1743, 1.442695
        %v1757 = vpow.pop %v1756
        %v1758 = vmul.f32 %v1744, 1.442695
        %v1759 = vpow.pop %v1758
        %v1760 = vmul.f32 %v1745, 1.442695
        %v1761 = vpow.pop %v1760
        %v1762 = vmul.f32 %v1747, 0.35355338
        %v1763 = vmul.f32 %v1749, 0.35355338
        %v1764 = vmul.f32 %v1751, 0.35355338
        %v1765 = vmul.f32 %v1753, 0.35355338
        %v1766 = vmul.f32 %v1755, 0.35355338
        %v1767 = vmul.f32 %v1757, 0.35355338
        %v1768 = vmul.f32 %v1759, 0.35355338
        %v1769 = vmul.f32 %v1761, 0.35355338
        %vm1770 = vcmask 64512
        %v1771 = vsel %vm1770, %v1529, 0.0
        %v1772 = vsel %vm1770, %v1530, 0.0
        %v1773 = vadd.f32 %v1771, %v1772
        %v1774 = vsel %vm1770, %v1531, 0.0
        %v1775 = vadd.f32 %v1773, %v1774
        %v1776 = vsel %vm1770, %v1532, 0.0
        %v1777 = vadd.f32 %v1775, %v1776
        %v1778 = vsel %vm1770, %v1533, 0.0
        %v1779 = vadd.f32 %v1777, %v1778
        %v1780 = vsel %vm1770, %v1534, 0.0
        %v1781 = vadd.f32 %v1779, %v1780
        %v1782 = vsel %vm1770, %v1535, 0.0
        %v1783 = vadd.f32 %v1781, %v1782
        %v1784 = vsel %vm1770, %v1536, 0.0
        %v1785 = vadd.f32 %v1783, %v1784
        %v1786 = vrot.slane %v1785, 4
        %v1787 = vadd.f32 %v1785, %v1786
        %v1788 = vrot.slane %v1787, 2
        %v1789 = vadd.f32 %v1787, %v1788
        %v1790 = vrot.slane %v1789, 1
        %v1791 = vadd.f32 %v1789, %v1790
        %v1792 = vmul.f32 %v1762, %v1791
        %v1793 = vmul.f32 %v1763, %v1791
        %v1794 = vmul.f32 %v1764, %v1791
        %v1795 = vmul.f32 %v1765, %v1791
        %v1796 = vmul.f32 %v1766, %v1791
        %v1797 = vmul.f32 %v1767, %v1791
        %v1798 = vmul.f32 %v1768, %v1791
        %v1799 = vmul.f32 %v1769, %v1791
        %v1800 = vsel %vm1770, %v1792, 0.0
        %1801 = vadd.xlane.f32.xlu0 %v1800
        %v1802 = vpop.xlane.xlu0 %1801
        %v1803 = vsel %vm1770, %v1793, 0.0
        %1804 = vadd.xlane.f32.xlu0 %v1803
        %v1805 = vpop.xlane.xlu0 %1804
        %v1806 = vsel %vm1770, %v1794, 0.0
        %1807 = vadd.xlane.f32.xlu0 %v1806
        %v1808 = vpop.xlane.xlu0 %1807
        %v1809 = vsel %vm1770, %v1795, 0.0
        %1810 = vadd.xlane.f32.xlu0 %v1809
        %v1811 = vpop.xlane.xlu0 %1810
        %v1812 = vsel %vm1770, %v1796, 0.0
        %1813 = vadd.xlane.f32.xlu0 %v1812
        %v1814 = vpop.xlane.xlu0 %1813
        %v1815 = vsel %vm1770, %v1797, 0.0
        %1816 = vadd.xlane.f32.xlu0 %v1815
        %v1817 = vpop.xlane.xlu0 %1816
        %v1818 = vsel %vm1770, %v1798, 0.0
        %1819 = vadd.xlane.f32.xlu0 %v1818
        %v1820 = vpop.xlane.xlu0 %1819
        %v1821 = vsel %vm1770, %v1799, 0.0
        %1822 = vadd.xlane.f32.xlu0 %v1821
        %v1823 = vpop.xlane.xlu0 %1822
        %1824 = vxpose.xlu0.b32.start [1/16] %v1529, 128
        %1825 = vxpose.xlu0.b32.cont [2/16] %v1530, 128
        %1826 = vxpose.xlu0.b32.cont [3/16] %v1531, 128
        %1827 = vxpose.xlu0.b32.cont [4/16] %v1532, 128
        %1828 = vxpose.xlu0.b32.cont [5/16] %v1533, 128
        %1829 = vxpose.xlu0.b32.cont [6/16] %v1534, 128
        %1830 = vxpose.xlu0.b32.cont [7/16] %v1535, 128
        %1831 = vxpose.xlu0.b32.cont [8/16] %v1536, 128
        %1832 = vxpose.xlu0.b32.cont [9/16] 0.0, 128
        %1833 = vxpose.xlu0.b32.cont [10/16] 0.0, 128
        %1834 = vxpose.xlu0.b32.cont [11/16] 0.0, 128
        %1835 = vxpose.xlu0.b32.cont [12/16] 0.0, 128
        %1836 = vxpose.xlu0.b32.cont [13/16] 0.0, 128
        %1837 = vxpose.xlu0.b32.cont [14/16] 0.0, 128
        %1838 = vxpose.xlu0.b32.cont [15/16] 0.0, 128
        %1839 = vxpose.xlu0.b32.end [16/16] 0.0, 128
        %v1840 = vpop.trf.xlu0
        %v1841 = vpop.trf.xlu0
        %v1842 = vpop.trf.xlu0
        %v1843 = vpop.trf.xlu0
        %v1844 = vpop.trf.xlu0
        %v1845 = vpop.trf.xlu0
        %v1846 = vpop.trf.xlu0
        %v1847 = vpop.trf.xlu0
        %v1848 = vpop.trf.xlu0
        %v1849 = vpop.trf.xlu0
        %v1850 = vpop.trf.xlu0
        %v1851 = vpop.trf.xlu0
        %v1852 = vpop.trf.xlu0
        %v1853 = vpop.trf.xlu0
        %v1854 = vpop.trf.xlu0
        %v1855 = vpop.trf.xlu0
        %1856 = vrot.lane.b32.xlu0 %v1303, 96
        %v1857 = vpop.permute.xlu0 %1856
        %1858 = vrot.lane.b32.xlu0 %v1306, 96
        %v1859 = vpop.permute.xlu0 %1858
        %1860 = vrot.lane.b32.xlu0 %v1311, 96
        %v1861 = vpop.permute.xlu0 %1860
        %1862 = vrot.lane.b32.xlu0 %v1314, 96
        %v1863 = vpop.permute.xlu0 %1862
        %1864 = vrot.lane.b32.xlu0 %v1319, 96
        %v1865 = vpop.permute.xlu0 %1864
        %1866 = vrot.lane.b32.xlu0 %v1322, 96
        %v1867 = vpop.permute.xlu0 %1866
        %1868 = vrot.lane.b32.xlu0 %v1327, 96
        %v1869 = vpop.permute.xlu0 %1868
        %1870 = vrot.lane.b32.xlu0 %v1330, 96
        %v1871 = vpop.permute.xlu0 %1870
        %vm1880 = vcmask 523264
        %v1882 = vsel %vm1880, %v1840, 0
        %1884 = vmatprep.subr.mxu0 0.0
        %1885 = vmatpush1.msra.mxu0 %v1857
        %1886 = vmatprep.subr.mxu0 0.0
        %1887 = vmatpush1.msra.mxu0 %v1859
        %1888 = vmatprep.subr.mxu0 0.0
        %1889 = vmatpush1.msra.mxu0 %v1861
        %1890 = vmatprep.subr.mxu0 0.0
        %1891 = vmatpush1.msra.mxu0 %v1863
        %1892 = vmatprep.subr.mxu0 0.0
        %1893 = vmatpush1.msra.mxu0 %v1865
        %1894 = vmatprep.subr.mxu0 0.0
        %1895 = vmatpush1.msra.mxu0 %v1867
        %1896 = vmatprep.subr.mxu0 0.0
        %1897 = vmatpush1.msra.mxu0 %v1869
        %1898 = vmatprep.subr.mxu0 0.0
        %1899 = vmatpush1.msra.mxu0 %v1871
        %1900 = vmatprep.subr.mxu0 0.0
        %1901 = vmatpush1.msra.mxu0 0.0
        %1902 = vmatprep.subr.mxu0 0.0
        %1903 = vmatpush1.msra.mxu0 0.0
        %1904 = vmatprep.subr.mxu0 0.0
        %1905 = vmatpush1.msra.mxu0 0.0
        %1906 = vmatprep.subr.mxu0 0.0
        %1907 = vmatpush1.msra.mxu0 0.0
        %1908 = vmatprep.subr.mxu0 0.0
        %1909 = vmatpush1.msra.mxu0 0.0
        %1910 = vmatprep.subr.mxu0 0.0
        %1911 = vmatpush1.msra.mxu0 0.0
        %1912 = vmatprep.subr.mxu0 0.0
        %1913 = vmatpush1.msra.mxu0 0.0
        %1914 = vmatprep.subr.mxu0 0.0
        %1915 = vmatpush1.msra.mxu0 0.0
        %1916 = vmatprep.subr.mxu0 0.0
        %1917 = vmatpush1.msra.mxu0 0.0
        %1918 = vmatprep.subr.mxu0 0.0
        %1919 = vmatpush1.msra.mxu0 0.0
        %1920 = vmatprep.subr.mxu0 0.0
        %1921 = vmatpush1.msra.mxu0 0.0
        %1922 = vmatprep.subr.mxu0 0.0
        %1923 = vmatpush1.msra.mxu0 0.0
        %1924 = vmatprep.subr.mxu0 0.0
        %1925 = vmatpush1.msra.mxu0 0.0
        %1926 = vmatprep.subr.mxu0 0.0
        %1927 = vmatpush1.msra.mxu0 0.0
        %1928 = vmatprep.subr.mxu0 0.0
        %1929 = vmatpush1.msra.mxu0 0.0
        %1930 = vmatprep.subr.mxu0 0.0
        %1931 = vmatpush1.msra.mxu0 0.0
        %1932 = vmatprep.subr.mxu0 0.0
        %1933 = vmatpush1.msra.mxu0 0.0
        %1934 = vmatprep.subr.mxu0 0.0
        %1935 = vmatpush1.msra.mxu0 0.0
        %1936 = vmatprep.subr.mxu0 0.0
        %1937 = vmatpush1.msra.mxu0 0.0
        %1938 = vmatprep.subr.mxu0 0.0
        %1939 = vmatpush1.msra.mxu0 0.0
        %1940 = vmatprep.subr.mxu0 0.0
        %1941 = vmatpush1.msra.mxu0 0.0
        %1942 = vmatprep.subr.mxu0 0.0
        %1943 = vmatpush1.msra.mxu0 0.0
        %1944 = vmatprep.subr.mxu0 0.0
        %1945 = vmatpush1.msra.mxu0 0.0
        %1946 = vmatprep.subr.mxu0 0.0
        %1947 = vmatpush1.msra.mxu0 0.0
        %1948 = vmatprep.mubr.f32.mxu0 0.0
        %1949 = vmatmul.mubr.f32.gmra.mrb[0].mxu0 %v1882
        %v1950 = vpop.f32.mrb[0].mxu0
        %v1951 = vadd.f32 0.0, %v1950
        %v1952 = vpop.f32.mrb[0].mxu0
        %1953 = vdwg.mxu0
        %v1955 = vsel %vm1770, %v1762, 0
        %v1958 = vsel %vm1770, %v1763, 0
        %v1961 = vsel %vm1770, %v1764, 0
        %v1964 = vsel %vm1770, %v1765, 0
        %v1967 = vsel %vm1770, %v1766, 0
        %v1970 = vsel %vm1770, %v1767, 0
        %v1973 = vsel %vm1770, %v1768, 0
        %v1976 = vsel %vm1770, %v1769, 0
        %1978 = vmatprep.subr.mxu0 0.0
        %1979 = vmatpush1.msra.mxu0 %v1951
        %1980 = vmatprep.subr.mxu0 0.0
        %1981 = vmatpush1.msra.mxu0 0.0
        %1982 = vmatprep.subr.mxu0 0.0
        %1983 = vmatpush1.msra.mxu0 0.0
        %1984 = vmatprep.subr.mxu0 0.0
        %1985 = vmatpush1.msra.mxu0 0.0
        %1986 = vmatprep.subr.mxu0 0.0
        %1987 = vmatpush1.msra.mxu0 0.0
        %1988 = vmatprep.subr.mxu0 0.0
        %1989 = vmatpush1.msra.mxu0 0.0
        %1990 = vmatprep.subr.mxu0 0.0
        %1991 = vmatpush1.msra.mxu0 0.0
        %1992 = vmatprep.subr.mxu0 0.0
        %1993 = vmatpush1.msra.mxu0 0.0
        %1994 = vmatprep.subr.mxu0 0.0
        %1995 = vmatpush1.msra.mxu0 0.0
        %1996 = vmatprep.subr.mxu0 0.0
        %1997 = vmatpush1.msra.mxu0 0.0
        %1998 = vmatprep.subr.mxu0 0.0
        %1999 = vmatpush1.msra.mxu0 0.0
        %2000 = vmatprep.subr.mxu0 0.0
        %2001 = vmatpush1.msra.mxu0 0.0
        %2002 = vmatprep.subr.mxu0 0.0
        %2003 = vmatpush1.msra.mxu0 0.0
        %2004 = vmatprep.subr.mxu0 0.0
        %2005 = vmatpush1.msra.mxu0 0.0
        %2006 = vmatprep.subr.mxu0 0.0
        %2007 = vmatpush1.msra.mxu0 0.0
        %2008 = vmatprep.subr.mxu0 0.0
        %2009 = vmatpush1.msra.mxu0 0.0
        %2010 = vmatprep.subr.mxu0 0.0
        %2011 = vmatpush1.msra.mxu0 0.0
        %2012 = vmatprep.subr.mxu0 0.0
        %2013 = vmatpush1.msra.mxu0 0.0
        %2014 = vmatprep.subr.mxu0 0.0
        %2015 = vmatpush1.msra.mxu0 0.0
        %2016 = vmatprep.subr.mxu0 0.0
        %2017 = vmatpush1.msra.mxu0 0.0
        %2018 = vmatprep.subr.mxu0 0.0
        %2019 = vmatpush1.msra.mxu0 0.0
        %2020 = vmatprep.subr.mxu0 0.0
        %2021 = vmatpush1.msra.mxu0 0.0
        %2022 = vmatprep.subr.mxu0 0.0
        %2023 = vmatpush1.msra.mxu0 0.0
        %2024 = vmatprep.subr.mxu0 0.0
        %2025 = vmatpush1.msra.mxu0 0.0
        %2026 = vmatprep.subr.mxu0 0.0
        %2027 = vmatpush1.msra.mxu0 0.0
        %2028 = vmatprep.subr.mxu0 0.0
        %2029 = vmatpush1.msra.mxu0 0.0
        %2030 = vmatprep.subr.mxu0 0.0
        %2031 = vmatpush1.msra.mxu0 0.0
        %2032 = vmatprep.subr.mxu0 0.0
        %2033 = vmatpush1.msra.mxu0 0.0
        %2034 = vmatprep.subr.mxu0 0.0
        %2035 = vmatpush1.msra.mxu0 0.0
        %2036 = vmatprep.subr.mxu0 0.0
        %2037 = vmatpush1.msra.mxu0 0.0
        %2038 = vmatprep.subr.mxu0 0.0
        %2039 = vmatpush1.msra.mxu0 0.0
        %2040 = vmatprep.subr.mxu0 0.0
        %2041 = vmatpush1.msra.mxu0 0.0
        %2042 = vmatprep.mubr.f32.mxu0 0.0
        %2043 = vmatmul.mubr.f32.gmra.mrb[0].mxu0 %v1955
        %v2044 = vpop.f32.mrb[0].mxu0
        %v2045 = vadd.f32 0.0, %v2044
        %v2046 = vpop.f32.mrb[0].mxu0
        %2047 = vmatprep.mubr.f32.mxu0 0.0
        %2048 = vmatmul.mubr.f32.gmra.mrb[0].mxu0 %v1958
        %v2049 = vpop.f32.mrb[0].mxu0
        %v2050 = vadd.f32 0.0, %v2049
        %v2051 = vpop.f32.mrb[0].mxu0
        %2052 = vmatprep.mubr.f32.mxu0 0.0
        %2053 = vmatmul.mubr.f32.gmra.mrb[0].mxu0 %v1961
        %v2054 = vpop.f32.mrb[0].mxu0
        %v2055 = vadd.f32 0.0, %v2054
        %v2056 = vpop.f32.mrb[0].mxu0
        %2057 = vmatprep.mubr.f32.mxu0 0.0
        %2058 = vmatmul.mubr.f32.gmra.mrb[0].mxu0 %v1964
        %v2059 = vpop.f32.mrb[0].mxu0
        %v2060 = vadd.f32 0.0, %v2059
        %v2061 = vpop.f32.mrb[0].mxu0
        %2062 = vmatprep.mubr.f32.mxu0 0.0
        %2063 = vmatmul.mubr.f32.gmra.mrb[0].mxu0 %v1967
        %v2064 = vpop.f32.mrb[0].mxu0
        %v2065 = vadd.f32 0.0, %v2064
        %v2066 = vpop.f32.mrb[0].mxu0
        %2067 = vmatprep.mubr.f32.mxu0 0.0
        %2068 = vmatmul.mubr.f32.gmra.mrb[0].mxu0 %v1970
        %v2069 = vpop.f32.mrb[0].mxu0
        %v2070 = vadd.f32 0.0, %v2069
        %v2071 = vpop.f32.mrb[0].mxu0
        %2072 = vmatprep.mubr.f32.mxu0 0.0
        %2073 = vmatmul.mubr.f32.gmra.mrb[0].mxu0 %v1973
        %v2074 = vpop.f32.mrb[0].mxu0
        %v2075 = vadd.f32 0.0, %v2074
        %v2076 = vpop.f32.mrb[0].mxu0
        %2077 = vmatprep.mubr.f32.mxu0 0.0
        %2078 = vmatmul.mubr.f32.gmra.mrb[0].mxu0 %v1976
        %v2079 = vpop.f32.mrb[0].mxu0
        %v2080 = vadd.f32 0.0, %v2079
        %v2081 = vpop.f32.mrb[0].mxu0
        %2082 = vdwg.mxu0
        %v2083 = vadd.f32 %v1802, 1e-08
        %v2084 = vadd.f32 %v1805, 1e-08
        %v2085 = vadd.f32 %v1808, 1e-08
        %v2086 = vadd.f32 %v1811, 1e-08
        %v2087 = vadd.f32 %v1814, 1e-08
        %v2088 = vadd.f32 %v1817, 1e-08
        %v2089 = vadd.f32 %v1820, 1e-08
        %v2090 = vadd.f32 %v1823, 1e-08
        %v2091 = vrcp.pop %v2083
        %v2092 = vrcp.pop %v2084
        %v2093 = vrcp.pop %v2085
        %v2094 = vrcp.pop %v2086
        %v2095 = vrcp.pop %v2087
        %v2096 = vrcp.pop %v2088
        %v2097 = vrcp.pop %v2089
        %v2098 = vrcp.pop %v2090
        %v2099 = vmul.f32 %v2045, %v2091
        %v2100 = vmul.f32 %v2050, %v2092
        %v2101 = vmul.f32 %v2055, %v2093
        %v2102 = vmul.f32 %v2060, %v2094
        %v2103 = vmul.f32 %v2065, %v2095
        %v2104 = vmul.f32 %v2070, %v2096
        %v2105 = vmul.f32 %v2075, %v2097
        %v2106 = vmul.f32 %v2080, %v2098
        %v2107 = vpack.c.bf16 %v2100, %v2099
        %v2108 = vpack.c.bf16 %v2102, %v2101
        %v2109 = vpack.c.bf16 %v2104, %v2103
        %v2110 = vpack.c.bf16 %v2106, %v2105
        %v2111 = vld [vmem:[#allocation13] sm:$0xf]
        %v2112 = vld [vmem:[#allocation13 + $0x4] sm:$0xf]
        %v2113 = vld [vmem:[#allocation14] sm:$0x1]
        %v2115 = vlaneseq
        %v2116 = vshrl.u32 %v2115, 7
        %v2117 = vsub.s32 0, %v2116
        %v2118 = vrot.slane %v2113, %v2117
        %v2122 = vunpack.c.l.b16 %v2111
        %v2123 = vunpack.c.l.b16 %v2112
        %v2124 = vpack.c.b16 %v2123, %v2122
        %v2127 = vsel %vm1341, %v2107, 0
        %v2130 = vsel %vm1341, %v2108, 0
        %v2133 = vsel %vm1341, %v2109, 0
        %v2136 = vsel %vm1341, %v2110, 0
        %2138 = vmatprep.subr.bf16.mxu0 0
        %2139 = vmatpush1.bf16.msra.mxu0 %v2124
        %2140 = vmatprep.subr.bf16.mxu0 0
        %2141 = vmatpush1.bf16.msra.mxu0 0
        %2142 = vmatprep.subr.bf16.mxu0 0
        %2143 = vmatpush1.bf16.msra.mxu0 0
        %2144 = vmatprep.subr.bf16.mxu0 0
        %2145 = vmatpush1.bf16.msra.mxu0 0
        %2146 = vmatprep.subr.bf16.mxu0 0
        %2147 = vmatpush1.bf16.msra.mxu0 0
        %2148 = vmatprep.subr.bf16.mxu0 0
        %2149 = vmatpush1.bf16.msra.mxu0 0
        %2150 = vmatprep.subr.bf16.mxu0 0
        %2151 = vmatpush1.bf16.msra.mxu0 0
        %2152 = vmatprep.subr.bf16.mxu0 0
        %2153 = vmatpush1.bf16.msra.mxu0 0
        %2154 = vmatprep.subr.bf16.mxu0 0
        %2155 = vmatpush1.bf16.msra.mxu0 0
        %2156 = vmatprep.subr.bf16.mxu0 0
        %2157 = vmatpush1.bf16.msra.mxu0 0
        %2158 = vmatprep.subr.bf16.mxu0 0
        %2159 = vmatpush1.bf16.msra.mxu0 0
        %2160 = vmatprep.subr.bf16.mxu0 0
        %2161 = vmatpush1.bf16.msra.mxu0 0
        %2162 = vmatprep.subr.bf16.mxu0 0
        %2163 = vmatpush1.bf16.msra.mxu0 0
        %2164 = vmatprep.subr.bf16.mxu0 0
        %2165 = vmatpush1.bf16.msra.mxu0 0
        %2166 = vmatprep.subr.bf16.mxu0 0
        %2167 = vmatpush1.bf16.msra.mxu0 0
        %2168 = vmatprep.subr.bf16.mxu0 0
        %2169 = vmatpush1.bf16.msra.mxu0 0
        %2170 = vmatprep.mubr.bf16.mxu0 0
        %2171 = vmatmul.mubr.bf16.gmra.mrb[0].mxu0 %v2127
        %v2172 = vpop.f32.mrb[0].mxu0
        %v2173 = vadd.f32 %v2118, %v2172
        %v2174 = vpop.f32.mrb[0].mxu0
        %v2175 = vpop.f32.mrb[0].mxu0
        %v2176 = vadd.f32 %v2118, %v2175
        %v2177 = vpop.f32.mrb[0].mxu0
        %2178 = vmatprep.mubr.bf16.mxu0 0
        %2179 = vmatmul.mubr.bf16.gmra.mrb[0].mxu0 %v2130
        %v2180 = vpop.f32.mrb[0].mxu0
        %v2181 = vadd.f32 %v2118, %v2180
        %v2182 = vpop.f32.mrb[0].mxu0
        %v2183 = vpop.f32.mrb[0].mxu0
        %v2184 = vadd.f32 %v2118, %v2183
        %v2185 = vpop.f32.mrb[0].mxu0
        %2186 = vmatprep.mubr.bf16.mxu0 0
        %2187 = vmatmul.mubr.bf16.gmra.mrb[0].mxu0 %v2133
        %v2188 = vpop.f32.mrb[0].mxu0
        %v2189 = vadd.f32 %v2118, %v2188
        %v2190 = vpop.f32.mrb[0].mxu0
        %v2191 = vpop.f32.mrb[0].mxu0
        %v2192 = vadd.f32 %v2118, %v2191
        %v2193 = vpop.f32.mrb[0].mxu0
        %2194 = vmatprep.mubr.bf16.mxu0 0
        %2195 = vmatmul.mubr.bf16.gmra.mrb[0].mxu0 %v2136
        %v2196 = vpop.f32.mrb[0].mxu0
        %v2197 = vadd.f32 %v2118, %v2196
        %v2198 = vpop.f32.mrb[0].mxu0
        %v2199 = vpop.f32.mrb[0].mxu0
        %v2200 = vadd.f32 %v2118, %v2199
        %v2201 = vpop.f32.mrb[0].mxu0
        %2202 = vdwg.mxu0
        %2211 = vrot.lane.b32.xlu0 %v2173, 32
        %v2212 = vpop.permute.xlu0 %2211
        %2213 = vrot.lane.b32.xlu0 %v2176, 32
        %v2214 = vpop.permute.xlu0 %2213
        %2215 = vrot.lane.b32.xlu0 %v2181, 32
        %v2216 = vpop.permute.xlu0 %2215
        %2217 = vrot.lane.b32.xlu0 %v2184, 32
        %v2218 = vpop.permute.xlu0 %2217
        %2219 = vrot.lane.b32.xlu0 %v2189, 32
        %v2220 = vpop.permute.xlu0 %2219
        %2221 = vrot.lane.b32.xlu0 %v2192, 32
        %v2222 = vpop.permute.xlu0 %2221
        %2223 = vrot.lane.b32.xlu0 %v2197, 32
        %v2224 = vpop.permute.xlu0 %2223
        %2225 = vrot.lane.b32.xlu0 %v2200, 32
        %v2226 = vpop.permute.xlu0 %2225
        %v2235 = vadd.f32 %v1303, %v2212
        %v2236 = vadd.f32 %v1306, %v2214
        %v2237 = vadd.f32 %v1311, %v2216
        %v2238 = vadd.f32 %v1314, %v2218
        %v2239 = vadd.f32 %v1319, %v2220
        %v2240 = vadd.f32 %v1322, %v2222
        %v2241 = vadd.f32 %v1327, %v2224
        %v2242 = vadd.f32 %v1330, %v2226
        %v2243 = vpack.c.bf16 %v2236, %v2235
        %v2244 = vpack.c.bf16 %v2238, %v2237
        %v2245 = vpack.c.bf16 %v2240, %v2239
        %v2246 = vpack.c.bf16 %v2242, %v2241
        %v2247 = vld [vmem:[#allocation16] sm:$0xf]
        %v2248 = vld [vmem:[#allocation16 + $0x4] sm:$0xf]
        %2253 = vrot.lane.b32.xlu0 %v2243, 96
        %v2254 = vpop.permute.xlu0 %2253
        %2255 = vrot.lane.b32.xlu0 %v2244, 96
        %v2256 = vpop.permute.xlu0 %2255
        %2257 = vrot.lane.b32.xlu0 %v2245, 96
        %v2258 = vpop.permute.xlu0 %2257
        %2259 = vrot.lane.b32.xlu0 %v2246, 96
        %v2260 = vpop.permute.xlu0 %2259
        %v2263 = vunpack.c.l.b16 %v2247
        %v2264 = vunpack.c.l.b16 %v2248
        %v2265 = vpack.c.b16 %v2264, %v2263
        %v2268 = vsel %vm1341, %v2254, 0
        %v2271 = vsel %vm1341, %v2256, 0
        %v2274 = vsel %vm1341, %v2258, 0
        %v2277 = vsel %vm1341, %v2260, 0
        %2279 = vmatprep.subr.bf16.mxu0 0
        %2280 = vmatpush1.bf16.msra.mxu0 %v2265
        %2281 = vmatprep.subr.bf16.mxu0 0
        %2282 = vmatpush1.bf16.msra.mxu0 0
        %2283 = vmatprep.subr.bf16.mxu0 0
        %2284 = vmatpush1.bf16.msra.mxu0 0
        %2285 = vmatprep.subr.bf16.mxu0 0
        %2286 = vmatpush1.bf16.msra.mxu0 0
        %2287 = vmatprep.subr.bf16.mxu0 0
        %2288 = vmatpush1.bf16.msra.mxu0 0
        %2289 = vmatprep.subr.bf16.mxu0 0
        %2290 = vmatpush1.bf16.msra.mxu0 0
        %2291 = vmatprep.subr.bf16.mxu0 0
        %2292 = vmatpush1.bf16.msra.mxu0 0
        %2293 = vmatprep.subr.bf16.mxu0 0
        %2294 = vmatpush1.bf16.msra.mxu0 0
        %2295 = vmatprep.subr.bf16.mxu0 0
        %2296 = vmatpush1.bf16.msra.mxu0 0
        %2297 = vmatprep.subr.bf16.mxu0 0
        %2298 = vmatpush1.bf16.msra.mxu0 0
        %2299 = vmatprep.subr.bf16.mxu0 0
        %2300 = vmatpush1.bf16.msra.mxu0 0
        %2301 = vmatprep.subr.bf16.mxu0 0
        %2302 = vmatpush1.bf16.msra.mxu0 0
        %2303 = vmatprep.subr.bf16.mxu0 0
        %2304 = vmatpush1.bf16.msra.mxu0 0
        %2305 = vmatprep.subr.bf16.mxu0 0
        %2306 = vmatpush1.bf16.msra.mxu0 0
        %2307 = vmatprep.subr.bf16.mxu0 0
        %2308 = vmatpush1.bf16.msra.mxu0 0
        %2309 = vmatprep.subr.bf16.mxu0 0
        %2310 = vmatpush1.bf16.msra.mxu0 0
        %2311 = vmatprep.mubr.bf16.mxu0 0
        %2312 = vmatmul.mubr.bf16.gmra.mrb[0].mxu0 %v2268
        %v2313 = vpop.f32.mrb[0].mxu0
        %v2314 = vadd.f32 0.0, %v2313
        %v2315 = vpop.f32.mrb[0].mxu0
        %v2316 = vpop.f32.mrb[0].mxu0
        %v2317 = vadd.f32 0.0, %v2316
        %v2318 = vpop.f32.mrb[0].mxu0
        %2319 = vmatprep.mubr.bf16.mxu0 0
        %2320 = vmatmul.mubr.bf16.gmra.mrb[0].mxu0 %v2271
        %v2321 = vpop.f32.mrb[0].mxu0
        %v2322 = vadd.f32 0.0, %v2321
        %v2323 = vpop.f32.mrb[0].mxu0
        %v2324 = vpop.f32.mrb[0].mxu0
        %v2325 = vadd.f32 0.0, %v2324
        %v2326 = vpop.f32.mrb[0].mxu0
        %2327 = vmatprep.mubr.bf16.mxu0 0
        %2328 = vmatmul.mubr.bf16.gmra.mrb[0].mxu0 %v2274
        %v2329 = vpop.f32.mrb[0].mxu0
        %v2330 = vadd.f32 0.0, %v2329
        %v2331 = vpop.f32.mrb[0].mxu0
        %v2332 = vpop.f32.mrb[0].mxu0
        %v2333 = vadd.f32 0.0, %v2332
        %v2334 = vpop.f32.mrb[0].mxu0
        %2335 = vmatprep.mubr.bf16.mxu0 0
        %2336 = vmatmul.mubr.bf16.gmra.mrb[0].mxu0 %v2277
        %v2337 = vpop.f32.mrb[0].mxu0
        %v2338 = vadd.f32 0.0, %v2337
        %v2339 = vpop.f32.mrb[0].mxu0
        %v2340 = vpop.f32.mrb[0].mxu0
        %v2341 = vadd.f32 0.0, %v2340
        %v2342 = vpop.f32.mrb[0].mxu0
        %2343 = vdwg.mxu0
        %v2344 = vld [vmem:[#allocation17] sm:$0x1]
        %v2346 = vlaneseq
        %v2347 = vshrl.u32 %v2346, 7
        %v2348 = vsub.s32 0, %v2347
        %v2349 = vrot.slane %v2344, %v2348
        %v2351 = vmul.f32 %v2314, %v2349
        %v2352 = vmul.f32 %v2317, %v2349
        %v2353 = vmul.f32 %v2322, %v2349
        %v2354 = vmul.f32 %v2325, %v2349
        %v2355 = vmul.f32 %v2330, %v2349
        %v2356 = vmul.f32 %v2333, %v2349
        %v2357 = vmul.f32 %v2338, %v2349
        %v2358 = vmul.f32 %v2341, %v2349
        %v2359 = vld [vmem:[#allocation19] sm:$0x1]
        %v2361 = vlaneseq
        %v2362 = vshrl.u32 %v2361, 7
        %v2363 = vsub.s32 0, %v2362
        %v2364 = vrot.slane %v2359, %v2363
        %v2366 = vadd.f32 %v2351, %v2364
        %v2367 = vadd.f32 %v2352, %v2364
        %v2368 = vadd.f32 %v2353, %v2364
        %v2369 = vadd.f32 %v2354, %v2364
        %v2370 = vadd.f32 %v2355, %v2364
        %v2371 = vadd.f32 %v2356, %v2364
        %v2372 = vadd.f32 %v2357, %v2364
        %v2373 = vadd.f32 %v2358, %v2364
        %v2374 = vadd.f32 %v2366, 3.0
        %v2375 = vadd.f32 %v2367, 3.0
        %v2376 = vadd.f32 %v2368, 3.0
        %v2377 = vadd.f32 %v2369, 3.0
        %v2378 = vadd.f32 %v2370, 3.0
        %v2379 = vadd.f32 %v2371, 3.0
        %v2380 = vadd.f32 %v2372, 3.0
        %v2381 = vadd.f32 %v2373, 3.0
        %v2382 = vmax.f32 %v2374, 0.0
        %v2383 = vmax.f32 %v2375, 0.0
        %v2384 = vmax.f32 %v2376, 0.0
        %v2385 = vmax.f32 %v2377, 0.0
        %v2386 = vmax.f32 %v2378, 0.0
        %v2387 = vmax.f32 %v2379, 0.0
        %v2388 = vmax.f32 %v2380, 0.0
        %v2389 = vmax.f32 %v2381, 0.0
        %v2390 = vmin.f32 %v2382, 6.0
        %v2391 = vmin.f32 %v2383, 6.0
        %v2392 = vmin.f32 %v2384, 6.0
        %v2393 = vmin.f32 %v2385, 6.0
        %v2394 = vmin.f32 %v2386, 6.0
        %v2395 = vmin.f32 %v2387, 6.0
        %v2396 = vmin.f32 %v2388, 6.0
        %v2397 = vmin.f32 %v2389, 6.0
        %v2398 = vmul.f32 %v2390, 0.16666667
        %v2399 = vmul.f32 %v2391, 0.16666667
        %v2400 = vmul.f32 %v2392, 0.16666667
        %v2401 = vmul.f32 %v2393, 0.16666667
        %v2402 = vmul.f32 %v2394, 0.16666667
        %v2403 = vmul.f32 %v2395, 0.16666667
        %v2404 = vmul.f32 %v2396, 0.16666667
        %v2405 = vmul.f32 %v2397, 0.16666667
        %v2406 = vmul.f32 %v2366, %v2398
        %v2407 = vmul.f32 %v2367, %v2399
        %v2408 = vmul.f32 %v2368, %v2400
        %v2409 = vmul.f32 %v2369, %v2401
        %v2410 = vmul.f32 %v2370, %v2402
        %v2411 = vmul.f32 %v2371, %v2403
        %v2412 = vmul.f32 %v2372, %v2404
        %v2413 = vmul.f32 %v2373, %v2405
        %v2414 = vlaneseq
        %v2415 = vshrl.u32 %v2414, 7
        %vm2416 = vcmp.ge.s32.totalorder %v2415, 1
        %vm2417 = vcmp.lt.s32.totalorder %v2415, 7
        %v2418 = vld [vmem:[#allocation20] sm:$0xff]
        %v2419 = vld [vmem:[#allocation20 + $0x8] sm:$0x1]
        %v2420 = vlaneseq
        %v2421 = vshrl.u32 %v2420, 7
        %v2422 = vsub.s32 4, %v2421
        %v2423 = vrot.slane %v2418, %v2422
        %v2424 = vmul.f32 %v2406, %v2423
        %v2425 = vmul.f32 %v2407, %v2423
        %v2426 = vmul.f32 %v2408, %v2423
        %v2427 = vmul.f32 %v2409, %v2423
        %v2428 = vmul.f32 %v2410, %v2423
        %v2429 = vmul.f32 %v2411, %v2423
        %v2430 = vmul.f32 %v2412, %v2423
        %v2431 = vmul.f32 %v2413, %v2423
        %v2433 = vrot.slane %v2413, 7
        %v2442 = vrot.slane %v2406, 7
        %v2443 = vrot.slane %v2407, 7
        %v2444 = vsel %vm1261, %v2442, %v2443
        %v2445 = vrot.slane %v2408, 7
        %v2446 = vsel %vm1261, %v2443, %v2445
        %v2447 = vrot.slane %v2409, 7
        %v2448 = vsel %vm1261, %v2445, %v2447
        %v2449 = vrot.slane %v2410, 7
        %v2450 = vsel %vm1261, %v2447, %v2449
        %v2451 = vrot.slane %v2411, 7
        %v2452 = vsel %vm1261, %v2449, %v2451
        %v2453 = vrot.slane %v2412, 7
        %v2454 = vsel %vm1261, %v2451, %v2453
        %v2462 = vsel %vm1261, %v2433, %v2442
        %v2463 = vsel %vm2416, 1, 0
        %vm2464 = vcmp.eq.s32.totalorder %v2463, 1
        %v2465 = vsel %vm2464, %v2462, 0.0
        %v2466 = vsel %vm2464, %v2444, 0.0
        %v2467 = vsel %vm2464, %v2446, 0.0
        %v2468 = vsel %vm2464, %v2448, 0.0
        %v2469 = vsel %vm2464, %v2450, 0.0
        %v2470 = vsel %vm2464, %v2452, 0.0
        %v2471 = vsel %vm2464, %v2454, 0.0
        %v2472 = vlaneseq
        %v2473 = vshrl.u32 %v2472, 7
        %v2474 = vsub.s32 0, %v2473
        %v2475 = vrot.slane %v2418, %v2474
        %v2476 = vmul.f32 %v2475, 0.0
        %v2477 = vmul.f32 %v2465, %v2475
        %v2478 = vmul.f32 %v2466, %v2475
        %v2479 = vmul.f32 %v2467, %v2475
        %v2480 = vmul.f32 %v2468, %v2475
        %v2481 = vmul.f32 %v2469, %v2475
        %v2482 = vmul.f32 %v2470, %v2475
        %v2483 = vmul.f32 %v2471, %v2475
        %v2484 = vadd.f32 %v2424, %v2476
        %v2485 = vadd.f32 %v2425, %v2477
        %v2486 = vadd.f32 %v2426, %v2478
        %v2487 = vadd.f32 %v2427, %v2479
        %v2488 = vadd.f32 %v2428, %v2480
        %v2489 = vadd.f32 %v2429, %v2481
        %v2490 = vadd.f32 %v2430, %v2482
        %v2491 = vadd.f32 %v2431, %v2483
        %v2492 = vlaneseq
        %v2493 = vshrl.u32 %v2492, 7
        %v2494 = vsub.s32 1, %v2493
        %v2495 = vrot.slane %v2418, %v2494
        %v2496 = vmul.f32 %v2495, 0.0
        %v2497 = vmul.f32 %v2406, %v2495
        %v2498 = vmul.f32 %v2407, %v2495
        %v2499 = vmul.f32 %v2408, %v2495
        %v2500 = vmul.f32 %v2409, %v2495
        %v2501 = vmul.f32 %v2410, %v2495
        %v2502 = vmul.f32 %v2411, %v2495
        %v2503 = vmul.f32 %v2412, %v2495
        %v2504 = vadd.f32 %v2484, %v2496
        %v2505 = vadd.f32 %v2485, %v2497
        %v2506 = vadd.f32 %v2486, %v2498
        %v2507 = vadd.f32 %v2487, %v2499
        %v2508 = vadd.f32 %v2488, %v2500
        %v2509 = vadd.f32 %v2489, %v2501
        %v2510 = vadd.f32 %v2490, %v2502
        %v2511 = vadd.f32 %v2491, %v2503
        %vm2512 = vcmask 1046528
        %v2513 = vrot.slane %v2406, 1
        %v2514 = vrot.slane %v2407, 1
        %v2515 = vsel %vm2512, %v2513, %v2514
        %v2516 = vrot.slane %v2408, 1
        %v2517 = vsel %vm2512, %v2514, %v2516
        %v2518 = vrot.slane %v2409, 1
        %v2519 = vsel %vm2512, %v2516, %v2518
        %v2520 = vrot.slane %v2410, 1
        %v2521 = vsel %vm2512, %v2518, %v2520
        %v2522 = vrot.slane %v2411, 1
        %v2523 = vsel %vm2512, %v2520, %v2522
        %v2524 = vrot.slane %v2412, 1
        %v2525 = vsel %vm2512, %v2522, %v2524
        %v2526 = vrot.slane %v2413, 1
        %v2527 = vsel %vm2512, %v2524, %v2526
        %v2535 = vsel %vm2417, 1, 0
        %vm2536 = vcmp.eq.s32.totalorder %v2535, 1
        %v2537 = vsel %vm2536, %v2515, 0.0
        %v2538 = vsel %vm2536, %v2517, 0.0
        %v2539 = vsel %vm2536, %v2519, 0.0
        %v2540 = vsel %vm2536, %v2521, 0.0
        %v2541 = vsel %vm2536, %v2523, 0.0
        %v2542 = vsel %vm2536, %v2525, 0.0
        %v2543 = vsel %vm2536, %v2527, 0.0
        %v2544 = vlaneseq
        %v2545 = vshrl.u32 %v2544, 7
        %v2546 = vsub.s32 2, %v2545
        %v2547 = vrot.slane %v2418, %v2546
        %v2548 = vmul.f32 %v2547, 0.0
        %v2549 = vmul.f32 %v2537, %v2547
        %v2550 = vmul.f32 %v2538, %v2547
        %v2551 = vmul.f32 %v2539, %v2547
        %v2552 = vmul.f32 %v2540, %v2547
        %v2553 = vmul.f32 %v2541, %v2547
        %v2554 = vmul.f32 %v2542, %v2547
        %v2555 = vmul.f32 %v2543, %v2547
        %v2556 = vadd.f32 %v2504, %v2548
        %v2557 = vadd.f32 %v2505, %v2549
        %v2558 = vadd.f32 %v2506, %v2550
        %v2559 = vadd.f32 %v2507, %v2551
        %v2560 = vadd.f32 %v2508, %v2552
        %v2561 = vadd.f32 %v2509, %v2553
        %v2562 = vadd.f32 %v2510, %v2554
        %v2563 = vadd.f32 %v2511, %v2555
        %v2564 = vsel %vm1261, %v2453, %v2433
        %v2566 = vsel %vm2464, %v2564, 0.0
        %v2567 = vlaneseq
        %v2568 = vshrl.u32 %v2567, 7
        %v2569 = vsub.s32 3, %v2568
        %v2570 = vrot.slane %v2418, %v2569
        %v2571 = vmul.f32 %v2465, %v2570
        %v2572 = vmul.f32 %v2466, %v2570
        %v2573 = vmul.f32 %v2467, %v2570
        %v2574 = vmul.f32 %v2468, %v2570
        %v2575 = vmul.f32 %v2469, %v2570
        %v2576 = vmul.f32 %v2470, %v2570
        %v2577 = vmul.f32 %v2471, %v2570
        %v2578 = vmul.f32 %v2566, %v2570
        %v2579 = vadd.f32 %v2556, %v2571
        %v2580 = vadd.f32 %v2557, %v2572
        %v2581 = vadd.f32 %v2558, %v2573
        %v2582 = vadd.f32 %v2559, %v2574
        %v2583 = vadd.f32 %v2560, %v2575
        %v2584 = vadd.f32 %v2561, %v2576
        %v2585 = vadd.f32 %v2562, %v2577
        %v2586 = vadd.f32 %v2563, %v2578
        %v2589 = vsel %vm2512, %v2526, %v2513
        %v2590 = vsel %vm2536, %v2589, 0.0
        %v2591 = vlaneseq
        %v2592 = vshrl.u32 %v2591, 7
        %v2593 = vsub.s32 5, %v2592
        %v2594 = vrot.slane %v2418, %v2593
        %v2595 = vmul.f32 %v2537, %v2594
        %v2596 = vmul.f32 %v2538, %v2594
        %v2597 = vmul.f32 %v2539, %v2594
        %v2598 = vmul.f32 %v2540, %v2594
        %v2599 = vmul.f32 %v2541, %v2594
        %v2600 = vmul.f32 %v2542, %v2594
        %v2601 = vmul.f32 %v2543, %v2594
        %v2602 = vmul.f32 %v2590, %v2594
        %v2603 = vadd.f32 %v2579, %v2595
        %v2604 = vadd.f32 %v2580, %v2596
        %v2605 = vadd.f32 %v2581, %v2597
        %v2606 = vadd.f32 %v2582, %v2598
        %v2607 = vadd.f32 %v2583, %v2599
        %v2608 = vadd.f32 %v2584, %v2600
        %v2609 = vadd.f32 %v2585, %v2601
        %v2610 = vadd.f32 %v2586, %v2602
        %v2611 = vlaneseq
        %v2612 = vshrl.u32 %v2611, 7
        %v2613 = vsub.s32 6, %v2612
        %v2614 = vrot.slane %v2418, %v2613
        %v2615 = vmul.f32 %v2466, %v2614
        %v2616 = vmul.f32 %v2467, %v2614
        %v2617 = vmul.f32 %v2468, %v2614
        %v2618 = vmul.f32 %v2469, %v2614
        %v2619 = vmul.f32 %v2470, %v2614
        %v2620 = vmul.f32 %v2471, %v2614
        %v2621 = vmul.f32 %v2566, %v2614
        %v2622 = vmul.f32 %v2614, 0.0
        %v2623 = vadd.f32 %v2603, %v2615
        %v2624 = vadd.f32 %v2604, %v2616
        %v2625 = vadd.f32 %v2605, %v2617
        %v2626 = vadd.f32 %v2606, %v2618
        %v2627 = vadd.f32 %v2607, %v2619
        %v2628 = vadd.f32 %v2608, %v2620
        %v2629 = vadd.f32 %v2609, %v2621
        %v2630 = vadd.f32 %v2610, %v2622
        %v2631 = vlaneseq
        %v2632 = vshrl.u32 %v2631, 7
        %v2633 = vsub.s32 7, %v2632
        %v2634 = vrot.slane %v2418, %v2633
        %v2635 = vmul.f32 %v2407, %v2634
        %v2636 = vmul.f32 %v2408, %v2634
        %v2637 = vmul.f32 %v2409, %v2634
        %v2638 = vmul.f32 %v2410, %v2634
        %v2639 = vmul.f32 %v2411, %v2634
        %v2640 = vmul.f32 %v2412, %v2634
        %v2641 = vmul.f32 %v2413, %v2634
        %v2642 = vmul.f32 %v2634, 0.0
        %v2643 = vadd.f32 %v2623, %v2635
        %v2644 = vadd.f32 %v2624, %v2636
        %v2645 = vadd.f32 %v2625, %v2637
        %v2646 = vadd.f32 %v2626, %v2638
        %v2647 = vadd.f32 %v2627, %v2639
        %v2648 = vadd.f32 %v2628, %v2640
        %v2649 = vadd.f32 %v2629, %v2641
        %v2650 = vadd.f32 %v2630, %v2642
        %v2651 = vlaneseq
        %v2652 = vshrl.u32 %v2651, 7
        %v2653 = vsub.s32 0, %v2652
        %v2654 = vrot.slane %v2419, %v2653
        %v2655 = vmul.f32 %v2538, %v2654
        %v2656 = vmul.f32 %v2539, %v2654
        %v2657 = vmul.f32 %v2540, %v2654
        %v2658 = vmul.f32 %v2541, %v2654
        %v2659 = vmul.f32 %v2542, %v2654
        %v2660 = vmul.f32 %v2543, %v2654
        %v2661 = vmul.f32 %v2590, %v2654
        %v2662 = vmul.f32 %v2654, 0.0
        %v2663 = vadd.f32 %v2643, %v2655
        %v2664 = vadd.f32 %v2644, %v2656
        %v2665 = vadd.f32 %v2645, %v2657
        %v2666 = vadd.f32 %v2646, %v2658
        %v2667 = vadd.f32 %v2647, %v2659
        %v2668 = vadd.f32 %v2648, %v2660
        %v2669 = vadd.f32 %v2649, %v2661
        %v2670 = vadd.f32 %v2650, %v2662
        %v2671 = vld [vmem:[#allocation22] sm:$0x1]
        %v2673 = vlaneseq
        %v2674 = vshrl.u32 %v2673, 7
        %v2675 = vsub.s32 0, %v2674
        %v2676 = vrot.slane %v2671, %v2675
        %v2678 = vmul.f32 %v2663, %v2676
        %v2679 = vmul.f32 %v2664, %v2676
        %v2680 = vmul.f32 %v2665, %v2676
        %v2681 = vmul.f32 %v2666, %v2676
        %v2682 = vmul.f32 %v2667, %v2676
        %v2683 = vmul.f32 %v2668, %v2676
        %v2684 = vmul.f32 %v2669, %v2676
        %v2685 = vmul.f32 %v2670, %v2676
        %v2686 = vld [vmem:[#allocation23] sm:$0x1]
        %v2688 = vlaneseq
        %v2689 = vshrl.u32 %v2688, 7
        %v2690 = vsub.s32 0, %v2689
        %v2691 = vrot.slane %v2686, %v2690
        %v2693 = vadd.f32 %v2678, %v2691
        %v2694 = vadd.f32 %v2679, %v2691
        %v2695 = vadd.f32 %v2680, %v2691
        %v2696 = vadd.f32 %v2681, %v2691
        %v2697 = vadd.f32 %v2682, %v2691
        %v2698 = vadd.f32 %v2683, %v2691
        %v2699 = vadd.f32 %v2684, %v2691
        %v2700 = vadd.f32 %v2685, %v2691
        %v2701 = vadd.f32 %v2693, 3.0
        %v2702 = vadd.f32 %v2694, 3.0
        %v2703 = vadd.f32 %v2695, 3.0
        %v2704 = vadd.f32 %v2696, 3.0
        %v2705 = vadd.f32 %v2697, 3.0
        %v2706 = vadd.f32 %v2698, 3.0
        %v2707 = vadd.f32 %v2699, 3.0
        %v2708 = vadd.f32 %v2700, 3.0
        %v2709 = vmax.f32 %v2701, 0.0
        %v2710 = vmax.f32 %v2702, 0.0
        %v2711 = vmax.f32 %v2703, 0.0
        %v2712 = vmax.f32 %v2704, 0.0
        %v2713 = vmax.f32 %v2705, 0.0
        %v2714 = vmax.f32 %v2706, 0.0
        %v2715 = vmax.f32 %v2707, 0.0
        %v2716 = vmax.f32 %v2708, 0.0
        %v2717 = vmin.f32 %v2709, 6.0
        %v2718 = vmin.f32 %v2710, 6.0
        %v2719 = vmin.f32 %v2711, 6.0
        %v2720 = vmin.f32 %v2712, 6.0
        %v2721 = vmin.f32 %v2713, 6.0
        %v2722 = vmin.f32 %v2714, 6.0
        %v2723 = vmin.f32 %v2715, 6.0
        %v2724 = vmin.f32 %v2716, 6.0
        %v2725 = vmul.f32 %v2717, 0.16666667
        %v2726 = vmul.f32 %v2718, 0.16666667
        %v2727 = vmul.f32 %v2719, 0.16666667
        %v2728 = vmul.f32 %v2720, 0.16666667
        %v2729 = vmul.f32 %v2721, 0.16666667
        %v2730 = vmul.f32 %v2722, 0.16666667
        %v2731 = vmul.f32 %v2723, 0.16666667
        %v2732 = vmul.f32 %v2724, 0.16666667
        %v2733 = vmul.f32 %v2693, %v2725
        %v2734 = vmul.f32 %v2694, %v2726
        %v2735 = vmul.f32 %v2695, %v2727
        %v2736 = vmul.f32 %v2696, %v2728
        %v2737 = vmul.f32 %v2697, %v2729
        %v2738 = vmul.f32 %v2698, %v2730
        %v2739 = vmul.f32 %v2699, %v2731
        %v2740 = vmul.f32 %v2700, %v2732
        %v2741 = vsel %vm1341, %v2733, 0.0
        %v2742 = vsel %vm1341, %v2734, 0.0
        %v2743 = vadd.f32 %v2741, %v2742
        %v2744 = vsel %vm1341, %v2735, 0.0
        %v2745 = vadd.f32 %v2743, %v2744
        %v2746 = vsel %vm1341, %v2736, 0.0
        %v2747 = vadd.f32 %v2745, %v2746
        %v2748 = vsel %vm1341, %v2737, 0.0
        %v2749 = vadd.f32 %v2747, %v2748
        %v2750 = vsel %vm1341, %v2738, 0.0
        %v2751 = vadd.f32 %v2749, %v2750
        %v2752 = vsel %vm1341, %v2739, 0.0
        %v2753 = vadd.f32 %v2751, %v2752
        %v2754 = vsel %vm1341, %v2740, 0.0
        %v2755 = vadd.f32 %v2753, %v2754
        %v2756 = vrot.slane %v2755, 4
        %v2757 = vadd.f32 %v2755, %v2756
        %v2758 = vrot.slane %v2757, 2
        %v2759 = vadd.f32 %v2757, %v2758
        %v2760 = vrot.slane %v2759, 1
        %v2761 = vadd.f32 %v2759, %v2760
        %v2762 = vrcp.pop 64.0
        %v2763 = vmul.f32 %v2761, %v2762
        %v2764 = vld [vmem:[#allocation25] sm:$0xff]
        %v2765 = vld [vmem:[#allocation25 + $0x8] sm:$0xff]
        %v2766 = vld [vmem:[#allocation26] sm:$0x1]
        %v2768 = vsel %vm1341, %v2763, 0
        %2770 = vmatprep.subr.mxu0 0.0
        %2771 = vmatpush1.msra.mxu0 %v2764
        %2772 = vmatprep.subr.mxu0 0.0
        %2773 = vmatpush1.msra.mxu0 %v2765
        %2774 = vmatprep.subr.mxu0 0.0
        %2775 = vmatpush1.msra.mxu0 0.0
        %2776 = vmatprep.subr.mxu0 0.0
        %2777 = vmatpush1.msra.mxu0 0.0
        %2778 = vmatprep.subr.mxu0 0.0
        %2779 = vmatpush1.msra.mxu0 0.0
        %2780 = vmatprep.subr.mxu0 0.0
        %2781 = vmatpush1.msra.mxu0 0.0
        %2782 = vmatprep.subr.mxu0 0.0
        %2783 = vmatpush1.msra.mxu0 0.0
        %2784 = vmatprep.subr.mxu0 0.0
        %2785 = vmatpush1.msra.mxu0 0.0
        %2786 = vmatprep.subr.mxu0 0.0
        %2787 = vmatpush1.msra.mxu0 0.0
        %2788 = vmatprep.subr.mxu0 0.0
        %2789 = vmatpush1.msra.mxu0 0.0
        %2790 = vmatprep.subr.mxu0 0.0
        %2791 = vmatpush1.msra.mxu0 0.0
        %2792 = vmatprep.subr.mxu0 0.0
        %2793 = vmatpush1.msra.mxu0 0.0
        %2794 = vmatprep.subr.mxu0 0.0
        %2795 = vmatpush1.msra.mxu0 0.0
        %2796 = vmatprep.subr.mxu0 0.0
        %2797 = vmatpush1.msra.mxu0 0.0
        %2798 = vmatprep.subr.mxu0 0.0
        %2799 = vmatpush1.msra.mxu0 0.0
        %2800 = vmatprep.subr.mxu0 0.0
        %2801 = vmatpush1.msra.mxu0 0.0
        %2802 = vmatprep.subr.mxu0 0.0
        %2803 = vmatpush1.msra.mxu0 0.0
        %2804 = vmatprep.subr.mxu0 0.0
        %2805 = vmatpush1.msra.mxu0 0.0
        %2806 = vmatprep.subr.mxu0 0.0
        %2807 = vmatpush1.msra.mxu0 0.0
        %2808 = vmatprep.subr.mxu0 0.0
        %2809 = vmatpush1.msra.mxu0 0.0
        %2810 = vmatprep.subr.mxu0 0.0
        %2811 = vmatpush1.msra.mxu0 0.0
        %2812 = vmatprep.subr.mxu0 0.0
        %2813 = vmatpush1.msra.mxu0 0.0
        %2814 = vmatprep.subr.mxu0 0.0
        %2815 = vmatpush1.msra.mxu0 0.0
        %2816 = vmatprep.subr.mxu0 0.0
        %2817 = vmatpush1.msra.mxu0 0.0
        %2818 = vmatprep.subr.mxu0 0.0
        %2819 = vmatpush1.msra.mxu0 0.0
        %2820 = vmatprep.subr.mxu0 0.0
        %2821 = vmatpush1.msra.mxu0 0.0
        %2822 = vmatprep.subr.mxu0 0.0
        %2823 = vmatpush1.msra.mxu0 0.0
        %2824 = vmatprep.subr.mxu0 0.0
        %2825 = vmatpush1.msra.mxu0 0.0
        %2826 = vmatprep.subr.mxu0 0.0
        %2827 = vmatpush1.msra.mxu0 0.0
        %2828 = vmatprep.subr.mxu0 0.0
        %2829 = vmatpush1.msra.mxu0 0.0
        %2830 = vmatprep.subr.mxu0 0.0
        %2831 = vmatpush1.msra.mxu0 0.0
        %2832 = vmatprep.subr.mxu0 0.0
        %2833 = vmatpush1.msra.mxu0 0.0
        %2834 = vmatprep.mubr.f32.mxu0 0.0
        %2835 = vmatmul.mubr.f32.gmra.mrb[0].mxu0 %v2768
        %v2836 = vpop.f32.mrb[0].mxu0
        %v2837 = vadd.f32 %v2766, %v2836
        %v2838 = vpop.f32.mrb[0].mxu0
        %2839 = vdwg.mxu0
        %v2840 = vmax.f32 %v2837, 0.0
        %v2841 = vld [vmem:[#allocation28] sm:$0xf]
        %v2842 = vld [vmem:[#allocation29] sm:$0x1]
        %vm2843 = vcmask 31744
        %v2845 = vsel %vm2843, %v2840, 0
        %vm2847 = vcmask 1043456
        %v2849 = vsel %vm2847, %v2841, 0
        %2851 = vmatprep.subr.mxu0 0.0
        %2852 = vmatpush1.msra.mxu0 %v2849
        %2853 = vmatprep.subr.mxu0 0.0
        %2854 = vmatpush1.msra.mxu0 0.0
        %2855 = vmatprep.subr.mxu0 0.0
        %2856 = vmatpush1.msra.mxu0 0.0
        %2857 = vmatprep.subr.mxu0 0.0
        %2858 = vmatpush1.msra.mxu0 0.0
        %2859 = vmatprep.subr.mxu0 0.0
        %2860 = vmatpush1.msra.mxu0 0.0
        %2861 = vmatprep.subr.mxu0 0.0
        %2862 = vmatpush1.msra.mxu0 0.0
        %2863 = vmatprep.subr.mxu0 0.0
        %2864 = vmatpush1.msra.mxu0 0.0
        %2865 = vmatprep.subr.mxu0 0.0
        %2866 = vmatpush1.msra.mxu0 0.0
        %2867 = vmatprep.subr.mxu0 0.0
        %2868 = vmatpush1.msra.mxu0 0.0
        %2869 = vmatprep.subr.mxu0 0.0
        %2870 = vmatpush1.msra.mxu0 0.0
        %2871 = vmatprep.subr.mxu0 0.0
        %2872 = vmatpush1.msra.mxu0 0.0
        %2873 = vmatprep.subr.mxu0 0.0
        %2874 = vmatpush1.msra.mxu0 0.0
        %2875 = vmatprep.subr.mxu0 0.0
        %2876 = vmatpush1.msra.mxu0 0.0
        %2877 = vmatprep.subr.mxu0 0.0
        %2878 = vmatpush1.msra.mxu0 0.0
        %2879 = vmatprep.subr.mxu0 0.0
        %2880 = vmatpush1.msra.mxu0 0.0
        %2881 = vmatprep.subr.mxu0 0.0
        %2882 = vmatpush1.msra.mxu0 0.0
        %2883 = vmatprep.subr.mxu0 0.0
        %2884 = vmatpush1.msra.mxu0 0.0
        %2885 = vmatprep.subr.mxu0 0.0
        %2886 = vmatpush1.msra.mxu0 0.0
        %2887 = vmatprep.subr.mxu0 0.0
        %2888 = vmatpush1.msra.mxu0 0.0
        %2889 = vmatprep.subr.mxu0 0.0
        %2890 = vmatpush1.msra.mxu0 0.0
        %2891 = vmatprep.subr.mxu0 0.0
        %2892 = vmatpush1.msra.mxu0 0.0
        %2893 = vmatprep.subr.mxu0 0.0
        %2894 = vmatpush1.msra.mxu0 0.0
        %2895 = vmatprep.subr.mxu0 0.0
        %2896 = vmatpush1.msra.mxu0 0.0
        %2897 = vmatprep.subr.mxu0 0.0
        %2898 = vmatpush1.msra.mxu0 0.0
        %2899 = vmatprep.subr.mxu0 0.0
        %2900 = vmatpush1.msra.mxu0 0.0
        %2901 = vmatprep.subr.mxu0 0.0
        %2902 = vmatpush1.msra.mxu0 0.0
        %2903 = vmatprep.subr.mxu0 0.0
        %2904 = vmatpush1.msra.mxu0 0.0
        %2905 = vmatprep.subr.mxu0 0.0
        %2906 = vmatpush1.msra.mxu0 0.0
        %2907 = vmatprep.subr.mxu0 0.0
        %2908 = vmatpush1.msra.mxu0 0.0
        %2909 = vmatprep.subr.mxu0 0.0
        %2910 = vmatpush1.msra.mxu0 0.0
        %2911 = vmatprep.subr.mxu0 0.0
        %2912 = vmatpush1.msra.mxu0 0.0
        %2913 = vmatprep.subr.mxu0 0.0
        %2914 = vmatpush1.msra.mxu0 0.0
        %2915 = vmatprep.mubr.f32.mxu0 0.0
        %2916 = vmatmul.mubr.f32.gmra.mrb[0].mxu0 %v2845
        %v2917 = vpop.f32.mrb[0].mxu0
        %v2918 = vadd.f32 %v2842, %v2917
        %v2919 = vpop.f32.mrb[0].mxu0
        %2920 = vdwg.mxu0
        %v2921 = vadd.f32 %v2918, 3.0
        %v2922 = vmax.f32 %v2921, 0.0
        %v2923 = vmin.f32 %v2922, 6.0
        %v2924 = vmul.f32 %v2923, 0.16666667
        %v2925 = vlaneseq
        %v2926 = vshrl.u32 %v2925, 7
        %v2927 = vsub.s32 0, %v2926
        %v2928 = vrot.slane %v2924, %v2927
        %v2929 = vmul.f32 %v2733, %v2928
        %v2930 = vmul.f32 %v2734, %v2928
        %v2931 = vmul.f32 %v2735, %v2928
        %v2932 = vmul.f32 %v2736, %v2928
        %v2933 = vmul.f32 %v2737, %v2928
        %v2934 = vmul.f32 %v2738, %v2928
        %v2935 = vmul.f32 %v2739, %v2928
        %v2936 = vmul.f32 %v2740, %v2928
        %v2937 = vpack.c.bf16 %v2930, %v2929
        %v2938 = vpack.c.bf16 %v2932, %v2931
        %v2939 = vpack.c.bf16 %v2934, %v2933
        %v2940 = vpack.c.bf16 %v2936, %v2935
        %v2941 = vld [vmem:[#allocation31] sm:$0xf]
        %v2942 = vld [vmem:[#allocation31 + $0x4] sm:$0xf]
        %v2945 = vunpack.c.l.b16 %v2941
        %v2946 = vunpack.c.l.b16 %v2942
        %v2947 = vpack.c.b16 %v2946, %v2945
        %v2950 = vsel %vm1341, %v2937, 0
        %v2953 = vsel %vm1341, %v2938, 0
        %v2956 = vsel %vm1341, %v2939, 0
        %v2959 = vsel %vm1341, %v2940, 0
        %2961 = vmatprep.subr.bf16.mxu0 0
        %2962 = vmatpush1.bf16.msra.mxu0 %v2947
        %2963 = vmatprep.subr.bf16.mxu0 0
        %2964 = vmatpush1.bf16.msra.mxu0 0
        %2965 = vmatprep.subr.bf16.mxu0 0
        %2966 = vmatpush1.bf16.msra.mxu0 0
        %2967 = vmatprep.subr.bf16.mxu0 0
        %2968 = vmatpush1.bf16.msra.mxu0 0
        %2969 = vmatprep.subr.bf16.mxu0 0
        %2970 = vmatpush1.bf16.msra.mxu0 0
        %2971 = vmatprep.subr.bf16.mxu0 0
        %2972 = vmatpush1.bf16.msra.mxu0 0
        %2973 = vmatprep.subr.bf16.mxu0 0
        %2974 = vmatpush1.bf16.msra.mxu0 0
        %2975 = vmatprep.subr.bf16.mxu0 0
        %2976 = vmatpush1.bf16.msra.mxu0 0
        %2977 = vmatprep.subr.bf16.mxu0 0
        %2978 = vmatpush1.bf16.msra.mxu0 0
        %2979 = vmatprep.subr.bf16.mxu0 0
        %2980 = vmatpush1.bf16.msra.mxu0 0
        %2981 = vmatprep.subr.bf16.mxu0 0
        %2982 = vmatpush1.bf16.msra.mxu0 0
        %2983 = vmatprep.subr.bf16.mxu0 0
        %2984 = vmatpush1.bf16.msra.mxu0 0
        %2985 = vmatprep.subr.bf16.mxu0 0
        %2986 = vmatpush1.bf16.msra.mxu0 0
        %2987 = vmatprep.subr.bf16.mxu0 0
        %2988 = vmatpush1.bf16.msra.mxu0 0
        %2989 = vmatprep.subr.bf16.mxu0 0
        %2990 = vmatpush1.bf16.msra.mxu0 0
        %2991 = vmatprep.subr.bf16.mxu0 0
        %2992 = vmatpush1.bf16.msra.mxu0 0
        %2993 = vmatprep.mubr.bf16.mxu0 0
        %2994 = vmatmul.mubr.bf16.gmra.mrb[0].mxu0 %v2950
        %v2995 = vpop.f32.mrb[0].mxu0
        %v2996 = vadd.f32 0.0, %v2995
        %v2997 = vpop.f32.mrb[0].mxu0
        %v2998 = vpop.f32.mrb[0].mxu0
        %v2999 = vadd.f32 0.0, %v2998
        %v3000 = vpop.f32.mrb[0].mxu0
        %3001 = vmatprep.mubr.bf16.mxu0 0
        %3002 = vmatmul.mubr.bf16.gmra.mrb[0].mxu0 %v2953
        %v3003 = vpop.f32.mrb[0].mxu0
        %v3004 = vadd.f32 0.0, %v3003
        %v3005 = vpop.f32.mrb[0].mxu0
        %v3006 = vpop.f32.mrb[0].mxu0
        %v3007 = vadd.f32 0.0, %v3006
        %v3008 = vpop.f32.mrb[0].mxu0
        %3009 = vmatprep.mubr.bf16.mxu0 0
        %3010 = vmatmul.mubr.bf16.gmra.mrb[0].mxu0 %v2956
        %v3011 = vpop.f32.mrb[0].mxu0
        %v3012 = vadd.f32 0.0, %v3011
        %v3013 = vpop.f32.mrb[0].mxu0
        %v3014 = vpop.f32.mrb[0].mxu0
        %v3015 = vadd.f32 0.0, %v3014
        %v3016 = vpop.f32.mrb[0].mxu0
        %3017 = vmatprep.mubr.bf16.mxu0 0
        %3018 = vmatmul.mubr.bf16.gmra.mrb[0].mxu0 %v2959
        %v3019 = vpop.f32.mrb[0].mxu0
        %v3020 = vadd.f32 0.0, %v3019
        %v3021 = vpop.f32.mrb[0].mxu0
        %v3022 = vpop.f32.mrb[0].mxu0
        %v3023 = vadd.f32 0.0, %v3022
        %v3024 = vpop.f32.mrb[0].mxu0
        %3025 = vdwg.mxu0
        %v3026 = vld [vmem:[#allocation32] sm:$0x1]
        %v3028 = vlaneseq
        %v3029 = vshrl.u32 %v3028, 7
        %v3030 = vsub.s32 0, %v3029
        %v3031 = vrot.slane %v3026, %v3030
        %v3033 = vmul.f32 %v2996, %v3031
        %v3034 = vmul.f32 %v2999, %v3031
        %v3035 = vmul.f32 %v3004, %v3031
        %v3036 = vmul.f32 %v3007, %v3031
        %v3037 = vmul.f32 %v3012, %v3031
        %v3038 = vmul.f32 %v3015, %v3031
        %v3039 = vmul.f32 %v3020, %v3031
        %v3040 = vmul.f32 %v3023, %v3031
        %v3041 = vld [vmem:[#allocation34] sm:$0x1]
        %v3043 = vlaneseq
        %v3044 = vshrl.u32 %v3043, 7
        %v3045 = vsub.s32 0, %v3044
        %v3046 = vrot.slane %v3041, %v3045
        %v3048 = vadd.f32 %v3033, %v3046
        %v3049 = vadd.f32 %v3034, %v3046
        %v3050 = vadd.f32 %v3035, %v3046
        %v3051 = vadd.f32 %v3036, %v3046
        %v3052 = vadd.f32 %v3037, %v3046
        %v3053 = vadd.f32 %v3038, %v3046
        %v3054 = vadd.f32 %v3039, %v3046
        %v3055 = vadd.f32 %v3040, %v3046
        %3064 = vrot.lane.b32.xlu0 %v3048, 32
        %v3065 = vpop.permute.xlu0 %3064
        %3066 = vrot.lane.b32.xlu0 %v3049, 32
        %v3067 = vpop.permute.xlu0 %3066
        %3068 = vrot.lane.b32.xlu0 %v3050, 32
        %v3069 = vpop.permute.xlu0 %3068
        %3070 = vrot.lane.b32.xlu0 %v3051, 32
        %v3071 = vpop.permute.xlu0 %3070
        %3072 = vrot.lane.b32.xlu0 %v3052, 32
        %v3073 = vpop.permute.xlu0 %3072
        %3074 = vrot.lane.b32.xlu0 %v3053, 32
        %v3075 = vpop.permute.xlu0 %3074
        %3076 = vrot.lane.b32.xlu0 %v3054, 32
        %v3077 = vpop.permute.xlu0 %3076
        %3078 = vrot.lane.b32.xlu0 %v3055, 32
        %v3079 = vpop.permute.xlu0 %3078
        %v3088 = vadd.f32 %v2235, %v3065
        %v3089 = vadd.f32 %v2236, %v3067
        %v3090 = vadd.f32 %v2237, %v3069
        %v3091 = vadd.f32 %v2238, %v3071
        %v3092 = vadd.f32 %v2239, %v3073
        %v3093 = vadd.f32 %v2240, %v3075
        %v3094 = vadd.f32 %v2241, %v3077
        %v3095 = vadd.f32 %v2242, %v3079
        %3104 = vrot.lane.b32.xlu0 %v3088, 96
        %v3105 = vpop.permute.xlu0 %3104
        %3106 = vrot.lane.b32.xlu0 %v3089, 96
        %v3107 = vpop.permute.xlu0 %3106
        %3108 = vrot.lane.b32.xlu0 %v3090, 96
        %v3109 = vpop.permute.xlu0 %3108
        %3110 = vrot.lane.b32.xlu0 %v3091, 96
        %v3111 = vpop.permute.xlu0 %3110
        %3112 = vrot.lane.b32.xlu0 %v3092, 96
        %v3113 = vpop.permute.xlu0 %3112
        %3114 = vrot.lane.b32.xlu0 %v3093, 96
        %v3115 = vpop.permute.xlu0 %3114
        %3116 = vrot.lane.b32.xlu0 %v3094, 96
        %v3117 = vpop.permute.xlu0 %3116
        %3118 = vrot.lane.b32.xlu0 %v3095, 96
        %v3119 = vpop.permute.xlu0 %3118
        %3128 = vst.msk [vmem:[%s938] sm:$0xff] %vm1341, %v3105
        %3129 = vst.msk [vmem:[%s938 + $0x8] sm:$0xff] %vm1341, %v3107
        %3130 = vst.msk [vmem:[%s938 + $0x10] sm:$0xff] %vm1341, %v3109
        %3131 = vst.msk [vmem:[%s938 + $0x18] sm:$0xff] %vm1341, %v3111
        %3132 = vst.msk [vmem:[%s938 + $0x20] sm:$0xff] %vm1341, %v3113
        %3133 = vst.msk [vmem:[%s938 + $0x28] sm:$0xff] %vm1341, %v3115
        %3134 = vst.msk [vmem:[%s938 + $0x30] sm:$0xff] %vm1341, %v3117
        %3135 = vst.msk [vmem:[%s938 + $0x38] sm:$0xff] %vm1341, %v3119
        %s3136 = sand.u32 %s502, 1
        %s3137 = scalar_lea.sflag [#allocation4], %s3136
        %s3138 = sand.u32 %s502, 1
        %s3139 = smul.addr %s3138, 64
        %s3140 = scalar_lea.vmem [#allocation35], %s3139
        // Predicated region
        $region189: #{t2t_forward.3} parent=103 // pred_check
          %p3141 = pneg %p512
        $region190: #{t2t_forward.3} parent=103 // pred_check_branch
          %3143 = sbr.rel (%p3141) target = $region192
        $region191: #{t2t_forward.3} parent=103 // pred_region
          %s3145 = ssub.s32 1024, 1024
          %3146 = vsyncadd %s3137, %s3145
          %s3147 = smul.addr %s48, 8
          %s3148 = smul.addr %s3147, 128
          %s3149 = scalar_lea.hbm %s21, %s3148
          %s3150 = sshll.u32 %s3140, 4
          %s3151 = int_to_ptr.vmem [resolvable:$true] %s3150
          %3156 = dma.vmem_to_hbm [thread:$0]  %s3151, 1024, %s3149, %s3137, 128, 128, 8
        $region192: #{t2t_forward.3} parent=103 // pred_fallthru
          _
      $region104: #{t2t_forward.3} parent=5 // pred_fallthru
        _
      %p3157 = scmp.le.s32.totalorder 2, %s43
      // Predicated region
      $region193: #{t2t_forward.3} parent=5 // pred_check
        %p3158 = pneg %p3157
      $region194: #{t2t_forward.3} parent=5 // pred_check_branch
        %3160 = sbr.rel (%p3158) target = $region196
      $region195: #{t2t_forward.3} parent=5 // pred_region
        %s3161 = ssub.s32 %s43, 2
        // Predicated region
        $region197: #{t2t_forward.3} parent=195 // pred_check
          %p3162 = pneg %p518
        $region198: #{t2t_forward.3} parent=195 // pred_check_branch
          %3164 = sbr.rel (%p3162) target = $region200
        $region199: #{t2t_forward.3} parent=195 // pred_region
          %s3165 = sand.u32 %s503, 1
          %s3166 = scalar_lea.sflag [#allocation4], %s3165
          %s3167 = sand.u32 %s503, 1
          %s3168 = smul.addr %s3167, 64
          %s3169 = scalar_lea.vmem [#allocation35], %s3168
          %3170 = dma.done %s3166, 1024
        $region200: #{t2t_forward.3} parent=195 // pred_fallthru
          _
      $region196: #{t2t_forward.3} parent=5 // pred_fallthru
        _
    $region6: #{t2t_forward.3} parent=1 // loop_footer
      %s47 = sadd.s32 1, %s43
    $region7: #{t2t_forward.3} parent=1 // loop_footer_branch
      %42 = sbr.rel target = $region3
    $region8: #{t2t_forward.3} parent=1 // loop_exit
      _
    %3171 = vsyncpa [#allocation3], 1
    %s3172 = scalar_lea.sflag [#allocation3], 1
    %3173 = vsyncpa %s3172, 1
    %3174 = vsyncpa [#allocation6], 1
    %3175 = vsyncpa [#allocation9], 1
    %3176 = vsyncpa [#allocation12], 1
    %3177 = vsyncpa [#allocation15], 1
    %3178 = vsyncpa [#allocation18], 1
    %3179 = vsyncpa [#allocation21], 1
    %3180 = vsyncpa [#allocation24], 1
    %3181 = vsyncpa [#allocation27], 1
    %3182 = vsyncpa [#allocation30], 1
    %3183 = vsyncpa [#allocation33], 1
    %3184 = vsyncpa [#allocation4], 1
    %s3185 = scalar_lea.sflag [#allocation4], 1
    %3186 = vsyncpa %s3185, 1

// kernel: t2t_forward.5
$region0: #{t2t_forward.5}
  #allocation0 [shape = 'u32[]', space=smem, size = 0x4, offset = 0x4, fixed_abs, tag = 'smem constant byte address 0x4 - core index']
  #allocation1 [shape = 'u32[144,128]{1,0:T(1,128)}', space=vmem, size = 0x12000, scoped, tag = 'internal scratch']
  %s0 = inlined_call_operand.hbm [shape: f32[8,144], index: 0, kind: input, shape index: {}]
  %s1 = inlined_call_operand.hbm [shape: bf16[144,128], index: 1, kind: input, shape index: {}]
  %s2 = inlined_call_operand.hbm [shape: f32[1,128], index: 2, kind: input, shape index: {}]
  %s3 = inlined_call_operand.hbm [shape: f32[8,128], index: 3, kind: output, shape index: {}]
  %s4 = sld [smem:[#allocation0]]
  $region34: #{t2t_forward.5} parent=0
    _
  %s6 = ssub.s32 1, %s4
  %s7 = scalar_select 0, %s6, %s4
  $region1: #{t2t_forward.5} parent=0
    #allocation2 [shape = 'u8[8192]{0}', space=vmem, size = 0x2000, scoped, tag = 'input window, operand 0, single buffered']
    #allocation3 [shape = 's32[1]{0}', space=sflag, size = 0x4, scoped, tag = 'scoped memory for t2t_forward.5']
    #allocation4 [shape = 's32[1]{0}', space=sflag, size = 0x4, scoped, tag = 'scoped memory for t2t_forward.5']
    #allocation5 [shape = 'u8[36864]{0}', space=vmem, size = 0x9000, scoped, tag = 'input window, operand 1, single buffered']
    #allocation6 [shape = 's32[1]{0}', space=sflag, size = 0x4, scoped, tag = 'scoped memory for t2t_forward.5']
    #allocation7 [shape = 'u8[512]{0}', space=vmem, size = 0x400, scoped, tag = 'input window, operand 2, single buffered']
    #allocation8 [shape = 'u8[4096]{0}', space=vmem, size = 0x1000, scoped, tag = 'output window, operand 0, single buffered']
    %8 = vsyncpa [#allocation3], 0
    %9 = vsyncpa [#allocation6], 0
    %10 = vsyncpa [#allocation4], 0
    // Predicated region
    $region2: #{t2t_forward.5} parent=1 // pred_check
      _
    $region3: #{t2t_forward.5} parent=1 // pred_check_branch
      %12 = sbr.rel (0) target = $region5
    $region4: #{t2t_forward.5} parent=1 // pred_region
      %s14 = ssub.s32 256, 256
      %15 = vsyncadd [#allocation3], %s14
      %s17 = sshll.u32 [#allocation2], 4
      %s18 = int_to_ptr.vmem [resolvable:$true] %s17
      %20 = dma.hbm_to_vmem [thread:$0]  %s0, 256, %s18, [#allocation3]
    $region5: #{t2t_forward.5} parent=1 // pred_fallthru
      _
    // Predicated region
    $region6: #{t2t_forward.5} parent=1 // pred_check
      _
    $region7: #{t2t_forward.5} parent=1 // pred_check_branch
      %22 = sbr.rel (0) target = $region9
    $region8: #{t2t_forward.5} parent=1 // pred_region
      %s24 = ssub.s32 1152, 1152
      %25 = vsyncadd [#allocation6], %s24
      %s26 = sshll.u32 [#allocation5], 4
      %s27 = int_to_ptr.vmem [resolvable:$true] %s26
      %32 = dma.hbm_to_vmem [thread:$0]  %s1, 1152, %s27, [#allocation6], 64, 64, 4
    $region9: #{t2t_forward.5} parent=1 // pred_fallthru
      _
    // Predicated region
    $region10: #{t2t_forward.5} parent=1 // pred_check
      _
    $region11: #{t2t_forward.5} parent=1 // pred_check_branch
      %34 = sbr.rel (0) target = $region13
    $region12: #{t2t_forward.5} parent=1 // pred_region
      %s36 = ssub.s32 16, 16
      %37 = vsyncadd [#allocation6], %s36
      %s39 = sshll.u32 [#allocation7], 4
      %s40 = int_to_ptr.vmem [resolvable:$true] %s39
      %42 = dma.hbm_to_vmem [thread:$0]  %s2, 16, %s40, [#allocation6]
    $region13: #{t2t_forward.5} parent=1 // pred_fallthru
      _
    // Predicated region
    $region14: #{t2t_forward.5} parent=1 // pred_check
      _
    $region15: #{t2t_forward.5} parent=1 // pred_check_branch
      %44 = sbr.rel (0) target = $region17
    $region16: #{t2t_forward.5} parent=1 // pred_region
      %45 = dma.done [#allocation3], 256
    $region17: #{t2t_forward.5} parent=1 // pred_fallthru
      _
    // Predicated region
    $region18: #{t2t_forward.5} parent=1 // pred_check
      _
    $region19: #{t2t_forward.5} parent=1 // pred_check_branch
      %47 = sbr.rel (0) target = $region21
    $region20: #{t2t_forward.5} parent=1 // pred_region
      %48 = dma.done [#allocation6], 1152
    $region21: #{t2t_forward.5} parent=1 // pred_fallthru
      _
    // Predicated region
    $region22: #{t2t_forward.5} parent=1 // pred_check
      _
    $region23: #{t2t_forward.5} parent=1 // pred_check_branch
      %50 = sbr.rel (0) target = $region25
    $region24: #{t2t_forward.5} parent=1 // pred_region
      %51 = dma.done [#allocation6], 16
    $region25: #{t2t_forward.5} parent=1 // pred_fallthru
      _
    %v53 = vld [vmem:[#allocation2] sm:$0xff]
    %v54 = vld [vmem:[#allocation2 + $0x8] sm:$0xff]
    %v55 = vpack.c.bf16 %v53, %v53
    %v56 = vpack.c.bf16 %v54, %v54
    %v57 = vld [vmem:[#allocation5] sm:$0xf]
    %v58 = vld [vmem:[#allocation5 + $0x4] sm:$0xf]
    %v59 = vld [vmem:[#allocation5 + $0x8] sm:$0xf]
    %v60 = vld [vmem:[#allocation5 + $0xc] sm:$0xf]
    %v61 = vld [vmem:[#allocation5 + $0x10] sm:$0xf]
    %v62 = vld [vmem:[#allocation5 + $0x14] sm:$0xf]
    %v63 = vld [vmem:[#allocation5 + $0x18] sm:$0xf]
    %v64 = vld [vmem:[#allocation5 + $0x1c] sm:$0xf]
    %v65 = vld [vmem:[#allocation5 + $0x20] sm:$0xf]
    %v66 = vld [vmem:[#allocation5 + $0x24] sm:$0xf]
    %v67 = vld [vmem:[#allocation5 + $0x28] sm:$0xf]
    %v68 = vld [vmem:[#allocation5 + $0x2c] sm:$0xf]
    %v69 = vld [vmem:[#allocation5 + $0x30] sm:$0xf]
    %v70 = vld [vmem:[#allocation5 + $0x34] sm:$0xf]
    %v71 = vld [vmem:[#allocation5 + $0x38] sm:$0xf]
    %v72 = vld [vmem:[#allocation5 + $0x3c] sm:$0xf]
    %v73 = vld [vmem:[#allocation5 + $0x40] sm:$0xf]
    %v74 = vld [vmem:[#allocation5 + $0x44] sm:$0xf]
    %v75 = vld [vmem:[#allocation7] sm:$0x1]
    %v77 = vlaneseq
    %v78 = vshrl.u32 %v77, 7
    %v79 = vsub.s32 0, %v78
    %v80 = vrot.slane %v75, %v79
    %v100 = vunpack.c.l.b16 %v57
    %v101 = vunpack.c.l.b16 %v58
    %v102 = vunpack.c.l.b16 %v59
    %v103 = vunpack.c.l.b16 %v60
    %v104 = vunpack.c.l.b16 %v61
    %v105 = vunpack.c.l.b16 %v62
    %v106 = vunpack.c.l.b16 %v63
    %v107 = vunpack.c.l.b16 %v64
    %v108 = vunpack.c.l.b16 %v65
    %v109 = vunpack.c.l.b16 %v66
    %v110 = vunpack.c.l.b16 %v67
    %v111 = vunpack.c.l.b16 %v68
    %v112 = vunpack.c.l.b16 %v69
    %v113 = vunpack.c.l.b16 %v70
    %v114 = vunpack.c.l.b16 %v71
    %v115 = vunpack.c.l.b16 %v72
    %v116 = vunpack.c.l.b16 %v73
    %v117 = vunpack.c.l.b16 %v74
    %v118 = vpack.c.b16 %v101, %v100
    %v119 = vpack.c.b16 %v103, %v102
    %v120 = vpack.c.b16 %v105, %v104
    %v121 = vpack.c.b16 %v107, %v106
    %v122 = vpack.c.b16 %v109, %v108
    %v123 = vpack.c.b16 %v111, %v110
    %v124 = vpack.c.b16 %v113, %v112
    %v125 = vpack.c.b16 %v115, %v114
    %v126 = vpack.c.b16 %v117, %v116
    %vm136 = vcmask 130048
    %v138 = vsel %vm136, %v56, 0
    %140 = vmatprep.subr.bf16.mxu0 0
    %141 = vmatpush1.bf16.msra.mxu0 %v118
    %142 = vmatprep.subr.bf16.mxu0 0
    %143 = vmatpush1.bf16.msra.mxu0 %v119
    %144 = vmatprep.subr.bf16.mxu0 0
    %145 = vmatpush1.bf16.msra.mxu0 %v120
    %146 = vmatprep.subr.bf16.mxu0 0
    %147 = vmatpush1.bf16.msra.mxu0 %v121
    %148 = vmatprep.subr.bf16.mxu0 0
    %149 = vmatpush1.bf16.msra.mxu0 %v122
    %150 = vmatprep.subr.bf16.mxu0 0
    %151 = vmatpush1.bf16.msra.mxu0 %v123
    %152 = vmatprep.subr.bf16.mxu0 0
    %153 = vmatpush1.bf16.msra.mxu0 %v124
    %154 = vmatprep.subr.bf16.mxu0 0
    %155 = vmatpush1.bf16.msra.mxu0 %v125
    %156 = vmatprep.subr.bf16.mxu0 0
    %157 = vmatpush1.bf16.msra.mxu0 %v126
    %158 = vmatprep.subr.bf16.mxu0 0
    %159 = vmatpush1.bf16.msra.mxu0 0
    %160 = vmatprep.subr.bf16.mxu0 0
    %161 = vmatpush1.bf16.msra.mxu0 0
    %162 = vmatprep.subr.bf16.mxu0 0
    %163 = vmatpush1.bf16.msra.mxu0 0
    %164 = vmatprep.subr.bf16.mxu0 0
    %165 = vmatpush1.bf16.msra.mxu0 0
    %166 = vmatprep.subr.bf16.mxu0 0
    %167 = vmatpush1.bf16.msra.mxu0 0
    %168 = vmatprep.subr.bf16.mxu0 0
    %169 = vmatpush1.bf16.msra.mxu0 0
    %170 = vmatprep.subr.bf16.mxu0 0
    %171 = vmatpush1.bf16.msra.mxu0 0
    %172 = vmatprep.mubr.bf16.mxu0 %v138
    %173 = vmatmul.mubr.bf16.gmra.mrb[0].mxu0 %v55
    %v174 = vpop.f32.mrb[0].mxu0
    %v175 = vadd.f32 %v80, %v174
    %v176 = vpop.f32.mrb[0].mxu0
    %v177 = vpop.f32.mrb[0].mxu0
    %v178 = vpop.f32.mrb[0].mxu0
    %179 = vdwg.mxu0
    %180 = vst [vmem:[#allocation8] sm:$0xff] %v175
    // Predicated region
    $region26: #{t2t_forward.5} parent=1 // pred_check
      _
    $region27: #{t2t_forward.5} parent=1 // pred_check_branch
      %182 = sbr.rel (0) target = $region29
    $region28: #{t2t_forward.5} parent=1 // pred_region
      %s184 = ssub.s32 128, 128
      %185 = vsyncadd [#allocation4], %s184
      %s187 = sshll.u32 [#allocation8], 4
      %s188 = int_to_ptr.vmem [resolvable:$true] %s187
      %190 = dma.vmem_to_hbm [thread:$0]  %s188, 128, %s3, [#allocation4]
    $region29: #{t2t_forward.5} parent=1 // pred_fallthru
      _
    // Predicated region
    $region30: #{t2t_forward.5} parent=1 // pred_check
      _
    $region31: #{t2t_forward.5} parent=1 // pred_check_branch
      %192 = sbr.rel (0) target = $region33
    $region32: #{t2t_forward.5} parent=1 // pred_region
      %193 = dma.done [#allocation4], 128
    $region33: #{t2t_forward.5} parent=1 // pred_fallthru
      _
    %194 = vsyncpa [#allocation3], 1
    %195 = vsyncpa [#allocation6], 1
    %196 = vsyncpa [#allocation4], 1

// kernel: t2t_forward.4
$region0: #{t2t_forward.4}
  #allocation0 [shape = 'u32[]', space=smem, size = 0x4, offset = 0x4, fixed_abs, tag = 'smem constant byte address 0x4 - core index']
  #allocation1 [shape = 'u32[144,128]{1,0:T(1,128)}', space=vmem, size = 0x12000, scoped, tag = 'internal scratch']
  %s0 = inlined_call_operand.hbm [shape: f32[2,16,144], index: 0, kind: input, shape index: {}]
  %s1 = inlined_call_operand.hbm [shape: f32[1,144], index: 1, kind: input, shape index: {}]
  %s2 = inlined_call_operand.hbm [shape: f32[1,144], index: 2, kind: input, shape index: {}]
  %s3 = inlined_call_operand.hbm [shape: bf16[144,48], index: 3, kind: input, shape index: {}]
  %s4 = inlined_call_operand.hbm [shape: f32[1,48], index: 4, kind: input, shape index: {}]
  %s5 = inlined_call_operand.hbm [shape: f32[16,8], index: 5, kind: input, shape index: {}]
  %s6 = inlined_call_operand.hbm [shape: bf16[16,16], index: 6, kind: input, shape index: {}]
  %s7 = inlined_call_operand.hbm [shape: f32[1,16], index: 7, kind: input, shape index: {}]
  %s8 = inlined_call_operand.hbm [shape: bf16[16,16], index: 8, kind: input, shape index: {}]
  %s9 = inlined_call_operand.hbm [shape: f32[1,16], index: 9, kind: input, shape index: {}]
  %s10 = inlined_call_operand.hbm [shape: f32[1,16], index: 10, kind: input, shape index: {}]
  %s11 = inlined_call_operand.hbm [shape: f32[9,16], index: 11, kind: input, shape index: {}]
  %s12 = inlined_call_operand.hbm [shape: f32[1,16], index: 12, kind: input, shape index: {}]
  %s13 = inlined_call_operand.hbm [shape: f32[1,16], index: 13, kind: input, shape index: {}]
  %s14 = inlined_call_operand.hbm [shape: f32[16,4], index: 14, kind: input, shape index: {}]
  %s15 = inlined_call_operand.hbm [shape: f32[1,4], index: 15, kind: input, shape index: {}]
  %s16 = inlined_call_operand.hbm [shape: f32[4,16], index: 16, kind: input, shape index: {}]
  %s17 = inlined_call_operand.hbm [shape: f32[1,16], index: 17, kind: input, shape index: {}]
  %s18 = inlined_call_operand.hbm [shape: bf16[16,16], index: 18, kind: input, shape index: {}]
  %s19 = inlined_call_operand.hbm [shape: f32[1,16], index: 19, kind: input, shape index: {}]
  %s20 = inlined_call_operand.hbm [shape: f32[1,16], index: 20, kind: input, shape index: {}]
  %s21 = inlined_call_operand.hbm [shape: f32[2,16,16], index: 21, kind: output, shape index: {}]
  %s22 = sld [smem:[#allocation0]]
  $region201: #{t2t_forward.4} parent=0
    _
  %s24 = ssub.s32 1, %s22
  %s25 = scalar_select 0, %s24, %s22
  $region1: #{t2t_forward.4} parent=0
    #allocation2 [shape = 'u8[32768]{0}', space=vmem, size = 0x8000, scoped, tag = 'input window, operand 0']
    #allocation3 [shape = 's32[2]{0}', space=sflag, size = 0x8, scoped, tag = 'scoped memory for t2t_forward.4']
    #allocation4 [shape = 's32[2]{0}', space=sflag, size = 0x8, scoped, tag = 'scoped memory for t2t_forward.4']
    #allocation5 [shape = 'u8[1024]{0}', space=vmem, size = 0x400, scoped, tag = 'input window, operand 1, single buffered']
    #allocation6 [shape = 's32[1]{0}', space=sflag, size = 0x4, scoped, tag = 'scoped memory for t2t_forward.4']
    #allocation7 [shape = 'u8[1024]{0}', space=vmem, size = 0x400, scoped, tag = 'input window, operand 2, single buffered']
    #allocation8 [shape = 'u8[36864]{0}', space=vmem, size = 0x9000, scoped, tag = 'input window, operand 3, single buffered']
    #allocation9 [shape = 's32[1]{0}', space=sflag, size = 0x4, scoped, tag = 'scoped memory for t2t_forward.4']
    #allocation10 [shape = 'u8[512]{0}', space=vmem, size = 0x400, scoped, tag = 'input window, operand 4, single buffered']
    #allocation11 [shape = 'u8[8192]{0}', space=vmem, size = 0x2000, scoped, tag = 'input window, operand 5, single buffered']
    #allocation12 [shape = 's32[1]{0}', space=sflag, size = 0x4, scoped, tag = 'scoped memory for t2t_forward.4']
    #allocation13 [shape = 'u8[4096]{0}', space=vmem, size = 0x1000, scoped, tag = 'input window, operand 6, single buffered']
    #allocation14 [shape = 'u8[512]{0}', space=vmem, size = 0x400, scoped, tag = 'input window, operand 7, single buffered']
    #allocation15 [shape = 's32[1]{0}', space=sflag, size = 0x4, scoped, tag = 'scoped memory for t2t_forward.4']
    #allocation16 [shape = 'u8[4096]{0}', space=vmem, size = 0x1000, scoped, tag = 'input window, operand 8, single buffered']
    #allocation17 [shape = 'u8[512]{0}', space=vmem, size = 0x400, scoped, tag = 'input window, operand 9, single buffered']
    #allocation18 [shape = 's32[1]{0}', space=sflag, size = 0x4, scoped, tag = 'scoped memory for t2t_forward.4']
    #allocation19 [shape = 'u8[512]{0}', space=vmem, size = 0x400, scoped, tag = 'input window, operand 10, single buffered']
    #allocation20 [shape = 'u8[8192]{0}', space=vmem, size = 0x2000, scoped, tag = 'input window, operand 11, single buffered']
    #allocation21 [shape = 's32[1]{0}', space=sflag, size = 0x4, scoped, tag = 'scoped memory for t2t_forward.4']
    #allocation22 [shape = 'u8[512]{0}', space=vmem, size = 0x400, scoped, tag = 'input window, operand 12, single buffered']
    #allocation23 [shape = 'u8[512]{0}', space=vmem, size = 0x400, scoped, tag = 'input window, operand 13, single buffered']
    #allocation24 [shape = 's32[1]{0}', space=sflag, size = 0x4, scoped, tag = 'scoped memory for t2t_forward.4']
    #allocation25 [shape = 'u8[8192]{0}', space=vmem, size = 0x2000, scoped, tag = 'input window, operand 14, single buffered']
    #allocation26 [shape = 'u8[512]{0}', space=vmem, size = 0x400, scoped, tag = 'input window, operand 15, single buffered']
    #allocation27 [shape = 's32[1]{0}', space=sflag, size = 0x4, scoped, tag = 'scoped memory for t2t_forward.4']
    #allocation28 [shape = 'u8[2048]{0}', space=vmem, size = 0x800, scoped, tag = 'input window, operand 16, single buffered']
    #allocation29 [shape = 'u8[512]{0}', space=vmem, size = 0x400, scoped, tag = 'input window, operand 17, single buffered']
    #allocation30 [shape = 's32[1]{0}', space=sflag, size = 0x4, scoped, tag = 'scoped memory for t2t_forward.4']
    #allocation31 [shape = 'u8[4096]{0}', space=vmem, size = 0x1000, scoped, tag = 'input window, operand 18, single buffered']
    #allocation32 [shape = 'u8[512]{0}', space=vmem, size = 0x400, scoped, tag = 'input window, operand 19, single buffered']
    #allocation33 [shape = 's32[1]{0}', space=sflag, size = 0x4, scoped, tag = 'scoped memory for t2t_forward.4']
    #allocation34 [shape = 'u8[512]{0}', space=vmem, size = 0x400, scoped, tag = 'input window, operand 20, single buffered']
    #allocation35 [shape = 'u8[16384]{0}', space=vmem, size = 0x4000, scoped, tag = 'output window, operand 0']
    %26 = vsyncpa [#allocation3], 0
    %s27 = scalar_lea.sflag [#allocation3], 1
    %28 = vsyncpa %s27, 0
    %29 = vsyncpa [#allocation6], 0
    %30 = vsyncpa [#allocation9], 0
    %31 = vsyncpa [#allocation12], 0
    %32 = vsyncpa [#allocation15], 0
    %33 = vsyncpa [#allocation18], 0
    %34 = vsyncpa [#allocation21], 0
    %35 = vsyncpa [#allocation24], 0
    %36 = vsyncpa [#allocation27], 0
    %37 = vsyncpa [#allocation30], 0
    %38 = vsyncpa [#allocation33], 0
    %39 = vsyncpa [#allocation4], 0
    %s40 = scalar_lea.sflag [#allocation4], 1
    %41 = vsyncpa %s40, 0
    loop: start=0, step=1, limit=4
    $region2: #{t2t_forward.4} parent=1 // loop_pre_header
      _
    $region3: #{t2t_forward.4} parent=1 // loop_header
      %s43 = sphi 0, %s47
      %p44 = scmp.ge.s32.totalorder %s43, 4
      %s53 = sphi 0, %s55
      %s56 = sphi 0, %s53
      %s57 = sphi 0, %s56
      %s73 = sphi 0, %s57
      %s77 = sphi 0, %s77
      %s79 = sphi 0, %s77
      %s80 = sphi 0, %s79
      %s94 = sphi 0, %s80
      %s98 = sphi 0, %s98
      %s100 = sphi 0, %s98
      %s101 = sphi 0, %s100
      %s115 = sphi 0, %s101
      %s119 = sphi 0, %s119
      %s121 = sphi 0, %s119
      %s122 = sphi 0, %s121
      %s136 = sphi 0, %s122
      %s140 = sphi 0, %s140
      %s142 = sphi 0, %s140
      %s143 = sphi 0, %s142
      %s157 = sphi 0, %s143
      %s161 = sphi 0, %s161
      %s163 = sphi 0, %s161
      %s164 = sphi 0, %s163
      %s178 = sphi 0, %s164
      %s182 = sphi 0, %s182
      %s184 = sphi 0, %s182
      %s185 = sphi 0, %s184
      %s199 = sphi 0, %s185
      %s203 = sphi 0, %s203
      %s205 = sphi 0, %s203
      %s206 = sphi 0, %s205
      %s220 = sphi 0, %s206
      %s224 = sphi 0, %s224
      %s226 = sphi 0, %s224
      %s227 = sphi 0, %s226
      %s241 = sphi 0, %s227
      %s245 = sphi 0, %s245
      %s247 = sphi 0, %s245
      %s248 = sphi 0, %s247
      %s262 = sphi 0, %s248
      %s266 = sphi 0, %s266
      %s268 = sphi 0, %s266
      %s269 = sphi 0, %s268
      %s283 = sphi 0, %s269
      %s287 = sphi 0, %s287
      %s289 = sphi 0, %s287
      %s290 = sphi 0, %s289
      %s304 = sphi 0, %s290
      %s308 = sphi 0, %s308
      %s310 = sphi 0, %s308
      %s311 = sphi 0, %s310
      %s325 = sphi 0, %s311
      %s329 = sphi 0, %s329
      %s331 = sphi 0, %s329
      %s332 = sphi 0, %s331
      %s346 = sphi 0, %s332
      %s350 = sphi 0, %s350
      %s352 = sphi 0, %s350
      %s353 = sphi 0, %s352
      %s367 = sphi 0, %s353
      %s371 = sphi 0, %s371
      %s373 = sphi 0, %s371
      %s374 = sphi 0, %s373
      %s388 = sphi 0, %s374
      %s392 = sphi 0, %s392
      %s394 = sphi 0, %s392
      %s395 = sphi 0, %s394
      %s409 = sphi 0, %s395
      %s413 = sphi 0, %s413
      %s415 = sphi 0, %s413
      %s416 = sphi 0, %s415
      %s430 = sphi 0, %s416
      %s434 = sphi 0, %s434
      %s436 = sphi 0, %s434
      %s437 = sphi 0, %s436
      %s451 = sphi 0, %s437
      %s455 = sphi 0, %s455
      %s457 = sphi 0, %s455
      %s458 = sphi 0, %s457
      %s472 = sphi 0, %s458
      %s476 = sphi 0, %s476
      %s478 = sphi 0, %s476
      %s479 = sphi 0, %s478
      %s493 = sphi 0, %s479
      %s499 = sphi 0, %s501
      %s502 = sphi 0, %s499
      %s503 = sphi 0, %s502
      %s519 = sphi 0, %s503
    $region4: #{t2t_forward.4} parent=1 // loop_header_branch
      %46 = sbr.rel (%p44) target = $region8
    $region5: #{t2t_forward.4} parent=1 // loop_body
      %s48 = ssub.s32 %s43, 1
      %s49 = ssub.s32 %s43, 2
      %s50 = sadd.s32 %s43, 1
      %s51 = ssub.s32 %s43, %s50
      %p52 = scmp.eq.s32.totalorder %s51, 0
      %s54 = sadd.s32 %s53, 1
      %s55 = scalar_select %p52, %s53, %s54
      %p58 = pneg %p52
      %p59 = scmp.eq.s32.totalorder %s43, 1
      %p60 = por %p58, %p59
      %p61 = scmp.ne.s32.totalorder %s53, %s56
      %p62 = scmp.eq.s32.totalorder %s43, 0
      %p63 = por %p61, %p62
      %p64 = scmp.ne.s32.totalorder %s53, %s56
      %p65 = scmp.eq.s32.totalorder %s48, 1
      %p66 = por %p64, %p65
      %p67 = scmp.ne.s32.totalorder %s56, %s57
      %p68 = scmp.eq.s32.totalorder %s48, 0
      %p69 = por %p67, %p68
      %p70 = scmp.ne.s32.totalorder %s56, %s57
      %p71 = scmp.eq.s32.totalorder %s49, 1
      %p72 = por %p70, %p71
      %p74 = scmp.ne.s32.totalorder %s57, %s73
      %p75 = scmp.eq.s32.totalorder %s49, 0
      %p76 = por %p74, %p75
      %s78 = sadd.s32 %s77, 1
      %p81 = scmp.eq.s32.totalorder %s43, 1
      %p82 = scmp.ne.s32.totalorder %s77, %s79
      %p83 = scmp.eq.s32.totalorder %s43, 0
      %p84 = por %p82, %p83
      %p85 = scmp.ne.s32.totalorder %s77, %s79
      %p86 = scmp.eq.s32.totalorder %s48, 1
      %p87 = por %p85, %p86
      %p88 = scmp.ne.s32.totalorder %s79, %s80
      %p89 = scmp.eq.s32.totalorder %s48, 0
      %p90 = por %p88, %p89
      %p91 = scmp.ne.s32.totalorder %s79, %s80
      %p92 = scmp.eq.s32.totalorder %s49, 1
      %p93 = por %p91, %p92
      %p95 = scmp.ne.s32.totalorder %s80, %s94
      %p96 = scmp.eq.s32.totalorder %s49, 0
      %p97 = por %p95, %p96
      %s99 = sadd.s32 %s98, 1
      %p102 = scmp.eq.s32.totalorder %s43, 1
      %p103 = scmp.ne.s32.totalorder %s98, %s100
      %p104 = scmp.eq.s32.totalorder %s43, 0
      %p105 = por %p103, %p104
      %p106 = scmp.ne.s32.totalorder %s98, %s100
      %p107 = scmp.eq.s32.totalorder %s48, 1
      %p108 = por %p106, %p107
      %p109 = scmp.ne.s32.totalorder %s100, %s101
      %p110 = scmp.eq.s32.totalorder %s48, 0
      %p111 = por %p109, %p110
      %p112 = scmp.ne.s32.totalorder %s100, %s101
      %p113 = scmp.eq.s32.totalorder %s49, 1
      %p114 = por %p112, %p113
      %p116 = scmp.ne.s32.totalorder %s101, %s115
      %p117 = scmp.eq.s32.totalorder %s49, 0
      %p118 = por %p116, %p117
      %s120 = sadd.s32 %s119, 1
      %p123 = scmp.eq.s32.totalorder %s43, 1
      %p124 = scmp.ne.s32.totalorder %s119, %s121
      %p125 = scmp.eq.s32.totalorder %s43, 0
      %p126 = por %p124, %p125
      %p127 = scmp.ne.s32.totalorder %s119, %s121
      %p128 = scmp.eq.s32.totalorder %s48, 1
      %p129 = por %p127, %p128
      %p130 = scmp.ne.s32.totalorder %s121, %s122
      %p131 = scmp.eq.s32.totalorder %s48, 0
      %p132 = por %p130, %p131
      %p133 = scmp.ne.s32.totalorder %s121, %s122
      %p134 = scmp.eq.s32.totalorder %s49, 1
      %p135 = por %p133, %p134
      %p137 = scmp.ne.s32.totalorder %s122, %s136
      %p138 = scmp.eq.s32.totalorder %s49, 0
      %p139 = por %p137, %p138
      %s141 = sadd.s32 %s140, 1
      %p144 = scmp.eq.s32.totalorder %s43, 1
      %p145 = scmp.ne.s32.totalorder %s140, %s142
      %p146 = scmp.eq.s32.totalorder %s43, 0
      %p147 = por %p145, %p146
      %p148 = scmp.ne.s32.totalorder %s140, %s142
      %p149 = scmp.eq.s32.totalorder %s48, 1
      %p150 = por %p148, %p149
      %p151 = scmp.ne.s32.totalorder %s142, %s143
      %p152 = scmp.eq.s32.totalorder %s48, 0
      %p153 = por %p151, %p152
      %p154 = scmp.ne.s32.totalorder %s142, %s143
      %p155 = scmp.eq.s32.totalorder %s49, 1
      %p156 = por %p154, %p155
      %p158 = scmp.ne.s32.totalorder %s143, %s157
      %p159 = scmp.eq.s32.totalorder %s49, 0
      %p160 = por %p158, %p159
      %s162 = sadd.s32 %s161, 1
      %p165 = scmp.eq.s32.totalorder %s43, 1
      %p166 = scmp.ne.s32.totalorder %s161, %s163
      %p167 = scmp.eq.s32.totalorder %s43, 0
      %p168 = por %p166, %p167
      %p169 = scmp.ne.s32.totalorder %s161, %s163
      %p170 = scmp.eq.s32.totalorder %s48, 1
      %p171 = por %p169, %p170
      %p172 = scmp.ne.s32.totalorder %s163, %s164
      %p173 = scmp.eq.s32.totalorder %s48, 0
      %p174 = por %p172, %p173
      %p175 = scmp.ne.s32.totalorder %s163, %s164
      %p176 = scmp.eq.s32.totalorder %s49, 1
      %p177 = por %p175, %p176
      %p179 = scmp.ne.s32.totalorder %s164, %s178
      %p180 = scmp.eq.s32.totalorder %s49, 0
      %p181 = por %p179, %p180
      %s183 = sadd.s32 %s182, 1
      %p186 = scmp.eq.s32.totalorder %s43, 1
      %p187 = scmp.ne.s32.totalorder %s182, %s184
      %p188 = scmp.eq.s32.totalorder %s43, 0
      %p189 = por %p187, %p188
      %p190 = scmp.ne.s32.totalorder %s182, %s184
      %p191 = scmp.eq.s32.totalorder %s48, 1
      %p192 = por %p190, %p191
      %p193 = scmp.ne.s32.totalorder %s184, %s185
      %p194 = scmp.eq.s32.totalorder %s48, 0
      %p195 = por %p193, %p194
      %p196 = scmp.ne.s32.totalorder %s184, %s185
      %p197 = scmp.eq.s32.totalorder %s49, 1
      %p198 = por %p196, %p197
      %p200 = scmp.ne.s32.totalorder %s185, %s199
      %p201 = scmp.eq.s32.totalorder %s49, 0
      %p202 = por %p200, %p201
      %s204 = sadd.s32 %s203, 1
      %p207 = scmp.eq.s32.totalorder %s43, 1
      %p208 = scmp.ne.s32.totalorder %s203, %s205
      %p209 = scmp.eq.s32.totalorder %s43, 0
      %p210 = por %p208, %p209
      %p211 = scmp.ne.s32.totalorder %s203, %s205
      %p212 = scmp.eq.s32.totalorder %s48, 1
      %p213 = por %p211, %p212
      %p214 = scmp.ne.s32.totalorder %s205, %s206
      %p215 = scmp.eq.s32.totalorder %s48, 0
      %p216 = por %p214, %p215
      %p217 = scmp.ne.s32.totalorder %s205, %s206
      %p218 = scmp.eq.s32.totalorder %s49, 1
      %p219 = por %p217, %p218
      %p221 = scmp.ne.s32.totalorder %s206, %s220
      %p222 = scmp.eq.s32.totalorder %s49, 0
      %p223 = por %p221, %p222
      %s225 = sadd.s32 %s224, 1
      %p228 = scmp.eq.s32.totalorder %s43, 1
      %p229 = scmp.ne.s32.totalorder %s224, %s226
      %p230 = scmp.eq.s32.totalorder %s43, 0
      %p231 = por %p229, %p230
      %p232 = scmp.ne.s32.totalorder %s224, %s226
      %p233 = scmp.eq.s32.totalorder %s48, 1
      %p234 = por %p232, %p233
      %p235 = scmp.ne.s32.totalorder %s226, %s227
      %p236 = scmp.eq.s32.totalorder %s48, 0
      %p237 = por %p235, %p236
      %p238 = scmp.ne.s32.totalorder %s226, %s227
      %p239 = scmp.eq.s32.totalorder %s49, 1
      %p240 = por %p238, %p239
      %p242 = scmp.ne.s32.totalorder %s227, %s241
      %p243 = scmp.eq.s32.totalorder %s49, 0
      %p244 = por %p242, %p243
      %s246 = sadd.s32 %s245, 1
      %p249 = scmp.eq.s32.totalorder %s43, 1
      %p250 = scmp.ne.s32.totalorder %s245, %s247
      %p251 = scmp.eq.s32.totalorder %s43, 0
      %p252 = por %p250, %p251
      %p253 = scmp.ne.s32.totalorder %s245, %s247
      %p254 = scmp.eq.s32.totalorder %s48, 1
      %p255 = por %p253, %p254
      %p256 = scmp.ne.s32.totalorder %s247, %s248
      %p257 = scmp.eq.s32.totalorder %s48, 0
      %p258 = por %p256, %p257
      %p259 = scmp.ne.s32.totalorder %s247, %s248
      %p260 = scmp.eq.s32.totalorder %s49, 1
      %p261 = por %p259, %p260
      %p263 = scmp.ne.s32.totalorder %s248, %s262
      %p264 = scmp.eq.s32.totalorder %s49, 0
      %p265 = por %p263, %p264
      %s267 = sadd.s32 %s266, 1
      %p270 = scmp.eq.s32.totalorder %s43, 1
      %p271 = scmp.ne.s32.totalorder %s266, %s268
      %p272 = scmp.eq.s32.totalorder %s43, 0
      %p273 = por %p271, %p272
      %p274 = scmp.ne.s32.totalorder %s266, %s268
      %p275 = scmp.eq.s32.totalorder %s48, 1
      %p276 = por %p274, %p275
      %p277 = scmp.ne.s32.totalorder %s268, %s269
      %p278 = scmp.eq.s32.totalorder %s48, 0
      %p279 = por %p277, %p278
      %p280 = scmp.ne.s32.totalorder %s268, %s269
      %p281 = scmp.eq.s32.totalorder %s49, 1
      %p282 = por %p280, %p281
      %p284 = scmp.ne.s32.totalorder %s269, %s283
      %p285 = scmp.eq.s32.totalorder %s49, 0
      %p286 = por %p284, %p285
      %s288 = sadd.s32 %s287, 1
      %p291 = scmp.eq.s32.totalorder %s43, 1
      %p292 = scmp.ne.s32.totalorder %s287, %s289
      %p293 = scmp.eq.s32.totalorder %s43, 0
      %p294 = por %p292, %p293
      %p295 = scmp.ne.s32.totalorder %s287, %s289
      %p296 = scmp.eq.s32.totalorder %s48, 1
      %p297 = por %p295, %p296
      %p298 = scmp.ne.s32.totalorder %s289, %s290
      %p299 = scmp.eq.s32.totalorder %s48, 0
      %p300 = por %p298, %p299
      %p301 = scmp.ne.s32.totalorder %s289, %s290
      %p302 = scmp.eq.s32.totalorder %s49, 1
      %p303 = por %p301, %p302
      %p305 = scmp.ne.s32.totalorder %s290, %s304
      %p306 = scmp.eq.s32.totalorder %s49, 0
      %p307 = por %p305, %p306
      %s309 = sadd.s32 %s308, 1
      %p312 = scmp.eq.s32.totalorder %s43, 1
      %p313 = scmp.ne.s32.totalorder %s308, %s310
      %p314 = scmp.eq.s32.totalorder %s43, 0
      %p315 = por %p313, %p314
      %p316 = scmp.ne.s32.totalorder %s308, %s310
      %p317 = scmp.eq.s32.totalorder %s48, 1
      %p318 = por %p316, %p317
      %p319 = scmp.ne.s32.totalorder %s310, %s311
      %p320 = scmp.eq.s32.totalorder %s48, 0
      %p321 = por %p319, %p320
      %p322 = scmp.ne.s32.totalorder %s310, %s311
      %p323 = scmp.eq.s32.totalorder %s49, 1
      %p324 = por %p322, %p323
      %p326 = scmp.ne.s32.totalorder %s311, %s325
      %p327 = scmp.eq.s32.totalorder %s49, 0
      %p328 = por %p326, %p327
      %s330 = sadd.s32 %s329, 1
      %p333 = scmp.eq.s32.totalorder %s43, 1
      %p334 = scmp.ne.s32.totalorder %s329, %s331
      %p335 = scmp.eq.s32.totalorder %s43, 0
      %p336 = por %p334, %p335
      %p337 = scmp.ne.s32.totalorder %s329, %s331
      %p338 = scmp.eq.s32.totalorder %s48, 1
      %p339 = por %p337, %p338
      %p340 = scmp.ne.s32.totalorder %s331, %s332
      %p341 = scmp.eq.s32.totalorder %s48, 0
      %p342 = por %p340, %p341
      %p343 = scmp.ne.s32.totalorder %s331, %s332
      %p344 = scmp.eq.s32.totalorder %s49, 1
      %p345 = por %p343, %p344
      %p347 = scmp.ne.s32.totalorder %s332, %s346
      %p348 = scmp.eq.s32.totalorder %s49, 0
      %p349 = por %p347, %p348
      %s351 = sadd.s32 %s350, 1
      %p354 = scmp.eq.s32.totalorder %s43, 1
      %p355 = scmp.ne.s32.totalorder %s350, %s352
      %p356 = scmp.eq.s32.totalorder %s43, 0
      %p357 = por %p355, %p356
      %p358 = scmp.ne.s32.totalorder %s350, %s352
      %p359 = scmp.eq.s32.totalorder %s48, 1
      %p360 = por %p358, %p359
      %p361 = scmp.ne.s32.totalorder %s352, %s353
      %p362 = scmp.eq.s32.totalorder %s48, 0
      %p363 = por %p361, %p362
      %p364 = scmp.ne.s32.totalorder %s352, %s353
      %p365 = scmp.eq.s32.totalorder %s49, 1
      %p366 = por %p364, %p365
      %p368 = scmp.ne.s32.totalorder %s353, %s367
      %p369 = scmp.eq.s32.totalorder %s49, 0
      %p370 = por %p368, %p369
      %s372 = sadd.s32 %s371, 1
      %p375 = scmp.eq.s32.totalorder %s43, 1
      %p376 = scmp.ne.s32.totalorder %s371, %s373
      %p377 = scmp.eq.s32.totalorder %s43, 0
      %p378 = por %p376, %p377
      %p379 = scmp.ne.s32.totalorder %s371, %s373
      %p380 = scmp.eq.s32.totalorder %s48, 1
      %p381 = por %p379, %p380
      %p382 = scmp.ne.s32.totalorder %s373, %s374
      %p383 = scmp.eq.s32.totalorder %s48, 0
      %p384 = por %p382, %p383
      %p385 = scmp.ne.s32.totalorder %s373, %s374
      %p386 = scmp.eq.s32.totalorder %s49, 1
      %p387 = por %p385, %p386
      %p389 = scmp.ne.s32.totalorder %s374, %s388
      %p390 = scmp.eq.s32.totalorder %s49, 0
      %p391 = por %p389, %p390
      %s393 = sadd.s32 %s392, 1
      %p396 = scmp.eq.s32.totalorder %s43, 1
      %p397 = scmp.ne.s32.totalorder %s392, %s394
      %p398 = scmp.eq.s32.totalorder %s43, 0
      %p399 = por %p397, %p398
      %p400 = scmp.ne.s32.totalorder %s392, %s394
      %p401 = scmp.eq.s32.totalorder %s48, 1
      %p402 = por %p400, %p401
      %p403 = scmp.ne.s32.totalorder %s394, %s395
      %p404 = scmp.eq.s32.totalorder %s48, 0
      %p405 = por %p403, %p404
      %p406 = scmp.ne.s32.totalorder %s394, %s395
      %p407 = scmp.eq.s32.totalorder %s49, 1
      %p408 = por %p406, %p407
      %p410 = scmp.ne.s32.totalorder %s395, %s409
      %p411 = scmp.eq.s32.totalorder %s49, 0
      %p412 = por %p410, %p411
      %s414 = sadd.s32 %s413, 1
      %p417 = scmp.eq.s32.totalorder %s43, 1
      %p418 = scmp.ne.s32.totalorder %s413, %s415
      %p419 = scmp.eq.s32.totalorder %s43, 0
      %p420 = por %p418, %p419
      %p421 = scmp.ne.s32.totalorder %s413, %s415
      %p422 = scmp.eq.s32.totalorder %s48, 1
      %p423 = por %p421, %p422
      %p424 = scmp.ne.s32.totalorder %s415, %s416
      %p425 = scmp.eq.s32.totalorder %s48, 0
      %p426 = por %p424, %p425
      %p427 = scmp.ne.s32.totalorder %s415, %s416
      %p428 = scmp.eq.s32.totalorder %s49, 1
      %p429 = por %p427, %p428
      %p431 = scmp.ne.s32.totalorder %s416, %s430
      %p432 = scmp.eq.s32.totalorder %s49, 0
      %p433 = por %p431, %p432
      %s435 = sadd.s32 %s434, 1
      %p438 = scmp.eq.s32.totalorder %s43, 1
      %p439 = scmp.ne.s32.totalorder %s434, %s436
      %p440 = scmp.eq.s32.totalorder %s43, 0
      %p441 = por %p439, %p440
      %p442 = scmp.ne.s32.totalorder %s434, %s436
      %p443 = scmp.eq.s32.totalorder %s48, 1
      %p444 = por %p442, %p443
      %p445 = scmp.ne.s32.totalorder %s436, %s437
      %p446 = scmp.eq.s32.totalorder %s48, 0
      %p447 = por %p445, %p446
      %p448 = scmp.ne.s32.totalorder %s436, %s437
      %p449 = scmp.eq.s32.totalorder %s49, 1
      %p450 = por %p448, %p449
      %p452 = scmp.ne.s32.totalorder %s437, %s451
      %p453 = scmp.eq.s32.totalorder %s49, 0
      %p454 = por %p452, %p453
      %s456 = sadd.s32 %s455, 1
      %p459 = scmp.eq.s32.totalorder %s43, 1
      %p460 = scmp.ne.s32.totalorder %s455, %s457
      %p461 = scmp.eq.s32.totalorder %s43, 0
      %p462 = por %p460, %p461
      %p463 = scmp.ne.s32.totalorder %s455, %s457
      %p464 = scmp.eq.s32.totalorder %s48, 1
      %p465 = por %p463, %p464
      %p466 = scmp.ne.s32.totalorder %s457, %s458
      %p467 = scmp.eq.s32.totalorder %s48, 0
      %p468 = por %p466, %p467
      %p469 = scmp.ne.s32.totalorder %s457, %s458
      %p470 = scmp.eq.s32.totalorder %s49, 1
      %p471 = por %p469, %p470
      %p473 = scmp.ne.s32.totalorder %s458, %s472
      %p474 = scmp.eq.s32.totalorder %s49, 0
      %p475 = por %p473, %p474
      %s477 = sadd.s32 %s476, 1
      %p480 = scmp.eq.s32.totalorder %s43, 1
      %p481 = scmp.ne.s32.totalorder %s476, %s478
      %p482 = scmp.eq.s32.totalorder %s43, 0
      %p483 = por %p481, %p482
      %p484 = scmp.ne.s32.totalorder %s476, %s478
      %p485 = scmp.eq.s32.totalorder %s48, 1
      %p486 = por %p484, %p485
      %p487 = scmp.ne.s32.totalorder %s478, %s479
      %p488 = scmp.eq.s32.totalorder %s48, 0
      %p489 = por %p487, %p488
      %p490 = scmp.ne.s32.totalorder %s478, %s479
      %p491 = scmp.eq.s32.totalorder %s49, 1
      %p492 = por %p490, %p491
      %p494 = scmp.ne.s32.totalorder %s479, %s493
      %p495 = scmp.eq.s32.totalorder %s49, 0
      %p496 = por %p494, %p495
      %s497 = ssub.s32 %s43, %s50
      %p498 = scmp.eq.s32.totalorder %s497, 0
      %s500 = sadd.s32 %s499, 1
      %s501 = scalar_select %p498, %s499, %s500
      %p504 = pneg %p498
      %p505 = scmp.eq.s32.totalorder %s43, 1
      %p506 = por %p504, %p505
      %p507 = scmp.ne.s32.totalorder %s499, %s502
      %p508 = scmp.eq.s32.totalorder %s43, 0
      %p509 = por %p507, %p508
      %p510 = scmp.ne.s32.totalorder %s499, %s502
      %p511 = scmp.eq.s32.totalorder %s48, 1
      %p512 = por %p510, %p511
      %p513 = scmp.ne.s32.totalorder %s502, %s503
      %p514 = scmp.eq.s32.totalorder %s48, 0
      %p515 = por %p513, %p514
      %p516 = scmp.ne.s32.totalorder %s502, %s503
      %p517 = scmp.eq.s32.totalorder %s49, 1
      %p518 = por %p516, %p517
      %p520 = scmp.ne.s32.totalorder %s503, %s519
      %p521 = scmp.eq.s32.totalorder %s49, 0
      %p522 = por %p520, %p521
      %p523 = scmp.le.s32.totalorder 1, %s43
      %p524 = scmp.lt.s32.totalorder %s43, 3
      %p525 = pnand %p523, %p524
      %p526 = pneg %p525
      // Predicated region
      $region9: #{t2t_forward.4} parent=5 // pred_check
        _
      $region10: #{t2t_forward.4} parent=5 // pred_check_branch
        %528 = sbr.rel (%p525) target = $region12
      $region11: #{t2t_forward.4} parent=5 // pred_region
        %s529 = ssub.s32 %s43, 1
        // Predicated region
        $region13: #{t2t_forward.4} parent=11 // pred_check
          %p530 = pneg %p90
        $region14: #{t2t_forward.4} parent=11 // pred_check_branch
          %532 = sbr.rel (%p530) target = $region16
        $region15: #{t2t_forward.4} parent=11 // pred_region
          %s534 = ssub.s32 32, 32
          %535 = vsyncadd [#allocation6], %s534
          %s537 = sshll.u32 [#allocation5], 4
          %s538 = int_to_ptr.vmem [resolvable:$true] %s537
          %540 = dma.hbm_to_vmem [thread:$0]  %s1, 32, %s538, [#allocation6]
        $region16: #{t2t_forward.4} parent=11 // pred_fallthru
          _
        // Predicated region
        $region17: #{t2t_forward.4} parent=11 // pred_check
          %p541 = pneg %p111
        $region18: #{t2t_forward.4} parent=11 // pred_check_branch
          %543 = sbr.rel (%p541) target = $region20
        $region19: #{t2t_forward.4} parent=11 // pred_region
          %s545 = ssub.s32 32, 32
          %546 = vsyncadd [#allocation6], %s545
          %s548 = sshll.u32 [#allocation7], 4
          %s549 = int_to_ptr.vmem [resolvable:$true] %s548
          %551 = dma.hbm_to_vmem [thread:$0]  %s2, 32, %s549, [#allocation6]
        $region20: #{t2t_forward.4} parent=11 // pred_fallthru
          _
        // Predicated region
        $region21: #{t2t_forward.4} parent=11 // pred_check
          %p552 = pneg %p132
        $region22: #{t2t_forward.4} parent=11 // pred_check_branch
          %554 = sbr.rel (%p552) target = $region24
        $region23: #{t2t_forward.4} parent=11 // pred_region
          %s556 = ssub.s32 1152, 1152
          %557 = vsyncadd [#allocation9], %s556
          %s558 = sshll.u32 [#allocation8], 4
          %s559 = int_to_ptr.vmem [resolvable:$true] %s558
          %564 = dma.hbm_to_vmem [thread:$0]  %s3, 1152, %s559, [#allocation9], 64, 64, 4
        $region24: #{t2t_forward.4} parent=11 // pred_fallthru
          _
        // Predicated region
        $region25: #{t2t_forward.4} parent=11 // pred_check
          %p565 = pneg %p153
        $region26: #{t2t_forward.4} parent=11 // pred_check_branch
          %567 = sbr.rel (%p565) target = $region28
        $region27: #{t2t_forward.4} parent=11 // pred_region
          %s569 = ssub.s32 16, 16
          %570 = vsyncadd [#allocation9], %s569
          %s572 = sshll.u32 [#allocation10], 4
          %s573 = int_to_ptr.vmem [resolvable:$true] %s572
          %575 = dma.hbm_to_vmem [thread:$0]  %s4, 16, %s573, [#allocation9]
        $region28: #{t2t_forward.4} parent=11 // pred_fallthru
          _
        // Predicated region
        $region29: #{t2t_forward.4} parent=11 // pred_check
          %p576 = pneg %p174
        $region30: #{t2t_forward.4} parent=11 // pred_check_branch
          %578 = sbr.rel (%p576) target = $region32
        $region31: #{t2t_forward.4} parent=11 // pred_region
          %s580 = ssub.s32 256, 256
          %581 = vsyncadd [#allocation12], %s580
          %s582 = sshll.u32 [#allocation11], 4
          %s583 = int_to_ptr.vmem [resolvable:$true] %s582
          %588 = dma.hbm_to_vmem [thread:$0]  %s5, 256, %s583, [#allocation12], 128, 128, 8
        $region32: #{t2t_forward.4} parent=11 // pred_fallthru
          _
        // Predicated region
        $region33: #{t2t_forward.4} parent=11 // pred_check
          %p589 = pneg %p195
        $region34: #{t2t_forward.4} parent=11 // pred_check_branch
          %591 = sbr.rel (%p589) target = $region36
        $region35: #{t2t_forward.4} parent=11 // pred_region
          %s593 = ssub.s32 128, 128
          %594 = vsyncadd [#allocation12], %s593
          %s595 = sshll.u32 [#allocation13], 4
          %s596 = int_to_ptr.vmem [resolvable:$true] %s595
          %601 = dma.hbm_to_vmem [thread:$0]  %s6, 128, %s596, [#allocation12], 64, 64, 4
        $region36: #{t2t_forward.4} parent=11 // pred_fallthru
          _
        // Predicated region
        $region37: #{t2t_forward.4} parent=11 // pred_check
          %p602 = pneg %p216
        $region38: #{t2t_forward.4} parent=11 // pred_check_branch
          %604 = sbr.rel (%p602) target = $region40
        $region39: #{t2t_forward.4} parent=11 // pred_region
          %s606 = ssub.s32 16, 16
          %607 = vsyncadd [#allocation15], %s606
          %s609 = sshll.u32 [#allocation14], 4
          %s610 = int_to_ptr.vmem [resolvable:$true] %s609
          %612 = dma.hbm_to_vmem [thread:$0]  %s7, 16, %s610, [#allocation15]
        $region40: #{t2t_forward.4} parent=11 // pred_fallthru
          _
        // Predicated region
        $region41: #{t2t_forward.4} parent=11 // pred_check
          %p613 = pneg %p237
        $region42: #{t2t_forward.4} parent=11 // pred_check_branch
          %615 = sbr.rel (%p613) target = $region44
        $region43: #{t2t_forward.4} parent=11 // pred_region
          %s617 = ssub.s32 128, 128
          %618 = vsyncadd [#allocation15], %s617
          %s619 = sshll.u32 [#allocation16], 4
          %s620 = int_to_ptr.vmem [resolvable:$true] %s619
          %625 = dma.hbm_to_vmem [thread:$0]  %s8, 128, %s620, [#allocation15], 64, 64, 4
        $region44: #{t2t_forward.4} parent=11 // pred_fallthru
          _
        // Predicated region
        $region45: #{t2t_forward.4} parent=11 // pred_check
          %p626 = pneg %p258
        $region46: #{t2t_forward.4} parent=11 // pred_check_branch
          %628 = sbr.rel (%p626) target = $region48
        $region47: #{t2t_forward.4} parent=11 // pred_region
          %s630 = ssub.s32 16, 16
          %631 = vsyncadd [#allocation18], %s630
          %s633 = sshll.u32 [#allocation17], 4
          %s634 = int_to_ptr.vmem [resolvable:$true] %s633
          %636 = dma.hbm_to_vmem [thread:$0]  %s9, 16, %s634, [#allocation18]
        $region48: #{t2t_forward.4} parent=11 // pred_fallthru
          _
        // Predicated region
        $region49: #{t2t_forward.4} parent=11 // pred_check
          %p637 = pneg %p279
        $region50: #{t2t_forward.4} parent=11 // pred_check_branch
          %639 = sbr.rel (%p637) target = $region52
        $region51: #{t2t_forward.4} parent=11 // pred_region
          %s641 = ssub.s32 16, 16
          %642 = vsyncadd [#allocation18], %s641
          %s644 = sshll.u32 [#allocation19], 4
          %s645 = int_to_ptr.vmem [resolvable:$true] %s644
          %647 = dma.hbm_to_vmem [thread:$0]  %s10, 16, %s645, [#allocation18]
        $region52: #{t2t_forward.4} parent=11 // pred_fallthru
          _
        // Predicated region
        $region53: #{t2t_forward.4} parent=11 // pred_check
          %p648 = pneg %p300
        $region54: #{t2t_forward.4} parent=11 // pred_check_branch
          %650 = sbr.rel (%p648) target = $region56
        $region55: #{t2t_forward.4} parent=11 // pred_region
          %s652 = ssub.s32 256, 256
          %653 = vsyncadd [#allocation21], %s652
          %s654 = sshll.u32 [#allocation20], 4
          %s655 = int_to_ptr.vmem [resolvable:$true] %s654
          %660 = dma.hbm_to_vmem [thread:$0]  %s11, 256, %s655, [#allocation21], 128, 128, 8
        $region56: #{t2t_forward.4} parent=11 // pred_fallthru
          _
        // Predicated region
        $region57: #{t2t_forward.4} parent=11 // pred_check
          %p661 = pneg %p321
        $region58: #{t2t_forward.4} parent=11 // pred_check_branch
          %663 = sbr.rel (%p661) target = $region60
        $region59: #{t2t_forward.4} parent=11 // pred_region
          %s665 = ssub.s32 16, 16
          %666 = vsyncadd [#allocation21], %s665
          %s668 = sshll.u32 [#allocation22], 4
          %s669 = int_to_ptr.vmem [resolvable:$true] %s668
          %671 = dma.hbm_to_vmem [thread:$0]  %s12, 16, %s669, [#allocation21]
        $region60: #{t2t_forward.4} parent=11 // pred_fallthru
          _
        // Predicated region
        $region61: #{t2t_forward.4} parent=11 // pred_check
          %p672 = pneg %p342
        $region62: #{t2t_forward.4} parent=11 // pred_check_branch
          %674 = sbr.rel (%p672) target = $region64
        $region63: #{t2t_forward.4} parent=11 // pred_region
          %s676 = ssub.s32 16, 16
          %677 = vsyncadd [#allocation24], %s676
          %s679 = sshll.u32 [#allocation23], 4
          %s680 = int_to_ptr.vmem [resolvable:$true] %s679
          %682 = dma.hbm_to_vmem [thread:$0]  %s13, 16, %s680, [#allocation24]
        $region64: #{t2t_forward.4} parent=11 // pred_fallthru
          _
        // Predicated region
        $region65: #{t2t_forward.4} parent=11 // pred_check
          %p683 = pneg %p363
        $region66: #{t2t_forward.4} parent=11 // pred_check_branch
          %685 = sbr.rel (%p683) target = $region68
        $region67: #{t2t_forward.4} parent=11 // pred_region
          %s687 = ssub.s32 256, 256
          %688 = vsyncadd [#allocation24], %s687
          %s689 = sshll.u32 [#allocation25], 4
          %s690 = int_to_ptr.vmem [resolvable:$true] %s689
          %695 = dma.hbm_to_vmem [thread:$0]  %s14, 256, %s690, [#allocation24], 128, 128, 8
        $region68: #{t2t_forward.4} parent=11 // pred_fallthru
          _
        // Predicated region
        $region69: #{t2t_forward.4} parent=11 // pred_check
          %p696 = pneg %p384
        $region70: #{t2t_forward.4} parent=11 // pred_check_branch
          %698 = sbr.rel (%p696) target = $region72
        $region71: #{t2t_forward.4} parent=11 // pred_region
          %s700 = ssub.s32 16, 16
          %701 = vsyncadd [#allocation27], %s700
          %s703 = sshll.u32 [#allocation26], 4
          %s704 = int_to_ptr.vmem [resolvable:$true] %s703
          %706 = dma.hbm_to_vmem [thread:$0]  %s15, 16, %s704, [#allocation27]
        $region72: #{t2t_forward.4} parent=11 // pred_fallthru
          _
        // Predicated region
        $region73: #{t2t_forward.4} parent=11 // pred_check
          %p707 = pneg %p405
        $region74: #{t2t_forward.4} parent=11 // pred_check_branch
          %709 = sbr.rel (%p707) target = $region76
        $region75: #{t2t_forward.4} parent=11 // pred_region
          %s711 = ssub.s32 64, 64
          %712 = vsyncadd [#allocation27], %s711
          %s714 = sshll.u32 [#allocation28], 4
          %s715 = int_to_ptr.vmem [resolvable:$true] %s714
          %717 = dma.hbm_to_vmem [thread:$0]  %s16, 64, %s715, [#allocation27]
        $region76: #{t2t_forward.4} parent=11 // pred_fallthru
          _
        // Predicated region
        $region77: #{t2t_forward.4} parent=11 // pred_check
          %p718 = pneg %p426
        $region78: #{t2t_forward.4} parent=11 // pred_check_branch
          %720 = sbr.rel (%p718) target = $region80
        $region79: #{t2t_forward.4} parent=11 // pred_region
          %s722 = ssub.s32 16, 16
          %723 = vsyncadd [#allocation30], %s722
          %s725 = sshll.u32 [#allocation29], 4
          %s726 = int_to_ptr.vmem [resolvable:$true] %s725
          %728 = dma.hbm_to_vmem [thread:$0]  %s17, 16, %s726, [#allocation30]
        $region80: #{t2t_forward.4} parent=11 // pred_fallthru
          _
        // Predicated region
        $region81: #{t2t_forward.4} parent=11 // pred_check
          %p729 = pneg %p447
        $region82: #{t2t_forward.4} parent=11 // pred_check_branch
          %731 = sbr.rel (%p729) target = $region84
        $region83: #{t2t_forward.4} parent=11 // pred_region
          %s733 = ssub.s32 128, 128
          %734 = vsyncadd [#allocation30], %s733
          %s735 = sshll.u32 [#allocation31], 4
          %s736 = int_to_ptr.vmem [resolvable:$true] %s735
          %741 = dma.hbm_to_vmem [thread:$0]  %s18, 128, %s736, [#allocation30], 64, 64, 4
        $region84: #{t2t_forward.4} parent=11 // pred_fallthru
          _
        // Predicated region
        $region85: #{t2t_forward.4} parent=11 // pred_check
          %p742 = pneg %p468
        $region86: #{t2t_forward.4} parent=11 // pred_check_branch
          %744 = sbr.rel (%p742) target = $region88
        $region87: #{t2t_forward.4} parent=11 // pred_region
          %s746 = ssub.s32 16, 16
          %747 = vsyncadd [#allocation33], %s746
          %s749 = sshll.u32 [#allocation32], 4
          %s750 = int_to_ptr.vmem [resolvable:$true] %s749
          %752 = dma.hbm_to_vmem [thread:$0]  %s19, 16, %s750, [#allocation33]
        $region88: #{t2t_forward.4} parent=11 // pred_fallthru
          _
        // Predicated region
        $region89: #{t2t_forward.4} parent=11 // pred_check
          %p753 = pneg %p489
        $region90: #{t2t_forward.4} parent=11 // pred_check_branch
          %755 = sbr.rel (%p753) target = $region92
        $region91: #{t2t_forward.4} parent=11 // pred_region
          %s757 = ssub.s32 16, 16
          %758 = vsyncadd [#allocation33], %s757
          %s760 = sshll.u32 [#allocation34], 4
          %s761 = int_to_ptr.vmem [resolvable:$true] %s760
          %763 = dma.hbm_to_vmem [thread:$0]  %s20, 16, %s761, [#allocation33]
        $region92: #{t2t_forward.4} parent=11 // pred_fallthru
          _
      $region12: #{t2t_forward.4} parent=5 // pred_fallthru
        _
      %p764 = scmp.lt.s32.totalorder %s43, 2
      // Predicated region
      $region93: #{t2t_forward.4} parent=5 // pred_check
        %p765 = pneg %p764
      $region94: #{t2t_forward.4} parent=5 // pred_check_branch
        %767 = sbr.rel (%p765) target = $region96
      $region95: #{t2t_forward.4} parent=5 // pred_region
        // Predicated region
        $region97: #{t2t_forward.4} parent=95 // pred_check
          %p768 = pneg %p63
        $region98: #{t2t_forward.4} parent=95 // pred_check_branch
          %770 = sbr.rel (%p768) target = $region100
        $region99: #{t2t_forward.4} parent=95 // pred_region
          %s771 = sand.u32 %s53, 1
          %s772 = scalar_lea.sflag [#allocation3], %s771
          %s773 = sand.u32 %s53, 1
          %s774 = smul.addr %s773, 32
          %s775 = scalar_lea.vmem [#allocation2], %s774
          %s777 = ssub.s32 512, 512
          %778 = vsyncadd %s772, %s777
          %s779 = smul.addr %s43, 4
          %s780 = smul.addr %s779, 128
          %s781 = scalar_lea.hbm %s0, %s780
          %s782 = sshll.u32 %s775, 4
          %s783 = int_to_ptr.vmem [resolvable:$true] %s782
          %788 = dma.hbm_to_vmem [thread:$0]  %s781, 512, %s783, %s772, 256, 256, 16
        $region100: #{t2t_forward.4} parent=95 // pred_fallthru
          _
      $region96: #{t2t_forward.4} parent=5 // pred_fallthru
        _
      %p789 = scmp.le.s32.totalorder 1, %s43
      %p790 = scmp.lt.s32.totalorder %s43, 3
      %p791 = pnand %p789, %p790
      %p792 = pneg %p791
      // Predicated region
      $region101: #{t2t_forward.4} parent=5 // pred_check
        _
      $region102: #{t2t_forward.4} parent=5 // pred_check_branch
        %794 = sbr.rel (%p791) target = $region104
      $region103: #{t2t_forward.4} parent=5 // pred_region
        %s795 = ssub.s32 %s43, 1
        %s796 = sand.u32 %s56, 1
        %s797 = scalar_lea.sflag [#allocation3], %s796
        %s798 = sand.u32 %s56, 1
        %s799 = smul.addr %s798, 32
        %s800 = scalar_lea.vmem [#allocation2], %s799
        // Predicated region
        $region105: #{t2t_forward.4} parent=103 // pred_check
          %p801 = pneg %p69
        $region106: #{t2t_forward.4} parent=103 // pred_check_branch
          %803 = sbr.rel (%p801) target = $region108
        $region107: #{t2t_forward.4} parent=103 // pred_region
          %804 = dma.done %s797, 512
        $region108: #{t2t_forward.4} parent=103 // pred_fallthru
          _
        // Predicated region
        $region109: #{t2t_forward.4} parent=103 // pred_check
          %p805 = pneg %p90
        $region110: #{t2t_forward.4} parent=103 // pred_check_branch
          %807 = sbr.rel (%p805) target = $region112
        $region111: #{t2t_forward.4} parent=103 // pred_region
          %808 = dma.done [#allocation6], 32
        $region112: #{t2t_forward.4} parent=103 // pred_fallthru
          _
        // Predicated region
        $region113: #{t2t_forward.4} parent=103 // pred_check
          %p809 = pneg %p111
        $region114: #{t2t_forward.4} parent=103 // pred_check_branch
          %811 = sbr.rel (%p809) target = $region116
        $region115: #{t2t_forward.4} parent=103 // pred_region
          %812 = dma.done [#allocation6], 32
        $region116: #{t2t_forward.4} parent=103 // pred_fallthru
          _
        // Predicated region
        $region117: #{t2t_forward.4} parent=103 // pred_check
          %p813 = pneg %p132
        $region118: #{t2t_forward.4} parent=103 // pred_check_branch
          %815 = sbr.rel (%p813) target = $region120
        $region119: #{t2t_forward.4} parent=103 // pred_region
          %816 = dma.done [#allocation9], 1152
        $region120: #{t2t_forward.4} parent=103 // pred_fallthru
          _
        // Predicated region
        $region121: #{t2t_forward.4} parent=103 // pred_check
          %p817 = pneg %p153
        $region122: #{t2t_forward.4} parent=103 // pred_check_branch
          %819 = sbr.rel (%p817) target = $region124
        $region123: #{t2t_forward.4} parent=103 // pred_region
          %820 = dma.done [#allocation9], 16
        $region124: #{t2t_forward.4} parent=103 // pred_fallthru
          _
        // Predicated region
        $region125: #{t2t_forward.4} parent=103 // pred_check
          %p821 = pneg %p174
        $region126: #{t2t_forward.4} parent=103 // pred_check_branch
          %823 = sbr.rel (%p821) target = $region128
        $region127: #{t2t_forward.4} parent=103 // pred_region
          %824 = dma.done [#allocation12], 256
        $region128: #{t2t_forward.4} parent=103 // pred_fallthru
          _
        // Predicated region
        $region129: #{t2t_forward.4} parent=103 // pred_check
          %p825 = pneg %p195
        $region130: #{t2t_forward.4} parent=103 // pred_check_branch
          %827 = sbr.rel (%p825) target = $region132
        $region131: #{t2t_forward.4} parent=103 // pred_region
          %828 = dma.done [#allocation12], 128
        $region132: #{t2t_forward.4} parent=103 // pred_fallthru
          _
        // Predicated region
        $region133: #{t2t_forward.4} parent=103 // pred_check
          %p829 = pneg %p216
        $region134: #{t2t_forward.4} parent=103 // pred_check_branch
          %831 = sbr.rel (%p829) target = $region136
        $region135: #{t2t_forward.4} parent=103 // pred_region
          %832 = dma.done [#allocation15], 16
        $region136: #{t2t_forward.4} parent=103 // pred_fallthru
          _
        // Predicated region
        $region137: #{t2t_forward.4} parent=103 // pred_check
          %p833 = pneg %p237
        $region138: #{t2t_forward.4} parent=103 // pred_check_branch
          %835 = sbr.rel (%p833) target = $region140
        $region139: #{t2t_forward.4} parent=103 // pred_region
          %836 = dma.done [#allocation15], 128
        $region140: #{t2t_forward.4} parent=103 // pred_fallthru
          _
        // Predicated region
        $region141: #{t2t_forward.4} parent=103 // pred_check
          %p837 = pneg %p258
        $region142: #{t2t_forward.4} parent=103 // pred_check_branch
          %839 = sbr.rel (%p837) target = $region144
        $region143: #{t2t_forward.4} parent=103 // pred_region
          %840 = dma.done [#allocation18], 16
        $region144: #{t2t_forward.4} parent=103 // pred_fallthru
          _
        // Predicated region
        $region145: #{t2t_forward.4} parent=103 // pred_check
          %p841 = pneg %p279
        $region146: #{t2t_forward.4} parent=103 // pred_check_branch
          %843 = sbr.rel (%p841) target = $region148
        $region147: #{t2t_forward.4} parent=103 // pred_region
          %844 = dma.done [#allocation18], 16
        $region148: #{t2t_forward.4} parent=103 // pred_fallthru
          _
        // Predicated region
        $region149: #{t2t_forward.4} parent=103 // pred_check
          %p845 = pneg %p300
        $region150: #{t2t_forward.4} parent=103 // pred_check_branch
          %847 = sbr.rel (%p845) target = $region152
        $region151: #{t2t_forward.4} parent=103 // pred_region
          %848 = dma.done [#allocation21], 256
        $region152: #{t2t_forward.4} parent=103 // pred_fallthru
          _
        // Predicated region
        $region153: #{t2t_forward.4} parent=103 // pred_check
          %p849 = pneg %p321
        $region154: #{t2t_forward.4} parent=103 // pred_check_branch
          %851 = sbr.rel (%p849) target = $region156
        $region155: #{t2t_forward.4} parent=103 // pred_region
          %852 = dma.done [#allocation21], 16
        $region156: #{t2t_forward.4} parent=103 // pred_fallthru
          _
        // Predicated region
        $region157: #{t2t_forward.4} parent=103 // pred_check
          %p853 = pneg %p342
        $region158: #{t2t_forward.4} parent=103 // pred_check_branch
          %855 = sbr.rel (%p853) target = $region160
        $region159: #{t2t_forward.4} parent=103 // pred_region
          %856 = dma.done [#allocation24], 16
        $region160: #{t2t_forward.4} parent=103 // pred_fallthru
          _
        // Predicated region
        $region161: #{t2t_forward.4} parent=103 // pred_check
          %p857 = pneg %p363
        $region162: #{t2t_forward.4} parent=103 // pred_check_branch
          %859 = sbr.rel (%p857) target = $region164
        $region163: #{t2t_forward.4} parent=103 // pred_region
          %860 = dma.done [#allocation24], 256
        $region164: #{t2t_forward.4} parent=103 // pred_fallthru
          _
        // Predicated region
        $region165: #{t2t_forward.4} parent=103 // pred_check
          %p861 = pneg %p384
        $region166: #{t2t_forward.4} parent=103 // pred_check_branch
          %863 = sbr.rel (%p861) target = $region168
        $region167: #{t2t_forward.4} parent=103 // pred_region
          %864 = dma.done [#allocation27], 16
        $region168: #{t2t_forward.4} parent=103 // pred_fallthru
          _
        // Predicated region
        $region169: #{t2t_forward.4} parent=103 // pred_check
          %p865 = pneg %p405
        $region170: #{t2t_forward.4} parent=103 // pred_check_branch
          %867 = sbr.rel (%p865) target = $region172
        $region171: #{t2t_forward.4} parent=103 // pred_region
          %868 = dma.done [#allocation27], 64
        $region172: #{t2t_forward.4} parent=103 // pred_fallthru
          _
        // Predicated region
        $region173: #{t2t_forward.4} parent=103 // pred_check
          %p869 = pneg %p426
        $region174: #{t2t_forward.4} parent=103 // pred_check_branch
          %871 = sbr.rel (%p869) target = $region176
        $region175: #{t2t_forward.4} parent=103 // pred_region
          %872 = dma.done [#allocation30], 16
        $region176: #{t2t_forward.4} parent=103 // pred_fallthru
          _
        // Predicated region
        $region177: #{t2t_forward.4} parent=103 // pred_check
          %p873 = pneg %p447
        $region178: #{t2t_forward.4} parent=103 // pred_check_branch
          %875 = sbr.rel (%p873) target = $region180
        $region179: #{t2t_forward.4} parent=103 // pred_region
          %876 = dma.done [#allocation30], 128
        $region180: #{t2t_forward.4} parent=103 // pred_fallthru
          _
        // Predicated region
        $region181: #{t2t_forward.4} parent=103 // pred_check
          %p877 = pneg %p468
        $region182: #{t2t_forward.4} parent=103 // pred_check_branch
          %879 = sbr.rel (%p877) target = $region184
        $region183: #{t2t_forward.4} parent=103 // pred_region
          %880 = dma.done [#allocation33], 16
        $region184: #{t2t_forward.4} parent=103 // pred_fallthru
          _
        // Predicated region
        $region185: #{t2t_forward.4} parent=103 // pred_check
          %p881 = pneg %p489
        $region186: #{t2t_forward.4} parent=103 // pred_check_branch
          %883 = sbr.rel (%p881) target = $region188
        $region187: #{t2t_forward.4} parent=103 // pred_region
          %884 = dma.done [#allocation33], 16
        $region188: #{t2t_forward.4} parent=103 // pred_fallthru
          _
        %s885 = sand.u32 %s56, 1
        %s886 = scalar_lea.sflag [#allocation3], %s885
        %s887 = sand.u32 %s56, 1
        %s888 = smul.addr %s887, 32
        %s889 = scalar_lea.vmem [#allocation2], %s888
        %p890 = pneg %p69
        %p891 = pneg %p66
        %p892 = pneg %p90
        %p893 = pneg %p87
        %p894 = pneg %p111
        %p895 = pneg %p108
        %p896 = pneg %p132
        %p897 = pneg %p129
        %p898 = pneg %p153
        %p899 = pneg %p150
        %p900 = pneg %p174
        %p901 = pneg %p171
        %p902 = pneg %p195
        %p903 = pneg %p192
        %p904 = pneg %p216
        %p905 = pneg %p213
        %p906 = pneg %p237
        %p907 = pneg %p234
        %p908 = pneg %p258
        %p909 = pneg %p255
        %p910 = pneg %p279
        %p911 = pneg %p276
        %p912 = pneg %p300
        %p913 = pneg %p297
        %p914 = pneg %p321
        %p915 = pneg %p318
        %p916 = pneg %p342
        %p917 = pneg %p339
        %p918 = pneg %p363
        %p919 = pneg %p360
        %p920 = pneg %p384
        %p921 = pneg %p381
        %p922 = pneg %p405
        %p923 = pneg %p402
        %p924 = pneg %p426
        %p925 = pneg %p423
        %p926 = pneg %p447
        %p927 = pneg %p444
        %p928 = pneg %p468
        %p929 = pneg %p465
        %p930 = pneg %p489
        %p931 = pneg %p486
        %p932 = pneg %p515
        %p933 = pneg %p512
        %s934 = sand.u32 %s502, 1
        %s935 = scalar_lea.sflag [#allocation4], %s934
        %s936 = sand.u32 %s502, 1
        %s937 = smul.addr %s936, 16
        %s938 = scalar_lea.vmem [#allocation35], %s937
        %v940 = vld [vmem:[%s800] sm:$0xff]
        %v941 = vld [vmem:[%s800 + $0x8] sm:$0xff]
        %v942 = vld [vmem:[%s800 + $0x10] sm:$0xff]
        %v943 = vld [vmem:[%s800 + $0x18] sm:$0xff]
        %vm944 = vcmask 130048
        %v945 = vsel %vm944, %v941, 0.0
        %v946 = vadd.f32 %v940, %v945
        %947 = vadd.xlane.f32.xlu0 %v946
        %v948 = vpop.xlane.xlu0 %947
        %v949 = vsel %vm944, %v943, 0.0
        %v950 = vadd.f32 %v942, %v949
        %951 = vadd.xlane.f32.xlu0 %v950
        %v952 = vpop.xlane.xlu0 %951
        %v953 = vrcp.pop 144.0
        %v954 = vmul.f32 %v948, %v953
        %v955 = vmul.f32 %v952, %v953
        %v956 = vsub.f32 %v940, %v954
        %v957 = vsub.f32 %v941, %v954
        %v958 = vsub.f32 %v942, %v955
        %v959 = vsub.f32 %v943, %v955
        %v960 = vmul.f32 %v956, %v956
        %v961 = vmul.f32 %v957, %v957
        %v962 = vmul.f32 %v958, %v958
        %v963 = vmul.f32 %v959, %v959
        %v964 = vsel %vm944, %v961, 0.0
        %v965 = vadd.f32 %v960, %v964
        %966 = vadd.xlane.f32.xlu0 %v965
        %v967 = vpop.xlane.xlu0 %966
        %v968 = vsel %vm944, %v963, 0.0
        %v969 = vadd.f32 %v962, %v968
        %970 = vadd.xlane.f32.xlu0 %v969
        %v971 = vpop.xlane.xlu0 %970
        %v972 = vmul.f32 %v967, %v953
        %v973 = vmul.f32 %v971, %v953
        %v974 = vadd.f32 %v972, 1e-05
        %v975 = vadd.f32 %v973, 1e-05
        %v976 = vrsqrt.pop %v974
        %v977 = vrsqrt.pop %v975
        %v978 = vmul.f32 %v956, %v976
        %v979 = vmul.f32 %v957, %v976
        %v980 = vmul.f32 %v958, %v977
        %v981 = vmul.f32 %v959, %v977
        %v982 = vld [vmem:[#allocation5] sm:$0x3]
        %v984 = vlaneseq
        %v985 = vshrl.u32 %v984, 7
        %v986 = vsub.s32 0, %v985
        %v987 = vrot.slane %v982, %v986
        %v988 = vlaneseq
        %v989 = vshrl.u32 %v988, 7
        %v990 = vsub.s32 1, %v989
        %v991 = vrot.slane %v982, %v990
        %v994 = vmul.f32 %v978, %v987
        %v995 = vmul.f32 %v979, %v991
        %v996 = vmul.f32 %v980, %v987
        %v997 = vmul.f32 %v981, %v991
        %v998 = vld [vmem:[#allocation7] sm:$0x3]
        %v1000 = vlaneseq
        %v1001 = vshrl.u32 %v1000, 7
        %v1002 = vsub.s32 0, %v1001
        %v1003 = vrot.slane %v998, %v1002
        %v1004 = vlaneseq
        %v1005 = vshrl.u32 %v1004, 7
        %v1006 = vsub.s32 1, %v1005
        %v1007 = vrot.slane %v998, %v1006
        %v1010 = vadd.f32 %v994, %v1003
        %v1011 = vadd.f32 %v995, %v1007
        %v1012 = vadd.f32 %v996, %v1003
        %v1013 = vadd.f32 %v997, %v1007
        %v1014 = vpack.c.bf16 %v1012, %v1010
        %v1015 = vpack.c.bf16 %v1013, %v1011
        %v1016 = vld [vmem:[#allocation8] sm:$0xf]
        %v1017 = vld [vmem:[#allocation8 + $0x4] sm:$0xf]
        %v1018 = vld [vmem:[#allocation8 + $0x8] sm:$0xf]
        %v1019 = vld [vmem:[#allocation8 + $0xc] sm:$0xf]
        %v1020 = vld [vmem:[#allocation8 + $0x10] sm:$0xf]
        %v1021 = vld [vmem:[#allocation8 + $0x14] sm:$0xf]
        %v1022 = vld [vmem:[#allocation8 + $0x18] sm:$0xf]
        %v1023 = vld [vmem:[#allocation8 + $0x1c] sm:$0xf]
        %v1024 = vld [vmem:[#allocation8 + $0x20] sm:$0xf]
        %v1025 = vld [vmem:[#allocation8 + $0x24] sm:$0xf]
        %v1026 = vld [vmem:[#allocation8 + $0x28] sm:$0xf]
        %v1027 = vld [vmem:[#allocation8 + $0x2c] sm:$0xf]
        %v1028 = vld [vmem:[#allocation8 + $0x30] sm:$0xf]
        %v1029 = vld [vmem:[#allocation8 + $0x34] sm:$0xf]
        %v1030 = vld [vmem:[#allocation8 + $0x38] sm:$0xf]
        %v1031 = vld [vmem:[#allocation8 + $0x3c] sm:$0xf]
        %v1032 = vld [vmem:[#allocation8 + $0x40] sm:$0xf]
        %v1033 = vld [vmem:[#allocation8 + $0x44] sm:$0xf]
        %v1034 = vld [vmem:[#allocation10] sm:$0x1]
        %v1036 = vlaneseq
        %v1037 = vshrl.u32 %v1036, 7
        %v1038 = vsub.s32 0, %v1037
        %v1039 = vrot.slane %v1034, %v1038
        %v1059 = vunpack.c.l.b16 %v1016
        %v1060 = vunpack.c.l.b16 %v1017
        %v1061 = vunpack.c.l.b16 %v1018
        %v1062 = vunpack.c.l.b16 %v1019
        %v1063 = vunpack.c.l.b16 %v1020
        %v1064 = vunpack.c.l.b16 %v1021
        %v1065 = vunpack.c.l.b16 %v1022
        %v1066 = vunpack.c.l.b16 %v1023
        %v1067 = vunpack.c.l.b16 %v1024
        %v1068 = vunpack.c.l.b16 %v1025
        %v1069 = vunpack.c.l.b16 %v1026
        %v1070 = vunpack.c.l.b16 %v1027
        %v1071 = vunpack.c.l.b16 %v1028
        %v1072 = vunpack.c.l.b16 %v1029
        %v1073 = vunpack.c.l.b16 %v1030
        %v1074 = vunpack.c.l.b16 %v1031
        %v1075 = vunpack.c.l.b16 %v1032
        %v1076 = vunpack.c.l.b16 %v1033
        %v1077 = vpack.c.b16 %v1060, %v1059
        %v1078 = vpack.c.b16 %v1062, %v1061
        %v1079 = vpack.c.b16 %v1064, %v1063
        %v1080 = vpack.c.b16 %v1066, %v1065
        %v1081 = vpack.c.b16 %v1068, %v1067
        %v1082 = vpack.c.b16 %v1070, %v1069
        %v1083 = vpack.c.b16 %v1072, %v1071
        %v1084 = vpack.c.b16 %v1074, %v1073
        %v1085 = vpack.c.b16 %v1076, %v1075
        %v1096 = vsel %vm944, %v1015, 0
        %1098 = vmatprep.subr.bf16.mxu0 0
        %1099 = vmatpush1.bf16.msra.mxu0 %v1077
        %1100 = vmatprep.subr.bf16.mxu0 0
        %1101 = vmatpush1.bf16.msra.mxu0 %v1078
        %1102 = vmatprep.subr.bf16.mxu0 0
        %1103 = vmatpush1.bf16.msra.mxu0 %v1079
        %1104 = vmatprep.subr.bf16.mxu0 0
        %1105 = vmatpush1.bf16.msra.mxu0 %v1080
        %1106 = vmatprep.subr.bf16.mxu0 0
        %1107 = vmatpush1.bf16.msra.mxu0 %v1081
        %1108 = vmatprep.subr.bf16.mxu0 0
        %1109 = vmatpush1.bf16.msra.mxu0 %v1082
        %1110 = vmatprep.subr.bf16.mxu0 0
        %1111 = vmatpush1.bf16.msra.mxu0 %v1083
        %1112 = vmatprep.subr.bf16.mxu0 0
        %1113 = vmatpush1.bf16.msra.mxu0 %v1084
        %1114 = vmatprep.subr.bf16.mxu0 0
        %1115 = vmatpush1.bf16.msra.mxu0 %v1085
        %1116 = vmatprep.subr.bf16.mxu0 0
        %1117 = vmatpush1.bf16.msra.mxu0 0
        %1118 = vmatprep.subr.bf16.mxu0 0
        %1119 = vmatpush1.bf16.msra.mxu0 0
        %1120 = vmatprep.subr.bf16.mxu0 0
        %1121 = vmatpush1.bf16.msra.mxu0 0
        %1122 = vmatprep.subr.bf16.mxu0 0
        %1123 = vmatpush1.bf16.msra.mxu0 0
        %1124 = vmatprep.subr.bf16.mxu0 0
        %1125 = vmatpush1.bf16.msra.mxu0 0
        %1126 = vmatprep.subr.bf16.mxu0 0
        %1127 = vmatpush1.bf16.msra.mxu0 0
        %1128 = vmatprep.subr.bf16.mxu0 0
        %1129 = vmatpush1.bf16.msra.mxu0 0
        %1130 = vmatprep.mubr.bf16.mxu0 %v1096
        %1131 = vmatmul.mubr.bf16.gmra.mrb[0].mxu0 %v1014
        %v1132 = vpop.f32.mrb[0].mxu0
        %v1133 = vadd.f32 %v1039, %v1132
        %v1134 = vpop.f32.mrb[0].mxu0
        %v1135 = vpop.f32.mrb[0].mxu0
        %v1136 = vadd.f32 %v1039, %v1135
        %v1137 = vpop.f32.mrb[0].mxu0
        %1138 = vdwg.mxu0
        %v1139 = vmul.f32 %v1133, %v1133
        %v1140 = vmul.f32 %v1136, %v1136
        %v1141 = vsel %vm944, %v1139, 0.0
        %1142 = vadd.xlane.f32.xlu0 %v1141
        %v1143 = vpop.xlane.xlu0 %1142
        %v1144 = vsel %vm944, %v1140, 0.0
        %1145 = vadd.xlane.f32.xlu0 %v1144
        %v1146 = vpop.xlane.xlu0 %1145
        %v1147 = vmul.f32 %v1143, 0.5
        %v1148 = vmul.f32 %v1146, 0.5
        %v1149 = vld [vmem:[#allocation11] sm:$0xff]
        %v1150 = vld [vmem:[#allocation11 + $0x8] sm:$0xff]
        %v1152 = vsel %vm944, %v1133, 0
        %v1155 = vsel %vm944, %v1136, 0
        %1157 = vmatprep.subr.mxu0 0.0
        %1158 = vmatpush1.msra.mxu0 %v1149
        %1159 = vmatprep.subr.mxu0 0.0
        %1160 = vmatpush1.msra.mxu0 %v1150
        %1161 = vmatprep.subr.mxu0 0.0
        %1162 = vmatpush1.msra.mxu0 0.0
        %1163 = vmatprep.subr.mxu0 0.0
        %1164 = vmatpush1.msra.mxu0 0.0
        %1165 = vmatprep.subr.mxu0 0.0
        %1166 = vmatpush1.msra.mxu0 0.0
        %1167 = vmatprep.subr.mxu0 0.0
        %1168 = vmatpush1.msra.mxu0 0.0
        %1169 = vmatprep.subr.mxu0 0.0
        %1170 = vmatpush1.msra.mxu0 0.0
        %1171 = vmatprep.subr.mxu0 0.0
        %1172 = vmatpush1.msra.mxu0 0.0
        %1173 = vmatprep.subr.mxu0 0.0
        %1174 = vmatpush1.msra.mxu0 0.0
        %1175 = vmatprep.subr.mxu0 0.0
        %1176 = vmatpush1.msra.mxu0 0.0
        %1177 = vmatprep.subr.mxu0 0.0
        %1178 = vmatpush1.msra.mxu0 0.0
        %1179 = vmatprep.subr.mxu0 0.0
        %1180 = vmatpush1.msra.mxu0 0.0
        %1181 = vmatprep.subr.mxu0 0.0
        %1182 = vmatpush1.msra.mxu0 0.0
        %1183 = vmatprep.subr.mxu0 0.0
        %1184 = vmatpush1.msra.mxu0 0.0
        %1185 = vmatprep.subr.mxu0 0.0
        %1186 = vmatpush1.msra.mxu0 0.0
        %1187 = vmatprep.subr.mxu0 0.0
        %1188 = vmatpush1.msra.mxu0 0.0
        %1189 = vmatprep.subr.mxu0 0.0
        %1190 = vmatpush1.msra.mxu0 0.0
        %1191 = vmatprep.subr.mxu0 0.0
        %1192 = vmatpush1.msra.mxu0 0.0
        %1193 = vmatprep.subr.mxu0 0.0
        %1194 = vmatpush1.msra.mxu0 0.0
        %1195 = vmatprep.subr.mxu0 0.0
        %1196 = vmatpush1.msra.mxu0 0.0
        %1197 = vmatprep.subr.mxu0 0.0
        %1198 = vmatpush1.msra.mxu0 0.0
        %1199 = vmatprep.subr.mxu0 0.0
        %1200 = vmatpush1.msra.mxu0 0.0
        %1201 = vmatprep.subr.mxu0 0.0
        %1202 = vmatpush1.msra.mxu0 0.0
        %1203 = vmatprep.subr.mxu0 0.0
        %1204 = vmatpush1.msra.mxu0 0.0
        %1205 = vmatprep.subr.mxu0 0.0
        %1206 = vmatpush1.msra.mxu0 0.0
        %1207 = vmatprep.subr.mxu0 0.0
        %1208 = vmatpush1.msra.mxu0 0.0
        %1209 = vmatprep.subr.mxu0 0.0
        %1210 = vmatpush1.msra.mxu0 0.0
        %1211 = vmatprep.subr.mxu0 0.0
        %1212 = vmatpush1.msra.mxu0 0.0
        %1213 = vmatprep.subr.mxu0 0.0
        %1214 = vmatpush1.msra.mxu0 0.0
        %1215 = vmatprep.subr.mxu0 0.0
        %1216 = vmatpush1.msra.mxu0 0.0
        %1217 = vmatprep.subr.mxu0 0.0
        %1218 = vmatpush1.msra.mxu0 0.0
        %1219 = vmatprep.subr.mxu0 0.0
        %1220 = vmatpush1.msra.mxu0 0.0
        %1221 = vmatprep.mubr.f32.mxu0 0.0
        %1222 = vmatmul.mubr.f32.gmra.mrb[0].mxu0 %v1152
        %v1223 = vpop.f32.mrb[0].mxu0
        %v1224 = vadd.f32 0.0, %v1223
        %v1225 = vpop.f32.mrb[0].mxu0
        %1226 = vmatprep.mubr.f32.mxu0 0.0
        %1227 = vmatmul.mubr.f32.gmra.mrb[0].mxu0 %v1155
        %v1228 = vpop.f32.mrb[0].mxu0
        %v1229 = vadd.f32 0.0, %v1228
        %v1230 = vpop.f32.mrb[0].mxu0
        %1231 = vdwg.mxu0
        %v1232 = vsub.f32 %v1224, %v1147
        %v1233 = vsub.f32 %v1229, %v1148
        %v1234 = vmul.f32 %v1232, 1.442695
        %v1235 = vpow.pop %v1234
        %v1236 = vmul.f32 %v1233, 1.442695
        %v1237 = vpow.pop %v1236
        %v1238 = vmul.f32 %v1235, 0.35355338
        %v1239 = vmul.f32 %v1237, 0.35355338
        %1242 = vrot.lane.b32.xlu0 %v1139, 112
        %v1243 = vpop.permute.xlu0 %1242
        %1244 = vrot.lane.b32.xlu0 %v1140, 112
        %v1245 = vpop.permute.xlu0 %1244
        %v1248 = vsel %vm944, %v1243, 0.0
        %1249 = vadd.xlane.f32.xlu0 %v1248
        %v1250 = vpop.xlane.xlu0 %1249
        %v1251 = vsel %vm944, %v1245, 0.0
        %1252 = vadd.xlane.f32.xlu0 %v1251
        %v1253 = vpop.xlane.xlu0 %1252
        %v1254 = vmul.f32 %v1250, 0.5
        %v1255 = vmul.f32 %v1253, 0.5
        %1256 = vrot.lane.b32.xlu0 %v1133, 112
        %v1257 = vpop.permute.xlu0 %1256
        %1258 = vrot.lane.b32.xlu0 %v1136, 112
        %v1259 = vpop.permute.xlu0 %1258
        %v1260 = vsel %vm944, %v1257, 0
        %v1262 = vsel %vm944, %v1259, 0
        %1264 = vmatprep.subr.mxu0 0.0
        %1265 = vmatpush1.msra.mxu0 %v1149
        %1266 = vmatprep.subr.mxu0 0.0
        %1267 = vmatpush1.msra.mxu0 %v1150
        %1268 = vmatprep.subr.mxu0 0.0
        %1269 = vmatpush1.msra.mxu0 0.0
        %1270 = vmatprep.subr.mxu0 0.0
        %1271 = vmatpush1.msra.mxu0 0.0
        %1272 = vmatprep.subr.mxu0 0.0
        %1273 = vmatpush1.msra.mxu0 0.0
        %1274 = vmatprep.subr.mxu0 0.0
        %1275 = vmatpush1.msra.mxu0 0.0
        %1276 = vmatprep.subr.mxu0 0.0
        %1277 = vmatpush1.msra.mxu0 0.0
        %1278 = vmatprep.subr.mxu0 0.0
        %1279 = vmatpush1.msra.mxu0 0.0
        %1280 = vmatprep.subr.mxu0 0.0
        %1281 = vmatpush1.msra.mxu0 0.0
        %1282 = vmatprep.subr.mxu0 0.0
        %1283 = vmatpush1.msra.mxu0 0.0
        %1284 = vmatprep.subr.mxu0 0.0
        %1285 = vmatpush1.msra.mxu0 0.0
        %1286 = vmatprep.subr.mxu0 0.0
        %1287 = vmatpush1.msra.mxu0 0.0
        %1288 = vmatprep.subr.mxu0 0.0
        %1289 = vmatpush1.msra.mxu0 0.0
        %1290 = vmatprep.subr.mxu0 0.0
        %1291 = vmatpush1.msra.mxu0 0.0
        %1292 = vmatprep.subr.mxu0 0.0
        %1293 = vmatpush1.msra.mxu0 0.0
        %1294 = vmatprep.subr.mxu0 0.0
        %1295 = vmatpush1.msra.mxu0 0.0
        %1296 = vmatprep.subr.mxu0 0.0
        %1297 = vmatpush1.msra.mxu0 0.0
        %1298 = vmatprep.subr.mxu0 0.0
        %1299 = vmatpush1.msra.mxu0 0.0
        %1300 = vmatprep.subr.mxu0 0.0
        %1301 = vmatpush1.msra.mxu0 0.0
        %1302 = vmatprep.subr.mxu0 0.0
        %1303 = vmatpush1.msra.mxu0 0.0
        %1304 = vmatprep.subr.mxu0 0.0
        %1305 = vmatpush1.msra.mxu0 0.0
        %1306 = vmatprep.subr.mxu0 0.0
        %1307 = vmatpush1.msra.mxu0 0.0
        %1308 = vmatprep.subr.mxu0 0.0
        %1309 = vmatpush1.msra.mxu0 0.0
        %1310 = vmatprep.subr.mxu0 0.0
        %1311 = vmatpush1.msra.mxu0 0.0
        %1312 = vmatprep.subr.mxu0 0.0
        %1313 = vmatpush1.msra.mxu0 0.0
        %1314 = vmatprep.subr.mxu0 0.0
        %1315 = vmatpush1.msra.mxu0 0.0
        %1316 = vmatprep.subr.mxu0 0.0
        %1317 = vmatpush1.msra.mxu0 0.0
        %1318 = vmatprep.subr.mxu0 0.0
        %1319 = vmatpush1.msra.mxu0 0.0
        %1320 = vmatprep.subr.mxu0 0.0
        %1321 = vmatpush1.msra.mxu0 0.0
        %1322 = vmatprep.subr.mxu0 0.0
        %1323 = vmatpush1.msra.mxu0 0.0
        %1324 = vmatprep.subr.mxu0 0.0
        %1325 = vmatpush1.msra.mxu0 0.0
        %1326 = vmatprep.subr.mxu0 0.0
        %1327 = vmatpush1.msra.mxu0 0.0
        %1328 = vmatprep.mubr.f32.mxu0 0.0
        %1329 = vmatmul.mubr.f32.gmra.mrb[0].mxu0 %v1260
        %v1330 = vpop.f32.mrb[0].mxu0
        %v1331 = vadd.f32 0.0, %v1330
        %v1332 = vpop.f32.mrb[0].mxu0
        %1333 = vmatprep.mubr.f32.mxu0 0.0
        %1334 = vmatmul.mubr.f32.gmra.mrb[0].mxu0 %v1262
        %v1335 = vpop.f32.mrb[0].mxu0
        %v1336 = vadd.f32 0.0, %v1335
        %v1337 = vpop.f32.mrb[0].mxu0
        %1338 = vdwg.mxu0
        %v1339 = vsub.f32 %v1331, %v1254
        %v1340 = vsub.f32 %v1336, %v1255
        %v1341 = vmul.f32 %v1339, 1.442695
        %v1342 = vpow.pop %v1341
        %v1343 = vmul.f32 %v1340, 1.442695
        %v1344 = vpow.pop %v1343
        %v1345 = vmul.f32 %v1342, 0.35355338
        %v1346 = vmul.f32 %v1344, 0.35355338
        %vm1347 = vcmask 64512
        %v1348 = vsel %vm1347, %v1238, 0.0
        %v1349 = vsel %vm1347, %v1239, 0.0
        %v1350 = vadd.f32 %v1348, %v1349
        %v1351 = vrot.slane %v1350, 4
        %v1352 = vadd.f32 %v1350, %v1351
        %v1353 = vrot.slane %v1352, 2
        %v1354 = vadd.f32 %v1352, %v1353
        %v1355 = vrot.slane %v1354, 1
        %v1356 = vadd.f32 %v1354, %v1355
        %v1357 = vmul.f32 %v1345, %v1356
        %v1358 = vmul.f32 %v1346, %v1356
        %v1359 = vsel %vm1347, %v1357, 0.0
        %1360 = vadd.xlane.f32.xlu0 %v1359
        %v1361 = vpop.xlane.xlu0 %1360
        %v1362 = vsel %vm1347, %v1358, 0.0
        %1363 = vadd.xlane.f32.xlu0 %v1362
        %v1364 = vpop.xlane.xlu0 %1363
        %1365 = vxpose.xlu0.b32.start [1/16] %v1238, 128
        %1366 = vxpose.xlu0.b32.cont [2/16] %v1239, 128
        %1367 = vxpose.xlu0.b32.cont [3/16] 0.0, 128
        %1368 = vxpose.xlu0.b32.cont [4/16] 0.0, 128
        %1369 = vxpose.xlu0.b32.cont [5/16] 0.0, 128
        %1370 = vxpose.xlu0.b32.cont [6/16] 0.0, 128
        %1371 = vxpose.xlu0.b32.cont [7/16] 0.0, 128
        %1372 = vxpose.xlu0.b32.cont [8/16] 0.0, 128
        %1373 = vxpose.xlu0.b32.cont [9/16] 0.0, 128
        %1374 = vxpose.xlu0.b32.cont [10/16] 0.0, 128
        %1375 = vxpose.xlu0.b32.cont [11/16] 0.0, 128
        %1376 = vxpose.xlu0.b32.cont [12/16] 0.0, 128
        %1377 = vxpose.xlu0.b32.cont [13/16] 0.0, 128
        %1378 = vxpose.xlu0.b32.cont [14/16] 0.0, 128
        %1379 = vxpose.xlu0.b32.cont [15/16] 0.0, 128
        %1380 = vxpose.xlu0.b32.end [16/16] 0.0, 128
        %v1381 = vpop.trf.xlu0
        %v1382 = vpop.trf.xlu0
        %v1383 = vpop.trf.xlu0
        %v1384 = vpop.trf.xlu0
        %v1385 = vpop.trf.xlu0
        %v1386 = vpop.trf.xlu0
        %v1387 = vpop.trf.xlu0
        %v1388 = vpop.trf.xlu0
        %v1389 = vpop.trf.xlu0
        %v1390 = vpop.trf.xlu0
        %v1391 = vpop.trf.xlu0
        %v1392 = vpop.trf.xlu0
        %v1393 = vpop.trf.xlu0
        %v1394 = vpop.trf.xlu0
        %v1395 = vpop.trf.xlu0
        %v1396 = vpop.trf.xlu0
        %1397 = vrot.lane.b32.xlu0 %v1133, 96
        %v1398 = vpop.permute.xlu0 %1397
        %1399 = vrot.lane.b32.xlu0 %v1136, 96
        %v1400 = vpop.permute.xlu0 %1399
        %v1404 = vsel %vm944, %v1381, 0
        %1406 = vmatprep.subr.mxu0 0.0
        %1407 = vmatpush1.msra.mxu0 %v1398
        %1408 = vmatprep.subr.mxu0 0.0
        %1409 = vmatpush1.msra.mxu0 %v1400
        %1410 = vmatprep.subr.mxu0 0.0
        %1411 = vmatpush1.msra.mxu0 0.0
        %1412 = vmatprep.subr.mxu0 0.0
        %1413 = vmatpush1.msra.mxu0 0.0
        %1414 = vmatprep.subr.mxu0 0.0
        %1415 = vmatpush1.msra.mxu0 0.0
        %1416 = vmatprep.subr.mxu0 0.0
        %1417 = vmatpush1.msra.mxu0 0.0
        %1418 = vmatprep.subr.mxu0 0.0
        %1419 = vmatpush1.msra.mxu0 0.0
        %1420 = vmatprep.subr.mxu0 0.0
        %1421 = vmatpush1.msra.mxu0 0.0
        %1422 = vmatprep.subr.mxu0 0.0
        %1423 = vmatpush1.msra.mxu0 0.0
        %1424 = vmatprep.subr.mxu0 0.0
        %1425 = vmatpush1.msra.mxu0 0.0
        %1426 = vmatprep.subr.mxu0 0.0
        %1427 = vmatpush1.msra.mxu0 0.0
        %1428 = vmatprep.subr.mxu0 0.0
        %1429 = vmatpush1.msra.mxu0 0.0
        %1430 = vmatprep.subr.mxu0 0.0
        %1431 = vmatpush1.msra.mxu0 0.0
        %1432 = vmatprep.subr.mxu0 0.0
        %1433 = vmatpush1.msra.mxu0 0.0
        %1434 = vmatprep.subr.mxu0 0.0
        %1435 = vmatpush1.msra.mxu0 0.0
        %1436 = vmatprep.subr.mxu0 0.0
        %1437 = vmatpush1.msra.mxu0 0.0
        %1438 = vmatprep.subr.mxu0 0.0
        %1439 = vmatpush1.msra.mxu0 0.0
        %1440 = vmatprep.subr.mxu0 0.0
        %1441 = vmatpush1.msra.mxu0 0.0
        %1442 = vmatprep.subr.mxu0 0.0
        %1443 = vmatpush1.msra.mxu0 0.0
        %1444 = vmatprep.subr.mxu0 0.0
        %1445 = vmatpush1.msra.mxu0 0.0
        %1446 = vmatprep.subr.mxu0 0.0
        %1447 = vmatpush1.msra.mxu0 0.0
        %1448 = vmatprep.subr.mxu0 0.0
        %1449 = vmatpush1.msra.mxu0 0.0
        %1450 = vmatprep.subr.mxu0 0.0
        %1451 = vmatpush1.msra.mxu0 0.0
        %1452 = vmatprep.subr.mxu0 0.0
        %1453 = vmatpush1.msra.mxu0 0.0
        %1454 = vmatprep.subr.mxu0 0.0
        %1455 = vmatpush1.msra.mxu0 0.0
        %1456 = vmatprep.subr.mxu0 0.0
        %1457 = vmatpush1.msra.mxu0 0.0
        %1458 = vmatprep.subr.mxu0 0.0
        %1459 = vmatpush1.msra.mxu0 0.0
        %1460 = vmatprep.subr.mxu0 0.0
        %1461 = vmatpush1.msra.mxu0 0.0
        %1462 = vmatprep.subr.mxu0 0.0
        %1463 = vmatpush1.msra.mxu0 0.0
        %1464 = vmatprep.subr.mxu0 0.0
        %1465 = vmatpush1.msra.mxu0 0.0
        %1466 = vmatprep.subr.mxu0 0.0
        %1467 = vmatpush1.msra.mxu0 0.0
        %1468 = vmatprep.subr.mxu0 0.0
        %1469 = vmatpush1.msra.mxu0 0.0
        %1470 = vmatprep.mubr.f32.mxu0 0.0
        %1471 = vmatmul.mubr.f32.gmra.mrb[0].mxu0 %v1404
        %v1472 = vpop.f32.mrb[0].mxu0
        %v1473 = vadd.f32 0.0, %v1472
        %v1474 = vpop.f32.mrb[0].mxu0
        %1475 = vdwg.mxu0
        %v1477 = vsel %vm1347, %v1345, 0
        %v1480 = vsel %vm1347, %v1346, 0
        %1482 = vmatprep.subr.mxu0 0.0
        %1483 = vmatpush1.msra.mxu0 %v1473
        %1484 = vmatprep.subr.mxu0 0.0
        %1485 = vmatpush1.msra.mxu0 0.0
        %1486 = vmatprep.subr.mxu0 0.0
        %1487 = vmatpush1.msra.mxu0 0.0
        %1488 = vmatprep.subr.mxu0 0.0
        %1489 = vmatpush1.msra.mxu0 0.0
        %1490 = vmatprep.subr.mxu0 0.0
        %1491 = vmatpush1.msra.mxu0 0.0
        %1492 = vmatprep.subr.mxu0 0.0
        %1493 = vmatpush1.msra.mxu0 0.0
        %1494 = vmatprep.subr.mxu0 0.0
        %1495 = vmatpush1.msra.mxu0 0.0
        %1496 = vmatprep.subr.mxu0 0.0
        %1497 = vmatpush1.msra.mxu0 0.0
        %1498 = vmatprep.subr.mxu0 0.0
        %1499 = vmatpush1.msra.mxu0 0.0
        %1500 = vmatprep.subr.mxu0 0.0
        %1501 = vmatpush1.msra.mxu0 0.0
        %1502 = vmatprep.subr.mxu0 0.0
        %1503 = vmatpush1.msra.mxu0 0.0
        %1504 = vmatprep.subr.mxu0 0.0
        %1505 = vmatpush1.msra.mxu0 0.0
        %1506 = vmatprep.subr.mxu0 0.0
        %1507 = vmatpush1.msra.mxu0 0.0
        %1508 = vmatprep.subr.mxu0 0.0
        %1509 = vmatpush1.msra.mxu0 0.0
        %1510 = vmatprep.subr.mxu0 0.0
        %1511 = vmatpush1.msra.mxu0 0.0
        %1512 = vmatprep.subr.mxu0 0.0
        %1513 = vmatpush1.msra.mxu0 0.0
        %1514 = vmatprep.subr.mxu0 0.0
        %1515 = vmatpush1.msra.mxu0 0.0
        %1516 = vmatprep.subr.mxu0 0.0
        %1517 = vmatpush1.msra.mxu0 0.0
        %1518 = vmatprep.subr.mxu0 0.0
        %1519 = vmatpush1.msra.mxu0 0.0
        %1520 = vmatprep.subr.mxu0 0.0
        %1521 = vmatpush1.msra.mxu0 0.0
        %1522 = vmatprep.subr.mxu0 0.0
        %1523 = vmatpush1.msra.mxu0 0.0
        %1524 = vmatprep.subr.mxu0 0.0
        %1525 = vmatpush1.msra.mxu0 0.0
        %1526 = vmatprep.subr.mxu0 0.0
        %1527 = vmatpush1.msra.mxu0 0.0
        %1528 = vmatprep.subr.mxu0 0.0
        %1529 = vmatpush1.msra.mxu0 0.0
        %1530 = vmatprep.subr.mxu0 0.0
        %1531 = vmatpush1.msra.mxu0 0.0
        %1532 = vmatprep.subr.mxu0 0.0
        %1533 = vmatpush1.msra.mxu0 0.0
        %1534 = vmatprep.subr.mxu0 0.0
        %1535 = vmatpush1.msra.mxu0 0.0
        %1536 = vmatprep.subr.mxu0 0.0
        %1537 = vmatpush1.msra.mxu0 0.0
        %1538 = vmatprep.subr.mxu0 0.0
        %1539 = vmatpush1.msra.mxu0 0.0
        %1540 = vmatprep.subr.mxu0 0.0
        %1541 = vmatpush1.msra.mxu0 0.0
        %1542 = vmatprep.subr.mxu0 0.0
        %1543 = vmatpush1.msra.mxu0 0.0
        %1544 = vmatprep.subr.mxu0 0.0
        %1545 = vmatpush1.msra.mxu0 0.0
        %1546 = vmatprep.mubr.f32.mxu0 0.0
        %1547 = vmatmul.mubr.f32.gmra.mrb[0].mxu0 %v1477
        %v1548 = vpop.f32.mrb[0].mxu0
        %v1549 = vadd.f32 0.0, %v1548
        %v1550 = vpop.f32.mrb[0].mxu0
        %1551 = vmatprep.mubr.f32.mxu0 0.0
        %1552 = vmatmul.mubr.f32.gmra.mrb[0].mxu0 %v1480
        %v1553 = vpop.f32.mrb[0].mxu0
        %v1554 = vadd.f32 0.0, %v1553
        %v1555 = vpop.f32.mrb[0].mxu0
        %1556 = vdwg.mxu0
        %v1557 = vadd.f32 %v1361, 1e-08
        %v1558 = vadd.f32 %v1364, 1e-08
        %v1559 = vrcp.pop %v1557
        %v1560 = vrcp.pop %v1558
        %v1561 = vmul.f32 %v1549, %v1559
        %v1562 = vmul.f32 %v1554, %v1560
        %v1563 = vpack.c.bf16 %v1562, %v1561
        %v1564 = vld [vmem:[#allocation13] sm:$0xf]
        %v1565 = vld [vmem:[#allocation13 + $0x4] sm:$0xf]
        %v1566 = vld [vmem:[#allocation14] sm:$0x1]
        %v1568 = vlaneseq
        %v1569 = vshrl.u32 %v1568, 7
        %v1570 = vsub.s32 0, %v1569
        %v1571 = vrot.slane %v1566, %v1570
        %v1575 = vunpack.c.l.b16 %v1564
        %v1576 = vunpack.c.l.b16 %v1565
        %v1577 = vpack.c.b16 %v1576, %v1575
        %v1580 = vsel %vm944, %v1563, 0
        %1582 = vmatprep.subr.bf16.mxu0 0
        %1583 = vmatpush1.bf16.msra.mxu0 %v1577
        %1584 = vmatprep.subr.bf16.mxu0 0
        %1585 = vmatpush1.bf16.msra.mxu0 0
        %1586 = vmatprep.subr.bf16.mxu0 0
        %1587 = vmatpush1.bf16.msra.mxu0 0
        %1588 = vmatprep.subr.bf16.mxu0 0
        %1589 = vmatpush1.bf16.msra.mxu0 0
        %1590 = vmatprep.subr.bf16.mxu0 0
        %1591 = vmatpush1.bf16.msra.mxu0 0
        %1592 = vmatprep.subr.bf16.mxu0 0
        %1593 = vmatpush1.bf16.msra.mxu0 0
        %1594 = vmatprep.subr.bf16.mxu0 0
        %1595 = vmatpush1.bf16.msra.mxu0 0
        %1596 = vmatprep.subr.bf16.mxu0 0
        %1597 = vmatpush1.bf16.msra.mxu0 0
        %1598 = vmatprep.subr.bf16.mxu0 0
        %1599 = vmatpush1.bf16.msra.mxu0 0
        %1600 = vmatprep.subr.bf16.mxu0 0
        %1601 = vmatpush1.bf16.msra.mxu0 0
        %1602 = vmatprep.subr.bf16.mxu0 0
        %1603 = vmatpush1.bf16.msra.mxu0 0
        %1604 = vmatprep.subr.bf16.mxu0 0
        %1605 = vmatpush1.bf16.msra.mxu0 0
        %1606 = vmatprep.subr.bf16.mxu0 0
        %1607 = vmatpush1.bf16.msra.mxu0 0
        %1608 = vmatprep.subr.bf16.mxu0 0
        %1609 = vmatpush1.bf16.msra.mxu0 0
        %1610 = vmatprep.subr.bf16.mxu0 0
        %1611 = vmatpush1.bf16.msra.mxu0 0
        %1612 = vmatprep.subr.bf16.mxu0 0
        %1613 = vmatpush1.bf16.msra.mxu0 0
        %1614 = vmatprep.mubr.bf16.mxu0 0
        %1615 = vmatmul.mubr.bf16.gmra.mrb[0].mxu0 %v1580
        %v1616 = vpop.f32.mrb[0].mxu0
        %v1617 = vadd.f32 %v1571, %v1616
        %v1618 = vpop.f32.mrb[0].mxu0
        %v1619 = vpop.f32.mrb[0].mxu0
        %v1620 = vadd.f32 %v1571, %v1619
        %v1621 = vpop.f32.mrb[0].mxu0
        %1622 = vdwg.mxu0
        %1625 = vrot.lane.b32.xlu0 %v1617, 32
        %v1626 = vpop.permute.xlu0 %1625
        %1627 = vrot.lane.b32.xlu0 %v1620, 32
        %v1628 = vpop.permute.xlu0 %1627
        %v1631 = vadd.f32 %v1133, %v1626
        %v1632 = vadd.f32 %v1136, %v1628
        %v1633 = vpack.c.bf16 %v1632, %v1631
        %v1634 = vld [vmem:[#allocation16] sm:$0xf]
        %v1635 = vld [vmem:[#allocation16 + $0x4] sm:$0xf]
        %1637 = vrot.lane.b32.xlu0 %v1633, 96
        %v1638 = vpop.permute.xlu0 %1637
        %v1641 = vunpack.c.l.b16 %v1634
        %v1642 = vunpack.c.l.b16 %v1635
        %v1643 = vpack.c.b16 %v1642, %v1641
        %v1646 = vsel %vm944, %v1638, 0
        %1648 = vmatprep.subr.bf16.mxu0 0
        %1649 = vmatpush1.bf16.msra.mxu0 %v1643
        %1650 = vmatprep.subr.bf16.mxu0 0
        %1651 = vmatpush1.bf16.msra.mxu0 0
        %1652 = vmatprep.subr.bf16.mxu0 0
        %1653 = vmatpush1.bf16.msra.mxu0 0
        %1654 = vmatprep.subr.bf16.mxu0 0
        %1655 = vmatpush1.bf16.msra.mxu0 0
        %1656 = vmatprep.subr.bf16.mxu0 0
        %1657 = vmatpush1.bf16.msra.mxu0 0
        %1658 = vmatprep.subr.bf16.mxu0 0
        %1659 = vmatpush1.bf16.msra.mxu0 0
        %1660 = vmatprep.subr.bf16.mxu0 0
        %1661 = vmatpush1.bf16.msra.mxu0 0
        %1662 = vmatprep.subr.bf16.mxu0 0
        %1663 = vmatpush1.bf16.msra.mxu0 0
        %1664 = vmatprep.subr.bf16.mxu0 0
        %1665 = vmatpush1.bf16.msra.mxu0 0
        %1666 = vmatprep.subr.bf16.mxu0 0
        %1667 = vmatpush1.bf16.msra.mxu0 0
        %1668 = vmatprep.subr.bf16.mxu0 0
        %1669 = vmatpush1.bf16.msra.mxu0 0
        %1670 = vmatprep.subr.bf16.mxu0 0
        %1671 = vmatpush1.bf16.msra.mxu0 0
        %1672 = vmatprep.subr.bf16.mxu0 0
        %1673 = vmatpush1.bf16.msra.mxu0 0
        %1674 = vmatprep.subr.bf16.mxu0 0
        %1675 = vmatpush1.bf16.msra.mxu0 0
        %1676 = vmatprep.subr.bf16.mxu0 0
        %1677 = vmatpush1.bf16.msra.mxu0 0
        %1678 = vmatprep.subr.bf16.mxu0 0
        %1679 = vmatpush1.bf16.msra.mxu0 0
        %1680 = vmatprep.mubr.bf16.mxu0 0
        %1681 = vmatmul.mubr.bf16.gmra.mrb[0].mxu0 %v1646
        %v1682 = vpop.f32.mrb[0].mxu0
        %v1683 = vadd.f32 0.0, %v1682
        %v1684 = vpop.f32.mrb[0].mxu0
        %v1685 = vpop.f32.mrb[0].mxu0
        %v1686 = vadd.f32 0.0, %v1685
        %v1687 = vpop.f32.mrb[0].mxu0
        %1688 = vdwg.mxu0
        %v1689 = vld [vmem:[#allocation17] sm:$0x1]
        %v1691 = vlaneseq
        %v1692 = vshrl.u32 %v1691, 7
        %v1693 = vsub.s32 0, %v1692
        %v1694 = vrot.slane %v1689, %v1693
        %v1696 = vmul.f32 %v1683, %v1694
        %v1697 = vmul.f32 %v1686, %v1694
        %v1698 = vld [vmem:[#allocation19] sm:$0x1]
        %v1700 = vlaneseq
        %v1701 = vshrl.u32 %v1700, 7
        %v1702 = vsub.s32 0, %v1701
        %v1703 = vrot.slane %v1698, %v1702
        %v1705 = vadd.f32 %v1696, %v1703
        %v1706 = vadd.f32 %v1697, %v1703
        %v1707 = vadd.f32 %v1705, 3.0
        %v1708 = vadd.f32 %v1706, 3.0
        %v1709 = vmax.f32 %v1707, 0.0
        %v1710 = vmax.f32 %v1708, 0.0
        %v1711 = vmin.f32 %v1709, 6.0
        %v1712 = vmin.f32 %v1710, 6.0
        %v1713 = vmul.f32 %v1711, 0.16666667
        %v1714 = vmul.f32 %v1712, 0.16666667
        %v1715 = vmul.f32 %v1705, %v1713
        %v1716 = vmul.f32 %v1706, %v1714
        %v1717 = vlaneseq
        %v1718 = vshrl.u32 %v1717, 7
        %vm1719 = vcmp.ge.s32.totalorder %v1718, 1
        %vm1720 = vcmp.lt.s32.totalorder %v1718, 3
        %v1721 = vld [vmem:[#allocation20] sm:$0xff]
        %v1722 = vld [vmem:[#allocation20 + $0x8] sm:$0x1]
        %v1723 = vlaneseq
        %v1724 = vshrl.u32 %v1723, 7
        %v1725 = vsub.s32 4, %v1724
        %v1726 = vrot.slane %v1721, %v1725
        %v1727 = vmul.f32 %v1715, %v1726
        %v1728 = vmul.f32 %v1716, %v1726
        %v1730 = vrot.slane %v1716, 3
        %vm1733 = vcmask 1044480
        %v1734 = vrot.slane %v1715, 3
        %v1735 = vsel %vm1733, %v1734, %v1730
        %v1738 = vsel %vm1733, %v1730, %v1734
        %v1739 = vsel %vm1719, 1, 0
        %vm1740 = vcmp.eq.s32.totalorder %v1739, 1
        %v1742 = vcombine.high %v1738, %v1738
        %v1743 = vcombine.high %v1735, %v1735
        %v1746 = vsel %vm1740, %v1742, 0.0
        %v1747 = vsel %vm1740, %v1735, 0.0
        %v1748 = vsel %vm1740, %v1743, 0.0
        %v1749 = vlaneseq
        %v1750 = vshrl.u32 %v1749, 7
        %v1751 = vsub.s32 0, %v1750
        %v1752 = vrot.slane %v1721, %v1751
        %v1754 = vcombine.high %v1752, %v1752
        %v1756 = vmul.f32 %v1752, 0.0
        %v1757 = vmul.f32 %v1746, %v1754
        %v1758 = vmul.f32 %v1747, %v1752
        %v1759 = vmul.f32 %v1748, %v1754
        %v1764 = vcombine.low %v1756, %v1757
        %v1765 = vcombine.low %v1758, %v1759
        %v1768 = vadd.f32 %v1727, %v1764
        %v1769 = vadd.f32 %v1728, %v1765
        %v1770 = vrot.slane %v1716, 4
        %vm1772 = vcmask 1043456
        %v1773 = vrot.slane %v1715, 4
        %v1774 = vsel %vm1772, %v1773, %v1770
        %v1777 = vsel %vm1772, %v1770, %v1773
        %v1779 = vcombine.high %v1777, %v1777
        %v1780 = vcombine.high %v1774, %v1774
        %v1783 = vlaneseq
        %v1784 = vshrl.u32 %v1783, 7
        %v1785 = vsub.s32 1, %v1784
        %v1786 = vrot.slane %v1721, %v1785
        %v1788 = vcombine.high %v1786, %v1786
        %v1790 = vmul.f32 %v1786, 0.0
        %v1791 = vmul.f32 %v1779, %v1788
        %v1792 = vmul.f32 %v1774, %v1786
        %v1793 = vmul.f32 %v1780, %v1788
        %v1798 = vcombine.low %v1790, %v1791
        %v1799 = vcombine.low %v1792, %v1793
        %v1802 = vadd.f32 %v1768, %v1798
        %v1803 = vadd.f32 %v1769, %v1799
        %v1804 = vrot.slane %v1716, 5
        %vm1806 = vcmask 1042432
        %v1807 = vrot.slane %v1715, 5
        %v1808 = vsel %vm1806, %v1807, %v1804
        %v1811 = vsel %vm1806, %v1804, %v1807
        %v1812 = vsel %vm1720, 1, 0
        %vm1813 = vcmp.eq.s32.totalorder %v1812, 1
        %v1815 = vcombine.high %v1811, %v1811
        %v1816 = vcombine.high %v1808, %v1808
        %v1819 = vsel %vm1813, %v1815, 0.0
        %v1820 = vsel %vm1813, %v1808, 0.0
        %v1821 = vsel %vm1813, %v1816, 0.0
        %v1822 = vlaneseq
        %v1823 = vshrl.u32 %v1822, 7
        %v1824 = vsub.s32 2, %v1823
        %v1825 = vrot.slane %v1721, %v1824
        %v1827 = vcombine.high %v1825, %v1825
        %v1829 = vmul.f32 %v1825, 0.0
        %v1830 = vmul.f32 %v1819, %v1827
        %v1831 = vmul.f32 %v1820, %v1825
        %v1832 = vmul.f32 %v1821, %v1827
        %v1837 = vcombine.low %v1829, %v1830
        %v1838 = vcombine.low %v1831, %v1832
        %v1841 = vadd.f32 %v1802, %v1837
        %v1842 = vadd.f32 %v1803, %v1838
        %v1843 = vrot.slane %v1716, 7
        %vm1845 = vcmask 1040384
        %v1846 = vrot.slane %v1715, 7
        %v1847 = vsel %vm1845, %v1846, %v1843
        %v1850 = vsel %vm1845, %v1843, %v1846
        %v1852 = vcombine.high %v1850, %v1850
        %v1853 = vcombine.high %v1847, %v1847
        %v1856 = vsel %vm1740, %v1850, 0.0
        %v1857 = vsel %vm1740, %v1852, 0.0
        %v1858 = vsel %vm1740, %v1847, 0.0
        %v1859 = vsel %vm1740, %v1853, 0.0
        %v1860 = vlaneseq
        %v1861 = vshrl.u32 %v1860, 7
        %v1862 = vsub.s32 3, %v1861
        %v1863 = vrot.slane %v1721, %v1862
        %v1865 = vcombine.high %v1863, %v1863
        %v1867 = vmul.f32 %v1856, %v1863
        %v1868 = vmul.f32 %v1857, %v1865
        %v1869 = vmul.f32 %v1858, %v1863
        %v1870 = vmul.f32 %v1859, %v1865
        %v1875 = vcombine.low %v1867, %v1868
        %v1876 = vcombine.low %v1869, %v1870
        %v1879 = vadd.f32 %v1841, %v1875
        %v1880 = vadd.f32 %v1842, %v1876
        %vm1881 = vcmask 1046528
        %v1882 = vrot.slane %v1715, 1
        %v1883 = vrot.slane %v1716, 1
        %v1884 = vsel %vm1881, %v1882, %v1883
        %v1888 = vsel %vm1881, %v1883, %v1882
        %v1890 = vcombine.high %v1884, %v1884
        %v1891 = vcombine.high %v1888, %v1888
        %v1894 = vsel %vm1813, %v1884, 0.0
        %v1895 = vsel %vm1813, %v1890, 0.0
        %v1896 = vsel %vm1813, %v1888, 0.0
        %v1897 = vsel %vm1813, %v1891, 0.0
        %v1898 = vlaneseq
        %v1899 = vshrl.u32 %v1898, 7
        %v1900 = vsub.s32 5, %v1899
        %v1901 = vrot.slane %v1721, %v1900
        %v1903 = vcombine.high %v1901, %v1901
        %v1905 = vmul.f32 %v1894, %v1901
        %v1906 = vmul.f32 %v1895, %v1903
        %v1907 = vmul.f32 %v1896, %v1901
        %v1908 = vmul.f32 %v1897, %v1903
        %v1913 = vcombine.low %v1905, %v1906
        %v1914 = vcombine.low %v1907, %v1908
        %v1917 = vadd.f32 %v1879, %v1913
        %v1918 = vadd.f32 %v1880, %v1914
        %v1919 = vsel %vm1740, %v1738, 0.0
        %v1920 = vlaneseq
        %v1921 = vshrl.u32 %v1920, 7
        %v1922 = vsub.s32 6, %v1921
        %v1923 = vrot.slane %v1721, %v1922
        %v1925 = vcombine.high %v1923, %v1923
        %v1927 = vmul.f32 %v1747, %v1923
        %v1928 = vmul.f32 %v1748, %v1925
        %v1929 = vmul.f32 %v1919, %v1923
        %v1930 = vmul.f32 %v1925, 0.0
        %v1935 = vcombine.low %v1927, %v1928
        %v1936 = vcombine.low %v1929, %v1930
        %v1939 = vadd.f32 %v1917, %v1935
        %v1940 = vadd.f32 %v1918, %v1936
        %v1941 = vlaneseq
        %v1942 = vshrl.u32 %v1941, 7
        %v1943 = vsub.s32 7, %v1942
        %v1944 = vrot.slane %v1721, %v1943
        %v1946 = vcombine.high %v1944, %v1944
        %v1948 = vmul.f32 %v1774, %v1944
        %v1949 = vmul.f32 %v1780, %v1946
        %v1950 = vmul.f32 %v1777, %v1944
        %v1951 = vmul.f32 %v1946, 0.0
        %v1956 = vcombine.low %v1948, %v1949
        %v1957 = vcombine.low %v1950, %v1951
        %v1960 = vadd.f32 %v1939, %v1956
        %v1961 = vadd.f32 %v1940, %v1957
        %v1962 = vsel %vm1813, %v1811, 0.0
        %v1963 = vlaneseq
        %v1964 = vshrl.u32 %v1963, 7
        %v1965 = vsub.s32 0, %v1964
        %v1966 = vrot.slane %v1722, %v1965
        %v1968 = vcombine.high %v1966, %v1966
        %v1970 = vmul.f32 %v1820, %v1966
        %v1971 = vmul.f32 %v1821, %v1968
        %v1972 = vmul.f32 %v1962, %v1966
        %v1973 = vmul.f32 %v1968, 0.0
        %v1978 = vcombine.low %v1970, %v1971
        %v1979 = vcombine.low %v1972, %v1973
        %v1982 = vadd.f32 %v1960, %v1978
        %v1983 = vadd.f32 %v1961, %v1979
        %v1984 = vld [vmem:[#allocation22] sm:$0x1]
        %v1986 = vlaneseq
        %v1987 = vshrl.u32 %v1986, 7
        %v1988 = vsub.s32 0, %v1987
        %v1989 = vrot.slane %v1984, %v1988
        %v1991 = vmul.f32 %v1982, %v1989
        %v1992 = vmul.f32 %v1983, %v1989
        %v1993 = vld [vmem:[#allocation23] sm:$0x1]
        %v1995 = vlaneseq
        %v1996 = vshrl.u32 %v1995, 7
        %v1997 = vsub.s32 0, %v1996
        %v1998 = vrot.slane %v1993, %v1997
        %v2000 = vadd.f32 %v1991, %v1998
        %v2001 = vadd.f32 %v1992, %v1998
        %v2002 = vadd.f32 %v2000, 3.0
        %v2003 = vadd.f32 %v2001, 3.0
        %v2004 = vmax.f32 %v2002, 0.0
        %v2005 = vmax.f32 %v2003, 0.0
        %v2006 = vmin.f32 %v2004, 6.0
        %v2007 = vmin.f32 %v2005, 6.0
        %v2008 = vmul.f32 %v2006, 0.16666667
        %v2009 = vmul.f32 %v2007, 0.16666667
        %v2010 = vmul.f32 %v2000, %v2008
        %v2011 = vmul.f32 %v2001, %v2009
        %v2012 = vsel %vm944, %v2010, 0.0
        %v2013 = vsel %vm944, %v2011, 0.0
        %v2014 = vadd.f32 %v2012, %v2013
        %v2015 = vrot.slane %v2014, 4
        %v2016 = vadd.f32 %v2014, %v2015
        %v2017 = vrot.slane %v2016, 2
        %v2018 = vadd.f32 %v2016, %v2017
        %v2019 = vrot.slane %v2018, 1
        %v2020 = vadd.f32 %v2018, %v2019
        %v2021 = vrcp.pop 16.0
        %v2022 = vmul.f32 %v2020, %v2021
        %v2023 = vld [vmem:[#allocation25] sm:$0xff]
        %v2024 = vld [vmem:[#allocation25 + $0x8] sm:$0xff]
        %v2025 = vld [vmem:[#allocation26] sm:$0x1]
        %v2027 = vsel %vm944, %v2022, 0
        %2029 = vmatprep.subr.mxu0 0.0
        %2030 = vmatpush1.msra.mxu0 %v2023
        %2031 = vmatprep.subr.mxu0 0.0
        %2032 = vmatpush1.msra.mxu0 %v2024
        %2033 = vmatprep.subr.mxu0 0.0
        %2034 = vmatpush1.msra.mxu0 0.0
        %2035 = vmatprep.subr.mxu0 0.0
        %2036 = vmatpush1.msra.mxu0 0.0
        %2037 = vmatprep.subr.mxu0 0.0
        %2038 = vmatpush1.msra.mxu0 0.0
        %2039 = vmatprep.subr.mxu0 0.0
        %2040 = vmatpush1.msra.mxu0 0.0
        %2041 = vmatprep.subr.mxu0 0.0
        %2042 = vmatpush1.msra.mxu0 0.0
        %2043 = vmatprep.subr.mxu0 0.0
        %2044 = vmatpush1.msra.mxu0 0.0
        %2045 = vmatprep.subr.mxu0 0.0
        %2046 = vmatpush1.msra.mxu0 0.0
        %2047 = vmatprep.subr.mxu0 0.0
        %2048 = vmatpush1.msra.mxu0 0.0
        %2049 = vmatprep.subr.mxu0 0.0
        %2050 = vmatpush1.msra.mxu0 0.0
        %2051 = vmatprep.subr.mxu0 0.0
        %2052 = vmatpush1.msra.mxu0 0.0
        %2053 = vmatprep.subr.mxu0 0.0
        %2054 = vmatpush1.msra.mxu0 0.0
        %2055 = vmatprep.subr.mxu0 0.0
        %2056 = vmatpush1.msra.mxu0 0.0
        %2057 = vmatprep.subr.mxu0 0.0
        %2058 = vmatpush1.msra.mxu0 0.0
        %2059 = vmatprep.subr.mxu0 0.0
        %2060 = vmatpush1.msra.mxu0 0.0
        %2061 = vmatprep.subr.mxu0 0.0
        %2062 = vmatpush1.msra.mxu0 0.0
        %2063 = vmatprep.subr.mxu0 0.0
        %2064 = vmatpush1.msra.mxu0 0.0
        %2065 = vmatprep.subr.mxu0 0.0
        %2066 = vmatpush1.msra.mxu0 0.0
        %2067 = vmatprep.subr.mxu0 0.0
        %2068 = vmatpush1.msra.mxu0 0.0
        %2069 = vmatprep.subr.mxu0 0.0
        %2070 = vmatpush1.msra.mxu0 0.0
        %2071 = vmatprep.subr.mxu0 0.0
        %2072 = vmatpush1.msra.mxu0 0.0
        %2073 = vmatprep.subr.mxu0 0.0
        %2074 = vmatpush1.msra.mxu0 0.0
        %2075 = vmatprep.subr.mxu0 0.0
        %2076 = vmatpush1.msra.mxu0 0.0
        %2077 = vmatprep.subr.mxu0 0.0
        %2078 = vmatpush1.msra.mxu0 0.0
        %2079 = vmatprep.subr.mxu0 0.0
        %2080 = vmatpush1.msra.mxu0 0.0
        %2081 = vmatprep.subr.mxu0 0.0
        %2082 = vmatpush1.msra.mxu0 0.0
        %2083 = vmatprep.subr.mxu0 0.0
        %2084 = vmatpush1.msra.mxu0 0.0
        %2085 = vmatprep.subr.mxu0 0.0
        %2086 = vmatpush1.msra.mxu0 0.0
        %2087 = vmatprep.subr.mxu0 0.0
        %2088 = vmatpush1.msra.mxu0 0.0
        %2089 = vmatprep.subr.mxu0 0.0
        %2090 = vmatpush1.msra.mxu0 0.0
        %2091 = vmatprep.subr.mxu0 0.0
        %2092 = vmatpush1.msra.mxu0 0.0
        %2093 = vmatprep.mubr.f32.mxu0 0.0
        %2094 = vmatmul.mubr.f32.gmra.mrb[0].mxu0 %v2027
        %v2095 = vpop.f32.mrb[0].mxu0
        %v2096 = vadd.f32 %v2025, %v2095
        %v2097 = vpop.f32.mrb[0].mxu0
        %2098 = vdwg.mxu0
        %v2099 = vmax.f32 %v2096, 0.0
        %v2100 = vld [vmem:[#allocation28] sm:$0xf]
        %v2101 = vld [vmem:[#allocation29] sm:$0x1]
        %vm2102 = vcmask 31744
        %v2104 = vsel %vm2102, %v2099, 0
        %v2107 = vsel %vm1772, %v2100, 0
        %2109 = vmatprep.subr.mxu0 0.0
        %2110 = vmatpush1.msra.mxu0 %v2107
        %2111 = vmatprep.subr.mxu0 0.0
        %2112 = vmatpush1.msra.mxu0 0.0
        %2113 = vmatprep.subr.mxu0 0.0
        %2114 = vmatpush1.msra.mxu0 0.0
        %2115 = vmatprep.subr.mxu0 0.0
        %2116 = vmatpush1.msra.mxu0 0.0
        %2117 = vmatprep.subr.mxu0 0.0
        %2118 = vmatpush1.msra.mxu0 0.0
        %2119 = vmatprep.subr.mxu0 0.0
        %2120 = vmatpush1.msra.mxu0 0.0
        %2121 = vmatprep.subr.mxu0 0.0
        %2122 = vmatpush1.msra.mxu0 0.0
        %2123 = vmatprep.subr.mxu0 0.0
        %2124 = vmatpush1.msra.mxu0 0.0
        %2125 = vmatprep.subr.mxu0 0.0
        %2126 = vmatpush1.msra.mxu0 0.0
        %2127 = vmatprep.subr.mxu0 0.0
        %2128 = vmatpush1.msra.mxu0 0.0
        %2129 = vmatprep.subr.mxu0 0.0
        %2130 = vmatpush1.msra.mxu0 0.0
        %2131 = vmatprep.subr.mxu0 0.0
        %2132 = vmatpush1.msra.mxu0 0.0
        %2133 = vmatprep.subr.mxu0 0.0
        %2134 = vmatpush1.msra.mxu0 0.0
        %2135 = vmatprep.subr.mxu0 0.0
        %2136 = vmatpush1.msra.mxu0 0.0
        %2137 = vmatprep.subr.mxu0 0.0
        %2138 = vmatpush1.msra.mxu0 0.0
        %2139 = vmatprep.subr.mxu0 0.0
        %2140 = vmatpush1.msra.mxu0 0.0
        %2141 = vmatprep.subr.mxu0 0.0
        %2142 = vmatpush1.msra.mxu0 0.0
        %2143 = vmatprep.subr.mxu0 0.0
        %2144 = vmatpush1.msra.mxu0 0.0
        %2145 = vmatprep.subr.mxu0 0.0
        %2146 = vmatpush1.msra.mxu0 0.0
        %2147 = vmatprep.subr.mxu0 0.0
        %2148 = vmatpush1.msra.mxu0 0.0
        %2149 = vmatprep.subr.mxu0 0.0
        %2150 = vmatpush1.msra.mxu0 0.0
        %2151 = vmatprep.subr.mxu0 0.0
        %2152 = vmatpush1.msra.mxu0 0.0
        %2153 = vmatprep.subr.mxu0 0.0
        %2154 = vmatpush1.msra.mxu0 0.0
        %2155 = vmatprep.subr.mxu0 0.0
        %2156 = vmatpush1.msra.mxu0 0.0
        %2157 = vmatprep.subr.mxu0 0.0
        %2158 = vmatpush1.msra.mxu0 0.0
        %2159 = vmatprep.subr.mxu0 0.0
        %2160 = vmatpush1.msra.mxu0 0.0
        %2161 = vmatprep.subr.mxu0 0.0
        %2162 = vmatpush1.msra.mxu0 0.0
        %2163 = vmatprep.subr.mxu0 0.0
        %2164 = vmatpush1.msra.mxu0 0.0
        %2165 = vmatprep.subr.mxu0 0.0
        %2166 = vmatpush1.msra.mxu0 0.0
        %2167 = vmatprep.subr.mxu0 0.0
        %2168 = vmatpush1.msra.mxu0 0.0
        %2169 = vmatprep.subr.mxu0 0.0
        %2170 = vmatpush1.msra.mxu0 0.0
        %2171 = vmatprep.subr.mxu0 0.0
        %2172 = vmatpush1.msra.mxu0 0.0
        %2173 = vmatprep.mubr.f32.mxu0 0.0
        %2174 = vmatmul.mubr.f32.gmra.mrb[0].mxu0 %v2104
        %v2175 = vpop.f32.mrb[0].mxu0
        %v2176 = vadd.f32 %v2101, %v2175
        %v2177 = vpop.f32.mrb[0].mxu0
        %2178 = vdwg.mxu0
        %v2179 = vadd.f32 %v2176, 3.0
        %v2180 = vmax.f32 %v2179, 0.0
        %v2181 = vmin.f32 %v2180, 6.0
        %v2182 = vmul.f32 %v2181, 0.16666667
        %v2183 = vlaneseq
        %v2184 = vshrl.u32 %v2183, 7
        %v2185 = vsub.s32 0, %v2184
        %v2186 = vrot.slane %v2182, %v2185
        %v2187 = vmul.f32 %v2010, %v2186
        %v2188 = vmul.f32 %v2011, %v2186
        %v2189 = vpack.c.bf16 %v2188, %v2187
        %v2190 = vld [vmem:[#allocation31] sm:$0xf]
        %v2191 = vld [vmem:[#allocation31 + $0x4] sm:$0xf]
        %v2194 = vunpack.c.l.b16 %v2190
        %v2195 = vunpack.c.l.b16 %v2191
        %v2196 = vpack.c.b16 %v2195, %v2194
        %v2199 = vsel %vm944, %v2189, 0
        %2201 = vmatprep.subr.bf16.mxu0 0
        %2202 = vmatpush1.bf16.msra.mxu0 %v2196
        %2203 = vmatprep.subr.bf16.mxu0 0
        %2204 = vmatpush1.bf16.msra.mxu0 0
        %2205 = vmatprep.subr.bf16.mxu0 0
        %2206 = vmatpush1.bf16.msra.mxu0 0
        %2207 = vmatprep.subr.bf16.mxu0 0
        %2208 = vmatpush1.bf16.msra.mxu0 0
        %2209 = vmatprep.subr.bf16.mxu0 0
        %2210 = vmatpush1.bf16.msra.mxu0 0
        %2211 = vmatprep.subr.bf16.mxu0 0
        %2212 = vmatpush1.bf16.msra.mxu0 0
        %2213 = vmatprep.subr.bf16.mxu0 0
        %2214 = vmatpush1.bf16.msra.mxu0 0
        %2215 = vmatprep.subr.bf16.mxu0 0
        %2216 = vmatpush1.bf16.msra.mxu0 0
        %2217 = vmatprep.subr.bf16.mxu0 0
        %2218 = vmatpush1.bf16.msra.mxu0 0
        %2219 = vmatprep.subr.bf16.mxu0 0
        %2220 = vmatpush1.bf16.msra.mxu0 0
        %2221 = vmatprep.subr.bf16.mxu0 0
        %2222 = vmatpush1.bf16.msra.mxu0 0
        %2223 = vmatprep.subr.bf16.mxu0 0
        %2224 = vmatpush1.bf16.msra.mxu0 0
        %2225 = vmatprep.subr.bf16.mxu0 0
        %2226 = vmatpush1.bf16.msra.mxu0 0
        %2227 = vmatprep.subr.bf16.mxu0 0
        %2228 = vmatpush1.bf16.msra.mxu0 0
        %2229 = vmatprep.subr.bf16.mxu0 0
        %2230 = vmatpush1.bf16.msra.mxu0 0
        %2231 = vmatprep.subr.bf16.mxu0 0
        %2232 = vmatpush1.bf16.msra.mxu0 0
        %2233 = vmatprep.mubr.bf16.mxu0 0
        %2234 = vmatmul.mubr.bf16.gmra.mrb[0].mxu0 %v2199
        %v2235 = vpop.f32.mrb[0].mxu0
        %v2236 = vadd.f32 0.0, %v2235
        %v2237 = vpop.f32.mrb[0].mxu0
        %v2238 = vpop.f32.mrb[0].mxu0
        %v2239 = vadd.f32 0.0, %v2238
        %v2240 = vpop.f32.mrb[0].mxu0
        %2241 = vdwg.mxu0
        %v2242 = vld [vmem:[#allocation32] sm:$0x1]
        %v2244 = vlaneseq
        %v2245 = vshrl.u32 %v2244, 7
        %v2246 = vsub.s32 0, %v2245
        %v2247 = vrot.slane %v2242, %v2246
        %v2249 = vmul.f32 %v2236, %v2247
        %v2250 = vmul.f32 %v2239, %v2247
        %v2251 = vld [vmem:[#allocation34] sm:$0x1]
        %v2253 = vlaneseq
        %v2254 = vshrl.u32 %v2253, 7
        %v2255 = vsub.s32 0, %v2254
        %v2256 = vrot.slane %v2251, %v2255
        %v2258 = vadd.f32 %v2249, %v2256
        %v2259 = vadd.f32 %v2250, %v2256
        %2262 = vrot.lane.b32.xlu0 %v2258, 32
        %v2263 = vpop.permute.xlu0 %2262
        %2264 = vrot.lane.b32.xlu0 %v2259, 32
        %v2265 = vpop.permute.xlu0 %2264
        %v2268 = vadd.f32 %v1631, %v2263
        %v2269 = vadd.f32 %v1632, %v2265
        %2272 = vrot.lane.b32.xlu0 %v2268, 96
        %v2273 = vpop.permute.xlu0 %2272
        %2274 = vrot.lane.b32.xlu0 %v2269, 96
        %v2275 = vpop.permute.xlu0 %2274
        %2278 = vst.msk [vmem:[%s938] sm:$0xff] %vm944, %v2273
        %2279 = vst.msk [vmem:[%s938 + $0x8] sm:$0xff] %vm944, %v2275
        %s2280 = sand.u32 %s502, 1
        %s2281 = scalar_lea.sflag [#allocation4], %s2280
        %s2282 = sand.u32 %s502, 1
        %s2283 = smul.addr %s2282, 16
        %s2284 = scalar_lea.vmem [#allocation35], %s2283
        // Predicated region
        $region189: #{t2t_forward.4} parent=103 // pred_check
          %p2285 = pneg %p512
        $region190: #{t2t_forward.4} parent=103 // pred_check_branch
          %2287 = sbr.rel (%p2285) target = $region192
        $region191: #{t2t_forward.4} parent=103 // pred_region
          %s2289 = ssub.s32 256, 256
          %2290 = vsyncadd %s2281, %s2289
          %s2291 = smul.addr %s48, 2
          %s2292 = smul.addr %s2291, 128
          %s2293 = scalar_lea.hbm %s21, %s2292
          %s2294 = sshll.u32 %s2284, 4
          %s2295 = int_to_ptr.vmem [resolvable:$true] %s2294
          %2300 = dma.vmem_to_hbm [thread:$0]  %s2295, 256, %s2293, %s2281, 128, 128, 8
        $region192: #{t2t_forward.4} parent=103 // pred_fallthru
          _
      $region104: #{t2t_forward.4} parent=5 // pred_fallthru
        _
      %p2301 = scmp.le.s32.totalorder 2, %s43
      // Predicated region
      $region193: #{t2t_forward.4} parent=5 // pred_check
        %p2302 = pneg %p2301
      $region194: #{t2t_forward.4} parent=5 // pred_check_branch
        %2304 = sbr.rel (%p2302) target = $region196
      $region195: #{t2t_forward.4} parent=5 // pred_region
        %s2305 = ssub.s32 %s43, 2
        // Predicated region
        $region197: #{t2t_forward.4} parent=195 // pred_check
          %p2306 = pneg %p518
        $region198: #{t2t_forward.4} parent=195 // pred_check_branch
          %2308 = sbr.rel (%p2306) target = $region200
        $region199: #{t2t_forward.4} parent=195 // pred_region
          %s2309 = sand.u32 %s503, 1
          %s2310 = scalar_lea.sflag [#allocation4], %s2309
          %s2311 = sand.u32 %s503, 1
          %s2312 = smul.addr %s2311, 16
          %s2313 = scalar_lea.vmem [#allocation35], %s2312
          %2314 = dma.done %s2310, 256
        $region200: #{t2t_forward.4} parent=195 // pred_fallthru
          _
      $region196: #{t2t_forward.4} parent=5 // pred_fallthru
        _
    $region6: #{t2t_forward.4} parent=1 // loop_footer
      %s47 = sadd.s32 1, %s43
    $region7: #{t2t_forward.4} parent=1 // loop_footer_branch
      %42 = sbr.rel target = $region3
    $region8: #{t2t_forward.4} parent=1 // loop_exit
      _
    %2315 = vsyncpa [#allocation3], 1
    %s2316 = scalar_lea.sflag [#allocation3], 1
    %2317 = vsyncpa %s2316, 1
    %2318 = vsyncpa [#allocation6], 1
    %2319 = vsyncpa [#allocation9], 1
    %2320 = vsyncpa [#allocation12], 1
    %2321 = vsyncpa [#allocation15], 1
    %2322 = vsyncpa [#allocation18], 1
    %2323 = vsyncpa [#allocation21], 1
    %2324 = vsyncpa [#allocation24], 1
    %2325 = vsyncpa [#allocation27], 1
    %2326 = vsyncpa [#allocation30], 1
    %2327 = vsyncpa [#allocation33], 1
    %2328 = vsyncpa [#allocation4], 1
    %s2329 = scalar_lea.sflag [#allocation4], 1
    %2330 = vsyncpa %s2329, 1

</llo_original>
